<compile_context>
chip_gen: v6e
topology: v6e:2x2x1
jax: 0.10.0
libtpu: 0.0.40
codegen_flags: <defaults>
</compile_context>

<pallas_src>
import numpy as np

import jax
import jax.numpy as jnp
from jax.experimental import pallas as pl
from jax.experimental.pallas import tpu as pltpu

ACT_DTYPE = jnp.bfloat16  # MXU operand dtype (accumulation / biases / outputs stay f32)


# ----------------------------------------------------------------------------
# Host-side (numpy) construction of the per-layer spatial selection operators.
# Activations live in the kernel as [C, H*W] per image (lane-dense spatial dim).
# ----------------------------------------------------------------------------
def _flat(n, h, w, H, W):
    return (n * H + h) * W + w


def _bilinear_coords(n_out, n_in):
    c = (np.arange(n_out, dtype=np.float64) + 0.5) / 2.0 - 0.5
    c = np.clip(c, 0.0, n_in - 1)
    lo = np.floor(c).astype(np.int64)
    hi = np.minimum(lo + 1, n_in - 1)
    return lo, hi, c - lo


def _upsample_matrix(N, H, W):
    """Bilinear x2 (align_corners=False) as a dense operator [N*2H*2W, N*H*W]."""
    Ho, Wo = 2 * H, 2 * W
    ylo, yhi, yf = _bilinear_coords(Ho, H)
    xlo, xhi, xf = _bilinear_coords(Wo, W)
    U = np.zeros((N * Ho * Wo, N * H * W), np.float64)
    for n in range(N):
        for ho in range(Ho):
            for wo in range(Wo):
                r = _flat(n, ho, wo, Ho, Wo)
                for hy, wy in ((ylo[ho], 1.0 - yf[ho]), (yhi[ho], yf[ho])):
                    for hx, wx in ((xlo[wo], 1.0 - xf[wo]), (xhi[wo], xf[wo])):
                        U[r, _flat(n, int(hy), int(hx), H, W)] += wy * wx
    return U


def _conv_selection(N, H, W, k, stride, pad, upsample):
    """Per-tap selection matrices S: [k*k, M_out, M_in] (folds padding, stride, upsample).

    Entries are multiples of 1/16 (bilinear weights), hence exact in bf16.
    """
    if upsample:
        Hc, Wc = 2 * H, 2 * W
        U = _upsample_matrix(N, H, W)
    else:
        Hc, Wc = H, W
        U = None
    Ho = (Hc + 2 * pad - k) // stride + 1
    Wo = (Wc + 2 * pad - k) // stride + 1
    M_out, M_c, M_in = N * Ho * Wo, N * Hc * Wc, N * H * W
    S = np.zeros((k * k, M_out, M_in), np.float64)
    for dy in range(k):
        for dx in range(k):
            C = np.zeros((M_out, M_c), np.float64)
            for n in range(N):
                for ho in range(Ho):
                    hc = stride * ho + dy - pad
                    if hc < 0 or hc >= Hc:
                        continue
                    for wo in range(Wo):
                        wc = stride * wo + dx - pad
                        if wc < 0 or wc >= Wc:
                            continue
                        C[_flat(n, ho, wo, Ho, Wo), _flat(n, hc, wc, Hc, Wc)] = 1.0
            S[dy * k + dx] = C @ U if upsample else C
    return S, (Ho, Wo)


def _bias_col(b):
    return jnp.asarray(np.asarray(b, np.float32).reshape(-1, 1))


# ----------------------------------------------------------------------------
# The single fused kernel body (one grid step == one image).
# ----------------------------------------------------------------------------
def build_unet_kernel(num_encoders, num_residual_blocks, dec_cfg):
    n_dec = num_encoders

    def kernel(*refs):
        pos = 0

        def take(n):
            nonlocal pos
            out = refs[pos:pos + n]
            pos += n
            return out

        (x_ref,) = take(1)
        enc_refs = [take(3) for _ in range(num_encoders)]                 # (S_cat, b, Wt)
        res_refs = [take(5) for _ in range(num_residual_blocks)]          # (S_cat, b1, Wt1, b2, Wt2)
        dec_refs = [take(2 + n_mm + (1 if has_vpu else 0))                # (S_T, b, [w_pred], W parts...)
                    for (n_mm, has_vpu) in dec_cfg]
        pred_refs = [take(2) for _ in range(n_dec)]                       # (wp, bp)
        out_refs = list(take(n_dec))
        assert pos == len(refs), (pos, len(refs))

        def conv_s_first(x, s_ref, b_ref, w_ref, residual=None):
            """relu( sum_t W_t^T @ (x @ S_cat)[:, t-block] + b [+ residual] ).

            x: [Cin, M_in] bf16; s_ref: [M_in, taps*M_out]; w_ref: [taps, Cout, Cin].
            One big gather matmul (K = M_in), then 9 tiny weight matmuls.
            """
            taps = w_ref.shape[0]
            m_out = s_ref.shape[1] // taps
            y = jnp.dot(x, s_ref[...], preferred_element_type=jnp.float32).astype(ACT_DTYPE)
            acc = None
            for t in range(taps):
                z = jnp.dot(w_ref[t], y[:, t * m_out:(t + 1) * m_out],
                            preferred_element_type=jnp.float32)
                acc = z if acc is None else acc + z
            acc = acc + b_ref[...]                                        # single bias broadcast
            if residual is not None:
                acc = acc + residual.astype(jnp.float32)
            return jnp.maximum(acc, 0.0).astype(ACT_DTYPE)                # ff activation = relu

        def conv_w_first(mm_parts, mm_w_refs, vpu_pred, vpu_w_ref, s_ref, b_ref):
            """relu( sum_t (W_all @ concat(parts))[t-block, :] @ S_t^T + b ).

            mm_parts: bf16 [Cp, M_in]; mm_w_refs: [taps*Cout, Cp] (taps stacked on rows);
            vpu_pred: f32 [1, M_in] prev-prediction (rank-1 piece, applied on the VPU);
            s_ref: [taps, M_in, M_out]; b_ref: [Cout, 1].
            """
            taps = s_ref.shape[0]
            cout = b_ref.shape[0]
            z = None
            for part, w_ref in zip(mm_parts, mm_w_refs):                  # one tap-fused W matmul / part
                zp = jnp.dot(w_ref[...], part, preferred_element_type=jnp.float32)
                z = zp if z is None else z + zp
            if vpu_pred is not None:                                      # 1-channel concat piece: VPU
                z = z + vpu_w_ref[...] * vpu_pred
            acc = None
            for t in range(taps):                                         # spatial (upsample+pad) stage
                zt = z[t * cout:(t + 1) * cout, :].astype(ACT_DTYPE)
                yt = jnp.dot(zt, s_ref[t], preferred_element_type=jnp.float32)
                acc = yt if acc is None else acc + yt
            acc = acc + b_ref[...]
            return jnp.maximum(acc, 0.0).astype(ACT_DTYPE)

        x = x_ref[...]
        blocks = []
        for (s, b, wgt) in enc_refs:                                      # stride-2 conv + relu
            x = conv_s_first(x, s, b, wgt)
            blocks.append(x)

        for (s, b1, w1, b2, w2) in res_refs:                              # residual block
            inp = x
            x = conv_s_first(x, s, b1, w1)
            x = conv_s_first(x, s, b2, w2, residual=inp)                  # relu(conv2 + residual)

        prev_pred = None
        for i in range(n_dec):
            n_mm, has_vpu = dec_cfg[i]
            d = dec_refs[i]
            s, b = d[0], d[1]
            if has_vpu:
                vpu_w, mm_w = d[2], list(d[3:])
            else:
                vpu_w, mm_w = None, list(d[2:])
            block = blocks[num_encoders - i - 1]
            if i == 0:
                mm_parts = [x, block]
            elif has_vpu:
                mm_parts = [x, block]
            else:  # generic num_output_channels > 1: pred piece goes through the MXU
                mm_parts = [prev_pred.astype(ACT_DTYPE), x, block]
            x = conv_w_first(mm_parts, mm_w,
                             prev_pred if has_vpu else None, vpu_w, s, b)
            wp, bp = pred_refs[i]                                         # fused 1x1 prediction head
            p = jnp.dot(wp[...], x, preferred_element_type=jnp.float32) + bp[...]
            out_refs[i][...] = p                                          # final_activation = None
            prev_pred = p

    return kernel


# ----------------------------------------------------------------------------
# One-time parameter / operator preparation (host side, outside the jit).
# ----------------------------------------------------------------------------
def prepare_unet(params, *, height, width):
    num_encoders = len(params["encoders"])
    num_out = int(params["preds"][0]["w"].shape[0])
    flat, macs = [], 0
    h, w = height, width

    enc_ch = []
    for enc in params["encoders"]:                                        # stride-2 convs: S-first
        wnp = np.asarray(enc["w"], np.float32)
        cout, cin, k, _ = wnp.shape
        taps = k * k
        S, (h2, w2) = _conv_selection(1, h, w, k, 2, k // 2, upsample=False)
        m_in, m_out = h * w, h2 * w2
        s_cat = np.transpose(S, (2, 0, 1)).reshape(m_in, taps * m_out)    # hstack_t(S_t^T)
        wt = np.transpose(wnp, (2, 3, 0, 1)).reshape(taps, cout, cin)     # per-tap W_t^T
        flat += [jnp.asarray(s_cat, ACT_DTYPE), _bias_col(enc["b"]), jnp.asarray(wt, ACT_DTYPE)]
        macs += cin * m_in * taps * m_out + taps * cin * cout * m_out
        enc_ch.append(cout)
        h, w = h2, w2

    for rb in params["resblocks"]:                                        # residual blocks: S-first
        w1 = np.asarray(rb["w1"], np.float32)
        w2 = np.asarray(rb["w2"], np.float32)
        c, _, k, _ = w1.shape
        taps = k * k
        S, _ = _conv_selection(1, h, w, k, 1, k // 2, upsample=False)
        m = h * w
        s_cat = np.transpose(S, (2, 0, 1)).reshape(m, taps * m)
        wt1 = np.transpose(w1, (2, 3, 0, 1)).reshape(taps, c, c)
        wt2 = np.transpose(w2, (2, 3, 0, 1)).reshape(taps, c, c)
        flat += [jnp.asarray(s_cat, ACT_DTYPE),
                 _bias_col(rb["b1"]), jnp.asarray(wt1, ACT_DTYPE),
                 _bias_col(rb["b2"]), jnp.asarray(wt2, ACT_DTYPE)]
        macs += 2 * (c * m * taps * m + taps * c * c * m)

    dec_hw, dec_cfg = [], []
    cur_ch = enc_ch[-1]
    for i, dec in enumerate(params["decoders"]):                          # upsample x2 + conv: W-first
        wnp = np.asarray(dec["w"], np.float32)
        cout, cin_total, k, _ = wnp.shape
        taps = k * k
        S, (h2, w2) = _conv_selection(1, h, w, k, 1, k // 2, upsample=True)
        m_in, m_out = h * w, h2 * w2
        s_T = np.transpose(S, (0, 2, 1))                                  # [taps, M_in, M_out]
        block_ch = enc_ch[num_encoders - i - 1]
        pred_ch = 0 if i == 0 else num_out
        widths = ([] if i == 0 else [pred_ch]) + [cur_ch, block_ch]       # concat([pred, x, block])
        assert sum(widths) == cin_total, (widths, cin_total)
        parts, off = [], 0
        for c in widths:                                                  # split Cin per concat piece
            wp = wnp[:, off:off + c, :, :]
            parts.append(np.transpose(wp, (2, 3, 0, 1)).reshape(taps * cout, c))
            off += c
        refs = [jnp.asarray(s_T, ACT_DTYPE), _bias_col(dec["b"])]
        has_vpu = (i > 0 and num_out == 1)                                # rank-1 pred piece on VPU
        if has_vpu:
            refs.append(jnp.asarray(parts[0], jnp.float32))
            mm_parts = parts[1:]
        else:
            mm_parts = parts
        refs += [jnp.asarray(p, ACT_DTYPE) for p in mm_parts]
        flat += refs
        dec_cfg.append((len(mm_parts), has_vpu))
        macs += taps * cout * cin_total * m_in + taps * cout * m_in * m_out
        dec_hw.append((h2, w2))
        cur_ch = cout
        h, w = h2, w2

    for pr, (ph, pw) in zip(params["preds"], dec_hw):                     # 1x1 prediction heads
        wp = np.asarray(pr["w"], np.float32)[:, :, 0, 0]                  # [num_out, Cdec]
        flat += [jnp.asarray(wp, ACT_DTYPE),
                 jnp.asarray(np.asarray(pr["b"], np.float32).reshape(num_out, 1))]
        macs += num_out * wp.shape[1] * ph * pw

    param_bytes = int(sum(int(np.prod(a.shape)) * a.dtype.itemsize for a in flat))
    return flat, dec_hw, dec_cfg, num_out, macs, param_bytes


def _const_index_map(ndim):
    return lambda b: (0,) * ndim


def make_multires_unet(params, *, batch, num_bins, height, width):
    num_encoders = len(params["encoders"])
    num_res = len(params["resblocks"])
    flat, dec_hw, dec_cfg, num_out, macs, param_bytes = prepare_unet(
        params, height=height, width=width)
    kernel = build_unet_kernel(num_encoders, num_res, dec_cfg)

    HW = height * width
    # Input: [batch, num_bins, H*W]; each grid step (one image) sees a [num_bins, H*W] block.
    in_specs = [pl.BlockSpec((None, num_bins, HW), lambda b: (b, 0, 0))]
    # Weights / selection operators: full-array VMEM-resident blocks, same block every step.
    in_specs += [pl.BlockSpec(a.shape, _const_index_map(a.ndim)) for a in flat]

    out_shape = [jax.ShapeDtypeStruct((batch, num_out, h * w), jnp.float32) for (h, w) in dec_hw]
    out_specs = [pl.BlockSpec((None, num_out, h * w), lambda b: (b, 0, 0)) for (h, w) in dec_hw]

    out_bytes = sum(4 * num_out * h * w for (h, w) in dec_hw) * batch
    cost = pl.CostEstimate(
        flops=2 * macs * batch,
        transcendentals=0,
        bytes_accessed=2 * num_bins * HW * batch + param_bytes + out_bytes,
    )

    call = pl.pallas_call(
        kernel,
        grid=(batch,),                                                    # one image per program
        in_specs=in_specs,
        out_specs=out_specs,
        out_shape=out_shape,
        compiler_params=pltpu.CompilerParams(
            dimension_semantics=("parallel",),                            # megacore sharding on v7x
            vmem_limit_bytes=32 * 1024 * 1024,
        ),
        cost_estimate=cost,
    )

    @jax.jit
    def forward(x_nchw):
        # NCHW -> [N, C, H*W]; channels on sublanes, pixels (lane-dense) on lanes.
        x3d = x_nchw.reshape(batch, num_bins, HW).astype(ACT_DTYPE)
        preds = call(x3d, *flat)
        return [p.reshape(batch, num_out, h, w) for p, (h, w) in zip(preds, dec_hw)]

    return forward


# ----------------------------------------------------------------------------
# Deterministic parameter construction (same config / init as the module defaults used before):
# base_num_channels=8, num_encoders=2, num_residual_blocks=1, num_output_channels=1,
# skip_type='concat', norm=None, use_upsample_conv=True, num_bins=4, kernel_size=3,
# channel_multiplier=2, activations=['relu', None], final_activation=None.
# ----------------------------------------------------------------------------
def init_params(key, *, base_num_channels=8, num_encoders=2, num_residual_blocks=1,
                num_output_channels=1, num_bins=4, kernel_size=3, channel_multiplier=2):
    enc_in = [int(base_num_channels * channel_multiplier ** i) for i in range(num_encoders)]
    enc_out = [int(base_num_channels * channel_multiplier ** (i + 1)) for i in range(num_encoders)]
    max_ch = enc_out[-1]

    def conv_w(k, cout, cin, kh, kw, scale=0.1):
        return scale * jax.random.normal(k, (cout, cin, kh, kw), dtype=jnp.float32)

    keys = iter(jax.random.split(key, 64))
    params = {"encoders": [], "resblocks": [], "decoders": [], "preds": []}

    for i, (cin, cout) in enumerate(zip(enc_in, enc_out)):
        if i == 0:
            cin = num_bins
        params["encoders"].append({
            "w": conv_w(next(keys), cout, cin, kernel_size, kernel_size),
            "b": 0.01 * jax.random.normal(next(keys), (cout,), dtype=jnp.float32),
        })

    for _ in range(num_residual_blocks):
        params["resblocks"].append({
            "w1": conv_w(next(keys), max_ch, max_ch, 3, 3),
            "b1": 0.01 * jax.random.normal(next(keys), (max_ch,), dtype=jnp.float32),
            "w2": conv_w(next(keys), max_ch, max_ch, 3, 3),
            "b2": 0.01 * jax.random.normal(next(keys), (max_ch,), dtype=jnp.float32),
        })

    dec_in = list(reversed(enc_out))
    dec_out = list(reversed(enc_in))
    for i, (cin, cout) in enumerate(zip(dec_in, dec_out)):
        pred_ch = 0 if i == 0 else num_output_channels
        params["decoders"].append({
            "w": conv_w(next(keys), cout, 2 * cin + pred_ch, kernel_size, kernel_size),
            "b": 0.01 * jax.random.normal(next(keys), (cout,), dtype=jnp.float32),
        })
    for cout in dec_out:
        params["preds"].append({
            "w": conv_w(next(keys), num_output_channels, cout, 1, 1),
            "b": 0.01 * jax.random.normal(next(keys), (num_output_channels,), dtype=jnp.float32),
        })
    return params


if __name__ == "__main__":
    key = jax.random.PRNGKey(0)
    k_params, k_x = jax.random.split(key)

    params = init_params(k_params)
    x = jax.random.normal(k_x, (2, 4, 16, 16), dtype=jnp.float32)  # N x num_bins x H x W

    forward = make_multires_unet(params, batch=2, num_bins=4, height=16, width=16)
    preds = forward(x)
    preds = jax.block_until_ready(preds)

    # Expected multi-resolution prediction shapes: (2,1,8,8) and (2,1,16,16)
    expected = [(2, 1, 8, 8), (2, 1, 16, 16)]
    assert [tuple(p.shape) for p in preds] == expected, [p.shape for p in preds]
    assert all(bool(jnp.isfinite(p).all()) for p in preds)

    print("KERNEL_OK")
</pallas_src>

<mosaic_0001>
module attributes {stable_mosaic.version = 11 : i64} {
  func.func @kernel(%arg0: i32, %arg1: memref<1x4x256xbf16, #tpu.memory_space<vmem>>, %arg2: memref<256x576xbf16, #tpu.memory_space<vmem>>, %arg3: memref<16x1xf32, #tpu.memory_space<vmem>>, %arg4: memref<9x16x4xbf16, #tpu.memory_space<vmem>>, %arg5: memref<64x144xbf16, #tpu.memory_space<vmem>>, %arg6: memref<32x1xf32, #tpu.memory_space<vmem>>, %arg7: memref<9x32x16xbf16, #tpu.memory_space<vmem>>, %arg8: memref<16x144xbf16, #tpu.memory_space<vmem>>, %arg9: memref<32x1xf32, #tpu.memory_space<vmem>>, %arg10: memref<9x32x32xbf16, #tpu.memory_space<vmem>>, %arg11: memref<32x1xf32, #tpu.memory_space<vmem>>, %arg12: memref<9x32x32xbf16, #tpu.memory_space<vmem>>, %arg13: memref<9x16x64xbf16, #tpu.memory_space<vmem>>, %arg14: memref<16x1xf32, #tpu.memory_space<vmem>>, %arg15: memref<144x32xbf16, #tpu.memory_space<vmem>>, %arg16: memref<144x32xbf16, #tpu.memory_space<vmem>>, %arg17: memref<9x64x256xbf16, #tpu.memory_space<vmem>>, %arg18: memref<8x1xf32, #tpu.memory_space<vmem>>, %arg19: memref<72x1xf32, #tpu.memory_space<vmem>>, %arg20: memref<72x16xbf16, #tpu.memory_space<vmem>>, %arg21: memref<72x16xbf16, #tpu.memory_space<vmem>>, %arg22: memref<1x16xbf16, #tpu.memory_space<vmem>>, %arg23: memref<1x1xf32, #tpu.memory_space<vmem>>, %arg24: memref<1x8xbf16, #tpu.memory_space<vmem>>, %arg25: memref<1x1xf32, #tpu.memory_space<vmem>>, %arg26: memref<1x1x64xf32, #tpu.memory_space<vmem>>, %arg27: memref<1x1x256xf32, #tpu.memory_space<vmem>>) attributes {dimension_semantics = [#tpu.dimension_semantics<parallel>], iteration_bounds = array<i64: 2>, scalar_prefetch = 0 : i64, scratch_operands = 0 : i64, tpu.core_type = #tpu.core_type<tc>, window_params = [{transform_indices = @transform_0, window_bounds = array<i64: 1, 4, 256>}, {pipeline_mode = #tpu.pipeline_mode<synchronous>, transform_indices = @transform_1, window_bounds = array<i64: 256, 576>}, {pipeline_mode = #tpu.pipeline_mode<synchronous>, transform_indices = @transform_2, window_bounds = array<i64: 16, 1>}, {pipeline_mode = #tpu.pipeline_mode<synchronous>, transform_indices = @transform_3, window_bounds = array<i64: 9, 16, 4>}, {pipeline_mode = #tpu.pipeline_mode<synchronous>, transform_indices = @transform_4, window_bounds = array<i64: 64, 144>}, {pipeline_mode = #tpu.pipeline_mode<synchronous>, transform_indices = @transform_5, window_bounds = array<i64: 32, 1>}, {pipeline_mode = #tpu.pipeline_mode<synchronous>, transform_indices = @transform_6, window_bounds = array<i64: 9, 32, 16>}, {pipeline_mode = #tpu.pipeline_mode<synchronous>, transform_indices = @transform_7, window_bounds = array<i64: 16, 144>}, {pipeline_mode = #tpu.pipeline_mode<synchronous>, transform_indices = @transform_8, window_bounds = array<i64: 32, 1>}, {pipeline_mode = #tpu.pipeline_mode<synchronous>, transform_indices = @transform_9, window_bounds = array<i64: 9, 32, 32>}, {pipeline_mode = #tpu.pipeline_mode<synchronous>, transform_indices = @transform_10, window_bounds = array<i64: 32, 1>}, {pipeline_mode = #tpu.pipeline_mode<synchronous>, transform_indices = @transform_11, window_bounds = array<i64: 9, 32, 32>}, {pipeline_mode = #tpu.pipeline_mode<synchronous>, transform_indices = @transform_12, window_bounds = array<i64: 9, 16, 64>}, {pipeline_mode = #tpu.pipeline_mode<synchronous>, transform_indices = @transform_13, window_bounds = array<i64: 16, 1>}, {pipeline_mode = #tpu.pipeline_mode<synchronous>, transform_indices = @transform_14, window_bounds = array<i64: 144, 32>}, {pipeline_mode = #tpu.pipeline_mode<synchronous>, transform_indices = @transform_15, window_bounds = array<i64: 144, 32>}, {pipeline_mode = #tpu.pipeline_mode<synchronous>, transform_indices = @transform_16, window_bounds = array<i64: 9, 64, 256>}, {pipeline_mode = #tpu.pipeline_mode<synchronous>, transform_indices = @transform_17, window_bounds = array<i64: 8, 1>}, {pipeline_mode = #tpu.pipeline_mode<synchronous>, transform_indices = @transform_18, window_bounds = array<i64: 72, 1>}, {pipeline_mode = #tpu.pipeline_mode<synchronous>, transform_indices = @transform_19, window_bounds = array<i64: 72, 16>}, {pipeline_mode = #tpu.pipeline_mode<synchronous>, transform_indices = @transform_20, window_bounds = array<i64: 72, 16>}, {pipeline_mode = #tpu.pipeline_mode<synchronous>, transform_indices = @transform_21, window_bounds = array<i64: 1, 16>}, {pipeline_mode = #tpu.pipeline_mode<synchronous>, transform_indices = @transform_22, window_bounds = array<i64: 1, 1>}, {pipeline_mode = #tpu.pipeline_mode<synchronous>, transform_indices = @transform_23, window_bounds = array<i64: 1, 8>}, {pipeline_mode = #tpu.pipeline_mode<synchronous>, transform_indices = @transform_24, window_bounds = array<i64: 1, 1>}, {transform_indices = @transform_25, window_bounds = array<i64: 1, 1, 64>}, {transform_indices = @transform_26, window_bounds = array<i64: 1, 1, 256>}]} {
    %c0 = arith.constant 0 : index
    %c0_0 = arith.constant 0 : index
    %c0_1 = arith.constant 0 : index
    %0 = vector.load %arg1[%c0, %c0_0, %c0_1] : memref<1x4x256xbf16, #tpu.memory_space<vmem>>, vector<1x4x256xbf16>
    %1 = vector.shape_cast %0 : vector<1x4x256xbf16> to vector<4x256xbf16>
    %c0_2 = arith.constant 0 : index
    %c0_3 = arith.constant 0 : index
    %2 = vector.load %arg2[%c0_2, %c0_3] : memref<256x576xbf16, #tpu.memory_space<vmem>>, vector<256x576xbf16>
    %cst = arith.constant dense<0.000000e+00> : vector<4x576xf32>
    %3 = tpu.matmul %1, %2, %cst {dimension_numbers = #tpu.dot_dimension_numbers<[1], [0], [0], [1], [0, 0, 1, 1], [], []>} : vector<4x256xbf16>, vector<256x576xbf16>, vector<4x576xf32> -> vector<4x576xf32>
    %4 = arith.truncf %3 : vector<4x576xf32> to vector<4x576xbf16>
    %c0_4 = arith.constant 0 : index
    %c0_5 = arith.constant 0 : index
    %c0_6 = arith.constant 0 : index
    %5 = vector.load %arg4[%c0_4, %c0_5, %c0_6] : memref<9x16x4xbf16, #tpu.memory_space<vmem>>, vector<1x16x4xbf16>
    %6 = vector.shape_cast %5 : vector<1x16x4xbf16> to vector<16x4xbf16>
    %7 = vector.extract_strided_slice %4 {offsets = [0, 0], sizes = [4, 64], strides = [1, 1]} : vector<4x576xbf16> to vector<4x64xbf16>
    %cst_7 = arith.constant dense<0.000000e+00> : vector<16x64xf32>
    %8 = tpu.matmul %6, %7, %cst_7 {dimension_numbers = #tpu.dot_dimension_numbers<[1], [0], [0], [1], [0, 0, 1, 1], [], []>} : vector<16x4xbf16>, vector<4x64xbf16>, vector<16x64xf32> -> vector<16x64xf32>
    %c1 = arith.constant 1 : index
    %c0_8 = arith.constant 0 : index
    %c0_9 = arith.constant 0 : index
    %9 = vector.load %arg4[%c1, %c0_8, %c0_9] : memref<9x16x4xbf16, #tpu.memory_space<vmem>>, vector<1x16x4xbf16>
    %10 = vector.shape_cast %9 : vector<1x16x4xbf16> to vector<16x4xbf16>
    %11 = vector.extract_strided_slice %4 {offsets = [0, 64], sizes = [4, 64], strides = [1, 1]} : vector<4x576xbf16> to vector<4x64xbf16>
    %cst_10 = arith.constant dense<0.000000e+00> : vector<16x64xf32>
    %12 = tpu.matmul %10, %11, %cst_10 {dimension_numbers = #tpu.dot_dimension_numbers<[1], [0], [0], [1], [0, 0, 1, 1], [], []>} : vector<16x4xbf16>, vector<4x64xbf16>, vector<16x64xf32> -> vector<16x64xf32>
    %13 = arith.addf %8, %12 : vector<16x64xf32>
    %c2 = arith.constant 2 : index
    %c0_11 = arith.constant 0 : index
    %c0_12 = arith.constant 0 : index
    %14 = vector.load %arg4[%c2, %c0_11, %c0_12] : memref<9x16x4xbf16, #tpu.memory_space<vmem>>, vector<1x16x4xbf16>
    %15 = vector.shape_cast %14 : vector<1x16x4xbf16> to vector<16x4xbf16>
    %16 = vector.extract_strided_slice %4 {offsets = [0, 128], sizes = [4, 64], strides = [1, 1]} : vector<4x576xbf16> to vector<4x64xbf16>
    %cst_13 = arith.constant dense<0.000000e+00> : vector<16x64xf32>
    %17 = tpu.matmul %15, %16, %cst_13 {dimension_numbers = #tpu.dot_dimension_numbers<[1], [0], [0], [1], [0, 0, 1, 1], [], []>} : vector<16x4xbf16>, vector<4x64xbf16>, vector<16x64xf32> -> vector<16x64xf32>
    %18 = arith.addf %13, %17 : vector<16x64xf32>
    %c3 = arith.constant 3 : index
    %c0_14 = arith.constant 0 : index
    %c0_15 = arith.constant 0 : index
    %19 = vector.load %arg4[%c3, %c0_14, %c0_15] : memref<9x16x4xbf16, #tpu.memory_space<vmem>>, vector<1x16x4xbf16>
    %20 = vector.shape_cast %19 : vector<1x16x4xbf16> to vector<16x4xbf16>
    %21 = vector.extract_strided_slice %4 {offsets = [0, 192], sizes = [4, 64], strides = [1, 1]} : vector<4x576xbf16> to vector<4x64xbf16>
    %cst_16 = arith.constant dense<0.000000e+00> : vector<16x64xf32>
    %22 = tpu.matmul %20, %21, %cst_16 {dimension_numbers = #tpu.dot_dimension_numbers<[1], [0], [0], [1], [0, 0, 1, 1], [], []>} : vector<16x4xbf16>, vector<4x64xbf16>, vector<16x64xf32> -> vector<16x64xf32>
    %23 = arith.addf %18, %22 : vector<16x64xf32>
    %c4 = arith.constant 4 : index
    %c0_17 = arith.constant 0 : index
    %c0_18 = arith.constant 0 : index
    %24 = vector.load %arg4[%c4, %c0_17, %c0_18] : memref<9x16x4xbf16, #tpu.memory_space<vmem>>, vector<1x16x4xbf16>
    %25 = vector.shape_cast %24 : vector<1x16x4xbf16> to vector<16x4xbf16>
    %26 = vector.extract_strided_slice %4 {offsets = [0, 256], sizes = [4, 64], strides = [1, 1]} : vector<4x576xbf16> to vector<4x64xbf16>
    %cst_19 = arith.constant dense<0.000000e+00> : vector<16x64xf32>
    %27 = tpu.matmul %25, %26, %cst_19 {dimension_numbers = #tpu.dot_dimension_numbers<[1], [0], [0], [1], [0, 0, 1, 1], [], []>} : vector<16x4xbf16>, vector<4x64xbf16>, vector<16x64xf32> -> vector<16x64xf32>
    %28 = arith.addf %23, %27 : vector<16x64xf32>
    %c5 = arith.constant 5 : index
    %c0_20 = arith.constant 0 : index
    %c0_21 = arith.constant 0 : index
    %29 = vector.load %arg4[%c5, %c0_20, %c0_21] : memref<9x16x4xbf16, #tpu.memory_space<vmem>>, vector<1x16x4xbf16>
    %30 = vector.shape_cast %29 : vector<1x16x4xbf16> to vector<16x4xbf16>
    %31 = vector.extract_strided_slice %4 {offsets = [0, 320], sizes = [4, 64], strides = [1, 1]} : vector<4x576xbf16> to vector<4x64xbf16>
    %cst_22 = arith.constant dense<0.000000e+00> : vector<16x64xf32>
    %32 = tpu.matmul %30, %31, %cst_22 {dimension_numbers = #tpu.dot_dimension_numbers<[1], [0], [0], [1], [0, 0, 1, 1], [], []>} : vector<16x4xbf16>, vector<4x64xbf16>, vector<16x64xf32> -> vector<16x64xf32>
    %33 = arith.addf %28, %32 : vector<16x64xf32>
    %c6 = arith.constant 6 : index
    %c0_23 = arith.constant 0 : index
    %c0_24 = arith.constant 0 : index
    %34 = vector.load %arg4[%c6, %c0_23, %c0_24] : memref<9x16x4xbf16, #tpu.memory_space<vmem>>, vector<1x16x4xbf16>
    %35 = vector.shape_cast %34 : vector<1x16x4xbf16> to vector<16x4xbf16>
    %36 = vector.extract_strided_slice %4 {offsets = [0, 384], sizes = [4, 64], strides = [1, 1]} : vector<4x576xbf16> to vector<4x64xbf16>
    %cst_25 = arith.constant dense<0.000000e+00> : vector<16x64xf32>
    %37 = tpu.matmul %35, %36, %cst_25 {dimension_numbers = #tpu.dot_dimension_numbers<[1], [0], [0], [1], [0, 0, 1, 1], [], []>} : vector<16x4xbf16>, vector<4x64xbf16>, vector<16x64xf32> -> vector<16x64xf32>
    %38 = arith.addf %33, %37 : vector<16x64xf32>
    %c7 = arith.constant 7 : index
    %c0_26 = arith.constant 0 : index
    %c0_27 = arith.constant 0 : index
    %39 = vector.load %arg4[%c7, %c0_26, %c0_27] : memref<9x16x4xbf16, #tpu.memory_space<vmem>>, vector<1x16x4xbf16>
    %40 = vector.shape_cast %39 : vector<1x16x4xbf16> to vector<16x4xbf16>
    %41 = vector.extract_strided_slice %4 {offsets = [0, 448], sizes = [4, 64], strides = [1, 1]} : vector<4x576xbf16> to vector<4x64xbf16>
    %cst_28 = arith.constant dense<0.000000e+00> : vector<16x64xf32>
    %42 = tpu.matmul %40, %41, %cst_28 {dimension_numbers = #tpu.dot_dimension_numbers<[1], [0], [0], [1], [0, 0, 1, 1], [], []>} : vector<16x4xbf16>, vector<4x64xbf16>, vector<16x64xf32> -> vector<16x64xf32>
    %43 = arith.addf %38, %42 : vector<16x64xf32>
    %c8 = arith.constant 8 : index
    %c0_29 = arith.constant 0 : index
    %c0_30 = arith.constant 0 : index
    %44 = vector.load %arg4[%c8, %c0_29, %c0_30] : memref<9x16x4xbf16, #tpu.memory_space<vmem>>, vector<1x16x4xbf16>
    %45 = vector.shape_cast %44 : vector<1x16x4xbf16> to vector<16x4xbf16>
    %46 = vector.extract_strided_slice %4 {offsets = [0, 512], sizes = [4, 64], strides = [1, 1]} : vector<4x576xbf16> to vector<4x64xbf16>
    %cst_31 = arith.constant dense<0.000000e+00> : vector<16x64xf32>
    %47 = tpu.matmul %45, %46, %cst_31 {dimension_numbers = #tpu.dot_dimension_numbers<[1], [0], [0], [1], [0, 0, 1, 1], [], []>} : vector<16x4xbf16>, vector<4x64xbf16>, vector<16x64xf32> -> vector<16x64xf32>
    %48 = arith.addf %43, %47 : vector<16x64xf32>
    %c0_32 = arith.constant 0 : index
    %c0_33 = arith.constant 0 : index
    %49 = vector.load %arg3[%c0_32, %c0_33] : memref<16x1xf32, #tpu.memory_space<vmem>>, vector<16x1xf32>
    %50 = vector.broadcast %49 : vector<16x1xf32> to vector<16x64xf32>
    %51 = arith.addf %48, %50 : vector<16x64xf32>
    %cst_34 = arith.constant 0.000000e+00 : f32
    %52 = vector.broadcast %cst_34 : f32 to vector<16x64xf32>
    %53 = arith.maximumf %51, %52 : vector<16x64xf32>
    %54 = arith.truncf %53 : vector<16x64xf32> to vector<16x64xbf16>
    %c0_35 = arith.constant 0 : index
    %c0_36 = arith.constant 0 : index
    %55 = vector.load %arg5[%c0_35, %c0_36] : memref<64x144xbf16, #tpu.memory_space<vmem>>, vector<64x144xbf16>
    %cst_37 = arith.constant dense<0.000000e+00> : vector<16x144xf32>
    %56 = tpu.matmul %54, %55, %cst_37 {dimension_numbers = #tpu.dot_dimension_numbers<[1], [0], [0], [1], [0, 0, 1, 1], [], []>} : vector<16x64xbf16>, vector<64x144xbf16>, vector<16x144xf32> -> vector<16x144xf32>
    %57 = arith.truncf %56 : vector<16x144xf32> to vector<16x144xbf16>
    %c0_38 = arith.constant 0 : index
    %c0_39 = arith.constant 0 : index
    %c0_40 = arith.constant 0 : index
    %58 = vector.load %arg7[%c0_38, %c0_39, %c0_40] : memref<9x32x16xbf16, #tpu.memory_space<vmem>>, vector<1x32x16xbf16>
    %59 = vector.shape_cast %58 : vector<1x32x16xbf16> to vector<32x16xbf16>
    %60 = vector.extract_strided_slice %57 {offsets = [0, 0], sizes = [16, 16], strides = [1, 1]} : vector<16x144xbf16> to vector<16x16xbf16>
    %cst_41 = arith.constant dense<0.000000e+00> : vector<32x16xf32>
    %61 = tpu.matmul %59, %60, %cst_41 {dimension_numbers = #tpu.dot_dimension_numbers<[1], [0], [0], [1], [0, 0, 1, 1], [], []>} : vector<32x16xbf16>, vector<16x16xbf16>, vector<32x16xf32> -> vector<32x16xf32>
    %c1_42 = arith.constant 1 : index
    %c0_43 = arith.constant 0 : index
    %c0_44 = arith.constant 0 : index
    %62 = vector.load %arg7[%c1_42, %c0_43, %c0_44] : memref<9x32x16xbf16, #tpu.memory_space<vmem>>, vector<1x32x16xbf16>
    %63 = vector.shape_cast %62 : vector<1x32x16xbf16> to vector<32x16xbf16>
    %64 = vector.extract_strided_slice %57 {offsets = [0, 16], sizes = [16, 16], strides = [1, 1]} : vector<16x144xbf16> to vector<16x16xbf16>
    %cst_45 = arith.constant dense<0.000000e+00> : vector<32x16xf32>
    %65 = tpu.matmul %63, %64, %cst_45 {dimension_numbers = #tpu.dot_dimension_numbers<[1], [0], [0], [1], [0, 0, 1, 1], [], []>} : vector<32x16xbf16>, vector<16x16xbf16>, vector<32x16xf32> -> vector<32x16xf32>
    %66 = arith.addf %61, %65 : vector<32x16xf32>
    %c2_46 = arith.constant 2 : index
    %c0_47 = arith.constant 0 : index
    %c0_48 = arith.constant 0 : index
    %67 = vector.load %arg7[%c2_46, %c0_47, %c0_48] : memref<9x32x16xbf16, #tpu.memory_space<vmem>>, vector<1x32x16xbf16>
    %68 = vector.shape_cast %67 : vector<1x32x16xbf16> to vector<32x16xbf16>
    %69 = vector.extract_strided_slice %57 {offsets = [0, 32], sizes = [16, 16], strides = [1, 1]} : vector<16x144xbf16> to vector<16x16xbf16>
    %cst_49 = arith.constant dense<0.000000e+00> : vector<32x16xf32>
    %70 = tpu.matmul %68, %69, %cst_49 {dimension_numbers = #tpu.dot_dimension_numbers<[1], [0], [0], [1], [0, 0, 1, 1], [], []>} : vector<32x16xbf16>, vector<16x16xbf16>, vector<32x16xf32> -> vector<32x16xf32>
    %71 = arith.addf %66, %70 : vector<32x16xf32>
    %c3_50 = arith.constant 3 : index
    %c0_51 = arith.constant 0 : index
    %c0_52 = arith.constant 0 : index
    %72 = vector.load %arg7[%c3_50, %c0_51, %c0_52] : memref<9x32x16xbf16, #tpu.memory_space<vmem>>, vector<1x32x16xbf16>
    %73 = vector.shape_cast %72 : vector<1x32x16xbf16> to vector<32x16xbf16>
    %74 = vector.extract_strided_slice %57 {offsets = [0, 48], sizes = [16, 16], strides = [1, 1]} : vector<16x144xbf16> to vector<16x16xbf16>
    %cst_53 = arith.constant dense<0.000000e+00> : vector<32x16xf32>
    %75 = tpu.matmul %73, %74, %cst_53 {dimension_numbers = #tpu.dot_dimension_numbers<[1], [0], [0], [1], [0, 0, 1, 1], [], []>} : vector<32x16xbf16>, vector<16x16xbf16>, vector<32x16xf32> -> vector<32x16xf32>
    %76 = arith.addf %71, %75 : vector<32x16xf32>
    %c4_54 = arith.constant 4 : index
    %c0_55 = arith.constant 0 : index
    %c0_56 = arith.constant 0 : index
    %77 = vector.load %arg7[%c4_54, %c0_55, %c0_56] : memref<9x32x16xbf16, #tpu.memory_space<vmem>>, vector<1x32x16xbf16>
    %78 = vector.shape_cast %77 : vector<1x32x16xbf16> to vector<32x16xbf16>
    %79 = vector.extract_strided_slice %57 {offsets = [0, 64], sizes = [16, 16], strides = [1, 1]} : vector<16x144xbf16> to vector<16x16xbf16>
    %cst_57 = arith.constant dense<0.000000e+00> : vector<32x16xf32>
    %80 = tpu.matmul %78, %79, %cst_57 {dimension_numbers = #tpu.dot_dimension_numbers<[1], [0], [0], [1], [0, 0, 1, 1], [], []>} : vector<32x16xbf16>, vector<16x16xbf16>, vector<32x16xf32> -> vector<32x16xf32>
    %81 = arith.addf %76, %80 : vector<32x16xf32>
    %c5_58 = arith.constant 5 : index
    %c0_59 = arith.constant 0 : index
    %c0_60 = arith.constant 0 : index
    %82 = vector.load %arg7[%c5_58, %c0_59, %c0_60] : memref<9x32x16xbf16, #tpu.memory_space<vmem>>, vector<1x32x16xbf16>
    %83 = vector.shape_cast %82 : vector<1x32x16xbf16> to vector<32x16xbf16>
    %84 = vector.extract_strided_slice %57 {offsets = [0, 80], sizes = [16, 16], strides = [1, 1]} : vector<16x144xbf16> to vector<16x16xbf16>
    %cst_61 = arith.constant dense<0.000000e+00> : vector<32x16xf32>
    %85 = tpu.matmul %83, %84, %cst_61 {dimension_numbers = #tpu.dot_dimension_numbers<[1], [0], [0], [1], [0, 0, 1, 1], [], []>} : vector<32x16xbf16>, vector<16x16xbf16>, vector<32x16xf32> -> vector<32x16xf32>
    %86 = arith.addf %81, %85 : vector<32x16xf32>
    %c6_62 = arith.constant 6 : index
    %c0_63 = arith.constant 0 : index
    %c0_64 = arith.constant 0 : index
    %87 = vector.load %arg7[%c6_62, %c0_63, %c0_64] : memref<9x32x16xbf16, #tpu.memory_space<vmem>>, vector<1x32x16xbf16>
    %88 = vector.shape_cast %87 : vector<1x32x16xbf16> to vector<32x16xbf16>
    %89 = vector.extract_strided_slice %57 {offsets = [0, 96], sizes = [16, 16], strides = [1, 1]} : vector<16x144xbf16> to vector<16x16xbf16>
    %cst_65 = arith.constant dense<0.000000e+00> : vector<32x16xf32>
    %90 = tpu.matmul %88, %89, %cst_65 {dimension_numbers = #tpu.dot_dimension_numbers<[1], [0], [0], [1], [0, 0, 1, 1], [], []>} : vector<32x16xbf16>, vector<16x16xbf16>, vector<32x16xf32> -> vector<32x16xf32>
    %91 = arith.addf %86, %90 : vector<32x16xf32>
    %c7_66 = arith.constant 7 : index
    %c0_67 = arith.constant 0 : index
    %c0_68 = arith.constant 0 : index
    %92 = vector.load %arg7[%c7_66, %c0_67, %c0_68] : memref<9x32x16xbf16, #tpu.memory_space<vmem>>, vector<1x32x16xbf16>
    %93 = vector.shape_cast %92 : vector<1x32x16xbf16> to vector<32x16xbf16>
    %94 = vector.extract_strided_slice %57 {offsets = [0, 112], sizes = [16, 16], strides = [1, 1]} : vector<16x144xbf16> to vector<16x16xbf16>
    %cst_69 = arith.constant dense<0.000000e+00> : vector<32x16xf32>
    %95 = tpu.matmul %93, %94, %cst_69 {dimension_numbers = #tpu.dot_dimension_numbers<[1], [0], [0], [1], [0, 0, 1, 1], [], []>} : vector<32x16xbf16>, vector<16x16xbf16>, vector<32x16xf32> -> vector<32x16xf32>
    %96 = arith.addf %91, %95 : vector<32x16xf32>
    %c8_70 = arith.constant 8 : index
    %c0_71 = arith.constant 0 : index
    %c0_72 = arith.constant 0 : index
    %97 = vector.load %arg7[%c8_70, %c0_71, %c0_72] : memref<9x32x16xbf16, #tpu.memory_space<vmem>>, vector<1x32x16xbf16>
    %98 = vector.shape_cast %97 : vector<1x32x16xbf16> to vector<32x16xbf16>
    %99 = vector.extract_strided_slice %57 {offsets = [0, 128], sizes = [16, 16], strides = [1, 1]} : vector<16x144xbf16> to vector<16x16xbf16>
    %cst_73 = arith.constant dense<0.000000e+00> : vector<32x16xf32>
    %100 = tpu.matmul %98, %99, %cst_73 {dimension_numbers = #tpu.dot_dimension_numbers<[1], [0], [0], [1], [0, 0, 1, 1], [], []>} : vector<32x16xbf16>, vector<16x16xbf16>, vector<32x16xf32> -> vector<32x16xf32>
    %101 = arith.addf %96, %100 : vector<32x16xf32>
    %c0_74 = arith.constant 0 : index
    %c0_75 = arith.constant 0 : index
    %102 = vector.load %arg6[%c0_74, %c0_75] : memref<32x1xf32, #tpu.memory_space<vmem>>, vector<32x1xf32>
    %103 = vector.broadcast %102 : vector<32x1xf32> to vector<32x16xf32>
    %104 = arith.addf %101, %103 : vector<32x16xf32>
    %cst_76 = arith.constant 0.000000e+00 : f32
    %105 = vector.broadcast %cst_76 : f32 to vector<32x16xf32>
    %106 = arith.maximumf %104, %105 : vector<32x16xf32>
    %107 = arith.truncf %106 : vector<32x16xf32> to vector<32x16xbf16>
    %c0_77 = arith.constant 0 : index
    %c0_78 = arith.constant 0 : index
    %108 = vector.load %arg8[%c0_77, %c0_78] : memref<16x144xbf16, #tpu.memory_space<vmem>>, vector<16x144xbf16>
    %cst_79 = arith.constant dense<0.000000e+00> : vector<32x144xf32>
    %109 = tpu.matmul %107, %108, %cst_79 {dimension_numbers = #tpu.dot_dimension_numbers<[1], [0], [0], [1], [0, 0, 1, 1], [], []>} : vector<32x16xbf16>, vector<16x144xbf16>, vector<32x144xf32> -> vector<32x144xf32>
    %110 = arith.truncf %109 : vector<32x144xf32> to vector<32x144xbf16>
    %c0_80 = arith.constant 0 : index
    %c0_81 = arith.constant 0 : index
    %c0_82 = arith.constant 0 : index
    %111 = vector.load %arg10[%c0_80, %c0_81, %c0_82] : memref<9x32x32xbf16, #tpu.memory_space<vmem>>, vector<1x32x32xbf16>
    %112 = vector.shape_cast %111 : vector<1x32x32xbf16> to vector<32x32xbf16>
    %113 = vector.extract_strided_slice %110 {offsets = [0, 0], sizes = [32, 16], strides = [1, 1]} : vector<32x144xbf16> to vector<32x16xbf16>
    %cst_83 = arith.constant dense<0.000000e+00> : vector<32x16xf32>
    %114 = tpu.matmul %112, %113, %cst_83 {dimension_numbers = #tpu.dot_dimension_numbers<[1], [0], [0], [1], [0, 0, 1, 1], [], []>} : vector<32x32xbf16>, vector<32x16xbf16>, vector<32x16xf32> -> vector<32x16xf32>
    %c1_84 = arith.constant 1 : index
    %c0_85 = arith.constant 0 : index
    %c0_86 = arith.constant 0 : index
    %115 = vector.load %arg10[%c1_84, %c0_85, %c0_86] : memref<9x32x32xbf16, #tpu.memory_space<vmem>>, vector<1x32x32xbf16>
    %116 = vector.shape_cast %115 : vector<1x32x32xbf16> to vector<32x32xbf16>
    %117 = vector.extract_strided_slice %110 {offsets = [0, 16], sizes = [32, 16], strides = [1, 1]} : vector<32x144xbf16> to vector<32x16xbf16>
    %cst_87 = arith.constant dense<0.000000e+00> : vector<32x16xf32>
    %118 = tpu.matmul %116, %117, %cst_87 {dimension_numbers = #tpu.dot_dimension_numbers<[1], [0], [0], [1], [0, 0, 1, 1], [], []>} : vector<32x32xbf16>, vector<32x16xbf16>, vector<32x16xf32> -> vector<32x16xf32>
    %119 = arith.addf %114, %118 : vector<32x16xf32>
    %c2_88 = arith.constant 2 : index
    %c0_89 = arith.constant 0 : index
    %c0_90 = arith.constant 0 : index
    %120 = vector.load %arg10[%c2_88, %c0_89, %c0_90] : memref<9x32x32xbf16, #tpu.memory_space<vmem>>, vector<1x32x32xbf16>
    %121 = vector.shape_cast %120 : vector<1x32x32xbf16> to vector<32x32xbf16>
    %122 = vector.extract_strided_slice %110 {offsets = [0, 32], sizes = [32, 16], strides = [1, 1]} : vector<32x144xbf16> to vector<32x16xbf16>
    %cst_91 = arith.constant dense<0.000000e+00> : vector<32x16xf32>
    %123 = tpu.matmul %121, %122, %cst_91 {dimension_numbers = #tpu.dot_dimension_numbers<[1], [0], [0], [1], [0, 0, 1, 1], [], []>} : vector<32x32xbf16>, vector<32x16xbf16>, vector<32x16xf32> -> vector<32x16xf32>
    %124 = arith.addf %119, %123 : vector<32x16xf32>
    %c3_92 = arith.constant 3 : index
    %c0_93 = arith.constant 0 : index
    %c0_94 = arith.constant 0 : index
    %125 = vector.load %arg10[%c3_92, %c0_93, %c0_94] : memref<9x32x32xbf16, #tpu.memory_space<vmem>>, vector<1x32x32xbf16>
    %126 = vector.shape_cast %125 : vector<1x32x32xbf16> to vector<32x32xbf16>
    %127 = vector.extract_strided_slice %110 {offsets = [0, 48], sizes = [32, 16], strides = [1, 1]} : vector<32x144xbf16> to vector<32x16xbf16>
    %cst_95 = arith.constant dense<0.000000e+00> : vector<32x16xf32>
    %128 = tpu.matmul %126, %127, %cst_95 {dimension_numbers = #tpu.dot_dimension_numbers<[1], [0], [0], [1], [0, 0, 1, 1], [], []>} : vector<32x32xbf16>, vector<32x16xbf16>, vector<32x16xf32> -> vector<32x16xf32>
    %129 = arith.addf %124, %128 : vector<32x16xf32>
    %c4_96 = arith.constant 4 : index
    %c0_97 = arith.constant 0 : index
    %c0_98 = arith.constant 0 : index
    %130 = vector.load %arg10[%c4_96, %c0_97, %c0_98] : memref<9x32x32xbf16, #tpu.memory_space<vmem>>, vector<1x32x32xbf16>
    %131 = vector.shape_cast %130 : vector<1x32x32xbf16> to vector<32x32xbf16>
    %132 = vector.extract_strided_slice %110 {offsets = [0, 64], sizes = [32, 16], strides = [1, 1]} : vector<32x144xbf16> to vector<32x16xbf16>
    %cst_99 = arith.constant dense<0.000000e+00> : vector<32x16xf32>
    %133 = tpu.matmul %131, %132, %cst_99 {dimension_numbers = #tpu.dot_dimension_numbers<[1], [0], [0], [1], [0, 0, 1, 1], [], []>} : vector<32x32xbf16>, vector<32x16xbf16>, vector<32x16xf32> -> vector<32x16xf32>
    %134 = arith.addf %129, %133 : vector<32x16xf32>
    %c5_100 = arith.constant 5 : index
    %c0_101 = arith.constant 0 : index
    %c0_102 = arith.constant 0 : index
    %135 = vector.load %arg10[%c5_100, %c0_101, %c0_102] : memref<9x32x32xbf16, #tpu.memory_space<vmem>>, vector<1x32x32xbf16>
    %136 = vector.shape_cast %135 : vector<1x32x32xbf16> to vector<32x32xbf16>
    %137 = vector.extract_strided_slice %110 {offsets = [0, 80], sizes = [32, 16], strides = [1, 1]} : vector<32x144xbf16> to vector<32x16xbf16>
    %cst_103 = arith.constant dense<0.000000e+00> : vector<32x16xf32>
    %138 = tpu.matmul %136, %137, %cst_103 {dimension_numbers = #tpu.dot_dimension_numbers<[1], [0], [0], [1], [0, 0, 1, 1], [], []>} : vector<32x32xbf16>, vector<32x16xbf16>, vector<32x16xf32> -> vector<32x16xf32>
    %139 = arith.addf %134, %138 : vector<32x16xf32>
    %c6_104 = arith.constant 6 : index
    %c0_105 = arith.constant 0 : index
    %c0_106 = arith.constant 0 : index
    %140 = vector.load %arg10[%c6_104, %c0_105, %c0_106] : memref<9x32x32xbf16, #tpu.memory_space<vmem>>, vector<1x32x32xbf16>
    %141 = vector.shape_cast %140 : vector<1x32x32xbf16> to vector<32x32xbf16>
    %142 = vector.extract_strided_slice %110 {offsets = [0, 96], sizes = [32, 16], strides = [1, 1]} : vector<32x144xbf16> to vector<32x16xbf16>
    %cst_107 = arith.constant dense<0.000000e+00> : vector<32x16xf32>
    %143 = tpu.matmul %141, %142, %cst_107 {dimension_numbers = #tpu.dot_dimension_numbers<[1], [0], [0], [1], [0, 0, 1, 1], [], []>} : vector<32x32xbf16>, vector<32x16xbf16>, vector<32x16xf32> -> vector<32x16xf32>
    %144 = arith.addf %139, %143 : vector<32x16xf32>
    %c7_108 = arith.constant 7 : index
    %c0_109 = arith.constant 0 : index
    %c0_110 = arith.constant 0 : index
    %145 = vector.load %arg10[%c7_108, %c0_109, %c0_110] : memref<9x32x32xbf16, #tpu.memory_space<vmem>>, vector<1x32x32xbf16>
    %146 = vector.shape_cast %145 : vector<1x32x32xbf16> to vector<32x32xbf16>
    %147 = vector.extract_strided_slice %110 {offsets = [0, 112], sizes = [32, 16], strides = [1, 1]} : vector<32x144xbf16> to vector<32x16xbf16>
    %cst_111 = arith.constant dense<0.000000e+00> : vector<32x16xf32>
    %148 = tpu.matmul %146, %147, %cst_111 {dimension_numbers = #tpu.dot_dimension_numbers<[1], [0], [0], [1], [0, 0, 1, 1], [], []>} : vector<32x32xbf16>, vector<32x16xbf16>, vector<32x16xf32> -> vector<32x16xf32>
    %149 = arith.addf %144, %148 : vector<32x16xf32>
    %c8_112 = arith.constant 8 : index
    %c0_113 = arith.constant 0 : index
    %c0_114 = arith.constant 0 : index
    %150 = vector.load %arg10[%c8_112, %c0_113, %c0_114] : memref<9x32x32xbf16, #tpu.memory_space<vmem>>, vector<1x32x32xbf16>
    %151 = vector.shape_cast %150 : vector<1x32x32xbf16> to vector<32x32xbf16>
    %152 = vector.extract_strided_slice %110 {offsets = [0, 128], sizes = [32, 16], strides = [1, 1]} : vector<32x144xbf16> to vector<32x16xbf16>
    %cst_115 = arith.constant dense<0.000000e+00> : vector<32x16xf32>
    %153 = tpu.matmul %151, %152, %cst_115 {dimension_numbers = #tpu.dot_dimension_numbers<[1], [0], [0], [1], [0, 0, 1, 1], [], []>} : vector<32x32xbf16>, vector<32x16xbf16>, vector<32x16xf32> -> vector<32x16xf32>
    %154 = arith.addf %149, %153 : vector<32x16xf32>
    %c0_116 = arith.constant 0 : index
    %c0_117 = arith.constant 0 : index
    %155 = vector.load %arg9[%c0_116, %c0_117] : memref<32x1xf32, #tpu.memory_space<vmem>>, vector<32x1xf32>
    %156 = vector.broadcast %155 : vector<32x1xf32> to vector<32x16xf32>
    %157 = arith.addf %154, %156 : vector<32x16xf32>
    %cst_118 = arith.constant 0.000000e+00 : f32
    %158 = vector.broadcast %cst_118 : f32 to vector<32x16xf32>
    %159 = arith.maximumf %157, %158 : vector<32x16xf32>
    %160 = arith.truncf %159 : vector<32x16xf32> to vector<32x16xbf16>
    %c0_119 = arith.constant 0 : index
    %c0_120 = arith.constant 0 : index
    %161 = vector.load %arg8[%c0_119, %c0_120] : memref<16x144xbf16, #tpu.memory_space<vmem>>, vector<16x144xbf16>
    %cst_121 = arith.constant dense<0.000000e+00> : vector<32x144xf32>
    %162 = tpu.matmul %160, %161, %cst_121 {dimension_numbers = #tpu.dot_dimension_numbers<[1], [0], [0], [1], [0, 0, 1, 1], [], []>} : vector<32x16xbf16>, vector<16x144xbf16>, vector<32x144xf32> -> vector<32x144xf32>
    %163 = arith.truncf %162 : vector<32x144xf32> to vector<32x144xbf16>
    %c0_122 = arith.constant 0 : index
    %c0_123 = arith.constant 0 : index
    %c0_124 = arith.constant 0 : index
    %164 = vector.load %arg12[%c0_122, %c0_123, %c0_124] : memref<9x32x32xbf16, #tpu.memory_space<vmem>>, vector<1x32x32xbf16>
    %165 = vector.shape_cast %164 : vector<1x32x32xbf16> to vector<32x32xbf16>
    %166 = vector.extract_strided_slice %163 {offsets = [0, 0], sizes = [32, 16], strides = [1, 1]} : vector<32x144xbf16> to vector<32x16xbf16>
    %cst_125 = arith.constant dense<0.000000e+00> : vector<32x16xf32>
    %167 = tpu.matmul %165, %166, %cst_125 {dimension_numbers = #tpu.dot_dimension_numbers<[1], [0], [0], [1], [0, 0, 1, 1], [], []>} : vector<32x32xbf16>, vector<32x16xbf16>, vector<32x16xf32> -> vector<32x16xf32>
    %c1_126 = arith.constant 1 : index
    %c0_127 = arith.constant 0 : index
    %c0_128 = arith.constant 0 : index
    %168 = vector.load %arg12[%c1_126, %c0_127, %c0_128] : memref<9x32x32xbf16, #tpu.memory_space<vmem>>, vector<1x32x32xbf16>
    %169 = vector.shape_cast %168 : vector<1x32x32xbf16> to vector<32x32xbf16>
    %170 = vector.extract_strided_slice %163 {offsets = [0, 16], sizes = [32, 16], strides = [1, 1]} : vector<32x144xbf16> to vector<32x16xbf16>
    %cst_129 = arith.constant dense<0.000000e+00> : vector<32x16xf32>
    %171 = tpu.matmul %169, %170, %cst_129 {dimension_numbers = #tpu.dot_dimension_numbers<[1], [0], [0], [1], [0, 0, 1, 1], [], []>} : vector<32x32xbf16>, vector<32x16xbf16>, vector<32x16xf32> -> vector<32x16xf32>
    %172 = arith.addf %167, %171 : vector<32x16xf32>
    %c2_130 = arith.constant 2 : index
    %c0_131 = arith.constant 0 : index
    %c0_132 = arith.constant 0 : index
    %173 = vector.load %arg12[%c2_130, %c0_131, %c0_132] : memref<9x32x32xbf16, #tpu.memory_space<vmem>>, vector<1x32x32xbf16>
    %174 = vector.shape_cast %173 : vector<1x32x32xbf16> to vector<32x32xbf16>
    %175 = vector.extract_strided_slice %163 {offsets = [0, 32], sizes = [32, 16], strides = [1, 1]} : vector<32x144xbf16> to vector<32x16xbf16>
    %cst_133 = arith.constant dense<0.000000e+00> : vector<32x16xf32>
    %176 = tpu.matmul %174, %175, %cst_133 {dimension_numbers = #tpu.dot_dimension_numbers<[1], [0], [0], [1], [0, 0, 1, 1], [], []>} : vector<32x32xbf16>, vector<32x16xbf16>, vector<32x16xf32> -> vector<32x16xf32>
    %177 = arith.addf %172, %176 : vector<32x16xf32>
    %c3_134 = arith.constant 3 : index
    %c0_135 = arith.constant 0 : index
    %c0_136 = arith.constant 0 : index
    %178 = vector.load %arg12[%c3_134, %c0_135, %c0_136] : memref<9x32x32xbf16, #tpu.memory_space<vmem>>, vector<1x32x32xbf16>
    %179 = vector.shape_cast %178 : vector<1x32x32xbf16> to vector<32x32xbf16>
    %180 = vector.extract_strided_slice %163 {offsets = [0, 48], sizes = [32, 16], strides = [1, 1]} : vector<32x144xbf16> to vector<32x16xbf16>
    %cst_137 = arith.constant dense<0.000000e+00> : vector<32x16xf32>
    %181 = tpu.matmul %179, %180, %cst_137 {dimension_numbers = #tpu.dot_dimension_numbers<[1], [0], [0], [1], [0, 0, 1, 1], [], []>} : vector<32x32xbf16>, vector<32x16xbf16>, vector<32x16xf32> -> vector<32x16xf32>
    %182 = arith.addf %177, %181 : vector<32x16xf32>
    %c4_138 = arith.constant 4 : index
    %c0_139 = arith.constant 0 : index
    %c0_140 = arith.constant 0 : index
    %183 = vector.load %arg12[%c4_138, %c0_139, %c0_140] : memref<9x32x32xbf16, #tpu.memory_space<vmem>>, vector<1x32x32xbf16>
    %184 = vector.shape_cast %183 : vector<1x32x32xbf16> to vector<32x32xbf16>
    %185 = vector.extract_strided_slice %163 {offsets = [0, 64], sizes = [32, 16], strides = [1, 1]} : vector<32x144xbf16> to vector<32x16xbf16>
    %cst_141 = arith.constant dense<0.000000e+00> : vector<32x16xf32>
    %186 = tpu.matmul %184, %185, %cst_141 {dimension_numbers = #tpu.dot_dimension_numbers<[1], [0], [0], [1], [0, 0, 1, 1], [], []>} : vector<32x32xbf16>, vector<32x16xbf16>, vector<32x16xf32> -> vector<32x16xf32>
    %187 = arith.addf %182, %186 : vector<32x16xf32>
    %c5_142 = arith.constant 5 : index
    %c0_143 = arith.constant 0 : index
    %c0_144 = arith.constant 0 : index
    %188 = vector.load %arg12[%c5_142, %c0_143, %c0_144] : memref<9x32x32xbf16, #tpu.memory_space<vmem>>, vector<1x32x32xbf16>
    %189 = vector.shape_cast %188 : vector<1x32x32xbf16> to vector<32x32xbf16>
    %190 = vector.extract_strided_slice %163 {offsets = [0, 80], sizes = [32, 16], strides = [1, 1]} : vector<32x144xbf16> to vector<32x16xbf16>
    %cst_145 = arith.constant dense<0.000000e+00> : vector<32x16xf32>
    %191 = tpu.matmul %189, %190, %cst_145 {dimension_numbers = #tpu.dot_dimension_numbers<[1], [0], [0], [1], [0, 0, 1, 1], [], []>} : vector<32x32xbf16>, vector<32x16xbf16>, vector<32x16xf32> -> vector<32x16xf32>
    %192 = arith.addf %187, %191 : vector<32x16xf32>
    %c6_146 = arith.constant 6 : index
    %c0_147 = arith.constant 0 : index
    %c0_148 = arith.constant 0 : index
    %193 = vector.load %arg12[%c6_146, %c0_147, %c0_148] : memref<9x32x32xbf16, #tpu.memory_space<vmem>>, vector<1x32x32xbf16>
    %194 = vector.shape_cast %193 : vector<1x32x32xbf16> to vector<32x32xbf16>
    %195 = vector.extract_strided_slice %163 {offsets = [0, 96], sizes = [32, 16], strides = [1, 1]} : vector<32x144xbf16> to vector<32x16xbf16>
    %cst_149 = arith.constant dense<0.000000e+00> : vector<32x16xf32>
    %196 = tpu.matmul %194, %195, %cst_149 {dimension_numbers = #tpu.dot_dimension_numbers<[1], [0], [0], [1], [0, 0, 1, 1], [], []>} : vector<32x32xbf16>, vector<32x16xbf16>, vector<32x16xf32> -> vector<32x16xf32>
    %197 = arith.addf %192, %196 : vector<32x16xf32>
    %c7_150 = arith.constant 7 : index
    %c0_151 = arith.constant 0 : index
    %c0_152 = arith.constant 0 : index
    %198 = vector.load %arg12[%c7_150, %c0_151, %c0_152] : memref<9x32x32xbf16, #tpu.memory_space<vmem>>, vector<1x32x32xbf16>
    %199 = vector.shape_cast %198 : vector<1x32x32xbf16> to vector<32x32xbf16>
    %200 = vector.extract_strided_slice %163 {offsets = [0, 112], sizes = [32, 16], strides = [1, 1]} : vector<32x144xbf16> to vector<32x16xbf16>
    %cst_153 = arith.constant dense<0.000000e+00> : vector<32x16xf32>
    %201 = tpu.matmul %199, %200, %cst_153 {dimension_numbers = #tpu.dot_dimension_numbers<[1], [0], [0], [1], [0, 0, 1, 1], [], []>} : vector<32x32xbf16>, vector<32x16xbf16>, vector<32x16xf32> -> vector<32x16xf32>
    %202 = arith.addf %197, %201 : vector<32x16xf32>
    %c8_154 = arith.constant 8 : index
    %c0_155 = arith.constant 0 : index
    %c0_156 = arith.constant 0 : index
    %203 = vector.load %arg12[%c8_154, %c0_155, %c0_156] : memref<9x32x32xbf16, #tpu.memory_space<vmem>>, vector<1x32x32xbf16>
    %204 = vector.shape_cast %203 : vector<1x32x32xbf16> to vector<32x32xbf16>
    %205 = vector.extract_strided_slice %163 {offsets = [0, 128], sizes = [32, 16], strides = [1, 1]} : vector<32x144xbf16> to vector<32x16xbf16>
    %cst_157 = arith.constant dense<0.000000e+00> : vector<32x16xf32>
    %206 = tpu.matmul %204, %205, %cst_157 {dimension_numbers = #tpu.dot_dimension_numbers<[1], [0], [0], [1], [0, 0, 1, 1], [], []>} : vector<32x32xbf16>, vector<32x16xbf16>, vector<32x16xf32> -> vector<32x16xf32>
    %207 = arith.addf %202, %206 : vector<32x16xf32>
    %c0_158 = arith.constant 0 : index
    %c0_159 = arith.constant 0 : index
    %208 = vector.load %arg11[%c0_158, %c0_159] : memref<32x1xf32, #tpu.memory_space<vmem>>, vector<32x1xf32>
    %209 = vector.broadcast %208 : vector<32x1xf32> to vector<32x16xf32>
    %210 = arith.addf %207, %209 : vector<32x16xf32>
    %211 = arith.extf %107 : vector<32x16xbf16> to vector<32x16xf32>
    %212 = arith.addf %210, %211 : vector<32x16xf32>
    %cst_160 = arith.constant 0.000000e+00 : f32
    %213 = vector.broadcast %cst_160 : f32 to vector<32x16xf32>
    %214 = arith.maximumf %212, %213 : vector<32x16xf32>
    %215 = arith.truncf %214 : vector<32x16xf32> to vector<32x16xbf16>
    %c0_161 = arith.constant 0 : index
    %c0_162 = arith.constant 0 : index
    %216 = vector.load %arg15[%c0_161, %c0_162] : memref<144x32xbf16, #tpu.memory_space<vmem>>, vector<144x32xbf16>
    %cst_163 = arith.constant dense<0.000000e+00> : vector<144x16xf32>
    %217 = tpu.matmul %216, %215, %cst_163 {dimension_numbers = #tpu.dot_dimension_numbers<[1], [0], [0], [1], [0, 0, 1, 1], [], []>} : vector<144x32xbf16>, vector<32x16xbf16>, vector<144x16xf32> -> vector<144x16xf32>
    %c0_164 = arith.constant 0 : index
    %c0_165 = arith.constant 0 : index
    %218 = vector.load %arg16[%c0_164, %c0_165] : memref<144x32xbf16, #tpu.memory_space<vmem>>, vector<144x32xbf16>
    %cst_166 = arith.constant dense<0.000000e+00> : vector<144x16xf32>
    %219 = tpu.matmul %218, %107, %cst_166 {dimension_numbers = #tpu.dot_dimension_numbers<[1], [0], [0], [1], [0, 0, 1, 1], [], []>} : vector<144x32xbf16>, vector<32x16xbf16>, vector<144x16xf32> -> vector<144x16xf32>
    %220 = arith.addf %217, %219 : vector<144x16xf32>
    %221 = vector.extract_strided_slice %220 {offsets = [0, 0], sizes = [16, 16], strides = [1, 1]} : vector<144x16xf32> to vector<16x16xf32>
    %222 = arith.truncf %221 : vector<16x16xf32> to vector<16x16xbf16>
    %c0_167 = arith.constant 0 : index
    %c0_168 = arith.constant 0 : index
    %c0_169 = arith.constant 0 : index
    %223 = vector.load %arg13[%c0_167, %c0_168, %c0_169] : memref<9x16x64xbf16, #tpu.memory_space<vmem>>, vector<1x16x64xbf16>
    %224 = vector.shape_cast %223 : vector<1x16x64xbf16> to vector<16x64xbf16>
    %cst_170 = arith.constant dense<0.000000e+00> : vector<16x64xf32>
    %225 = tpu.matmul %222, %224, %cst_170 {dimension_numbers = #tpu.dot_dimension_numbers<[1], [0], [0], [1], [0, 0, 1, 1], [], []>} : vector<16x16xbf16>, vector<16x64xbf16>, vector<16x64xf32> -> vector<16x64xf32>
    %226 = vector.extract_strided_slice %220 {offsets = [16, 0], sizes = [16, 16], strides = [1, 1]} : vector<144x16xf32> to vector<16x16xf32>
    %227 = arith.truncf %226 : vector<16x16xf32> to vector<16x16xbf16>
    %c1_171 = arith.constant 1 : index
    %c0_172 = arith.constant 0 : index
    %c0_173 = arith.constant 0 : index
    %228 = vector.load %arg13[%c1_171, %c0_172, %c0_173] : memref<9x16x64xbf16, #tpu.memory_space<vmem>>, vector<1x16x64xbf16>
    %229 = vector.shape_cast %228 : vector<1x16x64xbf16> to vector<16x64xbf16>
    %cst_174 = arith.constant dense<0.000000e+00> : vector<16x64xf32>
    %230 = tpu.matmul %227, %229, %cst_174 {dimension_numbers = #tpu.dot_dimension_numbers<[1], [0], [0], [1], [0, 0, 1, 1], [], []>} : vector<16x16xbf16>, vector<16x64xbf16>, vector<16x64xf32> -> vector<16x64xf32>
    %231 = arith.addf %225, %230 : vector<16x64xf32>
    %232 = vector.extract_strided_slice %220 {offsets = [32, 0], sizes = [16, 16], strides = [1, 1]} : vector<144x16xf32> to vector<16x16xf32>
    %233 = arith.truncf %232 : vector<16x16xf32> to vector<16x16xbf16>
    %c2_175 = arith.constant 2 : index
    %c0_176 = arith.constant 0 : index
    %c0_177 = arith.constant 0 : index
    %234 = vector.load %arg13[%c2_175, %c0_176, %c0_177] : memref<9x16x64xbf16, #tpu.memory_space<vmem>>, vector<1x16x64xbf16>
    %235 = vector.shape_cast %234 : vector<1x16x64xbf16> to vector<16x64xbf16>
    %cst_178 = arith.constant dense<0.000000e+00> : vector<16x64xf32>
    %236 = tpu.matmul %233, %235, %cst_178 {dimension_numbers = #tpu.dot_dimension_numbers<[1], [0], [0], [1], [0, 0, 1, 1], [], []>} : vector<16x16xbf16>, vector<16x64xbf16>, vector<16x64xf32> -> vector<16x64xf32>
    %237 = arith.addf %231, %236 : vector<16x64xf32>
    %238 = vector.extract_strided_slice %220 {offsets = [48, 0], sizes = [16, 16], strides = [1, 1]} : vector<144x16xf32> to vector<16x16xf32>
    %239 = arith.truncf %238 : vector<16x16xf32> to vector<16x16xbf16>
    %c3_179 = arith.constant 3 : index
    %c0_180 = arith.constant 0 : index
    %c0_181 = arith.constant 0 : index
    %240 = vector.load %arg13[%c3_179, %c0_180, %c0_181] : memref<9x16x64xbf16, #tpu.memory_space<vmem>>, vector<1x16x64xbf16>
    %241 = vector.shape_cast %240 : vector<1x16x64xbf16> to vector<16x64xbf16>
    %cst_182 = arith.constant dense<0.000000e+00> : vector<16x64xf32>
    %242 = tpu.matmul %239, %241, %cst_182 {dimension_numbers = #tpu.dot_dimension_numbers<[1], [0], [0], [1], [0, 0, 1, 1], [], []>} : vector<16x16xbf16>, vector<16x64xbf16>, vector<16x64xf32> -> vector<16x64xf32>
    %243 = arith.addf %237, %242 : vector<16x64xf32>
    %244 = vector.extract_strided_slice %220 {offsets = [64, 0], sizes = [16, 16], strides = [1, 1]} : vector<144x16xf32> to vector<16x16xf32>
    %245 = arith.truncf %244 : vector<16x16xf32> to vector<16x16xbf16>
    %c4_183 = arith.constant 4 : index
    %c0_184 = arith.constant 0 : index
    %c0_185 = arith.constant 0 : index
    %246 = vector.load %arg13[%c4_183, %c0_184, %c0_185] : memref<9x16x64xbf16, #tpu.memory_space<vmem>>, vector<1x16x64xbf16>
    %247 = vector.shape_cast %246 : vector<1x16x64xbf16> to vector<16x64xbf16>
    %cst_186 = arith.constant dense<0.000000e+00> : vector<16x64xf32>
    %248 = tpu.matmul %245, %247, %cst_186 {dimension_numbers = #tpu.dot_dimension_numbers<[1], [0], [0], [1], [0, 0, 1, 1], [], []>} : vector<16x16xbf16>, vector<16x64xbf16>, vector<16x64xf32> -> vector<16x64xf32>
    %249 = arith.addf %243, %248 : vector<16x64xf32>
    %250 = vector.extract_strided_slice %220 {offsets = [80, 0], sizes = [16, 16], strides = [1, 1]} : vector<144x16xf32> to vector<16x16xf32>
    %251 = arith.truncf %250 : vector<16x16xf32> to vector<16x16xbf16>
    %c5_187 = arith.constant 5 : index
    %c0_188 = arith.constant 0 : index
    %c0_189 = arith.constant 0 : index
    %252 = vector.load %arg13[%c5_187, %c0_188, %c0_189] : memref<9x16x64xbf16, #tpu.memory_space<vmem>>, vector<1x16x64xbf16>
    %253 = vector.shape_cast %252 : vector<1x16x64xbf16> to vector<16x64xbf16>
    %cst_190 = arith.constant dense<0.000000e+00> : vector<16x64xf32>
    %254 = tpu.matmul %251, %253, %cst_190 {dimension_numbers = #tpu.dot_dimension_numbers<[1], [0], [0], [1], [0, 0, 1, 1], [], []>} : vector<16x16xbf16>, vector<16x64xbf16>, vector<16x64xf32> -> vector<16x64xf32>
    %255 = arith.addf %249, %254 : vector<16x64xf32>
    %256 = vector.extract_strided_slice %220 {offsets = [96, 0], sizes = [16, 16], strides = [1, 1]} : vector<144x16xf32> to vector<16x16xf32>
    %257 = arith.truncf %256 : vector<16x16xf32> to vector<16x16xbf16>
    %c6_191 = arith.constant 6 : index
    %c0_192 = arith.constant 0 : index
    %c0_193 = arith.constant 0 : index
    %258 = vector.load %arg13[%c6_191, %c0_192, %c0_193] : memref<9x16x64xbf16, #tpu.memory_space<vmem>>, vector<1x16x64xbf16>
    %259 = vector.shape_cast %258 : vector<1x16x64xbf16> to vector<16x64xbf16>
    %cst_194 = arith.constant dense<0.000000e+00> : vector<16x64xf32>
    %260 = tpu.matmul %257, %259, %cst_194 {dimension_numbers = #tpu.dot_dimension_numbers<[1], [0], [0], [1], [0, 0, 1, 1], [], []>} : vector<16x16xbf16>, vector<16x64xbf16>, vector<16x64xf32> -> vector<16x64xf32>
    %261 = arith.addf %255, %260 : vector<16x64xf32>
    %262 = vector.extract_strided_slice %220 {offsets = [112, 0], sizes = [16, 16], strides = [1, 1]} : vector<144x16xf32> to vector<16x16xf32>
    %263 = arith.truncf %262 : vector<16x16xf32> to vector<16x16xbf16>
    %c7_195 = arith.constant 7 : index
    %c0_196 = arith.constant 0 : index
    %c0_197 = arith.constant 0 : index
    %264 = vector.load %arg13[%c7_195, %c0_196, %c0_197] : memref<9x16x64xbf16, #tpu.memory_space<vmem>>, vector<1x16x64xbf16>
    %265 = vector.shape_cast %264 : vector<1x16x64xbf16> to vector<16x64xbf16>
    %cst_198 = arith.constant dense<0.000000e+00> : vector<16x64xf32>
    %266 = tpu.matmul %263, %265, %cst_198 {dimension_numbers = #tpu.dot_dimension_numbers<[1], [0], [0], [1], [0, 0, 1, 1], [], []>} : vector<16x16xbf16>, vector<16x64xbf16>, vector<16x64xf32> -> vector<16x64xf32>
    %267 = arith.addf %261, %266 : vector<16x64xf32>
    %268 = vector.extract_strided_slice %220 {offsets = [128, 0], sizes = [16, 16], strides = [1, 1]} : vector<144x16xf32> to vector<16x16xf32>
    %269 = arith.truncf %268 : vector<16x16xf32> to vector<16x16xbf16>
    %c8_199 = arith.constant 8 : index
    %c0_200 = arith.constant 0 : index
    %c0_201 = arith.constant 0 : index
    %270 = vector.load %arg13[%c8_199, %c0_200, %c0_201] : memref<9x16x64xbf16, #tpu.memory_space<vmem>>, vector<1x16x64xbf16>
    %271 = vector.shape_cast %270 : vector<1x16x64xbf16> to vector<16x64xbf16>
    %cst_202 = arith.constant dense<0.000000e+00> : vector<16x64xf32>
    %272 = tpu.matmul %269, %271, %cst_202 {dimension_numbers = #tpu.dot_dimension_numbers<[1], [0], [0], [1], [0, 0, 1, 1], [], []>} : vector<16x16xbf16>, vector<16x64xbf16>, vector<16x64xf32> -> vector<16x64xf32>
    %273 = arith.addf %267, %272 : vector<16x64xf32>
    %c0_203 = arith.constant 0 : index
    %c0_204 = arith.constant 0 : index
    %274 = vector.load %arg14[%c0_203, %c0_204] : memref<16x1xf32, #tpu.memory_space<vmem>>, vector<16x1xf32>
    %275 = vector.broadcast %274 : vector<16x1xf32> to vector<16x64xf32>
    %276 = arith.addf %273, %275 : vector<16x64xf32>
    %cst_205 = arith.constant 0.000000e+00 : f32
    %277 = vector.broadcast %cst_205 : f32 to vector<16x64xf32>
    %278 = arith.maximumf %276, %277 : vector<16x64xf32>
    %279 = arith.truncf %278 : vector<16x64xf32> to vector<16x64xbf16>
    %c0_206 = arith.constant 0 : index
    %c0_207 = arith.constant 0 : index
    %280 = vector.load %arg22[%c0_206, %c0_207] : memref<1x16xbf16, #tpu.memory_space<vmem>>, vector<1x16xbf16>
    %cst_208 = arith.constant dense<0.000000e+00> : vector<1x64xf32>
    %281 = tpu.matmul %280, %279, %cst_208 {dimension_numbers = #tpu.dot_dimension_numbers<[1], [0], [0], [1], [0, 0, 1, 1], [], []>} : vector<1x16xbf16>, vector<16x64xbf16>, vector<1x64xf32> -> vector<1x64xf32>
    %c0_209 = arith.constant 0 : index
    %c0_210 = arith.constant 0 : index
    %282 = vector.load %arg23[%c0_209, %c0_210] : memref<1x1xf32, #tpu.memory_space<vmem>>, vector<1x1xf32>
    %283 = vector.broadcast %282 : vector<1x1xf32> to vector<1x64xf32>
    %284 = arith.addf %281, %283 : vector<1x64xf32>
    %c0_211 = arith.constant 0 : index
    %c0_212 = arith.constant 0 : index
    %c0_213 = arith.constant 0 : index
    %285 = vector.load %arg26[%c0_211, %c0_212, %c0_213] : memref<1x1x64xf32, #tpu.memory_space<vmem>>, vector<1x1x64xf32>
    %286 = vector.shape_cast %285 : vector<1x1x64xf32> to vector<1x64xf32>
    %287 = vector.shape_cast %284 : vector<1x64xf32> to vector<1x1x64xf32>
    tpu.vector_store %arg26[%c0_211, %c0_212, %c0_213], %287 {strides = array<i32>} : memref<1x1x64xf32, #tpu.memory_space<vmem>>, vector<1x1x64xf32>,
    %c0_214 = arith.constant 0 : index
    %c0_215 = arith.constant 0 : index
    %288 = vector.load %arg20[%c0_214, %c0_215] : memref<72x16xbf16, #tpu.memory_space<vmem>>, vector<72x16xbf16>
    %cst_216 = arith.constant dense<0.000000e+00> : vector<72x64xf32>
    %289 = tpu.matmul %288, %279, %cst_216 {dimension_numbers = #tpu.dot_dimension_numbers<[1], [0], [0], [1], [0, 0, 1, 1], [], []>} : vector<72x16xbf16>, vector<16x64xbf16>, vector<72x64xf32> -> vector<72x64xf32>
    %c0_217 = arith.constant 0 : index
    %c0_218 = arith.constant 0 : index
    %290 = vector.load %arg21[%c0_217, %c0_218] : memref<72x16xbf16, #tpu.memory_space<vmem>>, vector<72x16xbf16>
    %cst_219 = arith.constant dense<0.000000e+00> : vector<72x64xf32>
    %291 = tpu.matmul %290, %54, %cst_219 {dimension_numbers = #tpu.dot_dimension_numbers<[1], [0], [0], [1], [0, 0, 1, 1], [], []>} : vector<72x16xbf16>, vector<16x64xbf16>, vector<72x64xf32> -> vector<72x64xf32>
    %292 = arith.addf %289, %291 : vector<72x64xf32>
    %c0_220 = arith.constant 0 : index
    %c0_221 = arith.constant 0 : index
    %293 = vector.load %arg19[%c0_220, %c0_221] : memref<72x1xf32, #tpu.memory_space<vmem>>, vector<72x1xf32>
    %294 = vector.broadcast %293 : vector<72x1xf32> to vector<72x64xf32>
    %295 = vector.broadcast %284 : vector<1x64xf32> to vector<72x64xf32>
    %296 = arith.mulf %294, %295 : vector<72x64xf32>
    %297 = arith.addf %292, %296 : vector<72x64xf32>
    %298 = vector.extract_strided_slice %297 {offsets = [0, 0], sizes = [8, 64], strides = [1, 1]} : vector<72x64xf32> to vector<8x64xf32>
    %299 = arith.truncf %298 : vector<8x64xf32> to vector<8x64xbf16>
    %c0_222 = arith.constant 0 : index
    %c0_223 = arith.constant 0 : index
    %c0_224 = arith.constant 0 : index
    %300 = vector.load %arg17[%c0_222, %c0_223, %c0_224] : memref<9x64x256xbf16, #tpu.memory_space<vmem>>, vector<1x64x256xbf16>
    %301 = vector.shape_cast %300 : vector<1x64x256xbf16> to vector<64x256xbf16>
    %cst_225 = arith.constant dense<0.000000e+00> : vector<8x256xf32>
    %302 = tpu.matmul %299, %301, %cst_225 {dimension_numbers = #tpu.dot_dimension_numbers<[1], [0], [0], [1], [0, 0, 1, 1], [], []>} : vector<8x64xbf16>, vector<64x256xbf16>, vector<8x256xf32> -> vector<8x256xf32>
    %303 = vector.extract_strided_slice %297 {offsets = [8, 0], sizes = [8, 64], strides = [1, 1]} : vector<72x64xf32> to vector<8x64xf32>
    %304 = arith.truncf %303 : vector<8x64xf32> to vector<8x64xbf16>
    %c1_226 = arith.constant 1 : index
    %c0_227 = arith.constant 0 : index
    %c0_228 = arith.constant 0 : index
    %305 = vector.load %arg17[%c1_226, %c0_227, %c0_228] : memref<9x64x256xbf16, #tpu.memory_space<vmem>>, vector<1x64x256xbf16>
    %306 = vector.shape_cast %305 : vector<1x64x256xbf16> to vector<64x256xbf16>
    %cst_229 = arith.constant dense<0.000000e+00> : vector<8x256xf32>
    %307 = tpu.matmul %304, %306, %cst_229 {dimension_numbers = #tpu.dot_dimension_numbers<[1], [0], [0], [1], [0, 0, 1, 1], [], []>} : vector<8x64xbf16>, vector<64x256xbf16>, vector<8x256xf32> -> vector<8x256xf32>
    %308 = arith.addf %302, %307 : vector<8x256xf32>
    %309 = vector.extract_strided_slice %297 {offsets = [16, 0], sizes = [8, 64], strides = [1, 1]} : vector<72x64xf32> to vector<8x64xf32>
    %310 = arith.truncf %309 : vector<8x64xf32> to vector<8x64xbf16>
    %c2_230 = arith.constant 2 : index
    %c0_231 = arith.constant 0 : index
    %c0_232 = arith.constant 0 : index
    %311 = vector.load %arg17[%c2_230, %c0_231, %c0_232] : memref<9x64x256xbf16, #tpu.memory_space<vmem>>, vector<1x64x256xbf16>
    %312 = vector.shape_cast %311 : vector<1x64x256xbf16> to vector<64x256xbf16>
    %cst_233 = arith.constant dense<0.000000e+00> : vector<8x256xf32>
    %313 = tpu.matmul %310, %312, %cst_233 {dimension_numbers = #tpu.dot_dimension_numbers<[1], [0], [0], [1], [0, 0, 1, 1], [], []>} : vector<8x64xbf16>, vector<64x256xbf16>, vector<8x256xf32> -> vector<8x256xf32>
    %314 = arith.addf %308, %313 : vector<8x256xf32>
    %315 = vector.extract_strided_slice %297 {offsets = [24, 0], sizes = [8, 64], strides = [1, 1]} : vector<72x64xf32> to vector<8x64xf32>
    %316 = arith.truncf %315 : vector<8x64xf32> to vector<8x64xbf16>
    %c3_234 = arith.constant 3 : index
    %c0_235 = arith.constant 0 : index
    %c0_236 = arith.constant 0 : index
    %317 = vector.load %arg17[%c3_234, %c0_235, %c0_236] : memref<9x64x256xbf16, #tpu.memory_space<vmem>>, vector<1x64x256xbf16>
    %318 = vector.shape_cast %317 : vector<1x64x256xbf16> to vector<64x256xbf16>
    %cst_237 = arith.constant dense<0.000000e+00> : vector<8x256xf32>
    %319 = tpu.matmul %316, %318, %cst_237 {dimension_numbers = #tpu.dot_dimension_numbers<[1], [0], [0], [1], [0, 0, 1, 1], [], []>} : vector<8x64xbf16>, vector<64x256xbf16>, vector<8x256xf32> -> vector<8x256xf32>
    %320 = arith.addf %314, %319 : vector<8x256xf32>
    %321 = vector.extract_strided_slice %297 {offsets = [32, 0], sizes = [8, 64], strides = [1, 1]} : vector<72x64xf32> to vector<8x64xf32>
    %322 = arith.truncf %321 : vector<8x64xf32> to vector<8x64xbf16>
    %c4_238 = arith.constant 4 : index
    %c0_239 = arith.constant 0 : index
    %c0_240 = arith.constant 0 : index
    %323 = vector.load %arg17[%c4_238, %c0_239, %c0_240] : memref<9x64x256xbf16, #tpu.memory_space<vmem>>, vector<1x64x256xbf16>
    %324 = vector.shape_cast %323 : vector<1x64x256xbf16> to vector<64x256xbf16>
    %cst_241 = arith.constant dense<0.000000e+00> : vector<8x256xf32>
    %325 = tpu.matmul %322, %324, %cst_241 {dimension_numbers = #tpu.dot_dimension_numbers<[1], [0], [0], [1], [0, 0, 1, 1], [], []>} : vector<8x64xbf16>, vector<64x256xbf16>, vector<8x256xf32> -> vector<8x256xf32>
    %326 = arith.addf %320, %325 : vector<8x256xf32>
    %327 = vector.extract_strided_slice %297 {offsets = [40, 0], sizes = [8, 64], strides = [1, 1]} : vector<72x64xf32> to vector<8x64xf32>
    %328 = arith.truncf %327 : vector<8x64xf32> to vector<8x64xbf16>
    %c5_242 = arith.constant 5 : index
    %c0_243 = arith.constant 0 : index
    %c0_244 = arith.constant 0 : index
    %329 = vector.load %arg17[%c5_242, %c0_243, %c0_244] : memref<9x64x256xbf16, #tpu.memory_space<vmem>>, vector<1x64x256xbf16>
    %330 = vector.shape_cast %329 : vector<1x64x256xbf16> to vector<64x256xbf16>
    %cst_245 = arith.constant dense<0.000000e+00> : vector<8x256xf32>
    %331 = tpu.matmul %328, %330, %cst_245 {dimension_numbers = #tpu.dot_dimension_numbers<[1], [0], [0], [1], [0, 0, 1, 1], [], []>} : vector<8x64xbf16>, vector<64x256xbf16>, vector<8x256xf32> -> vector<8x256xf32>
    %332 = arith.addf %326, %331 : vector<8x256xf32>
    %333 = vector.extract_strided_slice %297 {offsets = [48, 0], sizes = [8, 64], strides = [1, 1]} : vector<72x64xf32> to vector<8x64xf32>
    %334 = arith.truncf %333 : vector<8x64xf32> to vector<8x64xbf16>
    %c6_246 = arith.constant 6 : index
    %c0_247 = arith.constant 0 : index
    %c0_248 = arith.constant 0 : index
    %335 = vector.load %arg17[%c6_246, %c0_247, %c0_248] : memref<9x64x256xbf16, #tpu.memory_space<vmem>>, vector<1x64x256xbf16>
    %336 = vector.shape_cast %335 : vector<1x64x256xbf16> to vector<64x256xbf16>
    %cst_249 = arith.constant dense<0.000000e+00> : vector<8x256xf32>
    %337 = tpu.matmul %334, %336, %cst_249 {dimension_numbers = #tpu.dot_dimension_numbers<[1], [0], [0], [1], [0, 0, 1, 1], [], []>} : vector<8x64xbf16>, vector<64x256xbf16>, vector<8x256xf32> -> vector<8x256xf32>
    %338 = arith.addf %332, %337 : vector<8x256xf32>
    %339 = vector.extract_strided_slice %297 {offsets = [56, 0], sizes = [8, 64], strides = [1, 1]} : vector<72x64xf32> to vector<8x64xf32>
    %340 = arith.truncf %339 : vector<8x64xf32> to vector<8x64xbf16>
    %c7_250 = arith.constant 7 : index
    %c0_251 = arith.constant 0 : index
    %c0_252 = arith.constant 0 : index
    %341 = vector.load %arg17[%c7_250, %c0_251, %c0_252] : memref<9x64x256xbf16, #tpu.memory_space<vmem>>, vector<1x64x256xbf16>
    %342 = vector.shape_cast %341 : vector<1x64x256xbf16> to vector<64x256xbf16>
    %cst_253 = arith.constant dense<0.000000e+00> : vector<8x256xf32>
    %343 = tpu.matmul %340, %342, %cst_253 {dimension_numbers = #tpu.dot_dimension_numbers<[1], [0], [0], [1], [0, 0, 1, 1], [], []>} : vector<8x64xbf16>, vector<64x256xbf16>, vector<8x256xf32> -> vector<8x256xf32>
    %344 = arith.addf %338, %343 : vector<8x256xf32>
    %345 = vector.extract_strided_slice %297 {offsets = [64, 0], sizes = [8, 64], strides = [1, 1]} : vector<72x64xf32> to vector<8x64xf32>
    %346 = arith.truncf %345 : vector<8x64xf32> to vector<8x64xbf16>
    %c8_254 = arith.constant 8 : index
    %c0_255 = arith.constant 0 : index
    %c0_256 = arith.constant 0 : index
    %347 = vector.load %arg17[%c8_254, %c0_255, %c0_256] : memref<9x64x256xbf16, #tpu.memory_space<vmem>>, vector<1x64x256xbf16>
    %348 = vector.shape_cast %347 : vector<1x64x256xbf16> to vector<64x256xbf16>
    %cst_257 = arith.constant dense<0.000000e+00> : vector<8x256xf32>
    %349 = tpu.matmul %346, %348, %cst_257 {dimension_numbers = #tpu.dot_dimension_numbers<[1], [0], [0], [1], [0, 0, 1, 1], [], []>} : vector<8x64xbf16>, vector<64x256xbf16>, vector<8x256xf32> -> vector<8x256xf32>
    %350 = arith.addf %344, %349 : vector<8x256xf32>
    %c0_258 = arith.constant 0 : index
    %c0_259 = arith.constant 0 : index
    %351 = vector.load %arg18[%c0_258, %c0_259] : memref<8x1xf32, #tpu.memory_space<vmem>>, vector<8x1xf32>
    %352 = vector.broadcast %351 : vector<8x1xf32> to vector<8x256xf32>
    %353 = arith.addf %350, %352 : vector<8x256xf32>
    %cst_260 = arith.constant 0.000000e+00 : f32
    %354 = vector.broadcast %cst_260 : f32 to vector<8x256xf32>
    %355 = arith.maximumf %353, %354 : vector<8x256xf32>
    %356 = arith.truncf %355 : vector<8x256xf32> to vector<8x256xbf16>
    %c0_261 = arith.constant 0 : index
    %c0_262 = arith.constant 0 : index
    %357 = vector.load %arg24[%c0_261, %c0_262] : memref<1x8xbf16, #tpu.memory_space<vmem>>, vector<1x8xbf16>
    %cst_263 = arith.constant dense<0.000000e+00> : vector<1x256xf32>
    %358 = tpu.matmul %357, %356, %cst_263 {dimension_numbers = #tpu.dot_dimension_numbers<[1], [0], [0], [1], [0, 0, 1, 1], [], []>} : vector<1x8xbf16>, vector<8x256xbf16>, vector<1x256xf32> -> vector<1x256xf32>
    %c0_264 = arith.constant 0 : index
    %c0_265 = arith.constant 0 : index
    %359 = vector.load %arg25[%c0_264, %c0_265] : memref<1x1xf32, #tpu.memory_space<vmem>>, vector<1x1xf32>
    %360 = vector.broadcast %359 : vector<1x1xf32> to vector<1x256xf32>
    %361 = arith.addf %358, %360 : vector<1x256xf32>
    %c0_266 = arith.constant 0 : index
    %c0_267 = arith.constant 0 : index
    %c0_268 = arith.constant 0 : index
    %362 = vector.load %arg27[%c0_266, %c0_267, %c0_268] : memref<1x1x256xf32, #tpu.memory_space<vmem>>, vector<1x1x256xf32>
    %363 = vector.shape_cast %362 : vector<1x1x256xf32> to vector<1x256xf32>
    %364 = vector.shape_cast %361 : vector<1x256xf32> to vector<1x1x256xf32>
    tpu.vector_store %arg27[%c0_266, %c0_267, %c0_268], %364 {strides = array<i32>} : memref<1x1x256xf32, #tpu.memory_space<vmem>>, vector<1x1x256xf32>,
    return
  }
  func.func @transform_0(%arg0: i32) -> (i32, i32, i32) {
    %c0_i32 = arith.constant 0 : i32
    %c0_i32_0 = arith.constant 0 : i32
    %c0_i32_1 = arith.constant 0 : i32
    return %arg0, %c0_i32, %c0_i32_0 : i32, i32, i32
  }
  func.func @transform_1(%arg0: i32) -> (i32, i32) {
    %c0_i32 = arith.constant 0 : i32
    %c0_i32_0 = arith.constant 0 : i32
    %c0_i32_1 = arith.constant 0 : i32
    return %c0_i32, %c0_i32_0 : i32, i32
  }
  func.func @transform_2(%arg0: i32) -> (i32, i32) {
    %c0_i32 = arith.constant 0 : i32
    %c0_i32_0 = arith.constant 0 : i32
    %c0_i32_1 = arith.constant 0 : i32
    return %c0_i32, %c0_i32_0 : i32, i32
  }
  func.func @transform_3(%arg0: i32) -> (i32, i32, i32) {
    %c0_i32 = arith.constant 0 : i32
    %c0_i32_0 = arith.constant 0 : i32
    %c0_i32_1 = arith.constant 0 : i32
    %c0_i32_2 = arith.constant 0 : i32
    return %c0_i32, %c0_i32_0, %c0_i32_1 : i32, i32, i32
  }
  func.func @transform_4(%arg0: i32) -> (i32, i32) {
    %c0_i32 = arith.constant 0 : i32
    %c0_i32_0 = arith.constant 0 : i32
    %c0_i32_1 = arith.constant 0 : i32
    return %c0_i32, %c0_i32_0 : i32, i32
  }
  func.func @transform_5(%arg0: i32) -> (i32, i32) {
    %c0_i32 = arith.constant 0 : i32
    %c0_i32_0 = arith.constant 0 : i32
    %c0_i32_1 = arith.constant 0 : i32
    return %c0_i32, %c0_i32_0 : i32, i32
  }
  func.func @transform_6(%arg0: i32) -> (i32, i32, i32) {
    %c0_i32 = arith.constant 0 : i32
    %c0_i32_0 = arith.constant 0 : i32
    %c0_i32_1 = arith.constant 0 : i32
    %c0_i32_2 = arith.constant 0 : i32
    return %c0_i32, %c0_i32_0, %c0_i32_1 : i32, i32, i32
  }
  func.func @transform_7(%arg0: i32) -> (i32, i32) {
    %c0_i32 = arith.constant 0 : i32
    %c0_i32_0 = arith.constant 0 : i32
    %c0_i32_1 = arith.constant 0 : i32
    return %c0_i32, %c0_i32_0 : i32, i32
  }
  func.func @transform_8(%arg0: i32) -> (i32, i32) {
    %c0_i32 = arith.constant 0 : i32
    %c0_i32_0 = arith.constant 0 : i32
    %c0_i32_1 = arith.constant 0 : i32
    return %c0_i32, %c0_i32_0 : i32, i32
  }
  func.func @transform_9(%arg0: i32) -> (i32, i32, i32) {
    %c0_i32 = arith.constant 0 : i32
    %c0_i32_0 = arith.constant 0 : i32
    %c0_i32_1 = arith.constant 0 : i32
    %c0_i32_2 = arith.constant 0 : i32
    return %c0_i32, %c0_i32_0, %c0_i32_1 : i32, i32, i32
  }
  func.func @transform_10(%arg0: i32) -> (i32, i32) {
    %c0_i32 = arith.constant 0 : i32
    %c0_i32_0 = arith.constant 0 : i32
    %c0_i32_1 = arith.constant 0 : i32
    return %c0_i32, %c0_i32_0 : i32, i32
  }
  func.func @transform_11(%arg0: i32) -> (i32, i32, i32) {
    %c0_i32 = arith.constant 0 : i32
    %c0_i32_0 = arith.constant 0 : i32
    %c0_i32_1 = arith.constant 0 : i32
    %c0_i32_2 = arith.constant 0 : i32
    return %c0_i32, %c0_i32_0, %c0_i32_1 : i32, i32, i32
  }
  func.func @transform_12(%arg0: i32) -> (i32, i32, i32) {
    %c0_i32 = arith.constant 0 : i32
    %c0_i32_0 = arith.constant 0 : i32
    %c0_i32_1 = arith.constant 0 : i32
    %c0_i32_2 = arith.constant 0 : i32
    return %c0_i32, %c0_i32_0, %c0_i32_1 : i32, i32, i32
  }
  func.func @transform_13(%arg0: i32) -> (i32, i32) {
    %c0_i32 = arith.constant 0 : i32
    %c0_i32_0 = arith.constant 0 : i32
    %c0_i32_1 = arith.constant 0 : i32
    return %c0_i32, %c0_i32_0 : i32, i32
  }
  func.func @transform_14(%arg0: i32) -> (i32, i32) {
    %c0_i32 = arith.constant 0 : i32
    %c0_i32_0 = arith.constant 0 : i32
    %c0_i32_1 = arith.constant 0 : i32
    return %c0_i32, %c0_i32_0 : i32, i32
  }
  func.func @transform_15(%arg0: i32) -> (i32, i32) {
    %c0_i32 = arith.constant 0 : i32
    %c0_i32_0 = arith.constant 0 : i32
    %c0_i32_1 = arith.constant 0 : i32
    return %c0_i32, %c0_i32_0 : i32, i32
  }
  func.func @transform_16(%arg0: i32) -> (i32, i32, i32) {
    %c0_i32 = arith.constant 0 : i32
    %c0_i32_0 = arith.constant 0 : i32
    %c0_i32_1 = arith.constant 0 : i32
    %c0_i32_2 = arith.constant 0 : i32
    return %c0_i32, %c0_i32_0, %c0_i32_1 : i32, i32, i32
  }
  func.func @transform_17(%arg0: i32) -> (i32, i32) {
    %c0_i32 = arith.constant 0 : i32
    %c0_i32_0 = arith.constant 0 : i32
    %c0_i32_1 = arith.constant 0 : i32
    return %c0_i32, %c0_i32_0 : i32, i32
  }
  func.func @transform_18(%arg0: i32) -> (i32, i32) {
    %c0_i32 = arith.constant 0 : i32
    %c0_i32_0 = arith.constant 0 : i32
    %c0_i32_1 = arith.constant 0 : i32
    return %c0_i32, %c0_i32_0 : i32, i32
  }
  func.func @transform_19(%arg0: i32) -> (i32, i32) {
    %c0_i32 = arith.constant 0 : i32
    %c0_i32_0 = arith.constant 0 : i32
    %c0_i32_1 = arith.constant 0 : i32
    return %c0_i32, %c0_i32_0 : i32, i32
  }
  func.func @transform_20(%arg0: i32) -> (i32, i32) {
    %c0_i32 = arith.constant 0 : i32
    %c0_i32_0 = arith.constant 0 : i32
    %c0_i32_1 = arith.constant 0 : i32
    return %c0_i32, %c0_i32_0 : i32, i32
  }
  func.func @transform_21(%arg0: i32) -> (i32, i32) {
    %c0_i32 = arith.constant 0 : i32
    %c0_i32_0 = arith.constant 0 : i32
    %c0_i32_1 = arith.constant 0 : i32
    return %c0_i32, %c0_i32_0 : i32, i32
  }
  func.func @transform_22(%arg0: i32) -> (i32, i32) {
    %c0_i32 = arith.constant 0 : i32
    %c0_i32_0 = arith.constant 0 : i32
    %c0_i32_1 = arith.constant 0 : i32
    return %c0_i32, %c0_i32_0 : i32, i32
  }
  func.func @transform_23(%arg0: i32) -> (i32, i32) {
    %c0_i32 = arith.constant 0 : i32
    %c0_i32_0 = arith.constant 0 : i32
    %c0_i32_1 = arith.constant 0 : i32
    return %c0_i32, %c0_i32_0 : i32, i32
  }
  func.func @transform_24(%arg0: i32) -> (i32, i32) {
    %c0_i32 = arith.constant 0 : i32
    %c0_i32_0 = arith.constant 0 : i32
    %c0_i32_1 = arith.constant 0 : i32
    return %c0_i32, %c0_i32_0 : i32, i32
  }
  func.func @transform_25(%arg0: i32) -> (i32, i32, i32) {
    %c0_i32 = arith.constant 0 : i32
    %c0_i32_0 = arith.constant 0 : i32
    %c0_i32_1 = arith.constant 0 : i32
    return %arg0, %c0_i32, %c0_i32_0 : i32, i32, i32
  }
  func.func @transform_26(%arg0: i32) -> (i32, i32, i32) {
    %c0_i32 = arith.constant 0 : i32
    %c0_i32_0 = arith.constant 0 : i32
    %c0_i32_1 = arith.constant 0 : i32
    return %arg0, %c0_i32, %c0_i32_0 : i32, i32, i32
  }
}

</mosaic_0001>

<llo_original>
// kernel: forward.1
$region0: #{forward.1}
  #allocation0 [shape = 'u32[]', space=smem, size = 0x4, offset = 0x4, fixed_abs, tag = 'smem constant byte address 0x4 - core index']
  #allocation1 [shape = 'u32[144,128]{1,0:T(1,128)}', space=vmem, size = 0x12000, scoped, tag = 'internal scratch']
  #allocation2 [shape = 'f32[1,1]{1,0:T(1,128)S(1)}', space=vmem, size = 0x200, scoped, tag = 'scoped memory for forward.1']
  #allocation3 [shape = 'f32[1,1]{1,0:T(1,128)S(1)}', space=vmem, size = 0x200, scoped, tag = 'scoped memory for forward.1']
  %s0 = inlined_call_operand.vmem [shape: bf16[2,4,256], index: 0, kind: input, shape index: {}]
  %s1 = inlined_call_operand.hbm [shape: bf16[256,576], index: 1, kind: input, shape index: {}]
  %s2 = inlined_call_operand.vmem [shape: f32[16,1], index: 2, kind: input, shape index: {}]
  %s3 = inlined_call_operand.hbm [shape: bf16[9,16,4], index: 3, kind: input, shape index: {}]
  %s4 = inlined_call_operand.hbm [shape: bf16[64,144], index: 4, kind: input, shape index: {}]
  %s5 = inlined_call_operand.hbm [shape: f32[32,1], index: 5, kind: input, shape index: {}]
  %s6 = inlined_call_operand.vmem [shape: bf16[9,32,16], index: 6, kind: input, shape index: {}]
  %s7 = inlined_call_operand.hbm [shape: bf16[16,144], index: 7, kind: input, shape index: {}]
  %s8 = inlined_call_operand.hbm [shape: f32[32,1], index: 8, kind: input, shape index: {}]
  %s9 = inlined_call_operand.vmem [shape: bf16[9,32,32], index: 9, kind: input, shape index: {}]
  %s10 = inlined_call_operand.hbm [shape: f32[32,1], index: 10, kind: input, shape index: {}]
  %s11 = inlined_call_operand.hbm [shape: bf16[9,32,32], index: 11, kind: input, shape index: {}]
  %s12 = inlined_call_operand.hbm [shape: bf16[9,16,64], index: 12, kind: input, shape index: {}]
  %s13 = inlined_call_operand.hbm [shape: f32[16,1], index: 13, kind: input, shape index: {}]
  %s14 = inlined_call_operand.hbm [shape: bf16[144,32], index: 14, kind: input, shape index: {}]
  %s15 = inlined_call_operand.hbm [shape: bf16[144,32], index: 15, kind: input, shape index: {}]
  %s16 = inlined_call_operand.hbm [shape: bf16[9,64,256], index: 16, kind: input, shape index: {}]
  %s17 = inlined_call_operand.hbm [shape: f32[8,1], index: 17, kind: input, shape index: {}]
  %s18 = inlined_call_operand.hbm [shape: f32[72,1], index: 18, kind: input, shape index: {}]
  %s19 = inlined_call_operand.hbm [shape: bf16[72,16], index: 19, kind: input, shape index: {}]
  %s20 = inlined_call_operand.hbm [shape: bf16[72,16], index: 20, kind: input, shape index: {}]
  %s21 = inlined_call_operand.hbm [shape: bf16[1,16], index: 21, kind: input, shape index: {}]
  %s22 = inlined_call_operand.<no memory space> [shape: f32[1,1], index: 22, kind: input, shape index: {}]
  %s23 = inlined_call_operand.hbm [shape: bf16[1,8], index: 23, kind: input, shape index: {}]
  %s24 = inlined_call_operand.<no memory space> [shape: f32[1,1], index: 24, kind: input, shape index: {}]
  %s25 = inlined_call_operand.vmem [shape: f32[2,1,64], index: 25, kind: output, shape index: {0}]
  %s26 = inlined_call_operand.vmem [shape: f32[2,1,256], index: 26, kind: output, shape index: {1}]
  %27 = xla_tuple %s25, %s26
  %s28 = sld [smem:[#allocation0]]
  $region217: #{forward.1} parent=0
    _
  %s30 = ssub.s32 1, %s28
  %s31 = scalar_select 0, %s30, %s28
  %v32 = vstv %s22
  %33 = vst [vmem:[#allocation2] sm:$0x1] %v32
  %v34 = vstv %s24
  %35 = vst [vmem:[#allocation3] sm:$0x1] %v34
  $region1: #{forward.1} parent=0
    #allocation4 [shape = 'u8[327680]{0}', space=vmem, size = 0x50000, scoped, tag = 'input window, operand 1, single buffered']
    #allocation5 [shape = 's32[2]{0}', space=sflag, size = 0x8, scoped, tag = 'scoped memory for forward.1']
    #allocation6 [shape = 'u8[36864]{0}', space=vmem, size = 0x9000, scoped, tag = 'input window, operand 3, single buffered']
    #allocation7 [shape = 's32[1]{0}', space=sflag, size = 0x4, scoped, tag = 'scoped memory for forward.1']
    #allocation8 [shape = 'u8[32768]{0}', space=vmem, size = 0x8000, scoped, tag = 'input window, operand 4, single buffered']
    #allocation9 [shape = 'u8[16384]{0}', space=vmem, size = 0x4000, scoped, tag = 'input window, operand 5, single buffered']
    #allocation10 [shape = 's32[1]{0}', space=sflag, size = 0x4, scoped, tag = 'scoped memory for forward.1']
    #allocation11 [shape = 'u8[8192]{0}', space=vmem, size = 0x2000, scoped, tag = 'input window, operand 7, single buffered']
    #allocation12 [shape = 'u8[16384]{0}', space=vmem, size = 0x4000, scoped, tag = 'input window, operand 8, single buffered']
    #allocation13 [shape = 's32[1]{0}', space=sflag, size = 0x4, scoped, tag = 'scoped memory for forward.1']
    #allocation14 [shape = 'u8[16384]{0}', space=vmem, size = 0x4000, scoped, tag = 'input window, operand 10, single buffered']
    #allocation15 [shape = 'u8[73728]{0}', space=vmem, size = 0x12000, scoped, tag = 'input window, operand 11, single buffered']
    #allocation16 [shape = 's32[1]{0}', space=sflag, size = 0x4, scoped, tag = 'scoped memory for forward.1']
    #allocation17 [shape = 'u8[36864]{0}', space=vmem, size = 0x9000, scoped, tag = 'input window, operand 12, single buffered']
    #allocation18 [shape = 'u8[8192]{0}', space=vmem, size = 0x2000, scoped, tag = 'input window, operand 13, single buffered']
    #allocation19 [shape = 's32[1]{0}', space=sflag, size = 0x4, scoped, tag = 'scoped memory for forward.1']
    #allocation20 [shape = 'u8[36864]{0}', space=vmem, size = 0x9000, scoped, tag = 'input window, operand 14, single buffered']
    #allocation21 [shape = 'u8[36864]{0}', space=vmem, size = 0x9000, scoped, tag = 'input window, operand 15, single buffered']
    #allocation22 [shape = 's32[1]{0}', space=sflag, size = 0x4, scoped, tag = 'scoped memory for forward.1']
    #allocation23 [shape = 'u8[294912]{0}', space=vmem, size = 0x48000, scoped, tag = 'input window, operand 16, single buffered']
    #allocation24 [shape = 'u8[4096]{0}', space=vmem, size = 0x1000, scoped, tag = 'input window, operand 17, single buffered']
    #allocation25 [shape = 's32[1]{0}', space=sflag, size = 0x4, scoped, tag = 'scoped memory for forward.1']
    #allocation26 [shape = 'u8[36864]{0}', space=vmem, size = 0x9000, scoped, tag = 'input window, operand 18, single buffered']
    #allocation27 [shape = 'u8[18432]{0}', space=vmem, size = 0x4800, scoped, tag = 'input window, operand 19, single buffered']
    #allocation28 [shape = 's32[1]{0}', space=sflag, size = 0x4, scoped, tag = 'scoped memory for forward.1']
    #allocation29 [shape = 'u8[18432]{0}', space=vmem, size = 0x4800, scoped, tag = 'input window, operand 20, single buffered']
    #allocation30 [shape = 'u8[512]{0}', space=vmem, size = 0x400, scoped, tag = 'input window, operand 21, single buffered']
    #allocation31 [shape = 's32[1]{0}', space=sflag, size = 0x4, scoped, tag = 'scoped memory for forward.1']
    #allocation32 [shape = 'u8[512]{0}', space=vmem, size = 0x400, scoped, tag = 'input window, operand 23, single buffered']
    %36 = vsyncpa [#allocation5], 0
    %37 = vsyncpa [#allocation7], 0
    %38 = vsyncpa [#allocation10], 0
    %39 = vsyncpa [#allocation13], 0
    %40 = vsyncpa [#allocation16], 0
    %41 = vsyncpa [#allocation19], 0
    %42 = vsyncpa [#allocation22], 0
    %43 = vsyncpa [#allocation25], 0
    %44 = vsyncpa [#allocation28], 0
    %45 = vsyncpa [#allocation31], 0
    loop: start=0, step=1, limit=4
    $region2: #{forward.1} parent=1 // loop_pre_header
      _
    $region3: #{forward.1} parent=1 // loop_header
      %s47 = sphi 0, %s51
      %p48 = scmp.ge.s32.totalorder %s47, 4
      %s57 = sphi 0, %s59
      %s60 = sphi 0, %s57
      %s61 = sphi 0, %s60
      %s77 = sphi 0, %s61
      %s81 = sphi 0, %s81
      %s83 = sphi 0, %s81
      %s84 = sphi 0, %s83
      %s98 = sphi 0, %s84
      %s102 = sphi 0, %s102
      %s104 = sphi 0, %s102
      %s105 = sphi 0, %s104
      %s119 = sphi 0, %s105
      %s123 = sphi 0, %s123
      %s125 = sphi 0, %s123
      %s126 = sphi 0, %s125
      %s140 = sphi 0, %s126
      %s144 = sphi 0, %s144
      %s146 = sphi 0, %s144
      %s147 = sphi 0, %s146
      %s161 = sphi 0, %s147
      %s165 = sphi 0, %s165
      %s167 = sphi 0, %s165
      %s168 = sphi 0, %s167
      %s182 = sphi 0, %s168
      %s186 = sphi 0, %s186
      %s188 = sphi 0, %s186
      %s189 = sphi 0, %s188
      %s203 = sphi 0, %s189
      %s207 = sphi 0, %s207
      %s209 = sphi 0, %s207
      %s210 = sphi 0, %s209
      %s224 = sphi 0, %s210
      %s228 = sphi 0, %s228
      %s230 = sphi 0, %s228
      %s231 = sphi 0, %s230
      %s245 = sphi 0, %s231
      %s249 = sphi 0, %s249
      %s251 = sphi 0, %s249
      %s252 = sphi 0, %s251
      %s266 = sphi 0, %s252
      %s270 = sphi 0, %s270
      %s272 = sphi 0, %s270
      %s273 = sphi 0, %s272
      %s287 = sphi 0, %s273
      %s291 = sphi 0, %s291
      %s293 = sphi 0, %s291
      %s294 = sphi 0, %s293
      %s308 = sphi 0, %s294
      %s312 = sphi 0, %s312
      %s314 = sphi 0, %s312
      %s315 = sphi 0, %s314
      %s329 = sphi 0, %s315
      %s333 = sphi 0, %s333
      %s335 = sphi 0, %s333
      %s336 = sphi 0, %s335
      %s350 = sphi 0, %s336
      %s354 = sphi 0, %s354
      %s356 = sphi 0, %s354
      %s357 = sphi 0, %s356
      %s371 = sphi 0, %s357
      %s375 = sphi 0, %s375
      %s377 = sphi 0, %s375
      %s378 = sphi 0, %s377
      %s392 = sphi 0, %s378
      %s396 = sphi 0, %s396
      %s398 = sphi 0, %s396
      %s399 = sphi 0, %s398
      %s413 = sphi 0, %s399
      %s417 = sphi 0, %s417
      %s419 = sphi 0, %s417
      %s420 = sphi 0, %s419
      %s434 = sphi 0, %s420
      %s438 = sphi 0, %s438
      %s440 = sphi 0, %s438
      %s441 = sphi 0, %s440
      %s455 = sphi 0, %s441
      %s459 = sphi 0, %s459
      %s461 = sphi 0, %s459
      %s462 = sphi 0, %s461
      %s476 = sphi 0, %s462
      %s480 = sphi 0, %s480
      %s482 = sphi 0, %s480
      %s483 = sphi 0, %s482
      %s497 = sphi 0, %s483
      %s501 = sphi 0, %s501
      %s503 = sphi 0, %s501
      %s504 = sphi 0, %s503
      %s518 = sphi 0, %s504
      %s522 = sphi 0, %s522
      %s524 = sphi 0, %s522
      %s525 = sphi 0, %s524
      %s539 = sphi 0, %s525
      %s543 = sphi 0, %s543
      %s545 = sphi 0, %s543
      %s546 = sphi 0, %s545
      %s560 = sphi 0, %s546
      %s564 = sphi 0, %s564
      %s566 = sphi 0, %s564
      %s567 = sphi 0, %s566
      %s581 = sphi 0, %s567
      %s587 = sphi 0, %s589
      %s590 = sphi 0, %s587
      %s591 = sphi 0, %s590
      %s607 = sphi 0, %s591
      %s613 = sphi 0, %s615
      %s616 = sphi 0, %s613
      %s617 = sphi 0, %s616
      %s633 = sphi 0, %s617
    $region4: #{forward.1} parent=1 // loop_header_branch
      %50 = sbr.rel (%p48) target = $region8
    $region5: #{forward.1} parent=1 // loop_body
      %s52 = ssub.s32 %s47, 1
      %s53 = ssub.s32 %s47, 2
      %s54 = sadd.s32 %s47, 1
      %s55 = ssub.s32 %s47, %s54
      %p56 = scmp.eq.s32.totalorder %s55, 0
      %s58 = sadd.s32 %s57, 1
      %s59 = scalar_select %p56, %s57, %s58
      %p62 = pneg %p56
      %p63 = scmp.eq.s32.totalorder %s47, 1
      %p64 = por %p62, %p63
      %p65 = scmp.ne.s32.totalorder %s57, %s60
      %p66 = scmp.eq.s32.totalorder %s47, 0
      %p67 = por %p65, %p66
      %p68 = scmp.ne.s32.totalorder %s57, %s60
      %p69 = scmp.eq.s32.totalorder %s52, 1
      %p70 = por %p68, %p69
      %p71 = scmp.ne.s32.totalorder %s60, %s61
      %p72 = scmp.eq.s32.totalorder %s52, 0
      %p73 = por %p71, %p72
      %p74 = scmp.ne.s32.totalorder %s60, %s61
      %p75 = scmp.eq.s32.totalorder %s53, 1
      %p76 = por %p74, %p75
      %p78 = scmp.ne.s32.totalorder %s61, %s77
      %p79 = scmp.eq.s32.totalorder %s53, 0
      %p80 = por %p78, %p79
      %s82 = sadd.s32 %s81, 1
      %p85 = scmp.eq.s32.totalorder %s47, 1
      %p86 = scmp.ne.s32.totalorder %s81, %s83
      %p87 = scmp.eq.s32.totalorder %s47, 0
      %p88 = por %p86, %p87
      %p89 = scmp.ne.s32.totalorder %s81, %s83
      %p90 = scmp.eq.s32.totalorder %s52, 1
      %p91 = por %p89, %p90
      %p92 = scmp.ne.s32.totalorder %s83, %s84
      %p93 = scmp.eq.s32.totalorder %s52, 0
      %p94 = por %p92, %p93
      %p95 = scmp.ne.s32.totalorder %s83, %s84
      %p96 = scmp.eq.s32.totalorder %s53, 1
      %p97 = por %p95, %p96
      %p99 = scmp.ne.s32.totalorder %s84, %s98
      %p100 = scmp.eq.s32.totalorder %s53, 0
      %p101 = por %p99, %p100
      %s103 = sadd.s32 %s102, 1
      %p106 = scmp.eq.s32.totalorder %s47, 1
      %p107 = scmp.ne.s32.totalorder %s102, %s104
      %p108 = scmp.eq.s32.totalorder %s47, 0
      %p109 = por %p107, %p108
      %p110 = scmp.ne.s32.totalorder %s102, %s104
      %p111 = scmp.eq.s32.totalorder %s52, 1
      %p112 = por %p110, %p111
      %p113 = scmp.ne.s32.totalorder %s104, %s105
      %p114 = scmp.eq.s32.totalorder %s52, 0
      %p115 = por %p113, %p114
      %p116 = scmp.ne.s32.totalorder %s104, %s105
      %p117 = scmp.eq.s32.totalorder %s53, 1
      %p118 = por %p116, %p117
      %p120 = scmp.ne.s32.totalorder %s105, %s119
      %p121 = scmp.eq.s32.totalorder %s53, 0
      %p122 = por %p120, %p121
      %s124 = sadd.s32 %s123, 1
      %p127 = scmp.eq.s32.totalorder %s47, 1
      %p128 = scmp.ne.s32.totalorder %s123, %s125
      %p129 = scmp.eq.s32.totalorder %s47, 0
      %p130 = por %p128, %p129
      %p131 = scmp.ne.s32.totalorder %s123, %s125
      %p132 = scmp.eq.s32.totalorder %s52, 1
      %p133 = por %p131, %p132
      %p134 = scmp.ne.s32.totalorder %s125, %s126
      %p135 = scmp.eq.s32.totalorder %s52, 0
      %p136 = por %p134, %p135
      %p137 = scmp.ne.s32.totalorder %s125, %s126
      %p138 = scmp.eq.s32.totalorder %s53, 1
      %p139 = por %p137, %p138
      %p141 = scmp.ne.s32.totalorder %s126, %s140
      %p142 = scmp.eq.s32.totalorder %s53, 0
      %p143 = por %p141, %p142
      %s145 = sadd.s32 %s144, 1
      %p148 = scmp.eq.s32.totalorder %s47, 1
      %p149 = scmp.ne.s32.totalorder %s144, %s146
      %p150 = scmp.eq.s32.totalorder %s47, 0
      %p151 = por %p149, %p150
      %p152 = scmp.ne.s32.totalorder %s144, %s146
      %p153 = scmp.eq.s32.totalorder %s52, 1
      %p154 = por %p152, %p153
      %p155 = scmp.ne.s32.totalorder %s146, %s147
      %p156 = scmp.eq.s32.totalorder %s52, 0
      %p157 = por %p155, %p156
      %p158 = scmp.ne.s32.totalorder %s146, %s147
      %p159 = scmp.eq.s32.totalorder %s53, 1
      %p160 = por %p158, %p159
      %p162 = scmp.ne.s32.totalorder %s147, %s161
      %p163 = scmp.eq.s32.totalorder %s53, 0
      %p164 = por %p162, %p163
      %s166 = sadd.s32 %s165, 1
      %p169 = scmp.eq.s32.totalorder %s47, 1
      %p170 = scmp.ne.s32.totalorder %s165, %s167
      %p171 = scmp.eq.s32.totalorder %s47, 0
      %p172 = por %p170, %p171
      %p173 = scmp.ne.s32.totalorder %s165, %s167
      %p174 = scmp.eq.s32.totalorder %s52, 1
      %p175 = por %p173, %p174
      %p176 = scmp.ne.s32.totalorder %s167, %s168
      %p177 = scmp.eq.s32.totalorder %s52, 0
      %p178 = por %p176, %p177
      %p179 = scmp.ne.s32.totalorder %s167, %s168
      %p180 = scmp.eq.s32.totalorder %s53, 1
      %p181 = por %p179, %p180
      %p183 = scmp.ne.s32.totalorder %s168, %s182
      %p184 = scmp.eq.s32.totalorder %s53, 0
      %p185 = por %p183, %p184
      %s187 = sadd.s32 %s186, 1
      %p190 = scmp.eq.s32.totalorder %s47, 1
      %p191 = scmp.ne.s32.totalorder %s186, %s188
      %p192 = scmp.eq.s32.totalorder %s47, 0
      %p193 = por %p191, %p192
      %p194 = scmp.ne.s32.totalorder %s186, %s188
      %p195 = scmp.eq.s32.totalorder %s52, 1
      %p196 = por %p194, %p195
      %p197 = scmp.ne.s32.totalorder %s188, %s189
      %p198 = scmp.eq.s32.totalorder %s52, 0
      %p199 = por %p197, %p198
      %p200 = scmp.ne.s32.totalorder %s188, %s189
      %p201 = scmp.eq.s32.totalorder %s53, 1
      %p202 = por %p200, %p201
      %p204 = scmp.ne.s32.totalorder %s189, %s203
      %p205 = scmp.eq.s32.totalorder %s53, 0
      %p206 = por %p204, %p205
      %s208 = sadd.s32 %s207, 1
      %p211 = scmp.eq.s32.totalorder %s47, 1
      %p212 = scmp.ne.s32.totalorder %s207, %s209
      %p213 = scmp.eq.s32.totalorder %s47, 0
      %p214 = por %p212, %p213
      %p215 = scmp.ne.s32.totalorder %s207, %s209
      %p216 = scmp.eq.s32.totalorder %s52, 1
      %p217 = por %p215, %p216
      %p218 = scmp.ne.s32.totalorder %s209, %s210
      %p219 = scmp.eq.s32.totalorder %s52, 0
      %p220 = por %p218, %p219
      %p221 = scmp.ne.s32.totalorder %s209, %s210
      %p222 = scmp.eq.s32.totalorder %s53, 1
      %p223 = por %p221, %p222
      %p225 = scmp.ne.s32.totalorder %s210, %s224
      %p226 = scmp.eq.s32.totalorder %s53, 0
      %p227 = por %p225, %p226
      %s229 = sadd.s32 %s228, 1
      %p232 = scmp.eq.s32.totalorder %s47, 1
      %p233 = scmp.ne.s32.totalorder %s228, %s230
      %p234 = scmp.eq.s32.totalorder %s47, 0
      %p235 = por %p233, %p234
      %p236 = scmp.ne.s32.totalorder %s228, %s230
      %p237 = scmp.eq.s32.totalorder %s52, 1
      %p238 = por %p236, %p237
      %p239 = scmp.ne.s32.totalorder %s230, %s231
      %p240 = scmp.eq.s32.totalorder %s52, 0
      %p241 = por %p239, %p240
      %p242 = scmp.ne.s32.totalorder %s230, %s231
      %p243 = scmp.eq.s32.totalorder %s53, 1
      %p244 = por %p242, %p243
      %p246 = scmp.ne.s32.totalorder %s231, %s245
      %p247 = scmp.eq.s32.totalorder %s53, 0
      %p248 = por %p246, %p247
      %s250 = sadd.s32 %s249, 1
      %p253 = scmp.eq.s32.totalorder %s47, 1
      %p254 = scmp.ne.s32.totalorder %s249, %s251
      %p255 = scmp.eq.s32.totalorder %s47, 0
      %p256 = por %p254, %p255
      %p257 = scmp.ne.s32.totalorder %s249, %s251
      %p258 = scmp.eq.s32.totalorder %s52, 1
      %p259 = por %p257, %p258
      %p260 = scmp.ne.s32.totalorder %s251, %s252
      %p261 = scmp.eq.s32.totalorder %s52, 0
      %p262 = por %p260, %p261
      %p263 = scmp.ne.s32.totalorder %s251, %s252
      %p264 = scmp.eq.s32.totalorder %s53, 1
      %p265 = por %p263, %p264
      %p267 = scmp.ne.s32.totalorder %s252, %s266
      %p268 = scmp.eq.s32.totalorder %s53, 0
      %p269 = por %p267, %p268
      %s271 = sadd.s32 %s270, 1
      %p274 = scmp.eq.s32.totalorder %s47, 1
      %p275 = scmp.ne.s32.totalorder %s270, %s272
      %p276 = scmp.eq.s32.totalorder %s47, 0
      %p277 = por %p275, %p276
      %p278 = scmp.ne.s32.totalorder %s270, %s272
      %p279 = scmp.eq.s32.totalorder %s52, 1
      %p280 = por %p278, %p279
      %p281 = scmp.ne.s32.totalorder %s272, %s273
      %p282 = scmp.eq.s32.totalorder %s52, 0
      %p283 = por %p281, %p282
      %p284 = scmp.ne.s32.totalorder %s272, %s273
      %p285 = scmp.eq.s32.totalorder %s53, 1
      %p286 = por %p284, %p285
      %p288 = scmp.ne.s32.totalorder %s273, %s287
      %p289 = scmp.eq.s32.totalorder %s53, 0
      %p290 = por %p288, %p289
      %s292 = sadd.s32 %s291, 1
      %p295 = scmp.eq.s32.totalorder %s47, 1
      %p296 = scmp.ne.s32.totalorder %s291, %s293
      %p297 = scmp.eq.s32.totalorder %s47, 0
      %p298 = por %p296, %p297
      %p299 = scmp.ne.s32.totalorder %s291, %s293
      %p300 = scmp.eq.s32.totalorder %s52, 1
      %p301 = por %p299, %p300
      %p302 = scmp.ne.s32.totalorder %s293, %s294
      %p303 = scmp.eq.s32.totalorder %s52, 0
      %p304 = por %p302, %p303
      %p305 = scmp.ne.s32.totalorder %s293, %s294
      %p306 = scmp.eq.s32.totalorder %s53, 1
      %p307 = por %p305, %p306
      %p309 = scmp.ne.s32.totalorder %s294, %s308
      %p310 = scmp.eq.s32.totalorder %s53, 0
      %p311 = por %p309, %p310
      %s313 = sadd.s32 %s312, 1
      %p316 = scmp.eq.s32.totalorder %s47, 1
      %p317 = scmp.ne.s32.totalorder %s312, %s314
      %p318 = scmp.eq.s32.totalorder %s47, 0
      %p319 = por %p317, %p318
      %p320 = scmp.ne.s32.totalorder %s312, %s314
      %p321 = scmp.eq.s32.totalorder %s52, 1
      %p322 = por %p320, %p321
      %p323 = scmp.ne.s32.totalorder %s314, %s315
      %p324 = scmp.eq.s32.totalorder %s52, 0
      %p325 = por %p323, %p324
      %p326 = scmp.ne.s32.totalorder %s314, %s315
      %p327 = scmp.eq.s32.totalorder %s53, 1
      %p328 = por %p326, %p327
      %p330 = scmp.ne.s32.totalorder %s315, %s329
      %p331 = scmp.eq.s32.totalorder %s53, 0
      %p332 = por %p330, %p331
      %s334 = sadd.s32 %s333, 1
      %p337 = scmp.eq.s32.totalorder %s47, 1
      %p338 = scmp.ne.s32.totalorder %s333, %s335
      %p339 = scmp.eq.s32.totalorder %s47, 0
      %p340 = por %p338, %p339
      %p341 = scmp.ne.s32.totalorder %s333, %s335
      %p342 = scmp.eq.s32.totalorder %s52, 1
      %p343 = por %p341, %p342
      %p344 = scmp.ne.s32.totalorder %s335, %s336
      %p345 = scmp.eq.s32.totalorder %s52, 0
      %p346 = por %p344, %p345
      %p347 = scmp.ne.s32.totalorder %s335, %s336
      %p348 = scmp.eq.s32.totalorder %s53, 1
      %p349 = por %p347, %p348
      %p351 = scmp.ne.s32.totalorder %s336, %s350
      %p352 = scmp.eq.s32.totalorder %s53, 0
      %p353 = por %p351, %p352
      %s355 = sadd.s32 %s354, 1
      %p358 = scmp.eq.s32.totalorder %s47, 1
      %p359 = scmp.ne.s32.totalorder %s354, %s356
      %p360 = scmp.eq.s32.totalorder %s47, 0
      %p361 = por %p359, %p360
      %p362 = scmp.ne.s32.totalorder %s354, %s356
      %p363 = scmp.eq.s32.totalorder %s52, 1
      %p364 = por %p362, %p363
      %p365 = scmp.ne.s32.totalorder %s356, %s357
      %p366 = scmp.eq.s32.totalorder %s52, 0
      %p367 = por %p365, %p366
      %p368 = scmp.ne.s32.totalorder %s356, %s357
      %p369 = scmp.eq.s32.totalorder %s53, 1
      %p370 = por %p368, %p369
      %p372 = scmp.ne.s32.totalorder %s357, %s371
      %p373 = scmp.eq.s32.totalorder %s53, 0
      %p374 = por %p372, %p373
      %s376 = sadd.s32 %s375, 1
      %p379 = scmp.eq.s32.totalorder %s47, 1
      %p380 = scmp.ne.s32.totalorder %s375, %s377
      %p381 = scmp.eq.s32.totalorder %s47, 0
      %p382 = por %p380, %p381
      %p383 = scmp.ne.s32.totalorder %s375, %s377
      %p384 = scmp.eq.s32.totalorder %s52, 1
      %p385 = por %p383, %p384
      %p386 = scmp.ne.s32.totalorder %s377, %s378
      %p387 = scmp.eq.s32.totalorder %s52, 0
      %p388 = por %p386, %p387
      %p389 = scmp.ne.s32.totalorder %s377, %s378
      %p390 = scmp.eq.s32.totalorder %s53, 1
      %p391 = por %p389, %p390
      %p393 = scmp.ne.s32.totalorder %s378, %s392
      %p394 = scmp.eq.s32.totalorder %s53, 0
      %p395 = por %p393, %p394
      %s397 = sadd.s32 %s396, 1
      %p400 = scmp.eq.s32.totalorder %s47, 1
      %p401 = scmp.ne.s32.totalorder %s396, %s398
      %p402 = scmp.eq.s32.totalorder %s47, 0
      %p403 = por %p401, %p402
      %p404 = scmp.ne.s32.totalorder %s396, %s398
      %p405 = scmp.eq.s32.totalorder %s52, 1
      %p406 = por %p404, %p405
      %p407 = scmp.ne.s32.totalorder %s398, %s399
      %p408 = scmp.eq.s32.totalorder %s52, 0
      %p409 = por %p407, %p408
      %p410 = scmp.ne.s32.totalorder %s398, %s399
      %p411 = scmp.eq.s32.totalorder %s53, 1
      %p412 = por %p410, %p411
      %p414 = scmp.ne.s32.totalorder %s399, %s413
      %p415 = scmp.eq.s32.totalorder %s53, 0
      %p416 = por %p414, %p415
      %s418 = sadd.s32 %s417, 1
      %p421 = scmp.eq.s32.totalorder %s47, 1
      %p422 = scmp.ne.s32.totalorder %s417, %s419
      %p423 = scmp.eq.s32.totalorder %s47, 0
      %p424 = por %p422, %p423
      %p425 = scmp.ne.s32.totalorder %s417, %s419
      %p426 = scmp.eq.s32.totalorder %s52, 1
      %p427 = por %p425, %p426
      %p428 = scmp.ne.s32.totalorder %s419, %s420
      %p429 = scmp.eq.s32.totalorder %s52, 0
      %p430 = por %p428, %p429
      %p431 = scmp.ne.s32.totalorder %s419, %s420
      %p432 = scmp.eq.s32.totalorder %s53, 1
      %p433 = por %p431, %p432
      %p435 = scmp.ne.s32.totalorder %s420, %s434
      %p436 = scmp.eq.s32.totalorder %s53, 0
      %p437 = por %p435, %p436
      %s439 = sadd.s32 %s438, 1
      %p442 = scmp.eq.s32.totalorder %s47, 1
      %p443 = scmp.ne.s32.totalorder %s438, %s440
      %p444 = scmp.eq.s32.totalorder %s47, 0
      %p445 = por %p443, %p444
      %p446 = scmp.ne.s32.totalorder %s438, %s440
      %p447 = scmp.eq.s32.totalorder %s52, 1
      %p448 = por %p446, %p447
      %p449 = scmp.ne.s32.totalorder %s440, %s441
      %p450 = scmp.eq.s32.totalorder %s52, 0
      %p451 = por %p449, %p450
      %p452 = scmp.ne.s32.totalorder %s440, %s441
      %p453 = scmp.eq.s32.totalorder %s53, 1
      %p454 = por %p452, %p453
      %p456 = scmp.ne.s32.totalorder %s441, %s455
      %p457 = scmp.eq.s32.totalorder %s53, 0
      %p458 = por %p456, %p457
      %s460 = sadd.s32 %s459, 1
      %p463 = scmp.eq.s32.totalorder %s47, 1
      %p464 = scmp.ne.s32.totalorder %s459, %s461
      %p465 = scmp.eq.s32.totalorder %s47, 0
      %p466 = por %p464, %p465
      %p467 = scmp.ne.s32.totalorder %s459, %s461
      %p468 = scmp.eq.s32.totalorder %s52, 1
      %p469 = por %p467, %p468
      %p470 = scmp.ne.s32.totalorder %s461, %s462
      %p471 = scmp.eq.s32.totalorder %s52, 0
      %p472 = por %p470, %p471
      %p473 = scmp.ne.s32.totalorder %s461, %s462
      %p474 = scmp.eq.s32.totalorder %s53, 1
      %p475 = por %p473, %p474
      %p477 = scmp.ne.s32.totalorder %s462, %s476
      %p478 = scmp.eq.s32.totalorder %s53, 0
      %p479 = por %p477, %p478
      %s481 = sadd.s32 %s480, 1
      %p484 = scmp.eq.s32.totalorder %s47, 1
      %p485 = scmp.ne.s32.totalorder %s480, %s482
      %p486 = scmp.eq.s32.totalorder %s47, 0
      %p487 = por %p485, %p486
      %p488 = scmp.ne.s32.totalorder %s480, %s482
      %p489 = scmp.eq.s32.totalorder %s52, 1
      %p490 = por %p488, %p489
      %p491 = scmp.ne.s32.totalorder %s482, %s483
      %p492 = scmp.eq.s32.totalorder %s52, 0
      %p493 = por %p491, %p492
      %p494 = scmp.ne.s32.totalorder %s482, %s483
      %p495 = scmp.eq.s32.totalorder %s53, 1
      %p496 = por %p494, %p495
      %p498 = scmp.ne.s32.totalorder %s483, %s497
      %p499 = scmp.eq.s32.totalorder %s53, 0
      %p500 = por %p498, %p499
      %s502 = sadd.s32 %s501, 1
      %p505 = scmp.eq.s32.totalorder %s47, 1
      %p506 = scmp.ne.s32.totalorder %s501, %s503
      %p507 = scmp.eq.s32.totalorder %s47, 0
      %p508 = por %p506, %p507
      %p509 = scmp.ne.s32.totalorder %s501, %s503
      %p510 = scmp.eq.s32.totalorder %s52, 1
      %p511 = por %p509, %p510
      %p512 = scmp.ne.s32.totalorder %s503, %s504
      %p513 = scmp.eq.s32.totalorder %s52, 0
      %p514 = por %p512, %p513
      %p515 = scmp.ne.s32.totalorder %s503, %s504
      %p516 = scmp.eq.s32.totalorder %s53, 1
      %p517 = por %p515, %p516
      %p519 = scmp.ne.s32.totalorder %s504, %s518
      %p520 = scmp.eq.s32.totalorder %s53, 0
      %p521 = por %p519, %p520
      %s523 = sadd.s32 %s522, 1
      %p526 = scmp.eq.s32.totalorder %s47, 1
      %p527 = scmp.ne.s32.totalorder %s522, %s524
      %p528 = scmp.eq.s32.totalorder %s47, 0
      %p529 = por %p527, %p528
      %p530 = scmp.ne.s32.totalorder %s522, %s524
      %p531 = scmp.eq.s32.totalorder %s52, 1
      %p532 = por %p530, %p531
      %p533 = scmp.ne.s32.totalorder %s524, %s525
      %p534 = scmp.eq.s32.totalorder %s52, 0
      %p535 = por %p533, %p534
      %p536 = scmp.ne.s32.totalorder %s524, %s525
      %p537 = scmp.eq.s32.totalorder %s53, 1
      %p538 = por %p536, %p537
      %p540 = scmp.ne.s32.totalorder %s525, %s539
      %p541 = scmp.eq.s32.totalorder %s53, 0
      %p542 = por %p540, %p541
      %s544 = sadd.s32 %s543, 1
      %p547 = scmp.eq.s32.totalorder %s47, 1
      %p548 = scmp.ne.s32.totalorder %s543, %s545
      %p549 = scmp.eq.s32.totalorder %s47, 0
      %p550 = por %p548, %p549
      %p551 = scmp.ne.s32.totalorder %s543, %s545
      %p552 = scmp.eq.s32.totalorder %s52, 1
      %p553 = por %p551, %p552
      %p554 = scmp.ne.s32.totalorder %s545, %s546
      %p555 = scmp.eq.s32.totalorder %s52, 0
      %p556 = por %p554, %p555
      %p557 = scmp.ne.s32.totalorder %s545, %s546
      %p558 = scmp.eq.s32.totalorder %s53, 1
      %p559 = por %p557, %p558
      %p561 = scmp.ne.s32.totalorder %s546, %s560
      %p562 = scmp.eq.s32.totalorder %s53, 0
      %p563 = por %p561, %p562
      %s565 = sadd.s32 %s564, 1
      %p568 = scmp.eq.s32.totalorder %s47, 1
      %p569 = scmp.ne.s32.totalorder %s564, %s566
      %p570 = scmp.eq.s32.totalorder %s47, 0
      %p571 = por %p569, %p570
      %p572 = scmp.ne.s32.totalorder %s564, %s566
      %p573 = scmp.eq.s32.totalorder %s52, 1
      %p574 = por %p572, %p573
      %p575 = scmp.ne.s32.totalorder %s566, %s567
      %p576 = scmp.eq.s32.totalorder %s52, 0
      %p577 = por %p575, %p576
      %p578 = scmp.ne.s32.totalorder %s566, %s567
      %p579 = scmp.eq.s32.totalorder %s53, 1
      %p580 = por %p578, %p579
      %p582 = scmp.ne.s32.totalorder %s567, %s581
      %p583 = scmp.eq.s32.totalorder %s53, 0
      %p584 = por %p582, %p583
      %s585 = ssub.s32 %s47, %s54
      %p586 = scmp.eq.s32.totalorder %s585, 0
      %s588 = sadd.s32 %s587, 1
      %s589 = scalar_select %p586, %s587, %s588
      %p592 = pneg %p586
      %p593 = scmp.eq.s32.totalorder %s47, 1
      %p594 = por %p592, %p593
      %p595 = scmp.ne.s32.totalorder %s587, %s590
      %p596 = scmp.eq.s32.totalorder %s47, 0
      %p597 = por %p595, %p596
      %p598 = scmp.ne.s32.totalorder %s587, %s590
      %p599 = scmp.eq.s32.totalorder %s52, 1
      %p600 = por %p598, %p599
      %p601 = scmp.ne.s32.totalorder %s590, %s591
      %p602 = scmp.eq.s32.totalorder %s52, 0
      %p603 = por %p601, %p602
      %p604 = scmp.ne.s32.totalorder %s590, %s591
      %p605 = scmp.eq.s32.totalorder %s53, 1
      %p606 = por %p604, %p605
      %p608 = scmp.ne.s32.totalorder %s591, %s607
      %p609 = scmp.eq.s32.totalorder %s53, 0
      %p610 = por %p608, %p609
      %s611 = ssub.s32 %s47, %s54
      %p612 = scmp.eq.s32.totalorder %s611, 0
      %s614 = sadd.s32 %s613, 1
      %s615 = scalar_select %p612, %s613, %s614
      %p618 = pneg %p612
      %p619 = scmp.eq.s32.totalorder %s47, 1
      %p620 = por %p618, %p619
      %p621 = scmp.ne.s32.totalorder %s613, %s616
      %p622 = scmp.eq.s32.totalorder %s47, 0
      %p623 = por %p621, %p622
      %p624 = scmp.ne.s32.totalorder %s613, %s616
      %p625 = scmp.eq.s32.totalorder %s52, 1
      %p626 = por %p624, %p625
      %p627 = scmp.ne.s32.totalorder %s616, %s617
      %p628 = scmp.eq.s32.totalorder %s52, 0
      %p629 = por %p627, %p628
      %p630 = scmp.ne.s32.totalorder %s616, %s617
      %p631 = scmp.eq.s32.totalorder %s53, 1
      %p632 = por %p630, %p631
      %p634 = scmp.ne.s32.totalorder %s617, %s633
      %p635 = scmp.eq.s32.totalorder %s53, 0
      %p636 = por %p634, %p635
      %p637 = scmp.le.s32.totalorder 1, %s47
      %p638 = scmp.lt.s32.totalorder %s47, 3
      %p639 = pnand %p637, %p638
      %p640 = pneg %p639
      // Predicated region
      $region9: #{forward.1} parent=5 // pred_check
        _
      $region10: #{forward.1} parent=5 // pred_check_branch
        %642 = sbr.rel (%p639) target = $region12
      $region11: #{forward.1} parent=5 // pred_region
        %s643 = ssub.s32 %s47, 1
        // Predicated region
        $region13: #{forward.1} parent=11 // pred_check
          %p644 = pneg %p94
        $region14: #{forward.1} parent=11 // pred_check_branch
          %646 = sbr.rel (%p644) target = $region16
        $region15: #{forward.1} parent=11 // pred_region
          %s648 = ssub.s32 10240, 10240
          %649 = vsyncadd [#allocation5], %s648
          %s650 = sshll.u32 [#allocation4], 4
          %s651 = int_to_ptr.vmem [resolvable:$true] %s650
          %656 = dma.hbm_to_vmem [thread:$0]  %s1, 10240, %s651, [#allocation5], 320, 320, 20
        $region16: #{forward.1} parent=11 // pred_fallthru
          _
        // Predicated region
        $region17: #{forward.1} parent=11 // pred_check
          %p657 = pneg %p115
        $region18: #{forward.1} parent=11 // pred_check_branch
          %659 = sbr.rel (%p657) target = $region20
        $region19: #{forward.1} parent=11 // pred_region
          _
        $region20: #{forward.1} parent=11 // pred_fallthru
          _
        // Predicated region
        $region21: #{forward.1} parent=11 // pred_check
          %p660 = pneg %p136
        $region22: #{forward.1} parent=11 // pred_check_branch
          %662 = sbr.rel (%p660) target = $region24
        $region23: #{forward.1} parent=11 // pred_region
          %s664 = ssub.s32 1152, 1152
          %665 = vsyncadd [#allocation7], %s664
          %s666 = sshll.u32 [#allocation6], 4
          %s667 = int_to_ptr.vmem [resolvable:$true] %s666
          %672 = dma.hbm_to_vmem [thread:$0]  %s3, 1152, %s667, [#allocation7], 64, 64, 4
        $region24: #{forward.1} parent=11 // pred_fallthru
          _
        // Predicated region
        $region25: #{forward.1} parent=11 // pred_check
          %p673 = pneg %p157
        $region26: #{forward.1} parent=11 // pred_check_branch
          %675 = sbr.rel (%p673) target = $region28
        $region27: #{forward.1} parent=11 // pred_region
          %s677 = ssub.s32 1024, 1024
          %678 = vsyncadd [#allocation7], %s677
          %s679 = sshll.u32 [#allocation8], 4
          %s680 = int_to_ptr.vmem [resolvable:$true] %s679
          %685 = dma.hbm_to_vmem [thread:$0]  %s4, 1024, %s680, [#allocation7], 128, 128, 8
        $region28: #{forward.1} parent=11 // pred_fallthru
          _
        // Predicated region
        $region29: #{forward.1} parent=11 // pred_check
          %p686 = pneg %p178
        $region30: #{forward.1} parent=11 // pred_check_branch
          %688 = sbr.rel (%p686) target = $region32
        $region31: #{forward.1} parent=11 // pred_region
          %s690 = ssub.s32 512, 512
          %691 = vsyncadd [#allocation10], %s690
          %s692 = sshll.u32 [#allocation9], 4
          %s693 = int_to_ptr.vmem [resolvable:$true] %s692
          %698 = dma.hbm_to_vmem [thread:$0]  %s5, 512, %s693, [#allocation10], 128, 128, 8
        $region32: #{forward.1} parent=11 // pred_fallthru
          _
        // Predicated region
        $region33: #{forward.1} parent=11 // pred_check
          %p699 = pneg %p199
        $region34: #{forward.1} parent=11 // pred_check_branch
          %701 = sbr.rel (%p699) target = $region36
        $region35: #{forward.1} parent=11 // pred_region
          _
        $region36: #{forward.1} parent=11 // pred_fallthru
          _
        // Predicated region
        $region37: #{forward.1} parent=11 // pred_check
          %p702 = pneg %p220
        $region38: #{forward.1} parent=11 // pred_check_branch
          %704 = sbr.rel (%p702) target = $region40
        $region39: #{forward.1} parent=11 // pred_region
          %s706 = ssub.s32 256, 256
          %707 = vsyncadd [#allocation10], %s706
          %s708 = sshll.u32 [#allocation11], 4
          %s709 = int_to_ptr.vmem [resolvable:$true] %s708
          %714 = dma.hbm_to_vmem [thread:$0]  %s7, 256, %s709, [#allocation10], 128, 128, 8
        $region40: #{forward.1} parent=11 // pred_fallthru
          _
        // Predicated region
        $region41: #{forward.1} parent=11 // pred_check
          %p715 = pneg %p241
        $region42: #{forward.1} parent=11 // pred_check_branch
          %717 = sbr.rel (%p715) target = $region44
        $region43: #{forward.1} parent=11 // pred_region
          %s719 = ssub.s32 512, 512
          %720 = vsyncadd [#allocation13], %s719
          %s721 = sshll.u32 [#allocation12], 4
          %s722 = int_to_ptr.vmem [resolvable:$true] %s721
          %727 = dma.hbm_to_vmem [thread:$0]  %s8, 512, %s722, [#allocation13], 128, 128, 8
        $region44: #{forward.1} parent=11 // pred_fallthru
          _
        // Predicated region
        $region45: #{forward.1} parent=11 // pred_check
          %p728 = pneg %p262
        $region46: #{forward.1} parent=11 // pred_check_branch
          %730 = sbr.rel (%p728) target = $region48
        $region47: #{forward.1} parent=11 // pred_region
          _
        $region48: #{forward.1} parent=11 // pred_fallthru
          _
        // Predicated region
        $region49: #{forward.1} parent=11 // pred_check
          %p731 = pneg %p283
        $region50: #{forward.1} parent=11 // pred_check_branch
          %733 = sbr.rel (%p731) target = $region52
        $region51: #{forward.1} parent=11 // pred_region
          %s735 = ssub.s32 512, 512
          %736 = vsyncadd [#allocation13], %s735
          %s737 = sshll.u32 [#allocation14], 4
          %s738 = int_to_ptr.vmem [resolvable:$true] %s737
          %743 = dma.hbm_to_vmem [thread:$0]  %s10, 512, %s738, [#allocation13], 128, 128, 8
        $region52: #{forward.1} parent=11 // pred_fallthru
          _
        // Predicated region
        $region53: #{forward.1} parent=11 // pred_check
          %p744 = pneg %p304
        $region54: #{forward.1} parent=11 // pred_check_branch
          %746 = sbr.rel (%p744) target = $region56
        $region55: #{forward.1} parent=11 // pred_region
          %s748 = ssub.s32 2304, 2304
          %749 = vsyncadd [#allocation16], %s748
          %s750 = sshll.u32 [#allocation15], 4
          %s751 = int_to_ptr.vmem [resolvable:$true] %s750
          %756 = dma.hbm_to_vmem [thread:$0]  %s11, 2304, %s751, [#allocation16], 64, 64, 4
        $region56: #{forward.1} parent=11 // pred_fallthru
          _
        // Predicated region
        $region57: #{forward.1} parent=11 // pred_check
          %p757 = pneg %p325
        $region58: #{forward.1} parent=11 // pred_check_branch
          %759 = sbr.rel (%p757) target = $region60
        $region59: #{forward.1} parent=11 // pred_region
          %s761 = ssub.s32 1152, 1152
          %762 = vsyncadd [#allocation16], %s761
          %s763 = sshll.u32 [#allocation17], 4
          %s764 = int_to_ptr.vmem [resolvable:$true] %s763
          %769 = dma.hbm_to_vmem [thread:$0]  %s12, 1152, %s764, [#allocation16], 64, 64, 4
        $region60: #{forward.1} parent=11 // pred_fallthru
          _
        // Predicated region
        $region61: #{forward.1} parent=11 // pred_check
          %p770 = pneg %p346
        $region62: #{forward.1} parent=11 // pred_check_branch
          %772 = sbr.rel (%p770) target = $region64
        $region63: #{forward.1} parent=11 // pred_region
          %s774 = ssub.s32 256, 256
          %775 = vsyncadd [#allocation19], %s774
          %s776 = sshll.u32 [#allocation18], 4
          %s777 = int_to_ptr.vmem [resolvable:$true] %s776
          %782 = dma.hbm_to_vmem [thread:$0]  %s13, 256, %s777, [#allocation19], 128, 128, 8
        $region64: #{forward.1} parent=11 // pred_fallthru
          _
        // Predicated region
        $region65: #{forward.1} parent=11 // pred_check
          %p783 = pneg %p367
        $region66: #{forward.1} parent=11 // pred_check_branch
          %785 = sbr.rel (%p783) target = $region68
        $region67: #{forward.1} parent=11 // pred_region
          %s787 = ssub.s32 1152, 1152
          %788 = vsyncadd [#allocation19], %s787
          %s789 = sshll.u32 [#allocation20], 4
          %s790 = int_to_ptr.vmem [resolvable:$true] %s789
          %795 = dma.hbm_to_vmem [thread:$0]  %s14, 1152, %s790, [#allocation19], 64, 64, 4
        $region68: #{forward.1} parent=11 // pred_fallthru
          _
        // Predicated region
        $region69: #{forward.1} parent=11 // pred_check
          %p796 = pneg %p388
        $region70: #{forward.1} parent=11 // pred_check_branch
          %798 = sbr.rel (%p796) target = $region72
        $region71: #{forward.1} parent=11 // pred_region
          %s800 = ssub.s32 1152, 1152
          %801 = vsyncadd [#allocation22], %s800
          %s802 = sshll.u32 [#allocation21], 4
          %s803 = int_to_ptr.vmem [resolvable:$true] %s802
          %808 = dma.hbm_to_vmem [thread:$0]  %s15, 1152, %s803, [#allocation22], 64, 64, 4
        $region72: #{forward.1} parent=11 // pred_fallthru
          _
        // Predicated region
        $region73: #{forward.1} parent=11 // pred_check
          %p809 = pneg %p409
        $region74: #{forward.1} parent=11 // pred_check_branch
          %811 = sbr.rel (%p809) target = $region76
        $region75: #{forward.1} parent=11 // pred_region
          %s813 = ssub.s32 9216, 9216
          %814 = vsyncadd [#allocation22], %s813
          %s815 = sshll.u32 [#allocation23], 4
          %s816 = int_to_ptr.vmem [resolvable:$true] %s815
          %821 = dma.hbm_to_vmem [thread:$0]  %s16, 9216, %s816, [#allocation22], 128, 128, 8
        $region76: #{forward.1} parent=11 // pred_fallthru
          _
        // Predicated region
        $region77: #{forward.1} parent=11 // pred_check
          %p822 = pneg %p430
        $region78: #{forward.1} parent=11 // pred_check_branch
          %824 = sbr.rel (%p822) target = $region80
        $region79: #{forward.1} parent=11 // pred_region
          %s826 = ssub.s32 128, 128
          %827 = vsyncadd [#allocation25], %s826
          %s829 = sshll.u32 [#allocation24], 4
          %s830 = int_to_ptr.vmem [resolvable:$true] %s829
          %832 = dma.hbm_to_vmem [thread:$0]  %s17, 128, %s830, [#allocation25]
        $region80: #{forward.1} parent=11 // pred_fallthru
          _
        // Predicated region
        $region81: #{forward.1} parent=11 // pred_check
          %p833 = pneg %p451
        $region82: #{forward.1} parent=11 // pred_check_branch
          %835 = sbr.rel (%p833) target = $region84
        $region83: #{forward.1} parent=11 // pred_region
          %s837 = ssub.s32 1152, 1152
          %838 = vsyncadd [#allocation25], %s837
          %s839 = sshll.u32 [#allocation26], 4
          %s840 = int_to_ptr.vmem [resolvable:$true] %s839
          %845 = dma.hbm_to_vmem [thread:$0]  %s18, 1152, %s840, [#allocation25], 128, 128, 8
        $region84: #{forward.1} parent=11 // pred_fallthru
          _
        // Predicated region
        $region85: #{forward.1} parent=11 // pred_check
          %p846 = pneg %p472
        $region86: #{forward.1} parent=11 // pred_check_branch
          %848 = sbr.rel (%p846) target = $region88
        $region87: #{forward.1} parent=11 // pred_region
          %s850 = ssub.s32 576, 576
          %851 = vsyncadd [#allocation28], %s850
          %s852 = sshll.u32 [#allocation27], 4
          %s853 = int_to_ptr.vmem [resolvable:$true] %s852
          %858 = dma.hbm_to_vmem [thread:$0]  %s19, 576, %s853, [#allocation28], 64, 64, 4
        $region88: #{forward.1} parent=11 // pred_fallthru
          _
        // Predicated region
        $region89: #{forward.1} parent=11 // pred_check
          %p859 = pneg %p493
        $region90: #{forward.1} parent=11 // pred_check_branch
          %861 = sbr.rel (%p859) target = $region92
        $region91: #{forward.1} parent=11 // pred_region
          %s863 = ssub.s32 576, 576
          %864 = vsyncadd [#allocation28], %s863
          %s865 = sshll.u32 [#allocation29], 4
          %s866 = int_to_ptr.vmem [resolvable:$true] %s865
          %871 = dma.hbm_to_vmem [thread:$0]  %s20, 576, %s866, [#allocation28], 64, 64, 4
        $region92: #{forward.1} parent=11 // pred_fallthru
          _
        // Predicated region
        $region93: #{forward.1} parent=11 // pred_check
          %p872 = pneg %p514
        $region94: #{forward.1} parent=11 // pred_check_branch
          %874 = sbr.rel (%p872) target = $region96
        $region95: #{forward.1} parent=11 // pred_region
          %s876 = ssub.s32 16, 16
          %877 = vsyncadd [#allocation31], %s876
          %s879 = sshll.u32 [#allocation30], 4
          %s880 = int_to_ptr.vmem [resolvable:$true] %s879
          %882 = dma.hbm_to_vmem [thread:$0]  %s21, 16, %s880, [#allocation31]
        $region96: #{forward.1} parent=11 // pred_fallthru
          _
        // Predicated region
        $region97: #{forward.1} parent=11 // pred_check
          %p883 = pneg %p535
        $region98: #{forward.1} parent=11 // pred_check_branch
          %885 = sbr.rel (%p883) target = $region100
        $region99: #{forward.1} parent=11 // pred_region
          _
        $region100: #{forward.1} parent=11 // pred_fallthru
          _
        // Predicated region
        $region101: #{forward.1} parent=11 // pred_check
          %p886 = pneg %p556
        $region102: #{forward.1} parent=11 // pred_check_branch
          %888 = sbr.rel (%p886) target = $region104
        $region103: #{forward.1} parent=11 // pred_region
          %s890 = ssub.s32 16, 16
          %891 = vsyncadd [#allocation31], %s890
          %s893 = sshll.u32 [#allocation32], 4
          %s894 = int_to_ptr.vmem [resolvable:$true] %s893
          %896 = dma.hbm_to_vmem [thread:$0]  %s23, 16, %s894, [#allocation31]
        $region104: #{forward.1} parent=11 // pred_fallthru
          _
        // Predicated region
        $region105: #{forward.1} parent=11 // pred_check
          %p897 = pneg %p577
        $region106: #{forward.1} parent=11 // pred_check_branch
          %899 = sbr.rel (%p897) target = $region108
        $region107: #{forward.1} parent=11 // pred_region
          _
        $region108: #{forward.1} parent=11 // pred_fallthru
          _
      $region12: #{forward.1} parent=5 // pred_fallthru
        _
      %p900 = scmp.lt.s32.totalorder %s47, 2
      // Predicated region
      $region109: #{forward.1} parent=5 // pred_check
        %p901 = pneg %p900
      $region110: #{forward.1} parent=5 // pred_check_branch
        %903 = sbr.rel (%p901) target = $region112
      $region111: #{forward.1} parent=5 // pred_region
        // Predicated region
        $region113: #{forward.1} parent=111 // pred_check
          %p904 = pneg %p67
        $region114: #{forward.1} parent=111 // pred_check_branch
          %906 = sbr.rel (%p904) target = $region116
        $region115: #{forward.1} parent=111 // pred_region
          %p907 = scmp.lt.s32.totalorder %s47, 1
          %s908 = scalar_select %p907, %s47, 1
          %s909 = smul.addr %s908, 2
          %s910 = smul.addr %s909, 2
          %s911 = scalar_lea.vmem %s0, %s910
        $region116: #{forward.1} parent=111 // pred_fallthru
          _
      $region112: #{forward.1} parent=5 // pred_fallthru
        _
      %p912 = scmp.le.s32.totalorder 1, %s47
      %p913 = scmp.lt.s32.totalorder %s47, 3
      %p914 = pnand %p912, %p913
      %p915 = pneg %p914
      // Predicated region
      $region117: #{forward.1} parent=5 // pred_check
        _
      $region118: #{forward.1} parent=5 // pred_check_branch
        %917 = sbr.rel (%p914) target = $region120
      $region119: #{forward.1} parent=5 // pred_region
        %s918 = ssub.s32 %s47, 1
        // Predicated region
        $region121: #{forward.1} parent=119 // pred_check
          %p919 = pneg %p94
        $region122: #{forward.1} parent=119 // pred_check_branch
          %921 = sbr.rel (%p919) target = $region124
        $region123: #{forward.1} parent=119 // pred_region
          %922 = dma.done [#allocation5], 10240
        $region124: #{forward.1} parent=119 // pred_fallthru
          _
        // Predicated region
        $region125: #{forward.1} parent=119 // pred_check
          %p923 = pneg %p136
        $region126: #{forward.1} parent=119 // pred_check_branch
          %925 = sbr.rel (%p923) target = $region128
        $region127: #{forward.1} parent=119 // pred_region
          %926 = dma.done [#allocation7], 1152
        $region128: #{forward.1} parent=119 // pred_fallthru
          _
        // Predicated region
        $region129: #{forward.1} parent=119 // pred_check
          %p927 = pneg %p157
        $region130: #{forward.1} parent=119 // pred_check_branch
          %929 = sbr.rel (%p927) target = $region132
        $region131: #{forward.1} parent=119 // pred_region
          %930 = dma.done [#allocation7], 1024
        $region132: #{forward.1} parent=119 // pred_fallthru
          _
        // Predicated region
        $region133: #{forward.1} parent=119 // pred_check
          %p931 = pneg %p178
        $region134: #{forward.1} parent=119 // pred_check_branch
          %933 = sbr.rel (%p931) target = $region136
        $region135: #{forward.1} parent=119 // pred_region
          %934 = dma.done [#allocation10], 512
        $region136: #{forward.1} parent=119 // pred_fallthru
          _
        // Predicated region
        $region137: #{forward.1} parent=119 // pred_check
          %p935 = pneg %p220
        $region138: #{forward.1} parent=119 // pred_check_branch
          %937 = sbr.rel (%p935) target = $region140
        $region139: #{forward.1} parent=119 // pred_region
          %938 = dma.done [#allocation10], 256
        $region140: #{forward.1} parent=119 // pred_fallthru
          _
        // Predicated region
        $region141: #{forward.1} parent=119 // pred_check
          %p939 = pneg %p241
        $region142: #{forward.1} parent=119 // pred_check_branch
          %941 = sbr.rel (%p939) target = $region144
        $region143: #{forward.1} parent=119 // pred_region
          %942 = dma.done [#allocation13], 512
        $region144: #{forward.1} parent=119 // pred_fallthru
          _
        // Predicated region
        $region145: #{forward.1} parent=119 // pred_check
          %p943 = pneg %p283
        $region146: #{forward.1} parent=119 // pred_check_branch
          %945 = sbr.rel (%p943) target = $region148
        $region147: #{forward.1} parent=119 // pred_region
          %946 = dma.done [#allocation13], 512
        $region148: #{forward.1} parent=119 // pred_fallthru
          _
        // Predicated region
        $region149: #{forward.1} parent=119 // pred_check
          %p947 = pneg %p304
        $region150: #{forward.1} parent=119 // pred_check_branch
          %949 = sbr.rel (%p947) target = $region152
        $region151: #{forward.1} parent=119 // pred_region
          %950 = dma.done [#allocation16], 2304
        $region152: #{forward.1} parent=119 // pred_fallthru
          _
        // Predicated region
        $region153: #{forward.1} parent=119 // pred_check
          %p951 = pneg %p325
        $region154: #{forward.1} parent=119 // pred_check_branch
          %953 = sbr.rel (%p951) target = $region156
        $region155: #{forward.1} parent=119 // pred_region
          %954 = dma.done [#allocation16], 1152
        $region156: #{forward.1} parent=119 // pred_fallthru
          _
        // Predicated region
        $region157: #{forward.1} parent=119 // pred_check
          %p955 = pneg %p346
        $region158: #{forward.1} parent=119 // pred_check_branch
          %957 = sbr.rel (%p955) target = $region160
        $region159: #{forward.1} parent=119 // pred_region
          %958 = dma.done [#allocation19], 256
        $region160: #{forward.1} parent=119 // pred_fallthru
          _
        // Predicated region
        $region161: #{forward.1} parent=119 // pred_check
          %p959 = pneg %p367
        $region162: #{forward.1} parent=119 // pred_check_branch
          %961 = sbr.rel (%p959) target = $region164
        $region163: #{forward.1} parent=119 // pred_region
          %962 = dma.done [#allocation19], 1152
        $region164: #{forward.1} parent=119 // pred_fallthru
          _
        // Predicated region
        $region165: #{forward.1} parent=119 // pred_check
          %p963 = pneg %p388
        $region166: #{forward.1} parent=119 // pred_check_branch
          %965 = sbr.rel (%p963) target = $region168
        $region167: #{forward.1} parent=119 // pred_region
          %966 = dma.done [#allocation22], 1152
        $region168: #{forward.1} parent=119 // pred_fallthru
          _
        // Predicated region
        $region169: #{forward.1} parent=119 // pred_check
          %p967 = pneg %p409
        $region170: #{forward.1} parent=119 // pred_check_branch
          %969 = sbr.rel (%p967) target = $region172
        $region171: #{forward.1} parent=119 // pred_region
          %970 = dma.done [#allocation22], 9216
        $region172: #{forward.1} parent=119 // pred_fallthru
          _
        // Predicated region
        $region173: #{forward.1} parent=119 // pred_check
          %p971 = pneg %p430
        $region174: #{forward.1} parent=119 // pred_check_branch
          %973 = sbr.rel (%p971) target = $region176
        $region175: #{forward.1} parent=119 // pred_region
          %974 = dma.done [#allocation25], 128
        $region176: #{forward.1} parent=119 // pred_fallthru
          _
        // Predicated region
        $region177: #{forward.1} parent=119 // pred_check
          %p975 = pneg %p451
        $region178: #{forward.1} parent=119 // pred_check_branch
          %977 = sbr.rel (%p975) target = $region180
        $region179: #{forward.1} parent=119 // pred_region
          %978 = dma.done [#allocation25], 1152
        $region180: #{forward.1} parent=119 // pred_fallthru
          _
        // Predicated region
        $region181: #{forward.1} parent=119 // pred_check
          %p979 = pneg %p472
        $region182: #{forward.1} parent=119 // pred_check_branch
          %981 = sbr.rel (%p979) target = $region184
        $region183: #{forward.1} parent=119 // pred_region
          %982 = dma.done [#allocation28], 576
        $region184: #{forward.1} parent=119 // pred_fallthru
          _
        // Predicated region
        $region185: #{forward.1} parent=119 // pred_check
          %p983 = pneg %p493
        $region186: #{forward.1} parent=119 // pred_check_branch
          %985 = sbr.rel (%p983) target = $region188
        $region187: #{forward.1} parent=119 // pred_region
          %986 = dma.done [#allocation28], 576
        $region188: #{forward.1} parent=119 // pred_fallthru
          _
        // Predicated region
        $region189: #{forward.1} parent=119 // pred_check
          %p987 = pneg %p514
        $region190: #{forward.1} parent=119 // pred_check_branch
          %989 = sbr.rel (%p987) target = $region192
        $region191: #{forward.1} parent=119 // pred_region
          %990 = dma.done [#allocation31], 16
        $region192: #{forward.1} parent=119 // pred_fallthru
          _
        // Predicated region
        $region193: #{forward.1} parent=119 // pred_check
          %p991 = pneg %p556
        $region194: #{forward.1} parent=119 // pred_check_branch
          %993 = sbr.rel (%p991) target = $region196
        $region195: #{forward.1} parent=119 // pred_region
          %994 = dma.done [#allocation31], 16
        $region196: #{forward.1} parent=119 // pred_fallthru
          _
        %p995 = scmp.lt.s32.totalorder %s52, 1
        %s996 = scalar_select %p995, %s52, 1
        %s997 = smul.addr %s996, 2
        %s998 = smul.addr %s997, 2
        %s999 = scalar_lea.vmem %s0, %s998
        %p1000 = pneg %p73
        %p1001 = pneg %p70
        %p1002 = pneg %p94
        %p1003 = pneg %p91
        %p1004 = pneg %p115
        %p1005 = pneg %p112
        %p1006 = pneg %p136
        %p1007 = pneg %p133
        %p1008 = pneg %p157
        %p1009 = pneg %p154
        %p1010 = pneg %p178
        %p1011 = pneg %p175
        %p1012 = pneg %p199
        %p1013 = pneg %p196
        %p1014 = pneg %p220
        %p1015 = pneg %p217
        %p1016 = pneg %p241
        %p1017 = pneg %p238
        %p1018 = pneg %p262
        %p1019 = pneg %p259
        %p1020 = pneg %p283
        %p1021 = pneg %p280
        %p1022 = pneg %p304
        %p1023 = pneg %p301
        %p1024 = pneg %p325
        %p1025 = pneg %p322
        %p1026 = pneg %p346
        %p1027 = pneg %p343
        %p1028 = pneg %p367
        %p1029 = pneg %p364
        %p1030 = pneg %p388
        %p1031 = pneg %p385
        %p1032 = pneg %p409
        %p1033 = pneg %p406
        %p1034 = pneg %p430
        %p1035 = pneg %p427
        %p1036 = pneg %p451
        %p1037 = pneg %p448
        %p1038 = pneg %p472
        %p1039 = pneg %p469
        %p1040 = pneg %p493
        %p1041 = pneg %p490
        %p1042 = pneg %p514
        %p1043 = pneg %p511
        %p1044 = pneg %p535
        %p1045 = pneg %p532
        %p1046 = pneg %p556
        %p1047 = pneg %p553
        %p1048 = pneg %p577
        %p1049 = pneg %p574
        %p1050 = pneg %p603
        %p1051 = pneg %p600
        %p1052 = scmp.lt.s32.totalorder %s52, 1
        %s1053 = scalar_select %p1052, %s52, 1
        %s1054 = scalar_lea.vmem %s25, %s1053
        %p1055 = pneg %p629
        %p1056 = pneg %p626
        %p1057 = scmp.lt.s32.totalorder %s52, 1
        %s1058 = scalar_select %p1057, %s52, 1
        %s1059 = smul.addr %s1058, 2
        %s1060 = scalar_lea.vmem %s26, %s1059
        %p1061 = scmp.lt.s32.totalorder %s52, 1
        %s1062 = scalar_select %p1061, %s52, 1
        %s1063 = smul.addr %s1062, 2
        %s1064 = smul.addr %s1063, 2
        %s1065 = scalar_lea.vmem %s0, %s1064
        %p1066 = scmp.lt.s32.totalorder %s52, 1
        %s1067 = scalar_select %p1066, %s52, 1
        %s1068 = scalar_lea.vmem %s25, %s1067
        %p1069 = scmp.lt.s32.totalorder %s52, 1
        %s1070 = scalar_select %p1069, %s52, 1
        %s1071 = smul.addr %s1070, 2
        %s1072 = scalar_lea.vmem %s26, %s1071
        %v1074 = vld [vmem:[%s1065] sm:$0xf]
        %v1075 = vld [vmem:[#allocation4] sm:$0xff]
        %v1076 = vld [vmem:[#allocation4 + $0x8] sm:$0xff]
        %v1077 = vld [vmem:[#allocation4 + $0x10] sm:$0xf]
        %v1078 = vld [vmem:[#allocation4 + $0x14] sm:$0xff]
        %v1079 = vld [vmem:[#allocation4 + $0x1c] sm:$0xff]
        %v1080 = vld [vmem:[#allocation4 + $0x24] sm:$0xf]
        %v1081 = vld [vmem:[#allocation4 + $0x28] sm:$0xff]
        %v1082 = vld [vmem:[#allocation4 + $0x30] sm:$0xff]
        %v1083 = vld [vmem:[#allocation4 + $0x38] sm:$0xf]
        %v1084 = vld [vmem:[#allocation4 + $0x3c] sm:$0xff]
        %v1085 = vld [vmem:[#allocation4 + $0x44] sm:$0xff]
        %v1086 = vld [vmem:[#allocation4 + $0x4c] sm:$0xf]
        %v1087 = vld [vmem:[#allocation4 + $0x50] sm:$0xff]
        %v1088 = vld [vmem:[#allocation4 + $0x58] sm:$0xff]
        %v1089 = vld [vmem:[#allocation4 + $0x60] sm:$0xf]
        %v1090 = vld [vmem:[#allocation4 + $0x64] sm:$0xff]
        %v1091 = vld [vmem:[#allocation4 + $0x6c] sm:$0xff]
        %v1092 = vld [vmem:[#allocation4 + $0x74] sm:$0xf]
        %v1093 = vld [vmem:[#allocation4 + $0x78] sm:$0xff]
        %v1094 = vld [vmem:[#allocation4 + $0x80] sm:$0xff]
        %v1095 = vld [vmem:[#allocation4 + $0x88] sm:$0xf]
        %v1096 = vld [vmem:[#allocation4 + $0x8c] sm:$0xff]
        %v1097 = vld [vmem:[#allocation4 + $0x94] sm:$0xff]
        %v1098 = vld [vmem:[#allocation4 + $0x9c] sm:$0xf]
        %v1099 = vld [vmem:[#allocation4 + $0xa0] sm:$0xff]
        %v1100 = vld [vmem:[#allocation4 + $0xa8] sm:$0xff]
        %v1101 = vld [vmem:[#allocation4 + $0xb0] sm:$0xf]
        %v1102 = vld [vmem:[#allocation4 + $0xb4] sm:$0xff]
        %v1103 = vld [vmem:[#allocation4 + $0xbc] sm:$0xff]
        %v1104 = vld [vmem:[#allocation4 + $0xc4] sm:$0xf]
        %v1105 = vld [vmem:[#allocation4 + $0xc8] sm:$0xff]
        %v1106 = vld [vmem:[#allocation4 + $0xd0] sm:$0xff]
        %v1107 = vld [vmem:[#allocation4 + $0xd8] sm:$0xf]
        %v1108 = vld [vmem:[#allocation4 + $0xdc] sm:$0xff]
        %v1109 = vld [vmem:[#allocation4 + $0xe4] sm:$0xff]
        %v1110 = vld [vmem:[#allocation4 + $0xec] sm:$0xf]
        %v1111 = vld [vmem:[#allocation4 + $0xf0] sm:$0xff]
        %v1112 = vld [vmem:[#allocation4 + $0xf8] sm:$0xff]
        %v1113 = vld [vmem:[#allocation4 + $0x100] sm:$0xf]
        %v1114 = vld [vmem:[#allocation4 + $0x104] sm:$0xff]
        %v1115 = vld [vmem:[#allocation4 + $0x10c] sm:$0xff]
        %v1116 = vld [vmem:[#allocation4 + $0x114] sm:$0xf]
        %v1117 = vld [vmem:[#allocation4 + $0x118] sm:$0xff]
        %v1118 = vld [vmem:[#allocation4 + $0x120] sm:$0xff]
        %v1119 = vld [vmem:[#allocation4 + $0x128] sm:$0xf]
        %v1120 = vld [vmem:[#allocation4 + $0x12c] sm:$0xff]
        %v1121 = vld [vmem:[#allocation4 + $0x134] sm:$0xff]
        %v1122 = vld [vmem:[#allocation4 + $0x13c] sm:$0xf]
        %v1123 = vld [vmem:[#allocation4 + $0x140] sm:$0xff]
        %v1124 = vld [vmem:[#allocation4 + $0x148] sm:$0xff]
        %v1125 = vld [vmem:[#allocation4 + $0x150] sm:$0xf]
        %v1126 = vld [vmem:[#allocation4 + $0x154] sm:$0xff]
        %v1127 = vld [vmem:[#allocation4 + $0x15c] sm:$0xff]
        %v1128 = vld [vmem:[#allocation4 + $0x164] sm:$0xf]
        %v1129 = vld [vmem:[#allocation4 + $0x168] sm:$0xff]
        %v1130 = vld [vmem:[#allocation4 + $0x170] sm:$0xff]
        %v1131 = vld [vmem:[#allocation4 + $0x178] sm:$0xf]
        %v1132 = vld [vmem:[#allocation4 + $0x17c] sm:$0xff]
        %v1133 = vld [vmem:[#allocation4 + $0x184] sm:$0xff]
        %v1134 = vld [vmem:[#allocation4 + $0x18c] sm:$0xf]
        %v1135 = vld [vmem:[#allocation4 + $0x190] sm:$0xff]
        %v1136 = vld [vmem:[#allocation4 + $0x198] sm:$0xff]
        %v1137 = vld [vmem:[#allocation4 + $0x1a0] sm:$0xf]
        %v1138 = vld [vmem:[#allocation4 + $0x1a4] sm:$0xff]
        %v1139 = vld [vmem:[#allocation4 + $0x1ac] sm:$0xff]
        %v1140 = vld [vmem:[#allocation4 + $0x1b4] sm:$0xf]
        %v1141 = vld [vmem:[#allocation4 + $0x1b8] sm:$0xff]
        %v1142 = vld [vmem:[#allocation4 + $0x1c0] sm:$0xff]
        %v1143 = vld [vmem:[#allocation4 + $0x1c8] sm:$0xf]
        %v1144 = vld [vmem:[#allocation4 + $0x1cc] sm:$0xff]
        %v1145 = vld [vmem:[#allocation4 + $0x1d4] sm:$0xff]
        %v1146 = vld [vmem:[#allocation4 + $0x1dc] sm:$0xf]
        %v1147 = vld [vmem:[#allocation4 + $0x1e0] sm:$0xff]
        %v1148 = vld [vmem:[#allocation4 + $0x1e8] sm:$0xff]
        %v1149 = vld [vmem:[#allocation4 + $0x1f0] sm:$0xf]
        %v1150 = vld [vmem:[#allocation4 + $0x1f4] sm:$0xff]
        %v1151 = vld [vmem:[#allocation4 + $0x1fc] sm:$0xff]
        %v1152 = vld [vmem:[#allocation4 + $0x204] sm:$0xf]
        %v1153 = vld [vmem:[#allocation4 + $0x208] sm:$0xff]
        %v1154 = vld [vmem:[#allocation4 + $0x210] sm:$0xff]
        %v1155 = vld [vmem:[#allocation4 + $0x218] sm:$0xf]
        %v1156 = vld [vmem:[#allocation4 + $0x21c] sm:$0xff]
        %v1157 = vld [vmem:[#allocation4 + $0x224] sm:$0xff]
        %v1158 = vld [vmem:[#allocation4 + $0x22c] sm:$0xf]
        %v1159 = vld [vmem:[#allocation4 + $0x230] sm:$0xff]
        %v1160 = vld [vmem:[#allocation4 + $0x238] sm:$0xff]
        %v1161 = vld [vmem:[#allocation4 + $0x240] sm:$0xf]
        %v1162 = vld [vmem:[#allocation4 + $0x244] sm:$0xff]
        %v1163 = vld [vmem:[#allocation4 + $0x24c] sm:$0xff]
        %v1164 = vld [vmem:[#allocation4 + $0x254] sm:$0xf]
        %v1165 = vld [vmem:[#allocation4 + $0x258] sm:$0xff]
        %v1166 = vld [vmem:[#allocation4 + $0x260] sm:$0xff]
        %v1167 = vld [vmem:[#allocation4 + $0x268] sm:$0xf]
        %v1168 = vld [vmem:[#allocation4 + $0x26c] sm:$0xff]
        %v1169 = vld [vmem:[#allocation4 + $0x274] sm:$0xff]
        %v1170 = vld [vmem:[#allocation4 + $0x27c] sm:$0xf]
        %v1173 = vunpack.c.l.s4 1983009808
        %v1174 = vunpack.c.0.s8 %v1173
        %v1175 = vlaneseq
        %v1176 = vshrl.u32 %v1175, 7
        %v1177 = vsub.s32 %v1174, %v1176
        %v1178 = vrot.slane %v1074, %v1177
        %v1179 = vcombine.high %v1178, %v1178
        %v1278 = vunpack.c.l.b16 %v1075
        %v1279 = vunpack.c.h.b16 %v1075
        %v1280 = vunpack.c.l.b16 %v1076
        %v1281 = vunpack.c.h.b16 %v1076
        %v1282 = vunpack.c.l.b16 %v1077
        %v1283 = vunpack.c.l.b16 %v1078
        %v1284 = vunpack.c.h.b16 %v1078
        %v1285 = vunpack.c.l.b16 %v1079
        %v1286 = vunpack.c.h.b16 %v1079
        %v1287 = vunpack.c.l.b16 %v1080
        %v1288 = vunpack.c.l.b16 %v1081
        %v1289 = vunpack.c.h.b16 %v1081
        %v1290 = vunpack.c.l.b16 %v1082
        %v1291 = vunpack.c.h.b16 %v1082
        %v1292 = vunpack.c.l.b16 %v1083
        %v1293 = vunpack.c.l.b16 %v1084
        %v1294 = vunpack.c.h.b16 %v1084
        %v1295 = vunpack.c.l.b16 %v1085
        %v1296 = vunpack.c.h.b16 %v1085
        %v1297 = vunpack.c.l.b16 %v1086
        %v1298 = vunpack.c.l.b16 %v1087
        %v1299 = vunpack.c.h.b16 %v1087
        %v1300 = vunpack.c.l.b16 %v1088
        %v1301 = vunpack.c.h.b16 %v1088
        %v1302 = vunpack.c.l.b16 %v1089
        %v1303 = vunpack.c.l.b16 %v1090
        %v1304 = vunpack.c.h.b16 %v1090
        %v1305 = vunpack.c.l.b16 %v1091
        %v1306 = vunpack.c.h.b16 %v1091
        %v1307 = vunpack.c.l.b16 %v1092
        %v1308 = vunpack.c.l.b16 %v1093
        %v1309 = vunpack.c.h.b16 %v1093
        %v1310 = vunpack.c.l.b16 %v1094
        %v1311 = vunpack.c.h.b16 %v1094
        %v1312 = vunpack.c.l.b16 %v1095
        %v1313 = vunpack.c.l.b16 %v1096
        %v1314 = vunpack.c.h.b16 %v1096
        %v1315 = vunpack.c.l.b16 %v1097
        %v1316 = vunpack.c.h.b16 %v1097
        %v1317 = vunpack.c.l.b16 %v1098
        %v1318 = vunpack.c.l.b16 %v1099
        %v1319 = vunpack.c.h.b16 %v1099
        %v1320 = vunpack.c.l.b16 %v1100
        %v1321 = vunpack.c.h.b16 %v1100
        %v1322 = vunpack.c.l.b16 %v1101
        %v1323 = vunpack.c.l.b16 %v1102
        %v1324 = vunpack.c.h.b16 %v1102
        %v1325 = vunpack.c.l.b16 %v1103
        %v1326 = vunpack.c.h.b16 %v1103
        %v1327 = vunpack.c.l.b16 %v1104
        %v1328 = vunpack.c.l.b16 %v1105
        %v1329 = vunpack.c.h.b16 %v1105
        %v1330 = vunpack.c.l.b16 %v1106
        %v1331 = vunpack.c.h.b16 %v1106
        %v1332 = vunpack.c.l.b16 %v1107
        %v1333 = vunpack.c.l.b16 %v1108
        %v1334 = vunpack.c.h.b16 %v1108
        %v1335 = vunpack.c.l.b16 %v1109
        %v1336 = vunpack.c.h.b16 %v1109
        %v1337 = vunpack.c.l.b16 %v1110
        %v1338 = vunpack.c.l.b16 %v1111
        %v1339 = vunpack.c.h.b16 %v1111
        %v1340 = vunpack.c.l.b16 %v1112
        %v1341 = vunpack.c.h.b16 %v1112
        %v1342 = vunpack.c.l.b16 %v1113
        %v1343 = vunpack.c.l.b16 %v1114
        %v1344 = vunpack.c.h.b16 %v1114
        %v1345 = vunpack.c.l.b16 %v1115
        %v1346 = vunpack.c.h.b16 %v1115
        %v1347 = vunpack.c.l.b16 %v1116
        %v1348 = vunpack.c.l.b16 %v1117
        %v1349 = vunpack.c.h.b16 %v1117
        %v1350 = vunpack.c.l.b16 %v1118
        %v1351 = vunpack.c.h.b16 %v1118
        %v1352 = vunpack.c.l.b16 %v1119
        %v1353 = vunpack.c.l.b16 %v1120
        %v1354 = vunpack.c.h.b16 %v1120
        %v1355 = vunpack.c.l.b16 %v1121
        %v1356 = vunpack.c.h.b16 %v1121
        %v1357 = vunpack.c.l.b16 %v1122
        %v1358 = vunpack.c.l.b16 %v1123
        %v1359 = vunpack.c.h.b16 %v1123
        %v1360 = vunpack.c.l.b16 %v1124
        %v1361 = vunpack.c.h.b16 %v1124
        %v1362 = vunpack.c.l.b16 %v1125
        %v1363 = vunpack.c.l.b16 %v1126
        %v1364 = vunpack.c.h.b16 %v1126
        %v1365 = vunpack.c.l.b16 %v1127
        %v1366 = vunpack.c.h.b16 %v1127
        %v1367 = vunpack.c.l.b16 %v1128
        %v1368 = vunpack.c.l.b16 %v1129
        %v1369 = vunpack.c.h.b16 %v1129
        %v1370 = vunpack.c.l.b16 %v1130
        %v1371 = vunpack.c.h.b16 %v1130
        %v1372 = vunpack.c.l.b16 %v1131
        %v1373 = vunpack.c.l.b16 %v1132
        %v1374 = vunpack.c.h.b16 %v1132
        %v1375 = vunpack.c.l.b16 %v1133
        %v1376 = vunpack.c.h.b16 %v1133
        %v1377 = vunpack.c.l.b16 %v1134
        %v1378 = vunpack.c.l.b16 %v1135
        %v1379 = vunpack.c.h.b16 %v1135
        %v1380 = vunpack.c.l.b16 %v1136
        %v1381 = vunpack.c.h.b16 %v1136
        %v1382 = vunpack.c.l.b16 %v1137
        %v1383 = vunpack.c.l.b16 %v1138
        %v1384 = vunpack.c.h.b16 %v1138
        %v1385 = vunpack.c.l.b16 %v1139
        %v1386 = vunpack.c.h.b16 %v1139
        %v1387 = vunpack.c.l.b16 %v1140
        %v1388 = vunpack.c.l.b16 %v1141
        %v1389 = vunpack.c.h.b16 %v1141
        %v1390 = vunpack.c.l.b16 %v1142
        %v1391 = vunpack.c.h.b16 %v1142
        %v1392 = vunpack.c.l.b16 %v1143
        %v1393 = vunpack.c.l.b16 %v1144
        %v1394 = vunpack.c.h.b16 %v1144
        %v1395 = vunpack.c.l.b16 %v1145
        %v1396 = vunpack.c.h.b16 %v1145
        %v1397 = vunpack.c.l.b16 %v1146
        %v1398 = vunpack.c.l.b16 %v1147
        %v1399 = vunpack.c.h.b16 %v1147
        %v1400 = vunpack.c.l.b16 %v1148
        %v1401 = vunpack.c.h.b16 %v1148
        %v1402 = vunpack.c.l.b16 %v1149
        %v1403 = vunpack.c.l.b16 %v1150
        %v1404 = vunpack.c.h.b16 %v1150
        %v1405 = vunpack.c.l.b16 %v1151
        %v1406 = vunpack.c.h.b16 %v1151
        %v1407 = vunpack.c.l.b16 %v1152
        %v1408 = vunpack.c.l.b16 %v1153
        %v1409 = vunpack.c.h.b16 %v1153
        %v1410 = vunpack.c.l.b16 %v1154
        %v1411 = vunpack.c.h.b16 %v1154
        %v1412 = vunpack.c.l.b16 %v1155
        %v1413 = vunpack.c.l.b16 %v1156
        %v1414 = vunpack.c.h.b16 %v1156
        %v1415 = vunpack.c.l.b16 %v1157
        %v1416 = vunpack.c.h.b16 %v1157
        %v1417 = vunpack.c.l.b16 %v1158
        %v1418 = vunpack.c.l.b16 %v1159
        %v1419 = vunpack.c.h.b16 %v1159
        %v1420 = vunpack.c.l.b16 %v1160
        %v1421 = vunpack.c.h.b16 %v1160
        %v1422 = vunpack.c.l.b16 %v1161
        %v1423 = vunpack.c.l.b16 %v1162
        %v1424 = vunpack.c.h.b16 %v1162
        %v1425 = vunpack.c.l.b16 %v1163
        %v1426 = vunpack.c.h.b16 %v1163
        %v1427 = vunpack.c.l.b16 %v1164
        %v1428 = vunpack.c.l.b16 %v1165
        %v1429 = vunpack.c.h.b16 %v1165
        %v1430 = vunpack.c.l.b16 %v1166
        %v1431 = vunpack.c.h.b16 %v1166
        %v1432 = vunpack.c.l.b16 %v1167
        %v1433 = vunpack.c.l.b16 %v1168
        %v1434 = vunpack.c.h.b16 %v1168
        %v1435 = vunpack.c.l.b16 %v1169
        %v1436 = vunpack.c.h.b16 %v1169
        %v1437 = vunpack.c.l.b16 %v1170
        %v1438 = vpack.c.b16 %v1283, %v1278
        %v1439 = vpack.c.b16 %v1284, %v1279
        %v1440 = vpack.c.b16 %v1285, %v1280
        %v1441 = vpack.c.b16 %v1286, %v1281
        %v1442 = vpack.c.b16 %v1287, %v1282
        %v1443 = vpack.c.b16 %v1293, %v1288
        %v1444 = vpack.c.b16 %v1294, %v1289
        %v1445 = vpack.c.b16 %v1295, %v1290
        %v1446 = vpack.c.b16 %v1296, %v1291
        %v1447 = vpack.c.b16 %v1297, %v1292
        %v1448 = vpack.c.b16 %v1303, %v1298
        %v1449 = vpack.c.b16 %v1304, %v1299
        %v1450 = vpack.c.b16 %v1305, %v1300
        %v1451 = vpack.c.b16 %v1306, %v1301
        %v1452 = vpack.c.b16 %v1307, %v1302
        %v1453 = vpack.c.b16 %v1313, %v1308
        %v1454 = vpack.c.b16 %v1314, %v1309
        %v1455 = vpack.c.b16 %v1315, %v1310
        %v1456 = vpack.c.b16 %v1316, %v1311
        %v1457 = vpack.c.b16 %v1317, %v1312
        %v1458 = vpack.c.b16 %v1323, %v1318
        %v1459 = vpack.c.b16 %v1324, %v1319
        %v1460 = vpack.c.b16 %v1325, %v1320
        %v1461 = vpack.c.b16 %v1326, %v1321
        %v1462 = vpack.c.b16 %v1327, %v1322
        %v1463 = vpack.c.b16 %v1333, %v1328
        %v1464 = vpack.c.b16 %v1334, %v1329
        %v1465 = vpack.c.b16 %v1335, %v1330
        %v1466 = vpack.c.b16 %v1336, %v1331
        %v1467 = vpack.c.b16 %v1337, %v1332
        %v1468 = vpack.c.b16 %v1343, %v1338
        %v1469 = vpack.c.b16 %v1344, %v1339
        %v1470 = vpack.c.b16 %v1345, %v1340
        %v1471 = vpack.c.b16 %v1346, %v1341
        %v1472 = vpack.c.b16 %v1347, %v1342
        %v1473 = vpack.c.b16 %v1353, %v1348
        %v1474 = vpack.c.b16 %v1354, %v1349
        %v1475 = vpack.c.b16 %v1355, %v1350
        %v1476 = vpack.c.b16 %v1356, %v1351
        %v1477 = vpack.c.b16 %v1357, %v1352
        %v1478 = vpack.c.b16 %v1363, %v1358
        %v1479 = vpack.c.b16 %v1364, %v1359
        %v1480 = vpack.c.b16 %v1365, %v1360
        %v1481 = vpack.c.b16 %v1366, %v1361
        %v1482 = vpack.c.b16 %v1367, %v1362
        %v1483 = vpack.c.b16 %v1373, %v1368
        %v1484 = vpack.c.b16 %v1374, %v1369
        %v1485 = vpack.c.b16 %v1375, %v1370
        %v1486 = vpack.c.b16 %v1376, %v1371
        %v1487 = vpack.c.b16 %v1377, %v1372
        %v1488 = vpack.c.b16 %v1383, %v1378
        %v1489 = vpack.c.b16 %v1384, %v1379
        %v1490 = vpack.c.b16 %v1385, %v1380
        %v1491 = vpack.c.b16 %v1386, %v1381
        %v1492 = vpack.c.b16 %v1387, %v1382
        %v1493 = vpack.c.b16 %v1393, %v1388
        %v1494 = vpack.c.b16 %v1394, %v1389
        %v1495 = vpack.c.b16 %v1395, %v1390
        %v1496 = vpack.c.b16 %v1396, %v1391
        %v1497 = vpack.c.b16 %v1397, %v1392
        %v1498 = vpack.c.b16 %v1403, %v1398
        %v1499 = vpack.c.b16 %v1404, %v1399
        %v1500 = vpack.c.b16 %v1405, %v1400
        %v1501 = vpack.c.b16 %v1406, %v1401
        %v1502 = vpack.c.b16 %v1407, %v1402
        %v1503 = vpack.c.b16 %v1413, %v1408
        %v1504 = vpack.c.b16 %v1414, %v1409
        %v1505 = vpack.c.b16 %v1415, %v1410
        %v1506 = vpack.c.b16 %v1416, %v1411
        %v1507 = vpack.c.b16 %v1417, %v1412
        %v1508 = vpack.c.b16 %v1423, %v1418
        %v1509 = vpack.c.b16 %v1424, %v1419
        %v1510 = vpack.c.b16 %v1425, %v1420
        %v1511 = vpack.c.b16 %v1426, %v1421
        %v1512 = vpack.c.b16 %v1427, %v1422
        %v1513 = vpack.c.b16 %v1433, %v1428
        %v1514 = vpack.c.b16 %v1434, %v1429
        %v1515 = vpack.c.b16 %v1435, %v1430
        %v1516 = vpack.c.b16 %v1436, %v1431
        %v1517 = vpack.c.b16 %v1437, %v1432
        %1598 = vmatprep.subr.bf16.mxu0 %v1474
        %1599 = vmatpush1.bf16.msra.mxu0 %v1473
        %1600 = vmatprep.subr.bf16.mxu0 %v1469
        %1601 = vmatpush1.bf16.msra.mxu0 %v1468
        %1602 = vmatprep.subr.bf16.mxu0 %v1464
        %1603 = vmatpush1.bf16.msra.mxu0 %v1463
        %1604 = vmatprep.subr.bf16.mxu0 %v1459
        %1605 = vmatpush1.bf16.msra.mxu0 %v1458
        %1606 = vmatprep.subr.bf16.mxu0 %v1454
        %1607 = vmatpush1.bf16.msra.mxu0 %v1453
        %1608 = vmatprep.subr.bf16.mxu0 %v1449
        %1609 = vmatpush1.bf16.msra.mxu0 %v1448
        %1610 = vmatprep.subr.bf16.mxu0 %v1444
        %1611 = vmatpush1.bf16.msra.mxu0 %v1443
        %1612 = vmatprep.subr.bf16.mxu0 %v1439
        %1613 = vmatpush1.bf16.msra.mxu0 %v1438
        %1614 = vmatprep.subr.bf16.mxu0 %v1514
        %1615 = vmatpush2.bf16.msra.mxu0 %v1513
        %1616 = vmatprep.subr.bf16.mxu0 %v1509
        %1617 = vmatpush2.bf16.msra.mxu0 %v1508
        %1618 = vmatprep.subr.bf16.mxu0 %v1504
        %1619 = vmatpush2.bf16.msra.mxu0 %v1503
        %1620 = vmatprep.subr.bf16.mxu0 %v1499
        %1621 = vmatpush2.bf16.msra.mxu0 %v1498
        %1622 = vmatprep.subr.bf16.mxu0 %v1494
        %1623 = vmatpush2.bf16.msra.mxu0 %v1493
        %1624 = vmatprep.subr.bf16.mxu0 %v1489
        %1625 = vmatpush2.bf16.msra.mxu0 %v1488
        %1626 = vmatprep.subr.bf16.mxu0 %v1484
        %1627 = vmatpush2.bf16.msra.mxu0 %v1483
        %1628 = vmatprep.subr.bf16.mxu0 %v1479
        %1629 = vmatpush2.bf16.msra.mxu0 %v1478
        %1630 = vmatprep.mubr.bf16.mxu0 %v1179
        %1631 = vmatmul.mubr.bf16.gmra.mxu0 %v1178
        %v1632 = vpop.f32.mrf.mxu0
        %v1633 = vadd.f32 0.0, %v1632
        %v1634 = vpop.f32.mrf.mxu0
        %v1635 = vadd.f32 0.0, %v1634
        %v1636 = vpop.f32.mrf.mxu0
        %v1637 = vpop.f32.mrf.mxu0
        %1638 = vdwg.mxu0
        %1639 = vmatprep.subr.bf16.mxu0 %v1476
        %1640 = vmatpush1.bf16.msra.mxu0 %v1475
        %1641 = vmatprep.subr.bf16.mxu0 %v1471
        %1642 = vmatpush1.bf16.msra.mxu0 %v1470
        %1643 = vmatprep.subr.bf16.mxu0 %v1466
        %1644 = vmatpush1.bf16.msra.mxu0 %v1465
        %1645 = vmatprep.subr.bf16.mxu0 %v1461
        %1646 = vmatpush1.bf16.msra.mxu0 %v1460
        %1647 = vmatprep.subr.bf16.mxu0 %v1456
        %1648 = vmatpush1.bf16.msra.mxu0 %v1455
        %1649 = vmatprep.subr.bf16.mxu0 %v1451
        %1650 = vmatpush1.bf16.msra.mxu0 %v1450
        %1651 = vmatprep.subr.bf16.mxu0 %v1446
        %1652 = vmatpush1.bf16.msra.mxu0 %v1445
        %1653 = vmatprep.subr.bf16.mxu0 %v1441
        %1654 = vmatpush1.bf16.msra.mxu0 %v1440
        %1655 = vmatprep.subr.bf16.mxu0 %v1516
        %1656 = vmatpush2.bf16.msra.mxu0 %v1515
        %1657 = vmatprep.subr.bf16.mxu0 %v1511
        %1658 = vmatpush2.bf16.msra.mxu0 %v1510
        %1659 = vmatprep.subr.bf16.mxu0 %v1506
        %1660 = vmatpush2.bf16.msra.mxu0 %v1505
        %1661 = vmatprep.subr.bf16.mxu0 %v1501
        %1662 = vmatpush2.bf16.msra.mxu0 %v1500
        %1663 = vmatprep.subr.bf16.mxu0 %v1496
        %1664 = vmatpush2.bf16.msra.mxu0 %v1495
        %1665 = vmatprep.subr.bf16.mxu0 %v1491
        %1666 = vmatpush2.bf16.msra.mxu0 %v1490
        %1667 = vmatprep.subr.bf16.mxu0 %v1486
        %1668 = vmatpush2.bf16.msra.mxu0 %v1485
        %1669 = vmatprep.subr.bf16.mxu0 %v1481
        %1670 = vmatpush2.bf16.msra.mxu0 %v1480
        %1671 = vmatprep.mubr.bf16.mxu0 %v1179
        %1672 = vmatmul.mubr.bf16.gmra.mxu0 %v1178
        %v1673 = vpop.f32.mrf.mxu0
        %v1674 = vadd.f32 0.0, %v1673
        %v1675 = vpop.f32.mrf.mxu0
        %v1676 = vadd.f32 0.0, %v1675
        %v1677 = vpop.f32.mrf.mxu0
        %v1678 = vpop.f32.mrf.mxu0
        %1679 = vdwg.mxu0
        %1680 = vmatprep.subr.bf16.mxu0 0
        %1681 = vmatpush1.bf16.msra.mxu0 %v1477
        %1682 = vmatprep.subr.bf16.mxu0 0
        %1683 = vmatpush1.bf16.msra.mxu0 %v1472
        %1684 = vmatprep.subr.bf16.mxu0 0
        %1685 = vmatpush1.bf16.msra.mxu0 %v1467
        %1686 = vmatprep.subr.bf16.mxu0 0
        %1687 = vmatpush1.bf16.msra.mxu0 %v1462
        %1688 = vmatprep.subr.bf16.mxu0 0
        %1689 = vmatpush1.bf16.msra.mxu0 %v1457
        %1690 = vmatprep.subr.bf16.mxu0 0
        %1691 = vmatpush1.bf16.msra.mxu0 %v1452
        %1692 = vmatprep.subr.bf16.mxu0 0
        %1693 = vmatpush1.bf16.msra.mxu0 %v1447
        %1694 = vmatprep.subr.bf16.mxu0 0
        %1695 = vmatpush1.bf16.msra.mxu0 %v1442
        %1696 = vmatprep.subr.bf16.mxu0 0
        %1697 = vmatpush2.bf16.msra.mxu0 %v1517
        %1698 = vmatprep.subr.bf16.mxu0 0
        %1699 = vmatpush2.bf16.msra.mxu0 %v1512
        %1700 = vmatprep.subr.bf16.mxu0 0
        %1701 = vmatpush2.bf16.msra.mxu0 %v1507
        %1702 = vmatprep.subr.bf16.mxu0 0
        %1703 = vmatpush2.bf16.msra.mxu0 %v1502
        %1704 = vmatprep.subr.bf16.mxu0 0
        %1705 = vmatpush2.bf16.msra.mxu0 %v1497
        %1706 = vmatprep.subr.bf16.mxu0 0
        %1707 = vmatpush2.bf16.msra.mxu0 %v1492
        %1708 = vmatprep.subr.bf16.mxu0 0
        %1709 = vmatpush2.bf16.msra.mxu0 %v1487
        %1710 = vmatprep.subr.bf16.mxu0 0
        %1711 = vmatpush2.bf16.msra.mxu0 %v1482
        %1712 = vmatprep.mubr.bf16.mxu0 %v1179
        %1713 = vmatmul.mubr.bf16.gmra.mxu0 %v1178
        %v1714 = vpop.f32.mrf.mxu0
        %v1715 = vadd.f32 0.0, %v1714
        %v1716 = vpop.f32.mrf.mxu0
        %v1717 = vpop.f32.mrf.mxu0
        %v1718 = vpop.f32.mrf.mxu0
        %1719 = vdwg.mxu0
        %v1720 = vpack.c.bf16 %v1633, %v1633
        %v1721 = vpack.c.bf16 %v1635, %v1635
        %v1722 = vpack.c.bf16 %v1674, %v1674
        %v1723 = vpack.c.bf16 %v1676, %v1676
        %v1724 = vpack.c.bf16 %v1715, %v1715
        %v1725 = vld [vmem:[#allocation6] sm:$0xf]
        %v1726 = vld [vmem:[#allocation6 + $0x4] sm:$0xf]
        %s1727 = scalar_lea.vmem [#allocation6], 8
        %v1728 = vld [vmem:[%s1727] sm:$0xf]
        %v1729 = vld [vmem:[%s1727 + $0x4] sm:$0xf]
        %v1732 = vunpack.c.l.b16 %v1728
        %v1733 = vunpack.c.l.b16 %v1729
        %v1734 = vpack.c.b16 %v1733, %v1732
        %1736 = vrot.lane.b32.xlu0 %v1720, 64
        %v1737 = vpop.permute.xlu0 %1736
        %vm1738 = vcmask 31744
        %v1740 = vsel %vm1738, %v1734, 0
        %vm1742 = vcmask 1041408
        %v1744 = vsel %vm1742, %v1737, 0
        %1746 = vmatprep.subr.bf16.mxu0 0
        %1747 = vmatpush1.bf16.msra.mxu0 0
        %1748 = vmatprep.subr.bf16.mxu0 0
        %1749 = vmatpush1.bf16.msra.mxu0 0
        %1750 = vmatprep.subr.bf16.mxu0 0
        %1751 = vmatpush1.bf16.msra.mxu0 0
        %1752 = vmatprep.subr.bf16.mxu0 0
        %1753 = vmatpush1.bf16.msra.mxu0 0
        %1754 = vmatprep.subr.bf16.mxu0 0
        %1755 = vmatpush1.bf16.msra.mxu0 0
        %1756 = vmatprep.subr.bf16.mxu0 0
        %1757 = vmatpush1.bf16.msra.mxu0 0
        %1758 = vmatprep.subr.bf16.mxu0 0
        %1759 = vmatpush1.bf16.msra.mxu0 0
        %1760 = vmatprep.subr.bf16.mxu0 0
        %1761 = vmatpush1.bf16.msra.mxu0 %v1744
        %1762 = vmatprep.subr.bf16.mxu0 0
        %1763 = vmatpush2.bf16.msra.mxu0 0
        %1764 = vmatprep.subr.bf16.mxu0 0
        %1765 = vmatpush2.bf16.msra.mxu0 0
        %1766 = vmatprep.subr.bf16.mxu0 0
        %1767 = vmatpush2.bf16.msra.mxu0 0
        %1768 = vmatprep.subr.bf16.mxu0 0
        %1769 = vmatpush2.bf16.msra.mxu0 0
        %1770 = vmatprep.subr.bf16.mxu0 0
        %1771 = vmatpush2.bf16.msra.mxu0 0
        %1772 = vmatprep.subr.bf16.mxu0 0
        %1773 = vmatpush2.bf16.msra.mxu0 0
        %1774 = vmatprep.subr.bf16.mxu0 0
        %1775 = vmatpush2.bf16.msra.mxu0 0
        %1776 = vmatprep.subr.bf16.mxu0 0
        %1777 = vmatpush2.bf16.msra.mxu0 0
        %1778 = vmatprep.mubr.bf16.mxu0 0
        %1779 = vmatmul.mubr.bf16.gmra.mxu0 %v1740
        %v1780 = vpop.f32.mrf.mxu0
        %v1781 = vadd.f32 0.0, %v1780
        %v1782 = vpop.f32.mrf.mxu0
        %v1783 = vpop.f32.mrf.mxu0
        %v1784 = vadd.f32 0.0, %v1783
        %v1785 = vpop.f32.mrf.mxu0
        %1786 = vdwg.mxu0
        %v1789 = vunpack.c.l.b16 %v1725
        %v1790 = vunpack.c.l.b16 %v1726
        %v1791 = vpack.c.b16 %v1790, %v1789
        %v1793 = vsel %vm1738, %v1791, 0
        %v1796 = vsel %vm1742, %v1720, 0
        %1798 = vmatprep.subr.bf16.mxu0 0
        %1799 = vmatpush1.bf16.msra.mxu0 0
        %1800 = vmatprep.subr.bf16.mxu0 0
        %1801 = vmatpush1.bf16.msra.mxu0 0
        %1802 = vmatprep.subr.bf16.mxu0 0
        %1803 = vmatpush1.bf16.msra.mxu0 0
        %1804 = vmatprep.subr.bf16.mxu0 0
        %1805 = vmatpush1.bf16.msra.mxu0 0
        %1806 = vmatprep.subr.bf16.mxu0 0
        %1807 = vmatpush1.bf16.msra.mxu0 0
        %1808 = vmatprep.subr.bf16.mxu0 0
        %1809 = vmatpush1.bf16.msra.mxu0 0
        %1810 = vmatprep.subr.bf16.mxu0 0
        %1811 = vmatpush1.bf16.msra.mxu0 0
        %1812 = vmatprep.subr.bf16.mxu0 0
        %1813 = vmatpush1.bf16.msra.mxu0 %v1796
        %1814 = vmatprep.subr.bf16.mxu0 0
        %1815 = vmatpush2.bf16.msra.mxu0 0
        %1816 = vmatprep.subr.bf16.mxu0 0
        %1817 = vmatpush2.bf16.msra.mxu0 0
        %1818 = vmatprep.subr.bf16.mxu0 0
        %1819 = vmatpush2.bf16.msra.mxu0 0
        %1820 = vmatprep.subr.bf16.mxu0 0
        %1821 = vmatpush2.bf16.msra.mxu0 0
        %1822 = vmatprep.subr.bf16.mxu0 0
        %1823 = vmatpush2.bf16.msra.mxu0 0
        %1824 = vmatprep.subr.bf16.mxu0 0
        %1825 = vmatpush2.bf16.msra.mxu0 0
        %1826 = vmatprep.subr.bf16.mxu0 0
        %1827 = vmatpush2.bf16.msra.mxu0 0
        %1828 = vmatprep.subr.bf16.mxu0 0
        %1829 = vmatpush2.bf16.msra.mxu0 0
        %1830 = vmatprep.mubr.bf16.mxu0 0
        %1831 = vmatmul.mubr.bf16.gmra.mxu0 %v1793
        %v1832 = vpop.f32.mrf.mxu0
        %v1833 = vadd.f32 %v1781, %v1832
        %v1834 = vpop.f32.mrf.mxu0
        %v1835 = vpop.f32.mrf.mxu0
        %v1836 = vadd.f32 %v1784, %v1835
        %v1837 = vpop.f32.mrf.mxu0
        %1838 = vdwg.mxu0
        %s1839 = scalar_lea.vmem [#allocation6], 16
        %v1840 = vld [vmem:[%s1839] sm:$0xf]
        %v1841 = vld [vmem:[%s1839 + $0x4] sm:$0xf]
        %v1844 = vunpack.c.l.b16 %v1840
        %v1845 = vunpack.c.l.b16 %v1841
        %v1846 = vpack.c.b16 %v1845, %v1844
        %v1848 = vsel %vm1738, %v1846, 0
        %v1851 = vsel %vm1742, %v1721, 0
        %1853 = vmatprep.subr.bf16.mxu0 0
        %1854 = vmatpush1.bf16.msra.mxu0 0
        %1855 = vmatprep.subr.bf16.mxu0 0
        %1856 = vmatpush1.bf16.msra.mxu0 0
        %1857 = vmatprep.subr.bf16.mxu0 0
        %1858 = vmatpush1.bf16.msra.mxu0 0
        %1859 = vmatprep.subr.bf16.mxu0 0
        %1860 = vmatpush1.bf16.msra.mxu0 0
        %1861 = vmatprep.subr.bf16.mxu0 0
        %1862 = vmatpush1.bf16.msra.mxu0 0
        %1863 = vmatprep.subr.bf16.mxu0 0
        %1864 = vmatpush1.bf16.msra.mxu0 0
        %1865 = vmatprep.subr.bf16.mxu0 0
        %1866 = vmatpush1.bf16.msra.mxu0 0
        %1867 = vmatprep.subr.bf16.mxu0 0
        %1868 = vmatpush1.bf16.msra.mxu0 %v1851
        %1869 = vmatprep.subr.bf16.mxu0 0
        %1870 = vmatpush2.bf16.msra.mxu0 0
        %1871 = vmatprep.subr.bf16.mxu0 0
        %1872 = vmatpush2.bf16.msra.mxu0 0
        %1873 = vmatprep.subr.bf16.mxu0 0
        %1874 = vmatpush2.bf16.msra.mxu0 0
        %1875 = vmatprep.subr.bf16.mxu0 0
        %1876 = vmatpush2.bf16.msra.mxu0 0
        %1877 = vmatprep.subr.bf16.mxu0 0
        %1878 = vmatpush2.bf16.msra.mxu0 0
        %1879 = vmatprep.subr.bf16.mxu0 0
        %1880 = vmatpush2.bf16.msra.mxu0 0
        %1881 = vmatprep.subr.bf16.mxu0 0
        %1882 = vmatpush2.bf16.msra.mxu0 0
        %1883 = vmatprep.subr.bf16.mxu0 0
        %1884 = vmatpush2.bf16.msra.mxu0 0
        %1885 = vmatprep.mubr.bf16.mxu0 0
        %1886 = vmatmul.mubr.bf16.gmra.mxu0 %v1848
        %v1887 = vpop.f32.mrf.mxu0
        %v1888 = vadd.f32 0.0, %v1887
        %v1889 = vpop.f32.mrf.mxu0
        %v1890 = vpop.f32.mrf.mxu0
        %v1891 = vadd.f32 0.0, %v1890
        %v1892 = vpop.f32.mrf.mxu0
        %1893 = vdwg.mxu0
        %v1894 = vadd.f32 %v1833, %v1888
        %v1895 = vadd.f32 %v1836, %v1891
        %s1896 = scalar_lea.vmem [#allocation6], 24
        %v1897 = vld [vmem:[%s1896] sm:$0xf]
        %v1898 = vld [vmem:[%s1896 + $0x4] sm:$0xf]
        %v1901 = vunpack.c.l.b16 %v1897
        %v1902 = vunpack.c.l.b16 %v1898
        %v1903 = vpack.c.b16 %v1902, %v1901
        %1905 = vrot.lane.b32.xlu0 %v1721, 64
        %v1906 = vpop.permute.xlu0 %1905
        %v1908 = vsel %vm1738, %v1903, 0
        %v1911 = vsel %vm1742, %v1906, 0
        %1913 = vmatprep.subr.bf16.mxu0 0
        %1914 = vmatpush1.bf16.msra.mxu0 0
        %1915 = vmatprep.subr.bf16.mxu0 0
        %1916 = vmatpush1.bf16.msra.mxu0 0
        %1917 = vmatprep.subr.bf16.mxu0 0
        %1918 = vmatpush1.bf16.msra.mxu0 0
        %1919 = vmatprep.subr.bf16.mxu0 0
        %1920 = vmatpush1.bf16.msra.mxu0 0
        %1921 = vmatprep.subr.bf16.mxu0 0
        %1922 = vmatpush1.bf16.msra.mxu0 0
        %1923 = vmatprep.subr.bf16.mxu0 0
        %1924 = vmatpush1.bf16.msra.mxu0 0
        %1925 = vmatprep.subr.bf16.mxu0 0
        %1926 = vmatpush1.bf16.msra.mxu0 0
        %1927 = vmatprep.subr.bf16.mxu0 0
        %1928 = vmatpush1.bf16.msra.mxu0 %v1911
        %1929 = vmatprep.subr.bf16.mxu0 0
        %1930 = vmatpush2.bf16.msra.mxu0 0
        %1931 = vmatprep.subr.bf16.mxu0 0
        %1932 = vmatpush2.bf16.msra.mxu0 0
        %1933 = vmatprep.subr.bf16.mxu0 0
        %1934 = vmatpush2.bf16.msra.mxu0 0
        %1935 = vmatprep.subr.bf16.mxu0 0
        %1936 = vmatpush2.bf16.msra.mxu0 0
        %1937 = vmatprep.subr.bf16.mxu0 0
        %1938 = vmatpush2.bf16.msra.mxu0 0
        %1939 = vmatprep.subr.bf16.mxu0 0
        %1940 = vmatpush2.bf16.msra.mxu0 0
        %1941 = vmatprep.subr.bf16.mxu0 0
        %1942 = vmatpush2.bf16.msra.mxu0 0
        %1943 = vmatprep.subr.bf16.mxu0 0
        %1944 = vmatpush2.bf16.msra.mxu0 0
        %1945 = vmatprep.mubr.bf16.mxu0 0
        %1946 = vmatmul.mubr.bf16.gmra.mxu0 %v1908
        %v1947 = vpop.f32.mrf.mxu0
        %v1948 = vadd.f32 0.0, %v1947
        %v1949 = vpop.f32.mrf.mxu0
        %v1950 = vpop.f32.mrf.mxu0
        %v1951 = vadd.f32 0.0, %v1950
        %v1952 = vpop.f32.mrf.mxu0
        %1953 = vdwg.mxu0
        %v1954 = vadd.f32 %v1894, %v1948
        %v1955 = vadd.f32 %v1895, %v1951
        %s1956 = scalar_lea.vmem [#allocation6], 32
        %v1957 = vld [vmem:[%s1956] sm:$0xf]
        %v1958 = vld [vmem:[%s1956 + $0x4] sm:$0xf]
        %v1961 = vunpack.c.l.b16 %v1957
        %v1962 = vunpack.c.l.b16 %v1958
        %v1963 = vpack.c.b16 %v1962, %v1961
        %v1965 = vsel %vm1738, %v1963, 0
        %v1968 = vsel %vm1742, %v1722, 0
        %1970 = vmatprep.subr.bf16.mxu0 0
        %1971 = vmatpush1.bf16.msra.mxu0 0
        %1972 = vmatprep.subr.bf16.mxu0 0
        %1973 = vmatpush1.bf16.msra.mxu0 0
        %1974 = vmatprep.subr.bf16.mxu0 0
        %1975 = vmatpush1.bf16.msra.mxu0 0
        %1976 = vmatprep.subr.bf16.mxu0 0
        %1977 = vmatpush1.bf16.msra.mxu0 0
        %1978 = vmatprep.subr.bf16.mxu0 0
        %1979 = vmatpush1.bf16.msra.mxu0 0
        %1980 = vmatprep.subr.bf16.mxu0 0
        %1981 = vmatpush1.bf16.msra.mxu0 0
        %1982 = vmatprep.subr.bf16.mxu0 0
        %1983 = vmatpush1.bf16.msra.mxu0 0
        %1984 = vmatprep.subr.bf16.mxu0 0
        %1985 = vmatpush1.bf16.msra.mxu0 %v1968
        %1986 = vmatprep.subr.bf16.mxu0 0
        %1987 = vmatpush2.bf16.msra.mxu0 0
        %1988 = vmatprep.subr.bf16.mxu0 0
        %1989 = vmatpush2.bf16.msra.mxu0 0
        %1990 = vmatprep.subr.bf16.mxu0 0
        %1991 = vmatpush2.bf16.msra.mxu0 0
        %1992 = vmatprep.subr.bf16.mxu0 0
        %1993 = vmatpush2.bf16.msra.mxu0 0
        %1994 = vmatprep.subr.bf16.mxu0 0
        %1995 = vmatpush2.bf16.msra.mxu0 0
        %1996 = vmatprep.subr.bf16.mxu0 0
        %1997 = vmatpush2.bf16.msra.mxu0 0
        %1998 = vmatprep.subr.bf16.mxu0 0
        %1999 = vmatpush2.bf16.msra.mxu0 0
        %2000 = vmatprep.subr.bf16.mxu0 0
        %2001 = vmatpush2.bf16.msra.mxu0 0
        %2002 = vmatprep.mubr.bf16.mxu0 0
        %2003 = vmatmul.mubr.bf16.gmra.mxu0 %v1965
        %v2004 = vpop.f32.mrf.mxu0
        %v2005 = vadd.f32 0.0, %v2004
        %v2006 = vpop.f32.mrf.mxu0
        %v2007 = vpop.f32.mrf.mxu0
        %v2008 = vadd.f32 0.0, %v2007
        %v2009 = vpop.f32.mrf.mxu0
        %2010 = vdwg.mxu0
        %v2011 = vadd.f32 %v1954, %v2005
        %v2012 = vadd.f32 %v1955, %v2008
        %s2013 = scalar_lea.vmem [#allocation6], 40
        %v2014 = vld [vmem:[%s2013] sm:$0xf]
        %v2015 = vld [vmem:[%s2013 + $0x4] sm:$0xf]
        %v2018 = vunpack.c.l.b16 %v2014
        %v2019 = vunpack.c.l.b16 %v2015
        %v2020 = vpack.c.b16 %v2019, %v2018
        %2022 = vrot.lane.b32.xlu0 %v1722, 64
        %v2023 = vpop.permute.xlu0 %2022
        %v2025 = vsel %vm1738, %v2020, 0
        %v2028 = vsel %vm1742, %v2023, 0
        %2030 = vmatprep.subr.bf16.mxu0 0
        %2031 = vmatpush1.bf16.msra.mxu0 0
        %2032 = vmatprep.subr.bf16.mxu0 0
        %2033 = vmatpush1.bf16.msra.mxu0 0
        %2034 = vmatprep.subr.bf16.mxu0 0
        %2035 = vmatpush1.bf16.msra.mxu0 0
        %2036 = vmatprep.subr.bf16.mxu0 0
        %2037 = vmatpush1.bf16.msra.mxu0 0
        %2038 = vmatprep.subr.bf16.mxu0 0
        %2039 = vmatpush1.bf16.msra.mxu0 0
        %2040 = vmatprep.subr.bf16.mxu0 0
        %2041 = vmatpush1.bf16.msra.mxu0 0
        %2042 = vmatprep.subr.bf16.mxu0 0
        %2043 = vmatpush1.bf16.msra.mxu0 0
        %2044 = vmatprep.subr.bf16.mxu0 0
        %2045 = vmatpush1.bf16.msra.mxu0 %v2028
        %2046 = vmatprep.subr.bf16.mxu0 0
        %2047 = vmatpush2.bf16.msra.mxu0 0
        %2048 = vmatprep.subr.bf16.mxu0 0
        %2049 = vmatpush2.bf16.msra.mxu0 0
        %2050 = vmatprep.subr.bf16.mxu0 0
        %2051 = vmatpush2.bf16.msra.mxu0 0
        %2052 = vmatprep.subr.bf16.mxu0 0
        %2053 = vmatpush2.bf16.msra.mxu0 0
        %2054 = vmatprep.subr.bf16.mxu0 0
        %2055 = vmatpush2.bf16.msra.mxu0 0
        %2056 = vmatprep.subr.bf16.mxu0 0
        %2057 = vmatpush2.bf16.msra.mxu0 0
        %2058 = vmatprep.subr.bf16.mxu0 0
        %2059 = vmatpush2.bf16.msra.mxu0 0
        %2060 = vmatprep.subr.bf16.mxu0 0
        %2061 = vmatpush2.bf16.msra.mxu0 0
        %2062 = vmatprep.mubr.bf16.mxu0 0
        %2063 = vmatmul.mubr.bf16.gmra.mxu0 %v2025
        %v2064 = vpop.f32.mrf.mxu0
        %v2065 = vadd.f32 0.0, %v2064
        %v2066 = vpop.f32.mrf.mxu0
        %v2067 = vpop.f32.mrf.mxu0
        %v2068 = vadd.f32 0.0, %v2067
        %v2069 = vpop.f32.mrf.mxu0
        %2070 = vdwg.mxu0
        %v2071 = vadd.f32 %v2011, %v2065
        %v2072 = vadd.f32 %v2012, %v2068
        %s2073 = scalar_lea.vmem [#allocation6], 48
        %v2074 = vld [vmem:[%s2073] sm:$0xf]
        %v2075 = vld [vmem:[%s2073 + $0x4] sm:$0xf]
        %v2078 = vunpack.c.l.b16 %v2074
        %v2079 = vunpack.c.l.b16 %v2075
        %v2080 = vpack.c.b16 %v2079, %v2078
        %v2082 = vsel %vm1738, %v2080, 0
        %v2085 = vsel %vm1742, %v1723, 0
        %2087 = vmatprep.subr.bf16.mxu0 0
        %2088 = vmatpush1.bf16.msra.mxu0 0
        %2089 = vmatprep.subr.bf16.mxu0 0
        %2090 = vmatpush1.bf16.msra.mxu0 0
        %2091 = vmatprep.subr.bf16.mxu0 0
        %2092 = vmatpush1.bf16.msra.mxu0 0
        %2093 = vmatprep.subr.bf16.mxu0 0
        %2094 = vmatpush1.bf16.msra.mxu0 0
        %2095 = vmatprep.subr.bf16.mxu0 0
        %2096 = vmatpush1.bf16.msra.mxu0 0
        %2097 = vmatprep.subr.bf16.mxu0 0
        %2098 = vmatpush1.bf16.msra.mxu0 0
        %2099 = vmatprep.subr.bf16.mxu0 0
        %2100 = vmatpush1.bf16.msra.mxu0 0
        %2101 = vmatprep.subr.bf16.mxu0 0
        %2102 = vmatpush1.bf16.msra.mxu0 %v2085
        %2103 = vmatprep.subr.bf16.mxu0 0
        %2104 = vmatpush2.bf16.msra.mxu0 0
        %2105 = vmatprep.subr.bf16.mxu0 0
        %2106 = vmatpush2.bf16.msra.mxu0 0
        %2107 = vmatprep.subr.bf16.mxu0 0
        %2108 = vmatpush2.bf16.msra.mxu0 0
        %2109 = vmatprep.subr.bf16.mxu0 0
        %2110 = vmatpush2.bf16.msra.mxu0 0
        %2111 = vmatprep.subr.bf16.mxu0 0
        %2112 = vmatpush2.bf16.msra.mxu0 0
        %2113 = vmatprep.subr.bf16.mxu0 0
        %2114 = vmatpush2.bf16.msra.mxu0 0
        %2115 = vmatprep.subr.bf16.mxu0 0
        %2116 = vmatpush2.bf16.msra.mxu0 0
        %2117 = vmatprep.subr.bf16.mxu0 0
        %2118 = vmatpush2.bf16.msra.mxu0 0
        %2119 = vmatprep.mubr.bf16.mxu0 0
        %2120 = vmatmul.mubr.bf16.gmra.mxu0 %v2082
        %v2121 = vpop.f32.mrf.mxu0
        %v2122 = vadd.f32 0.0, %v2121
        %v2123 = vpop.f32.mrf.mxu0
        %v2124 = vpop.f32.mrf.mxu0
        %v2125 = vadd.f32 0.0, %v2124
        %v2126 = vpop.f32.mrf.mxu0
        %2127 = vdwg.mxu0
        %v2128 = vadd.f32 %v2071, %v2122
        %v2129 = vadd.f32 %v2072, %v2125
        %s2130 = scalar_lea.vmem [#allocation6], 56
        %v2131 = vld [vmem:[%s2130] sm:$0xf]
        %v2132 = vld [vmem:[%s2130 + $0x4] sm:$0xf]
        %v2135 = vunpack.c.l.b16 %v2131
        %v2136 = vunpack.c.l.b16 %v2132
        %v2137 = vpack.c.b16 %v2136, %v2135
        %2139 = vrot.lane.b32.xlu0 %v1723, 64
        %v2140 = vpop.permute.xlu0 %2139
        %v2142 = vsel %vm1738, %v2137, 0
        %v2145 = vsel %vm1742, %v2140, 0
        %2147 = vmatprep.subr.bf16.mxu0 0
        %2148 = vmatpush1.bf16.msra.mxu0 0
        %2149 = vmatprep.subr.bf16.mxu0 0
        %2150 = vmatpush1.bf16.msra.mxu0 0
        %2151 = vmatprep.subr.bf16.mxu0 0
        %2152 = vmatpush1.bf16.msra.mxu0 0
        %2153 = vmatprep.subr.bf16.mxu0 0
        %2154 = vmatpush1.bf16.msra.mxu0 0
        %2155 = vmatprep.subr.bf16.mxu0 0
        %2156 = vmatpush1.bf16.msra.mxu0 0
        %2157 = vmatprep.subr.bf16.mxu0 0
        %2158 = vmatpush1.bf16.msra.mxu0 0
        %2159 = vmatprep.subr.bf16.mxu0 0
        %2160 = vmatpush1.bf16.msra.mxu0 0
        %2161 = vmatprep.subr.bf16.mxu0 0
        %2162 = vmatpush1.bf16.msra.mxu0 %v2145
        %2163 = vmatprep.subr.bf16.mxu0 0
        %2164 = vmatpush2.bf16.msra.mxu0 0
        %2165 = vmatprep.subr.bf16.mxu0 0
        %2166 = vmatpush2.bf16.msra.mxu0 0
        %2167 = vmatprep.subr.bf16.mxu0 0
        %2168 = vmatpush2.bf16.msra.mxu0 0
        %2169 = vmatprep.subr.bf16.mxu0 0
        %2170 = vmatpush2.bf16.msra.mxu0 0
        %2171 = vmatprep.subr.bf16.mxu0 0
        %2172 = vmatpush2.bf16.msra.mxu0 0
        %2173 = vmatprep.subr.bf16.mxu0 0
        %2174 = vmatpush2.bf16.msra.mxu0 0
        %2175 = vmatprep.subr.bf16.mxu0 0
        %2176 = vmatpush2.bf16.msra.mxu0 0
        %2177 = vmatprep.subr.bf16.mxu0 0
        %2178 = vmatpush2.bf16.msra.mxu0 0
        %2179 = vmatprep.mubr.bf16.mxu0 0
        %2180 = vmatmul.mubr.bf16.gmra.mxu0 %v2142
        %v2181 = vpop.f32.mrf.mxu0
        %v2182 = vadd.f32 0.0, %v2181
        %v2183 = vpop.f32.mrf.mxu0
        %v2184 = vpop.f32.mrf.mxu0
        %v2185 = vadd.f32 0.0, %v2184
        %v2186 = vpop.f32.mrf.mxu0
        %2187 = vdwg.mxu0
        %v2188 = vadd.f32 %v2128, %v2182
        %v2189 = vadd.f32 %v2129, %v2185
        %s2190 = scalar_lea.vmem [#allocation6], 64
        %v2191 = vld [vmem:[%s2190] sm:$0xf]
        %v2192 = vld [vmem:[%s2190 + $0x4] sm:$0xf]
        %v2195 = vunpack.c.l.b16 %v2191
        %v2196 = vunpack.c.l.b16 %v2192
        %v2197 = vpack.c.b16 %v2196, %v2195
        %v2199 = vsel %vm1738, %v2197, 0
        %v2202 = vsel %vm1742, %v1724, 0
        %2204 = vmatprep.subr.bf16.mxu0 0
        %2205 = vmatpush1.bf16.msra.mxu0 0
        %2206 = vmatprep.subr.bf16.mxu0 0
        %2207 = vmatpush1.bf16.msra.mxu0 0
        %2208 = vmatprep.subr.bf16.mxu0 0
        %2209 = vmatpush1.bf16.msra.mxu0 0
        %2210 = vmatprep.subr.bf16.mxu0 0
        %2211 = vmatpush1.bf16.msra.mxu0 0
        %2212 = vmatprep.subr.bf16.mxu0 0
        %2213 = vmatpush1.bf16.msra.mxu0 0
        %2214 = vmatprep.subr.bf16.mxu0 0
        %2215 = vmatpush1.bf16.msra.mxu0 0
        %2216 = vmatprep.subr.bf16.mxu0 0
        %2217 = vmatpush1.bf16.msra.mxu0 0
        %2218 = vmatprep.subr.bf16.mxu0 0
        %2219 = vmatpush1.bf16.msra.mxu0 %v2202
        %2220 = vmatprep.subr.bf16.mxu0 0
        %2221 = vmatpush2.bf16.msra.mxu0 0
        %2222 = vmatprep.subr.bf16.mxu0 0
        %2223 = vmatpush2.bf16.msra.mxu0 0
        %2224 = vmatprep.subr.bf16.mxu0 0
        %2225 = vmatpush2.bf16.msra.mxu0 0
        %2226 = vmatprep.subr.bf16.mxu0 0
        %2227 = vmatpush2.bf16.msra.mxu0 0
        %2228 = vmatprep.subr.bf16.mxu0 0
        %2229 = vmatpush2.bf16.msra.mxu0 0
        %2230 = vmatprep.subr.bf16.mxu0 0
        %2231 = vmatpush2.bf16.msra.mxu0 0
        %2232 = vmatprep.subr.bf16.mxu0 0
        %2233 = vmatpush2.bf16.msra.mxu0 0
        %2234 = vmatprep.subr.bf16.mxu0 0
        %2235 = vmatpush2.bf16.msra.mxu0 0
        %2236 = vmatprep.mubr.bf16.mxu0 0
        %2237 = vmatmul.mubr.bf16.gmra.mxu0 %v2199
        %v2238 = vpop.f32.mrf.mxu0
        %v2239 = vadd.f32 0.0, %v2238
        %v2240 = vpop.f32.mrf.mxu0
        %v2241 = vpop.f32.mrf.mxu0
        %v2242 = vadd.f32 0.0, %v2241
        %v2243 = vpop.f32.mrf.mxu0
        %2244 = vdwg.mxu0
        %v2245 = vadd.f32 %v2188, %v2239
        %v2246 = vadd.f32 %v2189, %v2242
        %v2247 = vld [vmem:[%s2] sm:$0xff]
        %v2248 = vld [vmem:[%s2 + $0x8] sm:$0xff]
        %2250 = vset.pattern.permute.xlu0 0
        %2251 = vperm.xlu0 %2250, %v2247
        %v2252 = vpop.permute.xlu0 %2251
        %2255 = vset.pattern.permute.xlu0 0
        %2256 = vperm.xlu0 %2255, %v2248
        %v2257 = vpop.permute.xlu0 %2256
        %v2259 = vadd.f32 %v2245, %v2252
        %v2260 = vadd.f32 %v2246, %v2257
        %v2261 = vmax.f32 %v2259, 0.0
        %v2262 = vmax.f32 %v2260, 0.0
        %v2263 = vpack.c.bf16 %v2262, %v2261
        %v2264 = vld [vmem:[#allocation8] sm:$0xff]
        %v2265 = vld [vmem:[#allocation8 + $0x8] sm:$0xff]
        %v2266 = vld [vmem:[#allocation8 + $0x10] sm:$0xff]
        %v2267 = vld [vmem:[#allocation8 + $0x18] sm:$0xff]
        %v2268 = vld [vmem:[#allocation8 + $0x20] sm:$0xff]
        %v2269 = vld [vmem:[#allocation8 + $0x28] sm:$0xff]
        %v2270 = vld [vmem:[#allocation8 + $0x30] sm:$0xff]
        %v2271 = vld [vmem:[#allocation8 + $0x38] sm:$0xff]
        %v2280 = vunpack.c.l.b16 %v2264
        %v2281 = vunpack.c.h.b16 %v2264
        %v2282 = vunpack.c.l.b16 %v2265
        %v2283 = vunpack.c.h.b16 %v2265
        %v2284 = vunpack.c.l.b16 %v2266
        %v2285 = vunpack.c.h.b16 %v2266
        %v2286 = vunpack.c.l.b16 %v2267
        %v2287 = vunpack.c.h.b16 %v2267
        %v2288 = vunpack.c.l.b16 %v2268
        %v2289 = vunpack.c.h.b16 %v2268
        %v2290 = vunpack.c.l.b16 %v2269
        %v2291 = vunpack.c.h.b16 %v2269
        %v2292 = vunpack.c.l.b16 %v2270
        %v2293 = vunpack.c.h.b16 %v2270
        %v2294 = vunpack.c.l.b16 %v2271
        %v2295 = vunpack.c.h.b16 %v2271
        %v2296 = vpack.c.b16 %v2282, %v2280
        %v2297 = vpack.c.b16 %v2283, %v2281
        %v2298 = vpack.c.b16 %v2286, %v2284
        %v2299 = vpack.c.b16 %v2287, %v2285
        %v2300 = vpack.c.b16 %v2290, %v2288
        %v2301 = vpack.c.b16 %v2291, %v2289
        %v2302 = vpack.c.b16 %v2294, %v2292
        %v2303 = vpack.c.b16 %v2295, %v2293
        %vm2312 = vcmask 523264
        %v2314 = vsel %vm2312, %v2263, 0
        %2316 = vmatprep.subr.bf16.mxu0 0
        %2317 = vmatpush1.bf16.msra.mxu0 0
        %2318 = vmatprep.subr.bf16.mxu0 0
        %2319 = vmatpush1.bf16.msra.mxu0 0
        %2320 = vmatprep.subr.bf16.mxu0 0
        %2321 = vmatpush1.bf16.msra.mxu0 0
        %2322 = vmatprep.subr.bf16.mxu0 0
        %2323 = vmatpush1.bf16.msra.mxu0 0
        %2324 = vmatprep.subr.bf16.mxu0 %v2303
        %2325 = vmatpush1.bf16.msra.mxu0 %v2302
        %2326 = vmatprep.subr.bf16.mxu0 %v2301
        %2327 = vmatpush1.bf16.msra.mxu0 %v2300
        %2328 = vmatprep.subr.bf16.mxu0 %v2299
        %2329 = vmatpush1.bf16.msra.mxu0 %v2298
        %2330 = vmatprep.subr.bf16.mxu0 %v2297
        %2331 = vmatpush1.bf16.msra.mxu0 %v2296
        %2332 = vmatprep.subr.bf16.mxu0 0
        %2333 = vmatpush2.bf16.msra.mxu0 0
        %2334 = vmatprep.subr.bf16.mxu0 0
        %2335 = vmatpush2.bf16.msra.mxu0 0
        %2336 = vmatprep.subr.bf16.mxu0 0
        %2337 = vmatpush2.bf16.msra.mxu0 0
        %2338 = vmatprep.subr.bf16.mxu0 0
        %2339 = vmatpush2.bf16.msra.mxu0 0
        %2340 = vmatprep.subr.bf16.mxu0 0
        %2341 = vmatpush2.bf16.msra.mxu0 0
        %2342 = vmatprep.subr.bf16.mxu0 0
        %2343 = vmatpush2.bf16.msra.mxu0 0
        %2344 = vmatprep.subr.bf16.mxu0 0
        %2345 = vmatpush2.bf16.msra.mxu0 0
        %2346 = vmatprep.subr.bf16.mxu0 0
        %2347 = vmatpush2.bf16.msra.mxu0 0
        %2348 = vmatprep.mubr.bf16.mxu0 0
        %2349 = vmatmul.mubr.bf16.gmra.mxu0 %v2314
        %v2350 = vpop.f32.mrf.mxu0
        %v2351 = vadd.f32 0.0, %v2350
        %v2352 = vpop.f32.mrf.mxu0
        %v2353 = vadd.f32 0.0, %v2352
        %v2354 = vpop.f32.mrf.mxu0
        %v2355 = vadd.f32 0.0, %v2354
        %v2356 = vpop.f32.mrf.mxu0
        %v2357 = vadd.f32 0.0, %v2356
        %2358 = vdwg.mxu0
        %v2359 = vpack.c.bf16 %v2355, %v2351
        %v2360 = vpack.c.bf16 %v2357, %v2353
        %v2361 = vld [vmem:[%s6] sm:$0xf]
        %v2362 = vld [vmem:[%s6 + $0x4] sm:$0xf]
        %v2363 = vld [vmem:[%s6 + $0x8] sm:$0xf]
        %v2364 = vld [vmem:[%s6 + $0xc] sm:$0xf]
        %s2365 = scalar_lea.vmem %s6, 16
        %v2366 = vld [vmem:[%s2365] sm:$0xf]
        %v2367 = vld [vmem:[%s2365 + $0x4] sm:$0xf]
        %v2368 = vld [vmem:[%s2365 + $0x8] sm:$0xf]
        %v2369 = vld [vmem:[%s2365 + $0xc] sm:$0xf]
        %v2374 = vunpack.c.l.b16 %v2366
        %v2375 = vunpack.c.l.b16 %v2367
        %v2376 = vunpack.c.l.b16 %v2368
        %v2377 = vunpack.c.l.b16 %v2369
        %v2378 = vpack.c.b16 %v2375, %v2374
        %v2379 = vpack.c.b16 %v2377, %v2376
        %2381 = vrot.lane.b32.xlu0 %v2359, 112
        %v2382 = vpop.permute.xlu0 %2381
        %vm2384 = vcmask 130048
        %v2386 = vsel %vm2384, %v2378, 0
        %v2389 = vsel %vm2384, %v2379, 0
        %2391 = vmatprep.subr.bf16.mxu0 0
        %2392 = vmatpush1.bf16.msra.mxu0 0
        %2393 = vmatprep.subr.bf16.mxu0 0
        %2394 = vmatpush1.bf16.msra.mxu0 0
        %2395 = vmatprep.subr.bf16.mxu0 0
        %2396 = vmatpush1.bf16.msra.mxu0 0
        %2397 = vmatprep.subr.bf16.mxu0 0
        %2398 = vmatpush1.bf16.msra.mxu0 0
        %2399 = vmatprep.subr.bf16.mxu0 0
        %2400 = vmatpush1.bf16.msra.mxu0 0
        %2401 = vmatprep.subr.bf16.mxu0 0
        %2402 = vmatpush1.bf16.msra.mxu0 0
        %2403 = vmatprep.subr.bf16.mxu0 0
        %2404 = vmatpush1.bf16.msra.mxu0 0
        %2405 = vmatprep.subr.bf16.mxu0 0
        %2406 = vmatpush1.bf16.msra.mxu0 %v2382
        %2407 = vmatprep.subr.bf16.mxu0 0
        %2408 = vmatpush2.bf16.msra.mxu0 0
        %2409 = vmatprep.subr.bf16.mxu0 0
        %2410 = vmatpush2.bf16.msra.mxu0 0
        %2411 = vmatprep.subr.bf16.mxu0 0
        %2412 = vmatpush2.bf16.msra.mxu0 0
        %2413 = vmatprep.subr.bf16.mxu0 0
        %2414 = vmatpush2.bf16.msra.mxu0 0
        %2415 = vmatprep.subr.bf16.mxu0 0
        %2416 = vmatpush2.bf16.msra.mxu0 0
        %2417 = vmatprep.subr.bf16.mxu0 0
        %2418 = vmatpush2.bf16.msra.mxu0 0
        %2419 = vmatprep.subr.bf16.mxu0 0
        %2420 = vmatpush2.bf16.msra.mxu0 0
        %2421 = vmatprep.subr.bf16.mxu0 0
        %2422 = vmatpush2.bf16.msra.mxu0 0
        %2423 = vmatprep.mubr.bf16.mxu0 0
        %2424 = vmatmul.mubr.bf16.gmra.mxu0 %v2386
        %v2425 = vpop.f32.mrf.mxu0
        %v2426 = vadd.f32 0.0, %v2425
        %v2427 = vpop.f32.mrf.mxu0
        %v2428 = vpop.f32.mrf.mxu0
        %v2429 = vadd.f32 0.0, %v2428
        %v2430 = vpop.f32.mrf.mxu0
        %2431 = vmatprep.mubr.bf16.mxu0 0
        %2432 = vmatmul.mubr.bf16.gmra.mxu0 %v2389
        %v2433 = vpop.f32.mrf.mxu0
        %v2434 = vadd.f32 0.0, %v2433
        %v2435 = vpop.f32.mrf.mxu0
        %v2436 = vpop.f32.mrf.mxu0
        %v2437 = vadd.f32 0.0, %v2436
        %v2438 = vpop.f32.mrf.mxu0
        %2439 = vdwg.mxu0
        %v2444 = vunpack.c.l.b16 %v2361
        %v2445 = vunpack.c.l.b16 %v2362
        %v2446 = vunpack.c.l.b16 %v2363
        %v2447 = vunpack.c.l.b16 %v2364
        %v2448 = vpack.c.b16 %v2445, %v2444
        %v2449 = vpack.c.b16 %v2447, %v2446
        %v2451 = vsel %vm2384, %v2448, 0
        %v2454 = vsel %vm2384, %v2449, 0
        %2456 = vmatprep.subr.bf16.mxu0 0
        %2457 = vmatpush1.bf16.msra.mxu0 0
        %2458 = vmatprep.subr.bf16.mxu0 0
        %2459 = vmatpush1.bf16.msra.mxu0 0
        %2460 = vmatprep.subr.bf16.mxu0 0
        %2461 = vmatpush1.bf16.msra.mxu0 0
        %2462 = vmatprep.subr.bf16.mxu0 0
        %2463 = vmatpush1.bf16.msra.mxu0 0
        %2464 = vmatprep.subr.bf16.mxu0 0
        %2465 = vmatpush1.bf16.msra.mxu0 0
        %2466 = vmatprep.subr.bf16.mxu0 0
        %2467 = vmatpush1.bf16.msra.mxu0 0
        %2468 = vmatprep.subr.bf16.mxu0 0
        %2469 = vmatpush1.bf16.msra.mxu0 0
        %2470 = vmatprep.subr.bf16.mxu0 0
        %2471 = vmatpush1.bf16.msra.mxu0 %v2359
        %2472 = vmatprep.subr.bf16.mxu0 0
        %2473 = vmatpush2.bf16.msra.mxu0 0
        %2474 = vmatprep.subr.bf16.mxu0 0
        %2475 = vmatpush2.bf16.msra.mxu0 0
        %2476 = vmatprep.subr.bf16.mxu0 0
        %2477 = vmatpush2.bf16.msra.mxu0 0
        %2478 = vmatprep.subr.bf16.mxu0 0
        %2479 = vmatpush2.bf16.msra.mxu0 0
        %2480 = vmatprep.subr.bf16.mxu0 0
        %2481 = vmatpush2.bf16.msra.mxu0 0
        %2482 = vmatprep.subr.bf16.mxu0 0
        %2483 = vmatpush2.bf16.msra.mxu0 0
        %2484 = vmatprep.subr.bf16.mxu0 0
        %2485 = vmatpush2.bf16.msra.mxu0 0
        %2486 = vmatprep.subr.bf16.mxu0 0
        %2487 = vmatpush2.bf16.msra.mxu0 0
        %2488 = vmatprep.mubr.bf16.mxu0 0
        %2489 = vmatmul.mubr.bf16.gmra.mxu0 %v2451
        %v2490 = vpop.f32.mrf.mxu0
        %v2491 = vadd.f32 %v2426, %v2490
        %v2492 = vpop.f32.mrf.mxu0
        %v2493 = vpop.f32.mrf.mxu0
        %v2494 = vadd.f32 %v2429, %v2493
        %v2495 = vpop.f32.mrf.mxu0
        %2496 = vmatprep.mubr.bf16.mxu0 0
        %2497 = vmatmul.mubr.bf16.gmra.mxu0 %v2454
        %v2498 = vpop.f32.mrf.mxu0
        %v2499 = vadd.f32 %v2434, %v2498
        %v2500 = vpop.f32.mrf.mxu0
        %v2501 = vpop.f32.mrf.mxu0
        %v2502 = vadd.f32 %v2437, %v2501
        %v2503 = vpop.f32.mrf.mxu0
        %2504 = vdwg.mxu0
        %s2505 = scalar_lea.vmem %s6, 32
        %v2506 = vld [vmem:[%s2505] sm:$0xf]
        %v2507 = vld [vmem:[%s2505 + $0x4] sm:$0xf]
        %v2508 = vld [vmem:[%s2505 + $0x8] sm:$0xf]
        %v2509 = vld [vmem:[%s2505 + $0xc] sm:$0xf]
        %v2514 = vunpack.c.l.b16 %v2506
        %v2515 = vunpack.c.l.b16 %v2507
        %v2516 = vunpack.c.l.b16 %v2508
        %v2517 = vunpack.c.l.b16 %v2509
        %v2518 = vpack.c.b16 %v2515, %v2514
        %v2519 = vpack.c.b16 %v2517, %v2516
        %2520 = vrot.lane.b32.xlu0 %v2359, 96
        %v2521 = vpop.permute.xlu0 %2520
        %v2524 = vsel %vm2384, %v2518, 0
        %v2527 = vsel %vm2384, %v2519, 0
        %2529 = vmatprep.subr.bf16.mxu0 0
        %2530 = vmatpush1.bf16.msra.mxu0 0
        %2531 = vmatprep.subr.bf16.mxu0 0
        %2532 = vmatpush1.bf16.msra.mxu0 0
        %2533 = vmatprep.subr.bf16.mxu0 0
        %2534 = vmatpush1.bf16.msra.mxu0 0
        %2535 = vmatprep.subr.bf16.mxu0 0
        %2536 = vmatpush1.bf16.msra.mxu0 0
        %2537 = vmatprep.subr.bf16.mxu0 0
        %2538 = vmatpush1.bf16.msra.mxu0 0
        %2539 = vmatprep.subr.bf16.mxu0 0
        %2540 = vmatpush1.bf16.msra.mxu0 0
        %2541 = vmatprep.subr.bf16.mxu0 0
        %2542 = vmatpush1.bf16.msra.mxu0 0
        %2543 = vmatprep.subr.bf16.mxu0 0
        %2544 = vmatpush1.bf16.msra.mxu0 %v2521
        %2545 = vmatprep.subr.bf16.mxu0 0
        %2546 = vmatpush2.bf16.msra.mxu0 0
        %2547 = vmatprep.subr.bf16.mxu0 0
        %2548 = vmatpush2.bf16.msra.mxu0 0
        %2549 = vmatprep.subr.bf16.mxu0 0
        %2550 = vmatpush2.bf16.msra.mxu0 0
        %2551 = vmatprep.subr.bf16.mxu0 0
        %2552 = vmatpush2.bf16.msra.mxu0 0
        %2553 = vmatprep.subr.bf16.mxu0 0
        %2554 = vmatpush2.bf16.msra.mxu0 0
        %2555 = vmatprep.subr.bf16.mxu0 0
        %2556 = vmatpush2.bf16.msra.mxu0 0
        %2557 = vmatprep.subr.bf16.mxu0 0
        %2558 = vmatpush2.bf16.msra.mxu0 0
        %2559 = vmatprep.subr.bf16.mxu0 0
        %2560 = vmatpush2.bf16.msra.mxu0 0
        %2561 = vmatprep.mubr.bf16.mxu0 0
        %2562 = vmatmul.mubr.bf16.gmra.mxu0 %v2524
        %v2563 = vpop.f32.mrf.mxu0
        %v2564 = vadd.f32 0.0, %v2563
        %v2565 = vpop.f32.mrf.mxu0
        %v2566 = vpop.f32.mrf.mxu0
        %v2567 = vadd.f32 0.0, %v2566
        %v2568 = vpop.f32.mrf.mxu0
        %2569 = vmatprep.mubr.bf16.mxu0 0
        %2570 = vmatmul.mubr.bf16.gmra.mxu0 %v2527
        %v2571 = vpop.f32.mrf.mxu0
        %v2572 = vadd.f32 0.0, %v2571
        %v2573 = vpop.f32.mrf.mxu0
        %v2574 = vpop.f32.mrf.mxu0
        %v2575 = vadd.f32 0.0, %v2574
        %v2576 = vpop.f32.mrf.mxu0
        %2577 = vdwg.mxu0
        %v2578 = vadd.f32 %v2491, %v2564
        %v2579 = vadd.f32 %v2494, %v2567
        %v2580 = vadd.f32 %v2499, %v2572
        %v2581 = vadd.f32 %v2502, %v2575
        %s2582 = scalar_lea.vmem %s6, 48
        %v2583 = vld [vmem:[%s2582] sm:$0xf]
        %v2584 = vld [vmem:[%s2582 + $0x4] sm:$0xf]
        %v2585 = vld [vmem:[%s2582 + $0x8] sm:$0xf]
        %v2586 = vld [vmem:[%s2582 + $0xc] sm:$0xf]
        %v2591 = vunpack.c.l.b16 %v2583
        %v2592 = vunpack.c.l.b16 %v2584
        %v2593 = vunpack.c.l.b16 %v2585
        %v2594 = vunpack.c.l.b16 %v2586
        %v2595 = vpack.c.b16 %v2592, %v2591
        %v2596 = vpack.c.b16 %v2594, %v2593
        %2597 = vrot.lane.b32.xlu0 %v2359, 80
        %v2598 = vpop.permute.xlu0 %2597
        %v2601 = vsel %vm2384, %v2595, 0
        %v2604 = vsel %vm2384, %v2596, 0
        %2606 = vmatprep.subr.bf16.mxu0 0
        %2607 = vmatpush1.bf16.msra.mxu0 0
        %2608 = vmatprep.subr.bf16.mxu0 0
        %2609 = vmatpush1.bf16.msra.mxu0 0
        %2610 = vmatprep.subr.bf16.mxu0 0
        %2611 = vmatpush1.bf16.msra.mxu0 0
        %2612 = vmatprep.subr.bf16.mxu0 0
        %2613 = vmatpush1.bf16.msra.mxu0 0
        %2614 = vmatprep.subr.bf16.mxu0 0
        %2615 = vmatpush1.bf16.msra.mxu0 0
        %2616 = vmatprep.subr.bf16.mxu0 0
        %2617 = vmatpush1.bf16.msra.mxu0 0
        %2618 = vmatprep.subr.bf16.mxu0 0
        %2619 = vmatpush1.bf16.msra.mxu0 0
        %2620 = vmatprep.subr.bf16.mxu0 0
        %2621 = vmatpush1.bf16.msra.mxu0 %v2598
        %2622 = vmatprep.subr.bf16.mxu0 0
        %2623 = vmatpush2.bf16.msra.mxu0 0
        %2624 = vmatprep.subr.bf16.mxu0 0
        %2625 = vmatpush2.bf16.msra.mxu0 0
        %2626 = vmatprep.subr.bf16.mxu0 0
        %2627 = vmatpush2.bf16.msra.mxu0 0
        %2628 = vmatprep.subr.bf16.mxu0 0
        %2629 = vmatpush2.bf16.msra.mxu0 0
        %2630 = vmatprep.subr.bf16.mxu0 0
        %2631 = vmatpush2.bf16.msra.mxu0 0
        %2632 = vmatprep.subr.bf16.mxu0 0
        %2633 = vmatpush2.bf16.msra.mxu0 0
        %2634 = vmatprep.subr.bf16.mxu0 0
        %2635 = vmatpush2.bf16.msra.mxu0 0
        %2636 = vmatprep.subr.bf16.mxu0 0
        %2637 = vmatpush2.bf16.msra.mxu0 0
        %2638 = vmatprep.mubr.bf16.mxu0 0
        %2639 = vmatmul.mubr.bf16.gmra.mxu0 %v2601
        %v2640 = vpop.f32.mrf.mxu0
        %v2641 = vadd.f32 0.0, %v2640
        %v2642 = vpop.f32.mrf.mxu0
        %v2643 = vpop.f32.mrf.mxu0
        %v2644 = vadd.f32 0.0, %v2643
        %v2645 = vpop.f32.mrf.mxu0
        %2646 = vmatprep.mubr.bf16.mxu0 0
        %2647 = vmatmul.mubr.bf16.gmra.mxu0 %v2604
        %v2648 = vpop.f32.mrf.mxu0
        %v2649 = vadd.f32 0.0, %v2648
        %v2650 = vpop.f32.mrf.mxu0
        %v2651 = vpop.f32.mrf.mxu0
        %v2652 = vadd.f32 0.0, %v2651
        %v2653 = vpop.f32.mrf.mxu0
        %2654 = vdwg.mxu0
        %v2655 = vadd.f32 %v2578, %v2641
        %v2656 = vadd.f32 %v2579, %v2644
        %v2657 = vadd.f32 %v2580, %v2649
        %v2658 = vadd.f32 %v2581, %v2652
        %s2659 = scalar_lea.vmem %s6, 64
        %v2660 = vld [vmem:[%s2659] sm:$0xf]
        %v2661 = vld [vmem:[%s2659 + $0x4] sm:$0xf]
        %v2662 = vld [vmem:[%s2659 + $0x8] sm:$0xf]
        %v2663 = vld [vmem:[%s2659 + $0xc] sm:$0xf]
        %v2668 = vunpack.c.l.b16 %v2660
        %v2669 = vunpack.c.l.b16 %v2661
        %v2670 = vunpack.c.l.b16 %v2662
        %v2671 = vunpack.c.l.b16 %v2663
        %v2672 = vpack.c.b16 %v2669, %v2668
        %v2673 = vpack.c.b16 %v2671, %v2670
        %2674 = vrot.lane.b32.xlu0 %v2359, 64
        %v2675 = vpop.permute.xlu0 %2674
        %v2678 = vsel %vm2384, %v2672, 0
        %v2681 = vsel %vm2384, %v2673, 0
        %2683 = vmatprep.subr.bf16.mxu0 0
        %2684 = vmatpush1.bf16.msra.mxu0 0
        %2685 = vmatprep.subr.bf16.mxu0 0
        %2686 = vmatpush1.bf16.msra.mxu0 0
        %2687 = vmatprep.subr.bf16.mxu0 0
        %2688 = vmatpush1.bf16.msra.mxu0 0
        %2689 = vmatprep.subr.bf16.mxu0 0
        %2690 = vmatpush1.bf16.msra.mxu0 0
        %2691 = vmatprep.subr.bf16.mxu0 0
        %2692 = vmatpush1.bf16.msra.mxu0 0
        %2693 = vmatprep.subr.bf16.mxu0 0
        %2694 = vmatpush1.bf16.msra.mxu0 0
        %2695 = vmatprep.subr.bf16.mxu0 0
        %2696 = vmatpush1.bf16.msra.mxu0 0
        %2697 = vmatprep.subr.bf16.mxu0 0
        %2698 = vmatpush1.bf16.msra.mxu0 %v2675
        %2699 = vmatprep.subr.bf16.mxu0 0
        %2700 = vmatpush2.bf16.msra.mxu0 0
        %2701 = vmatprep.subr.bf16.mxu0 0
        %2702 = vmatpush2.bf16.msra.mxu0 0
        %2703 = vmatprep.subr.bf16.mxu0 0
        %2704 = vmatpush2.bf16.msra.mxu0 0
        %2705 = vmatprep.subr.bf16.mxu0 0
        %2706 = vmatpush2.bf16.msra.mxu0 0
        %2707 = vmatprep.subr.bf16.mxu0 0
        %2708 = vmatpush2.bf16.msra.mxu0 0
        %2709 = vmatprep.subr.bf16.mxu0 0
        %2710 = vmatpush2.bf16.msra.mxu0 0
        %2711 = vmatprep.subr.bf16.mxu0 0
        %2712 = vmatpush2.bf16.msra.mxu0 0
        %2713 = vmatprep.subr.bf16.mxu0 0
        %2714 = vmatpush2.bf16.msra.mxu0 0
        %2715 = vmatprep.mubr.bf16.mxu0 0
        %2716 = vmatmul.mubr.bf16.gmra.mxu0 %v2678
        %v2717 = vpop.f32.mrf.mxu0
        %v2718 = vadd.f32 0.0, %v2717
        %v2719 = vpop.f32.mrf.mxu0
        %v2720 = vpop.f32.mrf.mxu0
        %v2721 = vadd.f32 0.0, %v2720
        %v2722 = vpop.f32.mrf.mxu0
        %2723 = vmatprep.mubr.bf16.mxu0 0
        %2724 = vmatmul.mubr.bf16.gmra.mxu0 %v2681
        %v2725 = vpop.f32.mrf.mxu0
        %v2726 = vadd.f32 0.0, %v2725
        %v2727 = vpop.f32.mrf.mxu0
        %v2728 = vpop.f32.mrf.mxu0
        %v2729 = vadd.f32 0.0, %v2728
        %v2730 = vpop.f32.mrf.mxu0
        %2731 = vdwg.mxu0
        %v2732 = vadd.f32 %v2655, %v2718
        %v2733 = vadd.f32 %v2656, %v2721
        %v2734 = vadd.f32 %v2657, %v2726
        %v2735 = vadd.f32 %v2658, %v2729
        %s2736 = scalar_lea.vmem %s6, 80
        %v2737 = vld [vmem:[%s2736] sm:$0xf]
        %v2738 = vld [vmem:[%s2736 + $0x4] sm:$0xf]
        %v2739 = vld [vmem:[%s2736 + $0x8] sm:$0xf]
        %v2740 = vld [vmem:[%s2736 + $0xc] sm:$0xf]
        %v2745 = vunpack.c.l.b16 %v2737
        %v2746 = vunpack.c.l.b16 %v2738
        %v2747 = vunpack.c.l.b16 %v2739
        %v2748 = vunpack.c.l.b16 %v2740
        %v2749 = vpack.c.b16 %v2746, %v2745
        %v2750 = vpack.c.b16 %v2748, %v2747
        %2751 = vrot.lane.b32.xlu0 %v2359, 48
        %v2752 = vpop.permute.xlu0 %2751
        %v2755 = vsel %vm2384, %v2749, 0
        %v2758 = vsel %vm2384, %v2750, 0
        %2760 = vmatprep.subr.bf16.mxu0 0
        %2761 = vmatpush1.bf16.msra.mxu0 0
        %2762 = vmatprep.subr.bf16.mxu0 0
        %2763 = vmatpush1.bf16.msra.mxu0 0
        %2764 = vmatprep.subr.bf16.mxu0 0
        %2765 = vmatpush1.bf16.msra.mxu0 0
        %2766 = vmatprep.subr.bf16.mxu0 0
        %2767 = vmatpush1.bf16.msra.mxu0 0
        %2768 = vmatprep.subr.bf16.mxu0 0
        %2769 = vmatpush1.bf16.msra.mxu0 0
        %2770 = vmatprep.subr.bf16.mxu0 0
        %2771 = vmatpush1.bf16.msra.mxu0 0
        %2772 = vmatprep.subr.bf16.mxu0 0
        %2773 = vmatpush1.bf16.msra.mxu0 0
        %2774 = vmatprep.subr.bf16.mxu0 0
        %2775 = vmatpush1.bf16.msra.mxu0 %v2752
        %2776 = vmatprep.subr.bf16.mxu0 0
        %2777 = vmatpush2.bf16.msra.mxu0 0
        %2778 = vmatprep.subr.bf16.mxu0 0
        %2779 = vmatpush2.bf16.msra.mxu0 0
        %2780 = vmatprep.subr.bf16.mxu0 0
        %2781 = vmatpush2.bf16.msra.mxu0 0
        %2782 = vmatprep.subr.bf16.mxu0 0
        %2783 = vmatpush2.bf16.msra.mxu0 0
        %2784 = vmatprep.subr.bf16.mxu0 0
        %2785 = vmatpush2.bf16.msra.mxu0 0
        %2786 = vmatprep.subr.bf16.mxu0 0
        %2787 = vmatpush2.bf16.msra.mxu0 0
        %2788 = vmatprep.subr.bf16.mxu0 0
        %2789 = vmatpush2.bf16.msra.mxu0 0
        %2790 = vmatprep.subr.bf16.mxu0 0
        %2791 = vmatpush2.bf16.msra.mxu0 0
        %2792 = vmatprep.mubr.bf16.mxu0 0
        %2793 = vmatmul.mubr.bf16.gmra.mxu0 %v2755
        %v2794 = vpop.f32.mrf.mxu0
        %v2795 = vadd.f32 0.0, %v2794
        %v2796 = vpop.f32.mrf.mxu0
        %v2797 = vpop.f32.mrf.mxu0
        %v2798 = vadd.f32 0.0, %v2797
        %v2799 = vpop.f32.mrf.mxu0
        %2800 = vmatprep.mubr.bf16.mxu0 0
        %2801 = vmatmul.mubr.bf16.gmra.mxu0 %v2758
        %v2802 = vpop.f32.mrf.mxu0
        %v2803 = vadd.f32 0.0, %v2802
        %v2804 = vpop.f32.mrf.mxu0
        %v2805 = vpop.f32.mrf.mxu0
        %v2806 = vadd.f32 0.0, %v2805
        %v2807 = vpop.f32.mrf.mxu0
        %2808 = vdwg.mxu0
        %v2809 = vadd.f32 %v2732, %v2795
        %v2810 = vadd.f32 %v2733, %v2798
        %v2811 = vadd.f32 %v2734, %v2803
        %v2812 = vadd.f32 %v2735, %v2806
        %s2813 = scalar_lea.vmem %s6, 96
        %v2814 = vld [vmem:[%s2813] sm:$0xf]
        %v2815 = vld [vmem:[%s2813 + $0x4] sm:$0xf]
        %v2816 = vld [vmem:[%s2813 + $0x8] sm:$0xf]
        %v2817 = vld [vmem:[%s2813 + $0xc] sm:$0xf]
        %v2822 = vunpack.c.l.b16 %v2814
        %v2823 = vunpack.c.l.b16 %v2815
        %v2824 = vunpack.c.l.b16 %v2816
        %v2825 = vunpack.c.l.b16 %v2817
        %v2826 = vpack.c.b16 %v2823, %v2822
        %v2827 = vpack.c.b16 %v2825, %v2824
        %2828 = vrot.lane.b32.xlu0 %v2359, 32
        %v2829 = vpop.permute.xlu0 %2828
        %v2832 = vsel %vm2384, %v2826, 0
        %v2835 = vsel %vm2384, %v2827, 0
        %2837 = vmatprep.subr.bf16.mxu0 0
        %2838 = vmatpush1.bf16.msra.mxu0 0
        %2839 = vmatprep.subr.bf16.mxu0 0
        %2840 = vmatpush1.bf16.msra.mxu0 0
        %2841 = vmatprep.subr.bf16.mxu0 0
        %2842 = vmatpush1.bf16.msra.mxu0 0
        %2843 = vmatprep.subr.bf16.mxu0 0
        %2844 = vmatpush1.bf16.msra.mxu0 0
        %2845 = vmatprep.subr.bf16.mxu0 0
        %2846 = vmatpush1.bf16.msra.mxu0 0
        %2847 = vmatprep.subr.bf16.mxu0 0
        %2848 = vmatpush1.bf16.msra.mxu0 0
        %2849 = vmatprep.subr.bf16.mxu0 0
        %2850 = vmatpush1.bf16.msra.mxu0 0
        %2851 = vmatprep.subr.bf16.mxu0 0
        %2852 = vmatpush1.bf16.msra.mxu0 %v2829
        %2853 = vmatprep.subr.bf16.mxu0 0
        %2854 = vmatpush2.bf16.msra.mxu0 0
        %2855 = vmatprep.subr.bf16.mxu0 0
        %2856 = vmatpush2.bf16.msra.mxu0 0
        %2857 = vmatprep.subr.bf16.mxu0 0
        %2858 = vmatpush2.bf16.msra.mxu0 0
        %2859 = vmatprep.subr.bf16.mxu0 0
        %2860 = vmatpush2.bf16.msra.mxu0 0
        %2861 = vmatprep.subr.bf16.mxu0 0
        %2862 = vmatpush2.bf16.msra.mxu0 0
        %2863 = vmatprep.subr.bf16.mxu0 0
        %2864 = vmatpush2.bf16.msra.mxu0 0
        %2865 = vmatprep.subr.bf16.mxu0 0
        %2866 = vmatpush2.bf16.msra.mxu0 0
        %2867 = vmatprep.subr.bf16.mxu0 0
        %2868 = vmatpush2.bf16.msra.mxu0 0
        %2869 = vmatprep.mubr.bf16.mxu0 0
        %2870 = vmatmul.mubr.bf16.gmra.mxu0 %v2832
        %v2871 = vpop.f32.mrf.mxu0
        %v2872 = vadd.f32 0.0, %v2871
        %v2873 = vpop.f32.mrf.mxu0
        %v2874 = vpop.f32.mrf.mxu0
        %v2875 = vadd.f32 0.0, %v2874
        %v2876 = vpop.f32.mrf.mxu0
        %2877 = vmatprep.mubr.bf16.mxu0 0
        %2878 = vmatmul.mubr.bf16.gmra.mxu0 %v2835
        %v2879 = vpop.f32.mrf.mxu0
        %v2880 = vadd.f32 0.0, %v2879
        %v2881 = vpop.f32.mrf.mxu0
        %v2882 = vpop.f32.mrf.mxu0
        %v2883 = vadd.f32 0.0, %v2882
        %v2884 = vpop.f32.mrf.mxu0
        %2885 = vdwg.mxu0
        %v2886 = vadd.f32 %v2809, %v2872
        %v2887 = vadd.f32 %v2810, %v2875
        %v2888 = vadd.f32 %v2811, %v2880
        %v2889 = vadd.f32 %v2812, %v2883
        %s2890 = scalar_lea.vmem %s6, 112
        %v2891 = vld [vmem:[%s2890] sm:$0xf]
        %v2892 = vld [vmem:[%s2890 + $0x4] sm:$0xf]
        %v2893 = vld [vmem:[%s2890 + $0x8] sm:$0xf]
        %v2894 = vld [vmem:[%s2890 + $0xc] sm:$0xf]
        %v2899 = vunpack.c.l.b16 %v2891
        %v2900 = vunpack.c.l.b16 %v2892
        %v2901 = vunpack.c.l.b16 %v2893
        %v2902 = vunpack.c.l.b16 %v2894
        %v2903 = vpack.c.b16 %v2900, %v2899
        %v2904 = vpack.c.b16 %v2902, %v2901
        %2905 = vrot.lane.b32.xlu0 %v2359, 16
        %v2906 = vpop.permute.xlu0 %2905
        %v2909 = vsel %vm2384, %v2903, 0
        %v2912 = vsel %vm2384, %v2904, 0
        %2914 = vmatprep.subr.bf16.mxu0 0
        %2915 = vmatpush1.bf16.msra.mxu0 0
        %2916 = vmatprep.subr.bf16.mxu0 0
        %2917 = vmatpush1.bf16.msra.mxu0 0
        %2918 = vmatprep.subr.bf16.mxu0 0
        %2919 = vmatpush1.bf16.msra.mxu0 0
        %2920 = vmatprep.subr.bf16.mxu0 0
        %2921 = vmatpush1.bf16.msra.mxu0 0
        %2922 = vmatprep.subr.bf16.mxu0 0
        %2923 = vmatpush1.bf16.msra.mxu0 0
        %2924 = vmatprep.subr.bf16.mxu0 0
        %2925 = vmatpush1.bf16.msra.mxu0 0
        %2926 = vmatprep.subr.bf16.mxu0 0
        %2927 = vmatpush1.bf16.msra.mxu0 0
        %2928 = vmatprep.subr.bf16.mxu0 0
        %2929 = vmatpush1.bf16.msra.mxu0 %v2906
        %2930 = vmatprep.subr.bf16.mxu0 0
        %2931 = vmatpush2.bf16.msra.mxu0 0
        %2932 = vmatprep.subr.bf16.mxu0 0
        %2933 = vmatpush2.bf16.msra.mxu0 0
        %2934 = vmatprep.subr.bf16.mxu0 0
        %2935 = vmatpush2.bf16.msra.mxu0 0
        %2936 = vmatprep.subr.bf16.mxu0 0
        %2937 = vmatpush2.bf16.msra.mxu0 0
        %2938 = vmatprep.subr.bf16.mxu0 0
        %2939 = vmatpush2.bf16.msra.mxu0 0
        %2940 = vmatprep.subr.bf16.mxu0 0
        %2941 = vmatpush2.bf16.msra.mxu0 0
        %2942 = vmatprep.subr.bf16.mxu0 0
        %2943 = vmatpush2.bf16.msra.mxu0 0
        %2944 = vmatprep.subr.bf16.mxu0 0
        %2945 = vmatpush2.bf16.msra.mxu0 0
        %2946 = vmatprep.mubr.bf16.mxu0 0
        %2947 = vmatmul.mubr.bf16.gmra.mxu0 %v2909
        %v2948 = vpop.f32.mrf.mxu0
        %v2949 = vadd.f32 0.0, %v2948
        %v2950 = vpop.f32.mrf.mxu0
        %v2951 = vpop.f32.mrf.mxu0
        %v2952 = vadd.f32 0.0, %v2951
        %v2953 = vpop.f32.mrf.mxu0
        %2954 = vmatprep.mubr.bf16.mxu0 0
        %2955 = vmatmul.mubr.bf16.gmra.mxu0 %v2912
        %v2956 = vpop.f32.mrf.mxu0
        %v2957 = vadd.f32 0.0, %v2956
        %v2958 = vpop.f32.mrf.mxu0
        %v2959 = vpop.f32.mrf.mxu0
        %v2960 = vadd.f32 0.0, %v2959
        %v2961 = vpop.f32.mrf.mxu0
        %2962 = vdwg.mxu0
        %v2963 = vadd.f32 %v2886, %v2949
        %v2964 = vadd.f32 %v2887, %v2952
        %v2965 = vadd.f32 %v2888, %v2957
        %v2966 = vadd.f32 %v2889, %v2960
        %s2967 = scalar_lea.vmem %s6, 128
        %v2968 = vld [vmem:[%s2967] sm:$0xf]
        %v2969 = vld [vmem:[%s2967 + $0x4] sm:$0xf]
        %v2970 = vld [vmem:[%s2967 + $0x8] sm:$0xf]
        %v2971 = vld [vmem:[%s2967 + $0xc] sm:$0xf]
        %v2976 = vunpack.c.l.b16 %v2968
        %v2977 = vunpack.c.l.b16 %v2969
        %v2978 = vunpack.c.l.b16 %v2970
        %v2979 = vunpack.c.l.b16 %v2971
        %v2980 = vpack.c.b16 %v2977, %v2976
        %v2981 = vpack.c.b16 %v2979, %v2978
        %v2983 = vsel %vm2384, %v2980, 0
        %v2986 = vsel %vm2384, %v2981, 0
        %2988 = vmatprep.subr.bf16.mxu0 0
        %2989 = vmatpush1.bf16.msra.mxu0 0
        %2990 = vmatprep.subr.bf16.mxu0 0
        %2991 = vmatpush1.bf16.msra.mxu0 0
        %2992 = vmatprep.subr.bf16.mxu0 0
        %2993 = vmatpush1.bf16.msra.mxu0 0
        %2994 = vmatprep.subr.bf16.mxu0 0
        %2995 = vmatpush1.bf16.msra.mxu0 0
        %2996 = vmatprep.subr.bf16.mxu0 0
        %2997 = vmatpush1.bf16.msra.mxu0 0
        %2998 = vmatprep.subr.bf16.mxu0 0
        %2999 = vmatpush1.bf16.msra.mxu0 0
        %3000 = vmatprep.subr.bf16.mxu0 0
        %3001 = vmatpush1.bf16.msra.mxu0 0
        %3002 = vmatprep.subr.bf16.mxu0 0
        %3003 = vmatpush1.bf16.msra.mxu0 %v2360
        %3004 = vmatprep.subr.bf16.mxu0 0
        %3005 = vmatpush2.bf16.msra.mxu0 0
        %3006 = vmatprep.subr.bf16.mxu0 0
        %3007 = vmatpush2.bf16.msra.mxu0 0
        %3008 = vmatprep.subr.bf16.mxu0 0
        %3009 = vmatpush2.bf16.msra.mxu0 0
        %3010 = vmatprep.subr.bf16.mxu0 0
        %3011 = vmatpush2.bf16.msra.mxu0 0
        %3012 = vmatprep.subr.bf16.mxu0 0
        %3013 = vmatpush2.bf16.msra.mxu0 0
        %3014 = vmatprep.subr.bf16.mxu0 0
        %3015 = vmatpush2.bf16.msra.mxu0 0
        %3016 = vmatprep.subr.bf16.mxu0 0
        %3017 = vmatpush2.bf16.msra.mxu0 0
        %3018 = vmatprep.subr.bf16.mxu0 0
        %3019 = vmatpush2.bf16.msra.mxu0 0
        %3020 = vmatprep.mubr.bf16.mxu0 0
        %3021 = vmatmul.mubr.bf16.gmra.mxu0 %v2983
        %v3022 = vpop.f32.mrf.mxu0
        %v3023 = vadd.f32 0.0, %v3022
        %v3024 = vpop.f32.mrf.mxu0
        %v3025 = vpop.f32.mrf.mxu0
        %v3026 = vadd.f32 0.0, %v3025
        %v3027 = vpop.f32.mrf.mxu0
        %3028 = vmatprep.mubr.bf16.mxu0 0
        %3029 = vmatmul.mubr.bf16.gmra.mxu0 %v2986
        %v3030 = vpop.f32.mrf.mxu0
        %v3031 = vadd.f32 0.0, %v3030
        %v3032 = vpop.f32.mrf.mxu0
        %v3033 = vpop.f32.mrf.mxu0
        %v3034 = vadd.f32 0.0, %v3033
        %v3035 = vpop.f32.mrf.mxu0
        %3036 = vdwg.mxu0
        %v3037 = vadd.f32 %v2963, %v3023
        %v3038 = vadd.f32 %v2964, %v3026
        %v3039 = vadd.f32 %v2965, %v3031
        %v3040 = vadd.f32 %v2966, %v3034
        %v3041 = vld [vmem:[#allocation9] sm:$0xff]
        %v3042 = vld [vmem:[#allocation9 + $0x8] sm:$0xff]
        %v3043 = vld [vmem:[#allocation9 + $0x10] sm:$0xff]
        %v3044 = vld [vmem:[#allocation9 + $0x18] sm:$0xff]
        %3046 = vset.pattern.permute.xlu0 0
        %3047 = vperm.xlu0 %3046, %v3041
        %v3048 = vpop.permute.xlu0 %3047
        %3051 = vset.pattern.permute.xlu0 0
        %3052 = vperm.xlu0 %3051, %v3042
        %v3053 = vpop.permute.xlu0 %3052
        %3056 = vset.pattern.permute.xlu0 0
        %3057 = vperm.xlu0 %3056, %v3043
        %v3058 = vpop.permute.xlu0 %3057
        %3061 = vset.pattern.permute.xlu0 0
        %3062 = vperm.xlu0 %3061, %v3044
        %v3063 = vpop.permute.xlu0 %3062
        %v3065 = vadd.f32 %v3037, %v3048
        %v3066 = vadd.f32 %v3038, %v3053
        %v3067 = vadd.f32 %v3039, %v3058
        %v3068 = vadd.f32 %v3040, %v3063
        %v3069 = vmax.f32 %v3065, 0.0
        %v3070 = vmax.f32 %v3066, 0.0
        %v3071 = vmax.f32 %v3067, 0.0
        %v3072 = vmax.f32 %v3068, 0.0
        %v3073 = vpack.c.bf16 %v3070, %v3069
        %v3074 = vpack.c.bf16 %v3072, %v3071
        %v3075 = vld [vmem:[#allocation11] sm:$0xff]
        %v3076 = vld [vmem:[#allocation11 + $0x8] sm:$0xff]
        %v3079 = vunpack.c.l.b16 %v3075
        %v3080 = vunpack.c.h.b16 %v3075
        %v3081 = vunpack.c.l.b16 %v3076
        %v3082 = vunpack.c.h.b16 %v3076
        %v3083 = vpack.c.b16 %v3081, %v3079
        %v3084 = vpack.c.b16 %v3082, %v3080
        %v3088 = vsel %vm2384, %v3073, 0
        %v3091 = vsel %vm2384, %v3074, 0
        %3093 = vmatprep.subr.bf16.mxu0 0
        %3094 = vmatpush1.bf16.msra.mxu0 0
        %3095 = vmatprep.subr.bf16.mxu0 0
        %3096 = vmatpush1.bf16.msra.mxu0 0
        %3097 = vmatprep.subr.bf16.mxu0 0
        %3098 = vmatpush1.bf16.msra.mxu0 0
        %3099 = vmatprep.subr.bf16.mxu0 0
        %3100 = vmatpush1.bf16.msra.mxu0 0
        %3101 = vmatprep.subr.bf16.mxu0 0
        %3102 = vmatpush1.bf16.msra.mxu0 0
        %3103 = vmatprep.subr.bf16.mxu0 0
        %3104 = vmatpush1.bf16.msra.mxu0 0
        %3105 = vmatprep.subr.bf16.mxu0 0
        %3106 = vmatpush1.bf16.msra.mxu0 0
        %3107 = vmatprep.subr.bf16.mxu0 %v3084
        %3108 = vmatpush1.bf16.msra.mxu0 %v3083
        %3109 = vmatprep.subr.bf16.mxu0 0
        %3110 = vmatpush2.bf16.msra.mxu0 0
        %3111 = vmatprep.subr.bf16.mxu0 0
        %3112 = vmatpush2.bf16.msra.mxu0 0
        %3113 = vmatprep.subr.bf16.mxu0 0
        %3114 = vmatpush2.bf16.msra.mxu0 0
        %3115 = vmatprep.subr.bf16.mxu0 0
        %3116 = vmatpush2.bf16.msra.mxu0 0
        %3117 = vmatprep.subr.bf16.mxu0 0
        %3118 = vmatpush2.bf16.msra.mxu0 0
        %3119 = vmatprep.subr.bf16.mxu0 0
        %3120 = vmatpush2.bf16.msra.mxu0 0
        %3121 = vmatprep.subr.bf16.mxu0 0
        %3122 = vmatpush2.bf16.msra.mxu0 0
        %3123 = vmatprep.subr.bf16.mxu0 0
        %3124 = vmatpush2.bf16.msra.mxu0 0
        %3125 = vmatprep.mubr.bf16.mxu0 0
        %3126 = vmatmul.mubr.bf16.gmra.mxu0 %v3088
        %v3127 = vpop.f32.mrf.mxu0
        %v3128 = vadd.f32 0.0, %v3127
        %v3129 = vpop.f32.mrf.mxu0
        %v3130 = vadd.f32 0.0, %v3129
        %v3131 = vpop.f32.mrf.mxu0
        %v3132 = vadd.f32 0.0, %v3131
        %v3133 = vpop.f32.mrf.mxu0
        %v3134 = vadd.f32 0.0, %v3133
        %3135 = vmatprep.mubr.bf16.mxu0 0
        %3136 = vmatmul.mubr.bf16.gmra.mxu0 %v3091
        %v3137 = vpop.f32.mrf.mxu0
        %v3138 = vadd.f32 0.0, %v3137
        %v3139 = vpop.f32.mrf.mxu0
        %v3140 = vadd.f32 0.0, %v3139
        %v3141 = vpop.f32.mrf.mxu0
        %v3142 = vadd.f32 0.0, %v3141
        %v3143 = vpop.f32.mrf.mxu0
        %v3144 = vadd.f32 0.0, %v3143
        %3145 = vdwg.mxu0
        %v3146 = vpack.c.bf16 %v3132, %v3128
        %v3147 = vpack.c.bf16 %v3134, %v3130
        %v3148 = vpack.c.bf16 %v3142, %v3138
        %v3149 = vpack.c.bf16 %v3144, %v3140
        %v3150 = vld [vmem:[%s9] sm:$0xf]
        %v3151 = vld [vmem:[%s9 + $0x4] sm:$0xf]
        %v3152 = vld [vmem:[%s9 + $0x8] sm:$0xf]
        %v3153 = vld [vmem:[%s9 + $0xc] sm:$0xf]
        %s3154 = scalar_lea.vmem %s9, 16
        %v3155 = vld [vmem:[%s3154] sm:$0xf]
        %v3156 = vld [vmem:[%s3154 + $0x4] sm:$0xf]
        %v3157 = vld [vmem:[%s3154 + $0x8] sm:$0xf]
        %v3158 = vld [vmem:[%s3154 + $0xc] sm:$0xf]
        %v3163 = vunpack.c.l.b16 %v3155
        %v3164 = vunpack.c.l.b16 %v3156
        %v3165 = vunpack.c.l.b16 %v3157
        %v3166 = vunpack.c.l.b16 %v3158
        %v3167 = vpack.c.b16 %v3164, %v3163
        %v3168 = vpack.c.b16 %v3166, %v3165
        %3171 = vrot.lane.b32.xlu0 %v3146, 112
        %v3172 = vpop.permute.xlu0 %3171
        %3173 = vrot.lane.b32.xlu0 %v3148, 112
        %v3174 = vpop.permute.xlu0 %3173
        %vm3177 = vcmask 261120
        %v3179 = vsel %vm3177, %v3167, 0
        %v3182 = vsel %vm3177, %v3168, 0
        %3184 = vmatprep.subr.bf16.mxu0 0
        %3185 = vmatpush1.bf16.msra.mxu0 0
        %3186 = vmatprep.subr.bf16.mxu0 0
        %3187 = vmatpush1.bf16.msra.mxu0 0
        %3188 = vmatprep.subr.bf16.mxu0 0
        %3189 = vmatpush1.bf16.msra.mxu0 0
        %3190 = vmatprep.subr.bf16.mxu0 0
        %3191 = vmatpush1.bf16.msra.mxu0 0
        %3192 = vmatprep.subr.bf16.mxu0 0
        %3193 = vmatpush1.bf16.msra.mxu0 0
        %3194 = vmatprep.subr.bf16.mxu0 0
        %3195 = vmatpush1.bf16.msra.mxu0 0
        %3196 = vmatprep.subr.bf16.mxu0 0
        %3197 = vmatpush1.bf16.msra.mxu0 %v3174
        %3198 = vmatprep.subr.bf16.mxu0 0
        %3199 = vmatpush1.bf16.msra.mxu0 %v3172
        %3200 = vmatprep.subr.bf16.mxu0 0
        %3201 = vmatpush2.bf16.msra.mxu0 0
        %3202 = vmatprep.subr.bf16.mxu0 0
        %3203 = vmatpush2.bf16.msra.mxu0 0
        %3204 = vmatprep.subr.bf16.mxu0 0
        %3205 = vmatpush2.bf16.msra.mxu0 0
        %3206 = vmatprep.subr.bf16.mxu0 0
        %3207 = vmatpush2.bf16.msra.mxu0 0
        %3208 = vmatprep.subr.bf16.mxu0 0
        %3209 = vmatpush2.bf16.msra.mxu0 0
        %3210 = vmatprep.subr.bf16.mxu0 0
        %3211 = vmatpush2.bf16.msra.mxu0 0
        %3212 = vmatprep.subr.bf16.mxu0 0
        %3213 = vmatpush2.bf16.msra.mxu0 0
        %3214 = vmatprep.subr.bf16.mxu0 0
        %3215 = vmatpush2.bf16.msra.mxu0 0
        %3216 = vmatprep.mubr.bf16.mxu0 0
        %3217 = vmatmul.mubr.bf16.gmra.mxu0 %v3179
        %v3218 = vpop.f32.mrf.mxu0
        %v3219 = vadd.f32 0.0, %v3218
        %v3220 = vpop.f32.mrf.mxu0
        %v3221 = vpop.f32.mrf.mxu0
        %v3222 = vadd.f32 0.0, %v3221
        %v3223 = vpop.f32.mrf.mxu0
        %3224 = vmatprep.mubr.bf16.mxu0 0
        %3225 = vmatmul.mubr.bf16.gmra.mxu0 %v3182
        %v3226 = vpop.f32.mrf.mxu0
        %v3227 = vadd.f32 0.0, %v3226
        %v3228 = vpop.f32.mrf.mxu0
        %v3229 = vpop.f32.mrf.mxu0
        %v3230 = vadd.f32 0.0, %v3229
        %v3231 = vpop.f32.mrf.mxu0
        %3232 = vdwg.mxu0
        %v3237 = vunpack.c.l.b16 %v3150
        %v3238 = vunpack.c.l.b16 %v3151
        %v3239 = vunpack.c.l.b16 %v3152
        %v3240 = vunpack.c.l.b16 %v3153
        %v3241 = vpack.c.b16 %v3238, %v3237
        %v3242 = vpack.c.b16 %v3240, %v3239
        %v3244 = vsel %vm3177, %v3241, 0
        %v3247 = vsel %vm3177, %v3242, 0
        %3249 = vmatprep.subr.bf16.mxu0 0
        %3250 = vmatpush1.bf16.msra.mxu0 0
        %3251 = vmatprep.subr.bf16.mxu0 0
        %3252 = vmatpush1.bf16.msra.mxu0 0
        %3253 = vmatprep.subr.bf16.mxu0 0
        %3254 = vmatpush1.bf16.msra.mxu0 0
        %3255 = vmatprep.subr.bf16.mxu0 0
        %3256 = vmatpush1.bf16.msra.mxu0 0
        %3257 = vmatprep.subr.bf16.mxu0 0
        %3258 = vmatpush1.bf16.msra.mxu0 0
        %3259 = vmatprep.subr.bf16.mxu0 0
        %3260 = vmatpush1.bf16.msra.mxu0 0
        %3261 = vmatprep.subr.bf16.mxu0 0
        %3262 = vmatpush1.bf16.msra.mxu0 %v3148
        %3263 = vmatprep.subr.bf16.mxu0 0
        %3264 = vmatpush1.bf16.msra.mxu0 %v3146
        %3265 = vmatprep.subr.bf16.mxu0 0
        %3266 = vmatpush2.bf16.msra.mxu0 0
        %3267 = vmatprep.subr.bf16.mxu0 0
        %3268 = vmatpush2.bf16.msra.mxu0 0
        %3269 = vmatprep.subr.bf16.mxu0 0
        %3270 = vmatpush2.bf16.msra.mxu0 0
        %3271 = vmatprep.subr.bf16.mxu0 0
        %3272 = vmatpush2.bf16.msra.mxu0 0
        %3273 = vmatprep.subr.bf16.mxu0 0
        %3274 = vmatpush2.bf16.msra.mxu0 0
        %3275 = vmatprep.subr.bf16.mxu0 0
        %3276 = vmatpush2.bf16.msra.mxu0 0
        %3277 = vmatprep.subr.bf16.mxu0 0
        %3278 = vmatpush2.bf16.msra.mxu0 0
        %3279 = vmatprep.subr.bf16.mxu0 0
        %3280 = vmatpush2.bf16.msra.mxu0 0
        %3281 = vmatprep.mubr.bf16.mxu0 0
        %3282 = vmatmul.mubr.bf16.gmra.mxu0 %v3244
        %v3283 = vpop.f32.mrf.mxu0
        %v3284 = vadd.f32 %v3219, %v3283
        %v3285 = vpop.f32.mrf.mxu0
        %v3286 = vpop.f32.mrf.mxu0
        %v3287 = vadd.f32 %v3222, %v3286
        %v3288 = vpop.f32.mrf.mxu0
        %3289 = vmatprep.mubr.bf16.mxu0 0
        %3290 = vmatmul.mubr.bf16.gmra.mxu0 %v3247
        %v3291 = vpop.f32.mrf.mxu0
        %v3292 = vadd.f32 %v3227, %v3291
        %v3293 = vpop.f32.mrf.mxu0
        %v3294 = vpop.f32.mrf.mxu0
        %v3295 = vadd.f32 %v3230, %v3294
        %v3296 = vpop.f32.mrf.mxu0
        %3297 = vdwg.mxu0
        %s3298 = scalar_lea.vmem %s9, 32
        %v3299 = vld [vmem:[%s3298] sm:$0xf]
        %v3300 = vld [vmem:[%s3298 + $0x4] sm:$0xf]
        %v3301 = vld [vmem:[%s3298 + $0x8] sm:$0xf]
        %v3302 = vld [vmem:[%s3298 + $0xc] sm:$0xf]
        %v3307 = vunpack.c.l.b16 %v3299
        %v3308 = vunpack.c.l.b16 %v3300
        %v3309 = vunpack.c.l.b16 %v3301
        %v3310 = vunpack.c.l.b16 %v3302
        %v3311 = vpack.c.b16 %v3308, %v3307
        %v3312 = vpack.c.b16 %v3310, %v3309
        %3313 = vrot.lane.b32.xlu0 %v3146, 96
        %v3314 = vpop.permute.xlu0 %3313
        %3315 = vrot.lane.b32.xlu0 %v3148, 96
        %v3316 = vpop.permute.xlu0 %3315
        %v3320 = vsel %vm3177, %v3311, 0
        %v3323 = vsel %vm3177, %v3312, 0
        %3325 = vmatprep.subr.bf16.mxu0 0
        %3326 = vmatpush1.bf16.msra.mxu0 0
        %3327 = vmatprep.subr.bf16.mxu0 0
        %3328 = vmatpush1.bf16.msra.mxu0 0
        %3329 = vmatprep.subr.bf16.mxu0 0
        %3330 = vmatpush1.bf16.msra.mxu0 0
        %3331 = vmatprep.subr.bf16.mxu0 0
        %3332 = vmatpush1.bf16.msra.mxu0 0
        %3333 = vmatprep.subr.bf16.mxu0 0
        %3334 = vmatpush1.bf16.msra.mxu0 0
        %3335 = vmatprep.subr.bf16.mxu0 0
        %3336 = vmatpush1.bf16.msra.mxu0 0
        %3337 = vmatprep.subr.bf16.mxu0 0
        %3338 = vmatpush1.bf16.msra.mxu0 %v3316
        %3339 = vmatprep.subr.bf16.mxu0 0
        %3340 = vmatpush1.bf16.msra.mxu0 %v3314
        %3341 = vmatprep.subr.bf16.mxu0 0
        %3342 = vmatpush2.bf16.msra.mxu0 0
        %3343 = vmatprep.subr.bf16.mxu0 0
        %3344 = vmatpush2.bf16.msra.mxu0 0
        %3345 = vmatprep.subr.bf16.mxu0 0
        %3346 = vmatpush2.bf16.msra.mxu0 0
        %3347 = vmatprep.subr.bf16.mxu0 0
        %3348 = vmatpush2.bf16.msra.mxu0 0
        %3349 = vmatprep.subr.bf16.mxu0 0
        %3350 = vmatpush2.bf16.msra.mxu0 0
        %3351 = vmatprep.subr.bf16.mxu0 0
        %3352 = vmatpush2.bf16.msra.mxu0 0
        %3353 = vmatprep.subr.bf16.mxu0 0
        %3354 = vmatpush2.bf16.msra.mxu0 0
        %3355 = vmatprep.subr.bf16.mxu0 0
        %3356 = vmatpush2.bf16.msra.mxu0 0
        %3357 = vmatprep.mubr.bf16.mxu0 0
        %3358 = vmatmul.mubr.bf16.gmra.mxu0 %v3320
        %v3359 = vpop.f32.mrf.mxu0
        %v3360 = vadd.f32 0.0, %v3359
        %v3361 = vpop.f32.mrf.mxu0
        %v3362 = vpop.f32.mrf.mxu0
        %v3363 = vadd.f32 0.0, %v3362
        %v3364 = vpop.f32.mrf.mxu0
        %3365 = vmatprep.mubr.bf16.mxu0 0
        %3366 = vmatmul.mubr.bf16.gmra.mxu0 %v3323
        %v3367 = vpop.f32.mrf.mxu0
        %v3368 = vadd.f32 0.0, %v3367
        %v3369 = vpop.f32.mrf.mxu0
        %v3370 = vpop.f32.mrf.mxu0
        %v3371 = vadd.f32 0.0, %v3370
        %v3372 = vpop.f32.mrf.mxu0
        %3373 = vdwg.mxu0
        %v3374 = vadd.f32 %v3284, %v3360
        %v3375 = vadd.f32 %v3287, %v3363
        %v3376 = vadd.f32 %v3292, %v3368
        %v3377 = vadd.f32 %v3295, %v3371
        %s3378 = scalar_lea.vmem %s9, 48
        %v3379 = vld [vmem:[%s3378] sm:$0xf]
        %v3380 = vld [vmem:[%s3378 + $0x4] sm:$0xf]
        %v3381 = vld [vmem:[%s3378 + $0x8] sm:$0xf]
        %v3382 = vld [vmem:[%s3378 + $0xc] sm:$0xf]
        %v3387 = vunpack.c.l.b16 %v3379
        %v3388 = vunpack.c.l.b16 %v3380
        %v3389 = vunpack.c.l.b16 %v3381
        %v3390 = vunpack.c.l.b16 %v3382
        %v3391 = vpack.c.b16 %v3388, %v3387
        %v3392 = vpack.c.b16 %v3390, %v3389
        %3393 = vrot.lane.b32.xlu0 %v3146, 80
        %v3394 = vpop.permute.xlu0 %3393
        %3395 = vrot.lane.b32.xlu0 %v3148, 80
        %v3396 = vpop.permute.xlu0 %3395
        %v3400 = vsel %vm3177, %v3391, 0
        %v3403 = vsel %vm3177, %v3392, 0
        %3405 = vmatprep.subr.bf16.mxu0 0
        %3406 = vmatpush1.bf16.msra.mxu0 0
        %3407 = vmatprep.subr.bf16.mxu0 0
        %3408 = vmatpush1.bf16.msra.mxu0 0
        %3409 = vmatprep.subr.bf16.mxu0 0
        %3410 = vmatpush1.bf16.msra.mxu0 0
        %3411 = vmatprep.subr.bf16.mxu0 0
        %3412 = vmatpush1.bf16.msra.mxu0 0
        %3413 = vmatprep.subr.bf16.mxu0 0
        %3414 = vmatpush1.bf16.msra.mxu0 0
        %3415 = vmatprep.subr.bf16.mxu0 0
        %3416 = vmatpush1.bf16.msra.mxu0 0
        %3417 = vmatprep.subr.bf16.mxu0 0
        %3418 = vmatpush1.bf16.msra.mxu0 %v3396
        %3419 = vmatprep.subr.bf16.mxu0 0
        %3420 = vmatpush1.bf16.msra.mxu0 %v3394
        %3421 = vmatprep.subr.bf16.mxu0 0
        %3422 = vmatpush2.bf16.msra.mxu0 0
        %3423 = vmatprep.subr.bf16.mxu0 0
        %3424 = vmatpush2.bf16.msra.mxu0 0
        %3425 = vmatprep.subr.bf16.mxu0 0
        %3426 = vmatpush2.bf16.msra.mxu0 0
        %3427 = vmatprep.subr.bf16.mxu0 0
        %3428 = vmatpush2.bf16.msra.mxu0 0
        %3429 = vmatprep.subr.bf16.mxu0 0
        %3430 = vmatpush2.bf16.msra.mxu0 0
        %3431 = vmatprep.subr.bf16.mxu0 0
        %3432 = vmatpush2.bf16.msra.mxu0 0
        %3433 = vmatprep.subr.bf16.mxu0 0
        %3434 = vmatpush2.bf16.msra.mxu0 0
        %3435 = vmatprep.subr.bf16.mxu0 0
        %3436 = vmatpush2.bf16.msra.mxu0 0
        %3437 = vmatprep.mubr.bf16.mxu0 0
        %3438 = vmatmul.mubr.bf16.gmra.mxu0 %v3400
        %v3439 = vpop.f32.mrf.mxu0
        %v3440 = vadd.f32 0.0, %v3439
        %v3441 = vpop.f32.mrf.mxu0
        %v3442 = vpop.f32.mrf.mxu0
        %v3443 = vadd.f32 0.0, %v3442
        %v3444 = vpop.f32.mrf.mxu0
        %3445 = vmatprep.mubr.bf16.mxu0 0
        %3446 = vmatmul.mubr.bf16.gmra.mxu0 %v3403
        %v3447 = vpop.f32.mrf.mxu0
        %v3448 = vadd.f32 0.0, %v3447
        %v3449 = vpop.f32.mrf.mxu0
        %v3450 = vpop.f32.mrf.mxu0
        %v3451 = vadd.f32 0.0, %v3450
        %v3452 = vpop.f32.mrf.mxu0
        %3453 = vdwg.mxu0
        %v3454 = vadd.f32 %v3374, %v3440
        %v3455 = vadd.f32 %v3375, %v3443
        %v3456 = vadd.f32 %v3376, %v3448
        %v3457 = vadd.f32 %v3377, %v3451
        %s3458 = scalar_lea.vmem %s9, 64
        %v3459 = vld [vmem:[%s3458] sm:$0xf]
        %v3460 = vld [vmem:[%s3458 + $0x4] sm:$0xf]
        %v3461 = vld [vmem:[%s3458 + $0x8] sm:$0xf]
        %v3462 = vld [vmem:[%s3458 + $0xc] sm:$0xf]
        %v3467 = vunpack.c.l.b16 %v3459
        %v3468 = vunpack.c.l.b16 %v3460
        %v3469 = vunpack.c.l.b16 %v3461
        %v3470 = vunpack.c.l.b16 %v3462
        %v3471 = vpack.c.b16 %v3468, %v3467
        %v3472 = vpack.c.b16 %v3470, %v3469
        %3473 = vrot.lane.b32.xlu0 %v3146, 64
        %v3474 = vpop.permute.xlu0 %3473
        %3475 = vrot.lane.b32.xlu0 %v3148, 64
        %v3476 = vpop.permute.xlu0 %3475
        %v3480 = vsel %vm3177, %v3471, 0
        %v3483 = vsel %vm3177, %v3472, 0
        %3485 = vmatprep.subr.bf16.mxu0 0
        %3486 = vmatpush1.bf16.msra.mxu0 0
        %3487 = vmatprep.subr.bf16.mxu0 0
        %3488 = vmatpush1.bf16.msra.mxu0 0
        %3489 = vmatprep.subr.bf16.mxu0 0
        %3490 = vmatpush1.bf16.msra.mxu0 0
        %3491 = vmatprep.subr.bf16.mxu0 0
        %3492 = vmatpush1.bf16.msra.mxu0 0
        %3493 = vmatprep.subr.bf16.mxu0 0
        %3494 = vmatpush1.bf16.msra.mxu0 0
        %3495 = vmatprep.subr.bf16.mxu0 0
        %3496 = vmatpush1.bf16.msra.mxu0 0
        %3497 = vmatprep.subr.bf16.mxu0 0
        %3498 = vmatpush1.bf16.msra.mxu0 %v3476
        %3499 = vmatprep.subr.bf16.mxu0 0
        %3500 = vmatpush1.bf16.msra.mxu0 %v3474
        %3501 = vmatprep.subr.bf16.mxu0 0
        %3502 = vmatpush2.bf16.msra.mxu0 0
        %3503 = vmatprep.subr.bf16.mxu0 0
        %3504 = vmatpush2.bf16.msra.mxu0 0
        %3505 = vmatprep.subr.bf16.mxu0 0
        %3506 = vmatpush2.bf16.msra.mxu0 0
        %3507 = vmatprep.subr.bf16.mxu0 0
        %3508 = vmatpush2.bf16.msra.mxu0 0
        %3509 = vmatprep.subr.bf16.mxu0 0
        %3510 = vmatpush2.bf16.msra.mxu0 0
        %3511 = vmatprep.subr.bf16.mxu0 0
        %3512 = vmatpush2.bf16.msra.mxu0 0
        %3513 = vmatprep.subr.bf16.mxu0 0
        %3514 = vmatpush2.bf16.msra.mxu0 0
        %3515 = vmatprep.subr.bf16.mxu0 0
        %3516 = vmatpush2.bf16.msra.mxu0 0
        %3517 = vmatprep.mubr.bf16.mxu0 0
        %3518 = vmatmul.mubr.bf16.gmra.mxu0 %v3480
        %v3519 = vpop.f32.mrf.mxu0
        %v3520 = vadd.f32 0.0, %v3519
        %v3521 = vpop.f32.mrf.mxu0
        %v3522 = vpop.f32.mrf.mxu0
        %v3523 = vadd.f32 0.0, %v3522
        %v3524 = vpop.f32.mrf.mxu0
        %3525 = vmatprep.mubr.bf16.mxu0 0
        %3526 = vmatmul.mubr.bf16.gmra.mxu0 %v3483
        %v3527 = vpop.f32.mrf.mxu0
        %v3528 = vadd.f32 0.0, %v3527
        %v3529 = vpop.f32.mrf.mxu0
        %v3530 = vpop.f32.mrf.mxu0
        %v3531 = vadd.f32 0.0, %v3530
        %v3532 = vpop.f32.mrf.mxu0
        %3533 = vdwg.mxu0
        %v3534 = vadd.f32 %v3454, %v3520
        %v3535 = vadd.f32 %v3455, %v3523
        %v3536 = vadd.f32 %v3456, %v3528
        %v3537 = vadd.f32 %v3457, %v3531
        %s3538 = scalar_lea.vmem %s9, 80
        %v3539 = vld [vmem:[%s3538] sm:$0xf]
        %v3540 = vld [vmem:[%s3538 + $0x4] sm:$0xf]
        %v3541 = vld [vmem:[%s3538 + $0x8] sm:$0xf]
        %v3542 = vld [vmem:[%s3538 + $0xc] sm:$0xf]
        %v3547 = vunpack.c.l.b16 %v3539
        %v3548 = vunpack.c.l.b16 %v3540
        %v3549 = vunpack.c.l.b16 %v3541
        %v3550 = vunpack.c.l.b16 %v3542
        %v3551 = vpack.c.b16 %v3548, %v3547
        %v3552 = vpack.c.b16 %v3550, %v3549
        %3553 = vrot.lane.b32.xlu0 %v3146, 48
        %v3554 = vpop.permute.xlu0 %3553
        %3555 = vrot.lane.b32.xlu0 %v3148, 48
        %v3556 = vpop.permute.xlu0 %3555
        %v3560 = vsel %vm3177, %v3551, 0
        %v3563 = vsel %vm3177, %v3552, 0
        %3565 = vmatprep.subr.bf16.mxu0 0
        %3566 = vmatpush1.bf16.msra.mxu0 0
        %3567 = vmatprep.subr.bf16.mxu0 0
        %3568 = vmatpush1.bf16.msra.mxu0 0
        %3569 = vmatprep.subr.bf16.mxu0 0
        %3570 = vmatpush1.bf16.msra.mxu0 0
        %3571 = vmatprep.subr.bf16.mxu0 0
        %3572 = vmatpush1.bf16.msra.mxu0 0
        %3573 = vmatprep.subr.bf16.mxu0 0
        %3574 = vmatpush1.bf16.msra.mxu0 0
        %3575 = vmatprep.subr.bf16.mxu0 0
        %3576 = vmatpush1.bf16.msra.mxu0 0
        %3577 = vmatprep.subr.bf16.mxu0 0
        %3578 = vmatpush1.bf16.msra.mxu0 %v3556
        %3579 = vmatprep.subr.bf16.mxu0 0
        %3580 = vmatpush1.bf16.msra.mxu0 %v3554
        %3581 = vmatprep.subr.bf16.mxu0 0
        %3582 = vmatpush2.bf16.msra.mxu0 0
        %3583 = vmatprep.subr.bf16.mxu0 0
        %3584 = vmatpush2.bf16.msra.mxu0 0
        %3585 = vmatprep.subr.bf16.mxu0 0
        %3586 = vmatpush2.bf16.msra.mxu0 0
        %3587 = vmatprep.subr.bf16.mxu0 0
        %3588 = vmatpush2.bf16.msra.mxu0 0
        %3589 = vmatprep.subr.bf16.mxu0 0
        %3590 = vmatpush2.bf16.msra.mxu0 0
        %3591 = vmatprep.subr.bf16.mxu0 0
        %3592 = vmatpush2.bf16.msra.mxu0 0
        %3593 = vmatprep.subr.bf16.mxu0 0
        %3594 = vmatpush2.bf16.msra.mxu0 0
        %3595 = vmatprep.subr.bf16.mxu0 0
        %3596 = vmatpush2.bf16.msra.mxu0 0
        %3597 = vmatprep.mubr.bf16.mxu0 0
        %3598 = vmatmul.mubr.bf16.gmra.mxu0 %v3560
        %v3599 = vpop.f32.mrf.mxu0
        %v3600 = vadd.f32 0.0, %v3599
        %v3601 = vpop.f32.mrf.mxu0
        %v3602 = vpop.f32.mrf.mxu0
        %v3603 = vadd.f32 0.0, %v3602
        %v3604 = vpop.f32.mrf.mxu0
        %3605 = vmatprep.mubr.bf16.mxu0 0
        %3606 = vmatmul.mubr.bf16.gmra.mxu0 %v3563
        %v3607 = vpop.f32.mrf.mxu0
        %v3608 = vadd.f32 0.0, %v3607
        %v3609 = vpop.f32.mrf.mxu0
        %v3610 = vpop.f32.mrf.mxu0
        %v3611 = vadd.f32 0.0, %v3610
        %v3612 = vpop.f32.mrf.mxu0
        %3613 = vdwg.mxu0
        %v3614 = vadd.f32 %v3534, %v3600
        %v3615 = vadd.f32 %v3535, %v3603
        %v3616 = vadd.f32 %v3536, %v3608
        %v3617 = vadd.f32 %v3537, %v3611
        %s3618 = scalar_lea.vmem %s9, 96
        %v3619 = vld [vmem:[%s3618] sm:$0xf]
        %v3620 = vld [vmem:[%s3618 + $0x4] sm:$0xf]
        %v3621 = vld [vmem:[%s3618 + $0x8] sm:$0xf]
        %v3622 = vld [vmem:[%s3618 + $0xc] sm:$0xf]
        %v3627 = vunpack.c.l.b16 %v3619
        %v3628 = vunpack.c.l.b16 %v3620
        %v3629 = vunpack.c.l.b16 %v3621
        %v3630 = vunpack.c.l.b16 %v3622
        %v3631 = vpack.c.b16 %v3628, %v3627
        %v3632 = vpack.c.b16 %v3630, %v3629
        %3633 = vrot.lane.b32.xlu0 %v3146, 32
        %v3634 = vpop.permute.xlu0 %3633
        %3635 = vrot.lane.b32.xlu0 %v3148, 32
        %v3636 = vpop.permute.xlu0 %3635
        %v3640 = vsel %vm3177, %v3631, 0
        %v3643 = vsel %vm3177, %v3632, 0
        %3645 = vmatprep.subr.bf16.mxu0 0
        %3646 = vmatpush1.bf16.msra.mxu0 0
        %3647 = vmatprep.subr.bf16.mxu0 0
        %3648 = vmatpush1.bf16.msra.mxu0 0
        %3649 = vmatprep.subr.bf16.mxu0 0
        %3650 = vmatpush1.bf16.msra.mxu0 0
        %3651 = vmatprep.subr.bf16.mxu0 0
        %3652 = vmatpush1.bf16.msra.mxu0 0
        %3653 = vmatprep.subr.bf16.mxu0 0
        %3654 = vmatpush1.bf16.msra.mxu0 0
        %3655 = vmatprep.subr.bf16.mxu0 0
        %3656 = vmatpush1.bf16.msra.mxu0 0
        %3657 = vmatprep.subr.bf16.mxu0 0
        %3658 = vmatpush1.bf16.msra.mxu0 %v3636
        %3659 = vmatprep.subr.bf16.mxu0 0
        %3660 = vmatpush1.bf16.msra.mxu0 %v3634
        %3661 = vmatprep.subr.bf16.mxu0 0
        %3662 = vmatpush2.bf16.msra.mxu0 0
        %3663 = vmatprep.subr.bf16.mxu0 0
        %3664 = vmatpush2.bf16.msra.mxu0 0
        %3665 = vmatprep.subr.bf16.mxu0 0
        %3666 = vmatpush2.bf16.msra.mxu0 0
        %3667 = vmatprep.subr.bf16.mxu0 0
        %3668 = vmatpush2.bf16.msra.mxu0 0
        %3669 = vmatprep.subr.bf16.mxu0 0
        %3670 = vmatpush2.bf16.msra.mxu0 0
        %3671 = vmatprep.subr.bf16.mxu0 0
        %3672 = vmatpush2.bf16.msra.mxu0 0
        %3673 = vmatprep.subr.bf16.mxu0 0
        %3674 = vmatpush2.bf16.msra.mxu0 0
        %3675 = vmatprep.subr.bf16.mxu0 0
        %3676 = vmatpush2.bf16.msra.mxu0 0
        %3677 = vmatprep.mubr.bf16.mxu0 0
        %3678 = vmatmul.mubr.bf16.gmra.mxu0 %v3640
        %v3679 = vpop.f32.mrf.mxu0
        %v3680 = vadd.f32 0.0, %v3679
        %v3681 = vpop.f32.mrf.mxu0
        %v3682 = vpop.f32.mrf.mxu0
        %v3683 = vadd.f32 0.0, %v3682
        %v3684 = vpop.f32.mrf.mxu0
        %3685 = vmatprep.mubr.bf16.mxu0 0
        %3686 = vmatmul.mubr.bf16.gmra.mxu0 %v3643
        %v3687 = vpop.f32.mrf.mxu0
        %v3688 = vadd.f32 0.0, %v3687
        %v3689 = vpop.f32.mrf.mxu0
        %v3690 = vpop.f32.mrf.mxu0
        %v3691 = vadd.f32 0.0, %v3690
        %v3692 = vpop.f32.mrf.mxu0
        %3693 = vdwg.mxu0
        %v3694 = vadd.f32 %v3614, %v3680
        %v3695 = vadd.f32 %v3615, %v3683
        %v3696 = vadd.f32 %v3616, %v3688
        %v3697 = vadd.f32 %v3617, %v3691
        %s3698 = scalar_lea.vmem %s9, 112
        %v3699 = vld [vmem:[%s3698] sm:$0xf]
        %v3700 = vld [vmem:[%s3698 + $0x4] sm:$0xf]
        %v3701 = vld [vmem:[%s3698 + $0x8] sm:$0xf]
        %v3702 = vld [vmem:[%s3698 + $0xc] sm:$0xf]
        %v3707 = vunpack.c.l.b16 %v3699
        %v3708 = vunpack.c.l.b16 %v3700
        %v3709 = vunpack.c.l.b16 %v3701
        %v3710 = vunpack.c.l.b16 %v3702
        %v3711 = vpack.c.b16 %v3708, %v3707
        %v3712 = vpack.c.b16 %v3710, %v3709
        %3713 = vrot.lane.b32.xlu0 %v3146, 16
        %v3714 = vpop.permute.xlu0 %3713
        %3715 = vrot.lane.b32.xlu0 %v3148, 16
        %v3716 = vpop.permute.xlu0 %3715
        %v3720 = vsel %vm3177, %v3711, 0
        %v3723 = vsel %vm3177, %v3712, 0
        %3725 = vmatprep.subr.bf16.mxu0 0
        %3726 = vmatpush1.bf16.msra.mxu0 0
        %3727 = vmatprep.subr.bf16.mxu0 0
        %3728 = vmatpush1.bf16.msra.mxu0 0
        %3729 = vmatprep.subr.bf16.mxu0 0
        %3730 = vmatpush1.bf16.msra.mxu0 0
        %3731 = vmatprep.subr.bf16.mxu0 0
        %3732 = vmatpush1.bf16.msra.mxu0 0
        %3733 = vmatprep.subr.bf16.mxu0 0
        %3734 = vmatpush1.bf16.msra.mxu0 0
        %3735 = vmatprep.subr.bf16.mxu0 0
        %3736 = vmatpush1.bf16.msra.mxu0 0
        %3737 = vmatprep.subr.bf16.mxu0 0
        %3738 = vmatpush1.bf16.msra.mxu0 %v3716
        %3739 = vmatprep.subr.bf16.mxu0 0
        %3740 = vmatpush1.bf16.msra.mxu0 %v3714
        %3741 = vmatprep.subr.bf16.mxu0 0
        %3742 = vmatpush2.bf16.msra.mxu0 0
        %3743 = vmatprep.subr.bf16.mxu0 0
        %3744 = vmatpush2.bf16.msra.mxu0 0
        %3745 = vmatprep.subr.bf16.mxu0 0
        %3746 = vmatpush2.bf16.msra.mxu0 0
        %3747 = vmatprep.subr.bf16.mxu0 0
        %3748 = vmatpush2.bf16.msra.mxu0 0
        %3749 = vmatprep.subr.bf16.mxu0 0
        %3750 = vmatpush2.bf16.msra.mxu0 0
        %3751 = vmatprep.subr.bf16.mxu0 0
        %3752 = vmatpush2.bf16.msra.mxu0 0
        %3753 = vmatprep.subr.bf16.mxu0 0
        %3754 = vmatpush2.bf16.msra.mxu0 0
        %3755 = vmatprep.subr.bf16.mxu0 0
        %3756 = vmatpush2.bf16.msra.mxu0 0
        %3757 = vmatprep.mubr.bf16.mxu0 0
        %3758 = vmatmul.mubr.bf16.gmra.mxu0 %v3720
        %v3759 = vpop.f32.mrf.mxu0
        %v3760 = vadd.f32 0.0, %v3759
        %v3761 = vpop.f32.mrf.mxu0
        %v3762 = vpop.f32.mrf.mxu0
        %v3763 = vadd.f32 0.0, %v3762
        %v3764 = vpop.f32.mrf.mxu0
        %3765 = vmatprep.mubr.bf16.mxu0 0
        %3766 = vmatmul.mubr.bf16.gmra.mxu0 %v3723
        %v3767 = vpop.f32.mrf.mxu0
        %v3768 = vadd.f32 0.0, %v3767
        %v3769 = vpop.f32.mrf.mxu0
        %v3770 = vpop.f32.mrf.mxu0
        %v3771 = vadd.f32 0.0, %v3770
        %v3772 = vpop.f32.mrf.mxu0
        %3773 = vdwg.mxu0
        %v3774 = vadd.f32 %v3694, %v3760
        %v3775 = vadd.f32 %v3695, %v3763
        %v3776 = vadd.f32 %v3696, %v3768
        %v3777 = vadd.f32 %v3697, %v3771
        %s3778 = scalar_lea.vmem %s9, 128
        %v3779 = vld [vmem:[%s3778] sm:$0xf]
        %v3780 = vld [vmem:[%s3778 + $0x4] sm:$0xf]
        %v3781 = vld [vmem:[%s3778 + $0x8] sm:$0xf]
        %v3782 = vld [vmem:[%s3778 + $0xc] sm:$0xf]
        %v3787 = vunpack.c.l.b16 %v3779
        %v3788 = vunpack.c.l.b16 %v3780
        %v3789 = vunpack.c.l.b16 %v3781
        %v3790 = vunpack.c.l.b16 %v3782
        %v3791 = vpack.c.b16 %v3788, %v3787
        %v3792 = vpack.c.b16 %v3790, %v3789
        %v3794 = vsel %vm3177, %v3791, 0
        %v3797 = vsel %vm3177, %v3792, 0
        %3799 = vmatprep.subr.bf16.mxu0 0
        %3800 = vmatpush1.bf16.msra.mxu0 0
        %3801 = vmatprep.subr.bf16.mxu0 0
        %3802 = vmatpush1.bf16.msra.mxu0 0
        %3803 = vmatprep.subr.bf16.mxu0 0
        %3804 = vmatpush1.bf16.msra.mxu0 0
        %3805 = vmatprep.subr.bf16.mxu0 0
        %3806 = vmatpush1.bf16.msra.mxu0 0
        %3807 = vmatprep.subr.bf16.mxu0 0
        %3808 = vmatpush1.bf16.msra.mxu0 0
        %3809 = vmatprep.subr.bf16.mxu0 0
        %3810 = vmatpush1.bf16.msra.mxu0 0
        %3811 = vmatprep.subr.bf16.mxu0 0
        %3812 = vmatpush1.bf16.msra.mxu0 %v3149
        %3813 = vmatprep.subr.bf16.mxu0 0
        %3814 = vmatpush1.bf16.msra.mxu0 %v3147
        %3815 = vmatprep.subr.bf16.mxu0 0
        %3816 = vmatpush2.bf16.msra.mxu0 0
        %3817 = vmatprep.subr.bf16.mxu0 0
        %3818 = vmatpush2.bf16.msra.mxu0 0
        %3819 = vmatprep.subr.bf16.mxu0 0
        %3820 = vmatpush2.bf16.msra.mxu0 0
        %3821 = vmatprep.subr.bf16.mxu0 0
        %3822 = vmatpush2.bf16.msra.mxu0 0
        %3823 = vmatprep.subr.bf16.mxu0 0
        %3824 = vmatpush2.bf16.msra.mxu0 0
        %3825 = vmatprep.subr.bf16.mxu0 0
        %3826 = vmatpush2.bf16.msra.mxu0 0
        %3827 = vmatprep.subr.bf16.mxu0 0
        %3828 = vmatpush2.bf16.msra.mxu0 0
        %3829 = vmatprep.subr.bf16.mxu0 0
        %3830 = vmatpush2.bf16.msra.mxu0 0
        %3831 = vmatprep.mubr.bf16.mxu0 0
        %3832 = vmatmul.mubr.bf16.gmra.mxu0 %v3794
        %v3833 = vpop.f32.mrf.mxu0
        %v3834 = vadd.f32 0.0, %v3833
        %v3835 = vpop.f32.mrf.mxu0
        %v3836 = vpop.f32.mrf.mxu0
        %v3837 = vadd.f32 0.0, %v3836
        %v3838 = vpop.f32.mrf.mxu0
        %3839 = vmatprep.mubr.bf16.mxu0 0
        %3840 = vmatmul.mubr.bf16.gmra.mxu0 %v3797
        %v3841 = vpop.f32.mrf.mxu0
        %v3842 = vadd.f32 0.0, %v3841
        %v3843 = vpop.f32.mrf.mxu0
        %v3844 = vpop.f32.mrf.mxu0
        %v3845 = vadd.f32 0.0, %v3844
        %v3846 = vpop.f32.mrf.mxu0
        %3847 = vdwg.mxu0
        %v3848 = vadd.f32 %v3774, %v3834
        %v3849 = vadd.f32 %v3775, %v3837
        %v3850 = vadd.f32 %v3776, %v3842
        %v3851 = vadd.f32 %v3777, %v3845
        %v3852 = vld [vmem:[#allocation12] sm:$0xff]
        %v3853 = vld [vmem:[#allocation12 + $0x8] sm:$0xff]
        %v3854 = vld [vmem:[#allocation12 + $0x10] sm:$0xff]
        %v3855 = vld [vmem:[#allocation12 + $0x18] sm:$0xff]
        %3857 = vset.pattern.permute.xlu0 0
        %3858 = vperm.xlu0 %3857, %v3852
        %v3859 = vpop.permute.xlu0 %3858
        %3862 = vset.pattern.permute.xlu0 0
        %3863 = vperm.xlu0 %3862, %v3853
        %v3864 = vpop.permute.xlu0 %3863
        %3867 = vset.pattern.permute.xlu0 0
        %3868 = vperm.xlu0 %3867, %v3854
        %v3869 = vpop.permute.xlu0 %3868
        %3872 = vset.pattern.permute.xlu0 0
        %3873 = vperm.xlu0 %3872, %v3855
        %v3874 = vpop.permute.xlu0 %3873
        %v3876 = vadd.f32 %v3848, %v3859
        %v3877 = vadd.f32 %v3849, %v3864
        %v3878 = vadd.f32 %v3850, %v3869
        %v3879 = vadd.f32 %v3851, %v3874
        %v3880 = vmax.f32 %v3876, 0.0
        %v3881 = vmax.f32 %v3877, 0.0
        %v3882 = vmax.f32 %v3878, 0.0
        %v3883 = vmax.f32 %v3879, 0.0
        %v3884 = vpack.c.bf16 %v3881, %v3880
        %v3885 = vpack.c.bf16 %v3883, %v3882
        %v3887 = vsel %vm2384, %v3884, 0
        %v3890 = vsel %vm2384, %v3885, 0
        %3892 = vmatprep.subr.bf16.mxu0 0
        %3893 = vmatpush1.bf16.msra.mxu0 0
        %3894 = vmatprep.subr.bf16.mxu0 0
        %3895 = vmatpush1.bf16.msra.mxu0 0
        %3896 = vmatprep.subr.bf16.mxu0 0
        %3897 = vmatpush1.bf16.msra.mxu0 0
        %3898 = vmatprep.subr.bf16.mxu0 0
        %3899 = vmatpush1.bf16.msra.mxu0 0
        %3900 = vmatprep.subr.bf16.mxu0 0
        %3901 = vmatpush1.bf16.msra.mxu0 0
        %3902 = vmatprep.subr.bf16.mxu0 0
        %3903 = vmatpush1.bf16.msra.mxu0 0
        %3904 = vmatprep.subr.bf16.mxu0 0
        %3905 = vmatpush1.bf16.msra.mxu0 0
        %3906 = vmatprep.subr.bf16.mxu0 %v3084
        %3907 = vmatpush1.bf16.msra.mxu0 %v3083
        %3908 = vmatprep.subr.bf16.mxu0 0
        %3909 = vmatpush2.bf16.msra.mxu0 0
        %3910 = vmatprep.subr.bf16.mxu0 0
        %3911 = vmatpush2.bf16.msra.mxu0 0
        %3912 = vmatprep.subr.bf16.mxu0 0
        %3913 = vmatpush2.bf16.msra.mxu0 0
        %3914 = vmatprep.subr.bf16.mxu0 0
        %3915 = vmatpush2.bf16.msra.mxu0 0
        %3916 = vmatprep.subr.bf16.mxu0 0
        %3917 = vmatpush2.bf16.msra.mxu0 0
        %3918 = vmatprep.subr.bf16.mxu0 0
        %3919 = vmatpush2.bf16.msra.mxu0 0
        %3920 = vmatprep.subr.bf16.mxu0 0
        %3921 = vmatpush2.bf16.msra.mxu0 0
        %3922 = vmatprep.subr.bf16.mxu0 0
        %3923 = vmatpush2.bf16.msra.mxu0 0
        %3924 = vmatprep.mubr.bf16.mxu0 0
        %3925 = vmatmul.mubr.bf16.gmra.mxu0 %v3887
        %v3926 = vpop.f32.mrf.mxu0
        %v3927 = vadd.f32 0.0, %v3926
        %v3928 = vpop.f32.mrf.mxu0
        %v3929 = vadd.f32 0.0, %v3928
        %v3930 = vpop.f32.mrf.mxu0
        %v3931 = vadd.f32 0.0, %v3930
        %v3932 = vpop.f32.mrf.mxu0
        %v3933 = vadd.f32 0.0, %v3932
        %3934 = vmatprep.mubr.bf16.mxu0 0
        %3935 = vmatmul.mubr.bf16.gmra.mxu0 %v3890
        %v3936 = vpop.f32.mrf.mxu0
        %v3937 = vadd.f32 0.0, %v3936
        %v3938 = vpop.f32.mrf.mxu0
        %v3939 = vadd.f32 0.0, %v3938
        %v3940 = vpop.f32.mrf.mxu0
        %v3941 = vadd.f32 0.0, %v3940
        %v3942 = vpop.f32.mrf.mxu0
        %v3943 = vadd.f32 0.0, %v3942
        %3944 = vdwg.mxu0
        %v3945 = vpack.c.bf16 %v3931, %v3927
        %v3946 = vpack.c.bf16 %v3933, %v3929
        %v3947 = vpack.c.bf16 %v3941, %v3937
        %v3948 = vpack.c.bf16 %v3943, %v3939
        %v3949 = vld [vmem:[#allocation15] sm:$0xf]
        %v3950 = vld [vmem:[#allocation15 + $0x4] sm:$0xf]
        %v3951 = vld [vmem:[#allocation15 + $0x8] sm:$0xf]
        %v3952 = vld [vmem:[#allocation15 + $0xc] sm:$0xf]
        %s3953 = scalar_lea.vmem [#allocation15], 16
        %v3954 = vld [vmem:[%s3953] sm:$0xf]
        %v3955 = vld [vmem:[%s3953 + $0x4] sm:$0xf]
        %v3956 = vld [vmem:[%s3953 + $0x8] sm:$0xf]
        %v3957 = vld [vmem:[%s3953 + $0xc] sm:$0xf]
        %v3962 = vunpack.c.l.b16 %v3954
        %v3963 = vunpack.c.l.b16 %v3955
        %v3964 = vunpack.c.l.b16 %v3956
        %v3965 = vunpack.c.l.b16 %v3957
        %v3966 = vpack.c.b16 %v3963, %v3962
        %v3967 = vpack.c.b16 %v3965, %v3964
        %3970 = vrot.lane.b32.xlu0 %v3945, 112
        %v3971 = vpop.permute.xlu0 %3970
        %3972 = vrot.lane.b32.xlu0 %v3947, 112
        %v3973 = vpop.permute.xlu0 %3972
        %v3977 = vsel %vm3177, %v3966, 0
        %v3980 = vsel %vm3177, %v3967, 0
        %3982 = vmatprep.subr.bf16.mxu0 0
        %3983 = vmatpush1.bf16.msra.mxu0 0
        %3984 = vmatprep.subr.bf16.mxu0 0
        %3985 = vmatpush1.bf16.msra.mxu0 0
        %3986 = vmatprep.subr.bf16.mxu0 0
        %3987 = vmatpush1.bf16.msra.mxu0 0
        %3988 = vmatprep.subr.bf16.mxu0 0
        %3989 = vmatpush1.bf16.msra.mxu0 0
        %3990 = vmatprep.subr.bf16.mxu0 0
        %3991 = vmatpush1.bf16.msra.mxu0 0
        %3992 = vmatprep.subr.bf16.mxu0 0
        %3993 = vmatpush1.bf16.msra.mxu0 0
        %3994 = vmatprep.subr.bf16.mxu0 0
        %3995 = vmatpush1.bf16.msra.mxu0 %v3973
        %3996 = vmatprep.subr.bf16.mxu0 0
        %3997 = vmatpush1.bf16.msra.mxu0 %v3971
        %3998 = vmatprep.subr.bf16.mxu0 0
        %3999 = vmatpush2.bf16.msra.mxu0 0
        %4000 = vmatprep.subr.bf16.mxu0 0
        %4001 = vmatpush2.bf16.msra.mxu0 0
        %4002 = vmatprep.subr.bf16.mxu0 0
        %4003 = vmatpush2.bf16.msra.mxu0 0
        %4004 = vmatprep.subr.bf16.mxu0 0
        %4005 = vmatpush2.bf16.msra.mxu0 0
        %4006 = vmatprep.subr.bf16.mxu0 0
        %4007 = vmatpush2.bf16.msra.mxu0 0
        %4008 = vmatprep.subr.bf16.mxu0 0
        %4009 = vmatpush2.bf16.msra.mxu0 0
        %4010 = vmatprep.subr.bf16.mxu0 0
        %4011 = vmatpush2.bf16.msra.mxu0 0
        %4012 = vmatprep.subr.bf16.mxu0 0
        %4013 = vmatpush2.bf16.msra.mxu0 0
        %4014 = vmatprep.mubr.bf16.mxu0 0
        %4015 = vmatmul.mubr.bf16.gmra.mxu0 %v3977
        %v4016 = vpop.f32.mrf.mxu0
        %v4017 = vadd.f32 0.0, %v4016
        %v4018 = vpop.f32.mrf.mxu0
        %v4019 = vpop.f32.mrf.mxu0
        %v4020 = vadd.f32 0.0, %v4019
        %v4021 = vpop.f32.mrf.mxu0
        %4022 = vmatprep.mubr.bf16.mxu0 0
        %4023 = vmatmul.mubr.bf16.gmra.mxu0 %v3980
        %v4024 = vpop.f32.mrf.mxu0
        %v4025 = vadd.f32 0.0, %v4024
        %v4026 = vpop.f32.mrf.mxu0
        %v4027 = vpop.f32.mrf.mxu0
        %v4028 = vadd.f32 0.0, %v4027
        %v4029 = vpop.f32.mrf.mxu0
        %4030 = vdwg.mxu0
        %v4035 = vunpack.c.l.b16 %v3949
        %v4036 = vunpack.c.l.b16 %v3950
        %v4037 = vunpack.c.l.b16 %v3951
        %v4038 = vunpack.c.l.b16 %v3952
        %v4039 = vpack.c.b16 %v4036, %v4035
        %v4040 = vpack.c.b16 %v4038, %v4037
        %v4042 = vsel %vm3177, %v4039, 0
        %v4045 = vsel %vm3177, %v4040, 0
        %4047 = vmatprep.subr.bf16.mxu0 0
        %4048 = vmatpush1.bf16.msra.mxu0 0
        %4049 = vmatprep.subr.bf16.mxu0 0
        %4050 = vmatpush1.bf16.msra.mxu0 0
        %4051 = vmatprep.subr.bf16.mxu0 0
        %4052 = vmatpush1.bf16.msra.mxu0 0
        %4053 = vmatprep.subr.bf16.mxu0 0
        %4054 = vmatpush1.bf16.msra.mxu0 0
        %4055 = vmatprep.subr.bf16.mxu0 0
        %4056 = vmatpush1.bf16.msra.mxu0 0
        %4057 = vmatprep.subr.bf16.mxu0 0
        %4058 = vmatpush1.bf16.msra.mxu0 0
        %4059 = vmatprep.subr.bf16.mxu0 0
        %4060 = vmatpush1.bf16.msra.mxu0 %v3947
        %4061 = vmatprep.subr.bf16.mxu0 0
        %4062 = vmatpush1.bf16.msra.mxu0 %v3945
        %4063 = vmatprep.subr.bf16.mxu0 0
        %4064 = vmatpush2.bf16.msra.mxu0 0
        %4065 = vmatprep.subr.bf16.mxu0 0
        %4066 = vmatpush2.bf16.msra.mxu0 0
        %4067 = vmatprep.subr.bf16.mxu0 0
        %4068 = vmatpush2.bf16.msra.mxu0 0
        %4069 = vmatprep.subr.bf16.mxu0 0
        %4070 = vmatpush2.bf16.msra.mxu0 0
        %4071 = vmatprep.subr.bf16.mxu0 0
        %4072 = vmatpush2.bf16.msra.mxu0 0
        %4073 = vmatprep.subr.bf16.mxu0 0
        %4074 = vmatpush2.bf16.msra.mxu0 0
        %4075 = vmatprep.subr.bf16.mxu0 0
        %4076 = vmatpush2.bf16.msra.mxu0 0
        %4077 = vmatprep.subr.bf16.mxu0 0
        %4078 = vmatpush2.bf16.msra.mxu0 0
        %4079 = vmatprep.mubr.bf16.mxu0 0
        %4080 = vmatmul.mubr.bf16.gmra.mxu0 %v4042
        %v4081 = vpop.f32.mrf.mxu0
        %v4082 = vadd.f32 %v4017, %v4081
        %v4083 = vpop.f32.mrf.mxu0
        %v4084 = vpop.f32.mrf.mxu0
        %v4085 = vadd.f32 %v4020, %v4084
        %v4086 = vpop.f32.mrf.mxu0
        %4087 = vmatprep.mubr.bf16.mxu0 0
        %4088 = vmatmul.mubr.bf16.gmra.mxu0 %v4045
        %v4089 = vpop.f32.mrf.mxu0
        %v4090 = vadd.f32 %v4025, %v4089
        %v4091 = vpop.f32.mrf.mxu0
        %v4092 = vpop.f32.mrf.mxu0
        %v4093 = vadd.f32 %v4028, %v4092
        %v4094 = vpop.f32.mrf.mxu0
        %4095 = vdwg.mxu0
        %s4096 = scalar_lea.vmem [#allocation15], 32
        %v4097 = vld [vmem:[%s4096] sm:$0xf]
        %v4098 = vld [vmem:[%s4096 + $0x4] sm:$0xf]
        %v4099 = vld [vmem:[%s4096 + $0x8] sm:$0xf]
        %v4100 = vld [vmem:[%s4096 + $0xc] sm:$0xf]
        %v4105 = vunpack.c.l.b16 %v4097
        %v4106 = vunpack.c.l.b16 %v4098
        %v4107 = vunpack.c.l.b16 %v4099
        %v4108 = vunpack.c.l.b16 %v4100
        %v4109 = vpack.c.b16 %v4106, %v4105
        %v4110 = vpack.c.b16 %v4108, %v4107
        %4111 = vrot.lane.b32.xlu0 %v3945, 96
        %v4112 = vpop.permute.xlu0 %4111
        %4113 = vrot.lane.b32.xlu0 %v3947, 96
        %v4114 = vpop.permute.xlu0 %4113
        %v4118 = vsel %vm3177, %v4109, 0
        %v4121 = vsel %vm3177, %v4110, 0
        %4123 = vmatprep.subr.bf16.mxu0 0
        %4124 = vmatpush1.bf16.msra.mxu0 0
        %4125 = vmatprep.subr.bf16.mxu0 0
        %4126 = vmatpush1.bf16.msra.mxu0 0
        %4127 = vmatprep.subr.bf16.mxu0 0
        %4128 = vmatpush1.bf16.msra.mxu0 0
        %4129 = vmatprep.subr.bf16.mxu0 0
        %4130 = vmatpush1.bf16.msra.mxu0 0
        %4131 = vmatprep.subr.bf16.mxu0 0
        %4132 = vmatpush1.bf16.msra.mxu0 0
        %4133 = vmatprep.subr.bf16.mxu0 0
        %4134 = vmatpush1.bf16.msra.mxu0 0
        %4135 = vmatprep.subr.bf16.mxu0 0
        %4136 = vmatpush1.bf16.msra.mxu0 %v4114
        %4137 = vmatprep.subr.bf16.mxu0 0
        %4138 = vmatpush1.bf16.msra.mxu0 %v4112
        %4139 = vmatprep.subr.bf16.mxu0 0
        %4140 = vmatpush2.bf16.msra.mxu0 0
        %4141 = vmatprep.subr.bf16.mxu0 0
        %4142 = vmatpush2.bf16.msra.mxu0 0
        %4143 = vmatprep.subr.bf16.mxu0 0
        %4144 = vmatpush2.bf16.msra.mxu0 0
        %4145 = vmatprep.subr.bf16.mxu0 0
        %4146 = vmatpush2.bf16.msra.mxu0 0
        %4147 = vmatprep.subr.bf16.mxu0 0
        %4148 = vmatpush2.bf16.msra.mxu0 0
        %4149 = vmatprep.subr.bf16.mxu0 0
        %4150 = vmatpush2.bf16.msra.mxu0 0
        %4151 = vmatprep.subr.bf16.mxu0 0
        %4152 = vmatpush2.bf16.msra.mxu0 0
        %4153 = vmatprep.subr.bf16.mxu0 0
        %4154 = vmatpush2.bf16.msra.mxu0 0
        %4155 = vmatprep.mubr.bf16.mxu0 0
        %4156 = vmatmul.mubr.bf16.gmra.mxu0 %v4118
        %v4157 = vpop.f32.mrf.mxu0
        %v4158 = vadd.f32 0.0, %v4157
        %v4159 = vpop.f32.mrf.mxu0
        %v4160 = vpop.f32.mrf.mxu0
        %v4161 = vadd.f32 0.0, %v4160
        %v4162 = vpop.f32.mrf.mxu0
        %4163 = vmatprep.mubr.bf16.mxu0 0
        %4164 = vmatmul.mubr.bf16.gmra.mxu0 %v4121
        %v4165 = vpop.f32.mrf.mxu0
        %v4166 = vadd.f32 0.0, %v4165
        %v4167 = vpop.f32.mrf.mxu0
        %v4168 = vpop.f32.mrf.mxu0
        %v4169 = vadd.f32 0.0, %v4168
        %v4170 = vpop.f32.mrf.mxu0
        %4171 = vdwg.mxu0
        %v4172 = vadd.f32 %v4082, %v4158
        %v4173 = vadd.f32 %v4085, %v4161
        %v4174 = vadd.f32 %v4090, %v4166
        %v4175 = vadd.f32 %v4093, %v4169
        %s4176 = scalar_lea.vmem [#allocation15], 48
        %v4177 = vld [vmem:[%s4176] sm:$0xf]
        %v4178 = vld [vmem:[%s4176 + $0x4] sm:$0xf]
        %v4179 = vld [vmem:[%s4176 + $0x8] sm:$0xf]
        %v4180 = vld [vmem:[%s4176 + $0xc] sm:$0xf]
        %v4185 = vunpack.c.l.b16 %v4177
        %v4186 = vunpack.c.l.b16 %v4178
        %v4187 = vunpack.c.l.b16 %v4179
        %v4188 = vunpack.c.l.b16 %v4180
        %v4189 = vpack.c.b16 %v4186, %v4185
        %v4190 = vpack.c.b16 %v4188, %v4187
        %4191 = vrot.lane.b32.xlu0 %v3945, 80
        %v4192 = vpop.permute.xlu0 %4191
        %4193 = vrot.lane.b32.xlu0 %v3947, 80
        %v4194 = vpop.permute.xlu0 %4193
        %v4198 = vsel %vm3177, %v4189, 0
        %v4201 = vsel %vm3177, %v4190, 0
        %4203 = vmatprep.subr.bf16.mxu0 0
        %4204 = vmatpush1.bf16.msra.mxu0 0
        %4205 = vmatprep.subr.bf16.mxu0 0
        %4206 = vmatpush1.bf16.msra.mxu0 0
        %4207 = vmatprep.subr.bf16.mxu0 0
        %4208 = vmatpush1.bf16.msra.mxu0 0
        %4209 = vmatprep.subr.bf16.mxu0 0
        %4210 = vmatpush1.bf16.msra.mxu0 0
        %4211 = vmatprep.subr.bf16.mxu0 0
        %4212 = vmatpush1.bf16.msra.mxu0 0
        %4213 = vmatprep.subr.bf16.mxu0 0
        %4214 = vmatpush1.bf16.msra.mxu0 0
        %4215 = vmatprep.subr.bf16.mxu0 0
        %4216 = vmatpush1.bf16.msra.mxu0 %v4194
        %4217 = vmatprep.subr.bf16.mxu0 0
        %4218 = vmatpush1.bf16.msra.mxu0 %v4192
        %4219 = vmatprep.subr.bf16.mxu0 0
        %4220 = vmatpush2.bf16.msra.mxu0 0
        %4221 = vmatprep.subr.bf16.mxu0 0
        %4222 = vmatpush2.bf16.msra.mxu0 0
        %4223 = vmatprep.subr.bf16.mxu0 0
        %4224 = vmatpush2.bf16.msra.mxu0 0
        %4225 = vmatprep.subr.bf16.mxu0 0
        %4226 = vmatpush2.bf16.msra.mxu0 0
        %4227 = vmatprep.subr.bf16.mxu0 0
        %4228 = vmatpush2.bf16.msra.mxu0 0
        %4229 = vmatprep.subr.bf16.mxu0 0
        %4230 = vmatpush2.bf16.msra.mxu0 0
        %4231 = vmatprep.subr.bf16.mxu0 0
        %4232 = vmatpush2.bf16.msra.mxu0 0
        %4233 = vmatprep.subr.bf16.mxu0 0
        %4234 = vmatpush2.bf16.msra.mxu0 0
        %4235 = vmatprep.mubr.bf16.mxu0 0
        %4236 = vmatmul.mubr.bf16.gmra.mxu0 %v4198
        %v4237 = vpop.f32.mrf.mxu0
        %v4238 = vadd.f32 0.0, %v4237
        %v4239 = vpop.f32.mrf.mxu0
        %v4240 = vpop.f32.mrf.mxu0
        %v4241 = vadd.f32 0.0, %v4240
        %v4242 = vpop.f32.mrf.mxu0
        %4243 = vmatprep.mubr.bf16.mxu0 0
        %4244 = vmatmul.mubr.bf16.gmra.mxu0 %v4201
        %v4245 = vpop.f32.mrf.mxu0
        %v4246 = vadd.f32 0.0, %v4245
        %v4247 = vpop.f32.mrf.mxu0
        %v4248 = vpop.f32.mrf.mxu0
        %v4249 = vadd.f32 0.0, %v4248
        %v4250 = vpop.f32.mrf.mxu0
        %4251 = vdwg.mxu0
        %v4252 = vadd.f32 %v4172, %v4238
        %v4253 = vadd.f32 %v4173, %v4241
        %v4254 = vadd.f32 %v4174, %v4246
        %v4255 = vadd.f32 %v4175, %v4249
        %s4256 = scalar_lea.vmem [#allocation15], 64
        %v4257 = vld [vmem:[%s4256] sm:$0xf]
        %v4258 = vld [vmem:[%s4256 + $0x4] sm:$0xf]
        %v4259 = vld [vmem:[%s4256 + $0x8] sm:$0xf]
        %v4260 = vld [vmem:[%s4256 + $0xc] sm:$0xf]
        %v4265 = vunpack.c.l.b16 %v4257
        %v4266 = vunpack.c.l.b16 %v4258
        %v4267 = vunpack.c.l.b16 %v4259
        %v4268 = vunpack.c.l.b16 %v4260
        %v4269 = vpack.c.b16 %v4266, %v4265
        %v4270 = vpack.c.b16 %v4268, %v4267
        %4271 = vrot.lane.b32.xlu0 %v3945, 64
        %v4272 = vpop.permute.xlu0 %4271
        %4273 = vrot.lane.b32.xlu0 %v3947, 64
        %v4274 = vpop.permute.xlu0 %4273
        %v4278 = vsel %vm3177, %v4269, 0
        %v4281 = vsel %vm3177, %v4270, 0
        %4283 = vmatprep.subr.bf16.mxu0 0
        %4284 = vmatpush1.bf16.msra.mxu0 0
        %4285 = vmatprep.subr.bf16.mxu0 0
        %4286 = vmatpush1.bf16.msra.mxu0 0
        %4287 = vmatprep.subr.bf16.mxu0 0
        %4288 = vmatpush1.bf16.msra.mxu0 0
        %4289 = vmatprep.subr.bf16.mxu0 0
        %4290 = vmatpush1.bf16.msra.mxu0 0
        %4291 = vmatprep.subr.bf16.mxu0 0
        %4292 = vmatpush1.bf16.msra.mxu0 0
        %4293 = vmatprep.subr.bf16.mxu0 0
        %4294 = vmatpush1.bf16.msra.mxu0 0
        %4295 = vmatprep.subr.bf16.mxu0 0
        %4296 = vmatpush1.bf16.msra.mxu0 %v4274
        %4297 = vmatprep.subr.bf16.mxu0 0
        %4298 = vmatpush1.bf16.msra.mxu0 %v4272
        %4299 = vmatprep.subr.bf16.mxu0 0
        %4300 = vmatpush2.bf16.msra.mxu0 0
        %4301 = vmatprep.subr.bf16.mxu0 0
        %4302 = vmatpush2.bf16.msra.mxu0 0
        %4303 = vmatprep.subr.bf16.mxu0 0
        %4304 = vmatpush2.bf16.msra.mxu0 0
        %4305 = vmatprep.subr.bf16.mxu0 0
        %4306 = vmatpush2.bf16.msra.mxu0 0
        %4307 = vmatprep.subr.bf16.mxu0 0
        %4308 = vmatpush2.bf16.msra.mxu0 0
        %4309 = vmatprep.subr.bf16.mxu0 0
        %4310 = vmatpush2.bf16.msra.mxu0 0
        %4311 = vmatprep.subr.bf16.mxu0 0
        %4312 = vmatpush2.bf16.msra.mxu0 0
        %4313 = vmatprep.subr.bf16.mxu0 0
        %4314 = vmatpush2.bf16.msra.mxu0 0
        %4315 = vmatprep.mubr.bf16.mxu0 0
        %4316 = vmatmul.mubr.bf16.gmra.mxu0 %v4278
        %v4317 = vpop.f32.mrf.mxu0
        %v4318 = vadd.f32 0.0, %v4317
        %v4319 = vpop.f32.mrf.mxu0
        %v4320 = vpop.f32.mrf.mxu0
        %v4321 = vadd.f32 0.0, %v4320
        %v4322 = vpop.f32.mrf.mxu0
        %4323 = vmatprep.mubr.bf16.mxu0 0
        %4324 = vmatmul.mubr.bf16.gmra.mxu0 %v4281
        %v4325 = vpop.f32.mrf.mxu0
        %v4326 = vadd.f32 0.0, %v4325
        %v4327 = vpop.f32.mrf.mxu0
        %v4328 = vpop.f32.mrf.mxu0
        %v4329 = vadd.f32 0.0, %v4328
        %v4330 = vpop.f32.mrf.mxu0
        %4331 = vdwg.mxu0
        %v4332 = vadd.f32 %v4252, %v4318
        %v4333 = vadd.f32 %v4253, %v4321
        %v4334 = vadd.f32 %v4254, %v4326
        %v4335 = vadd.f32 %v4255, %v4329
        %s4336 = scalar_lea.vmem [#allocation15], 80
        %v4337 = vld [vmem:[%s4336] sm:$0xf]
        %v4338 = vld [vmem:[%s4336 + $0x4] sm:$0xf]
        %v4339 = vld [vmem:[%s4336 + $0x8] sm:$0xf]
        %v4340 = vld [vmem:[%s4336 + $0xc] sm:$0xf]
        %v4345 = vunpack.c.l.b16 %v4337
        %v4346 = vunpack.c.l.b16 %v4338
        %v4347 = vunpack.c.l.b16 %v4339
        %v4348 = vunpack.c.l.b16 %v4340
        %v4349 = vpack.c.b16 %v4346, %v4345
        %v4350 = vpack.c.b16 %v4348, %v4347
        %4351 = vrot.lane.b32.xlu0 %v3945, 48
        %v4352 = vpop.permute.xlu0 %4351
        %4353 = vrot.lane.b32.xlu0 %v3947, 48
        %v4354 = vpop.permute.xlu0 %4353
        %v4358 = vsel %vm3177, %v4349, 0
        %v4361 = vsel %vm3177, %v4350, 0
        %4363 = vmatprep.subr.bf16.mxu0 0
        %4364 = vmatpush1.bf16.msra.mxu0 0
        %4365 = vmatprep.subr.bf16.mxu0 0
        %4366 = vmatpush1.bf16.msra.mxu0 0
        %4367 = vmatprep.subr.bf16.mxu0 0
        %4368 = vmatpush1.bf16.msra.mxu0 0
        %4369 = vmatprep.subr.bf16.mxu0 0
        %4370 = vmatpush1.bf16.msra.mxu0 0
        %4371 = vmatprep.subr.bf16.mxu0 0
        %4372 = vmatpush1.bf16.msra.mxu0 0
        %4373 = vmatprep.subr.bf16.mxu0 0
        %4374 = vmatpush1.bf16.msra.mxu0 0
        %4375 = vmatprep.subr.bf16.mxu0 0
        %4376 = vmatpush1.bf16.msra.mxu0 %v4354
        %4377 = vmatprep.subr.bf16.mxu0 0
        %4378 = vmatpush1.bf16.msra.mxu0 %v4352
        %4379 = vmatprep.subr.bf16.mxu0 0
        %4380 = vmatpush2.bf16.msra.mxu0 0
        %4381 = vmatprep.subr.bf16.mxu0 0
        %4382 = vmatpush2.bf16.msra.mxu0 0
        %4383 = vmatprep.subr.bf16.mxu0 0
        %4384 = vmatpush2.bf16.msra.mxu0 0
        %4385 = vmatprep.subr.bf16.mxu0 0
        %4386 = vmatpush2.bf16.msra.mxu0 0
        %4387 = vmatprep.subr.bf16.mxu0 0
        %4388 = vmatpush2.bf16.msra.mxu0 0
        %4389 = vmatprep.subr.bf16.mxu0 0
        %4390 = vmatpush2.bf16.msra.mxu0 0
        %4391 = vmatprep.subr.bf16.mxu0 0
        %4392 = vmatpush2.bf16.msra.mxu0 0
        %4393 = vmatprep.subr.bf16.mxu0 0
        %4394 = vmatpush2.bf16.msra.mxu0 0
        %4395 = vmatprep.mubr.bf16.mxu0 0
        %4396 = vmatmul.mubr.bf16.gmra.mxu0 %v4358
        %v4397 = vpop.f32.mrf.mxu0
        %v4398 = vadd.f32 0.0, %v4397
        %v4399 = vpop.f32.mrf.mxu0
        %v4400 = vpop.f32.mrf.mxu0
        %v4401 = vadd.f32 0.0, %v4400
        %v4402 = vpop.f32.mrf.mxu0
        %4403 = vmatprep.mubr.bf16.mxu0 0
        %4404 = vmatmul.mubr.bf16.gmra.mxu0 %v4361
        %v4405 = vpop.f32.mrf.mxu0
        %v4406 = vadd.f32 0.0, %v4405
        %v4407 = vpop.f32.mrf.mxu0
        %v4408 = vpop.f32.mrf.mxu0
        %v4409 = vadd.f32 0.0, %v4408
        %v4410 = vpop.f32.mrf.mxu0
        %4411 = vdwg.mxu0
        %v4412 = vadd.f32 %v4332, %v4398
        %v4413 = vadd.f32 %v4333, %v4401
        %v4414 = vadd.f32 %v4334, %v4406
        %v4415 = vadd.f32 %v4335, %v4409
        %s4416 = scalar_lea.vmem [#allocation15], 96
        %v4417 = vld [vmem:[%s4416] sm:$0xf]
        %v4418 = vld [vmem:[%s4416 + $0x4] sm:$0xf]
        %v4419 = vld [vmem:[%s4416 + $0x8] sm:$0xf]
        %v4420 = vld [vmem:[%s4416 + $0xc] sm:$0xf]
        %v4425 = vunpack.c.l.b16 %v4417
        %v4426 = vunpack.c.l.b16 %v4418
        %v4427 = vunpack.c.l.b16 %v4419
        %v4428 = vunpack.c.l.b16 %v4420
        %v4429 = vpack.c.b16 %v4426, %v4425
        %v4430 = vpack.c.b16 %v4428, %v4427
        %4431 = vrot.lane.b32.xlu0 %v3945, 32
        %v4432 = vpop.permute.xlu0 %4431
        %4433 = vrot.lane.b32.xlu0 %v3947, 32
        %v4434 = vpop.permute.xlu0 %4433
        %v4438 = vsel %vm3177, %v4429, 0
        %v4441 = vsel %vm3177, %v4430, 0
        %4443 = vmatprep.subr.bf16.mxu0 0
        %4444 = vmatpush1.bf16.msra.mxu0 0
        %4445 = vmatprep.subr.bf16.mxu0 0
        %4446 = vmatpush1.bf16.msra.mxu0 0
        %4447 = vmatprep.subr.bf16.mxu0 0
        %4448 = vmatpush1.bf16.msra.mxu0 0
        %4449 = vmatprep.subr.bf16.mxu0 0
        %4450 = vmatpush1.bf16.msra.mxu0 0
        %4451 = vmatprep.subr.bf16.mxu0 0
        %4452 = vmatpush1.bf16.msra.mxu0 0
        %4453 = vmatprep.subr.bf16.mxu0 0
        %4454 = vmatpush1.bf16.msra.mxu0 0
        %4455 = vmatprep.subr.bf16.mxu0 0
        %4456 = vmatpush1.bf16.msra.mxu0 %v4434
        %4457 = vmatprep.subr.bf16.mxu0 0
        %4458 = vmatpush1.bf16.msra.mxu0 %v4432
        %4459 = vmatprep.subr.bf16.mxu0 0
        %4460 = vmatpush2.bf16.msra.mxu0 0
        %4461 = vmatprep.subr.bf16.mxu0 0
        %4462 = vmatpush2.bf16.msra.mxu0 0
        %4463 = vmatprep.subr.bf16.mxu0 0
        %4464 = vmatpush2.bf16.msra.mxu0 0
        %4465 = vmatprep.subr.bf16.mxu0 0
        %4466 = vmatpush2.bf16.msra.mxu0 0
        %4467 = vmatprep.subr.bf16.mxu0 0
        %4468 = vmatpush2.bf16.msra.mxu0 0
        %4469 = vmatprep.subr.bf16.mxu0 0
        %4470 = vmatpush2.bf16.msra.mxu0 0
        %4471 = vmatprep.subr.bf16.mxu0 0
        %4472 = vmatpush2.bf16.msra.mxu0 0
        %4473 = vmatprep.subr.bf16.mxu0 0
        %4474 = vmatpush2.bf16.msra.mxu0 0
        %4475 = vmatprep.mubr.bf16.mxu0 0
        %4476 = vmatmul.mubr.bf16.gmra.mxu0 %v4438
        %v4477 = vpop.f32.mrf.mxu0
        %v4478 = vadd.f32 0.0, %v4477
        %v4479 = vpop.f32.mrf.mxu0
        %v4480 = vpop.f32.mrf.mxu0
        %v4481 = vadd.f32 0.0, %v4480
        %v4482 = vpop.f32.mrf.mxu0
        %4483 = vmatprep.mubr.bf16.mxu0 0
        %4484 = vmatmul.mubr.bf16.gmra.mxu0 %v4441
        %v4485 = vpop.f32.mrf.mxu0
        %v4486 = vadd.f32 0.0, %v4485
        %v4487 = vpop.f32.mrf.mxu0
        %v4488 = vpop.f32.mrf.mxu0
        %v4489 = vadd.f32 0.0, %v4488
        %v4490 = vpop.f32.mrf.mxu0
        %4491 = vdwg.mxu0
        %v4492 = vadd.f32 %v4412, %v4478
        %v4493 = vadd.f32 %v4413, %v4481
        %v4494 = vadd.f32 %v4414, %v4486
        %v4495 = vadd.f32 %v4415, %v4489
        %s4496 = scalar_lea.vmem [#allocation15], 112
        %v4497 = vld [vmem:[%s4496] sm:$0xf]
        %v4498 = vld [vmem:[%s4496 + $0x4] sm:$0xf]
        %v4499 = vld [vmem:[%s4496 + $0x8] sm:$0xf]
        %v4500 = vld [vmem:[%s4496 + $0xc] sm:$0xf]
        %v4505 = vunpack.c.l.b16 %v4497
        %v4506 = vunpack.c.l.b16 %v4498
        %v4507 = vunpack.c.l.b16 %v4499
        %v4508 = vunpack.c.l.b16 %v4500
        %v4509 = vpack.c.b16 %v4506, %v4505
        %v4510 = vpack.c.b16 %v4508, %v4507
        %4511 = vrot.lane.b32.xlu0 %v3945, 16
        %v4512 = vpop.permute.xlu0 %4511
        %4513 = vrot.lane.b32.xlu0 %v3947, 16
        %v4514 = vpop.permute.xlu0 %4513
        %v4518 = vsel %vm3177, %v4509, 0
        %v4521 = vsel %vm3177, %v4510, 0
        %4523 = vmatprep.subr.bf16.mxu0 0
        %4524 = vmatpush1.bf16.msra.mxu0 0
        %4525 = vmatprep.subr.bf16.mxu0 0
        %4526 = vmatpush1.bf16.msra.mxu0 0
        %4527 = vmatprep.subr.bf16.mxu0 0
        %4528 = vmatpush1.bf16.msra.mxu0 0
        %4529 = vmatprep.subr.bf16.mxu0 0
        %4530 = vmatpush1.bf16.msra.mxu0 0
        %4531 = vmatprep.subr.bf16.mxu0 0
        %4532 = vmatpush1.bf16.msra.mxu0 0
        %4533 = vmatprep.subr.bf16.mxu0 0
        %4534 = vmatpush1.bf16.msra.mxu0 0
        %4535 = vmatprep.subr.bf16.mxu0 0
        %4536 = vmatpush1.bf16.msra.mxu0 %v4514
        %4537 = vmatprep.subr.bf16.mxu0 0
        %4538 = vmatpush1.bf16.msra.mxu0 %v4512
        %4539 = vmatprep.subr.bf16.mxu0 0
        %4540 = vmatpush2.bf16.msra.mxu0 0
        %4541 = vmatprep.subr.bf16.mxu0 0
        %4542 = vmatpush2.bf16.msra.mxu0 0
        %4543 = vmatprep.subr.bf16.mxu0 0
        %4544 = vmatpush2.bf16.msra.mxu0 0
        %4545 = vmatprep.subr.bf16.mxu0 0
        %4546 = vmatpush2.bf16.msra.mxu0 0
        %4547 = vmatprep.subr.bf16.mxu0 0
        %4548 = vmatpush2.bf16.msra.mxu0 0
        %4549 = vmatprep.subr.bf16.mxu0 0
        %4550 = vmatpush2.bf16.msra.mxu0 0
        %4551 = vmatprep.subr.bf16.mxu0 0
        %4552 = vmatpush2.bf16.msra.mxu0 0
        %4553 = vmatprep.subr.bf16.mxu0 0
        %4554 = vmatpush2.bf16.msra.mxu0 0
        %4555 = vmatprep.mubr.bf16.mxu0 0
        %4556 = vmatmul.mubr.bf16.gmra.mxu0 %v4518
        %v4557 = vpop.f32.mrf.mxu0
        %v4558 = vadd.f32 0.0, %v4557
        %v4559 = vpop.f32.mrf.mxu0
        %v4560 = vpop.f32.mrf.mxu0
        %v4561 = vadd.f32 0.0, %v4560
        %v4562 = vpop.f32.mrf.mxu0
        %4563 = vmatprep.mubr.bf16.mxu0 0
        %4564 = vmatmul.mubr.bf16.gmra.mxu0 %v4521
        %v4565 = vpop.f32.mrf.mxu0
        %v4566 = vadd.f32 0.0, %v4565
        %v4567 = vpop.f32.mrf.mxu0
        %v4568 = vpop.f32.mrf.mxu0
        %v4569 = vadd.f32 0.0, %v4568
        %v4570 = vpop.f32.mrf.mxu0
        %4571 = vdwg.mxu0
        %v4572 = vadd.f32 %v4492, %v4558
        %v4573 = vadd.f32 %v4493, %v4561
        %v4574 = vadd.f32 %v4494, %v4566
        %v4575 = vadd.f32 %v4495, %v4569
        %s4576 = scalar_lea.vmem [#allocation15], 128
        %v4577 = vld [vmem:[%s4576] sm:$0xf]
        %v4578 = vld [vmem:[%s4576 + $0x4] sm:$0xf]
        %v4579 = vld [vmem:[%s4576 + $0x8] sm:$0xf]
        %v4580 = vld [vmem:[%s4576 + $0xc] sm:$0xf]
        %v4585 = vunpack.c.l.b16 %v4577
        %v4586 = vunpack.c.l.b16 %v4578
        %v4587 = vunpack.c.l.b16 %v4579
        %v4588 = vunpack.c.l.b16 %v4580
        %v4589 = vpack.c.b16 %v4586, %v4585
        %v4590 = vpack.c.b16 %v4588, %v4587
        %v4592 = vsel %vm3177, %v4589, 0
        %v4595 = vsel %vm3177, %v4590, 0
        %4597 = vmatprep.subr.bf16.mxu0 0
        %4598 = vmatpush1.bf16.msra.mxu0 0
        %4599 = vmatprep.subr.bf16.mxu0 0
        %4600 = vmatpush1.bf16.msra.mxu0 0
        %4601 = vmatprep.subr.bf16.mxu0 0
        %4602 = vmatpush1.bf16.msra.mxu0 0
        %4603 = vmatprep.subr.bf16.mxu0 0
        %4604 = vmatpush1.bf16.msra.mxu0 0
        %4605 = vmatprep.subr.bf16.mxu0 0
        %4606 = vmatpush1.bf16.msra.mxu0 0
        %4607 = vmatprep.subr.bf16.mxu0 0
        %4608 = vmatpush1.bf16.msra.mxu0 0
        %4609 = vmatprep.subr.bf16.mxu0 0
        %4610 = vmatpush1.bf16.msra.mxu0 %v3948
        %4611 = vmatprep.subr.bf16.mxu0 0
        %4612 = vmatpush1.bf16.msra.mxu0 %v3946
        %4613 = vmatprep.subr.bf16.mxu0 0
        %4614 = vmatpush2.bf16.msra.mxu0 0
        %4615 = vmatprep.subr.bf16.mxu0 0
        %4616 = vmatpush2.bf16.msra.mxu0 0
        %4617 = vmatprep.subr.bf16.mxu0 0
        %4618 = vmatpush2.bf16.msra.mxu0 0
        %4619 = vmatprep.subr.bf16.mxu0 0
        %4620 = vmatpush2.bf16.msra.mxu0 0
        %4621 = vmatprep.subr.bf16.mxu0 0
        %4622 = vmatpush2.bf16.msra.mxu0 0
        %4623 = vmatprep.subr.bf16.mxu0 0
        %4624 = vmatpush2.bf16.msra.mxu0 0
        %4625 = vmatprep.subr.bf16.mxu0 0
        %4626 = vmatpush2.bf16.msra.mxu0 0
        %4627 = vmatprep.subr.bf16.mxu0 0
        %4628 = vmatpush2.bf16.msra.mxu0 0
        %4629 = vmatprep.mubr.bf16.mxu0 0
        %4630 = vmatmul.mubr.bf16.gmra.mxu0 %v4592
        %v4631 = vpop.f32.mrf.mxu0
        %v4632 = vadd.f32 0.0, %v4631
        %v4633 = vpop.f32.mrf.mxu0
        %v4634 = vpop.f32.mrf.mxu0
        %v4635 = vadd.f32 0.0, %v4634
        %v4636 = vpop.f32.mrf.mxu0
        %4637 = vmatprep.mubr.bf16.mxu0 0
        %4638 = vmatmul.mubr.bf16.gmra.mxu0 %v4595
        %v4639 = vpop.f32.mrf.mxu0
        %v4640 = vadd.f32 0.0, %v4639
        %v4641 = vpop.f32.mrf.mxu0
        %v4642 = vpop.f32.mrf.mxu0
        %v4643 = vadd.f32 0.0, %v4642
        %v4644 = vpop.f32.mrf.mxu0
        %4645 = vdwg.mxu0
        %v4646 = vadd.f32 %v4572, %v4632
        %v4647 = vadd.f32 %v4573, %v4635
        %v4648 = vadd.f32 %v4574, %v4640
        %v4649 = vadd.f32 %v4575, %v4643
        %v4650 = vld [vmem:[#allocation14] sm:$0xff]
        %v4651 = vld [vmem:[#allocation14 + $0x8] sm:$0xff]
        %v4652 = vld [vmem:[#allocation14 + $0x10] sm:$0xff]
        %v4653 = vld [vmem:[#allocation14 + $0x18] sm:$0xff]
        %4655 = vset.pattern.permute.xlu0 0
        %4656 = vperm.xlu0 %4655, %v4650
        %v4657 = vpop.permute.xlu0 %4656
        %4660 = vset.pattern.permute.xlu0 0
        %4661 = vperm.xlu0 %4660, %v4651
        %v4662 = vpop.permute.xlu0 %4661
        %4665 = vset.pattern.permute.xlu0 0
        %4666 = vperm.xlu0 %4665, %v4652
        %v4667 = vpop.permute.xlu0 %4666
        %4670 = vset.pattern.permute.xlu0 0
        %4671 = vperm.xlu0 %4670, %v4653
        %v4672 = vpop.permute.xlu0 %4671
        %v4674 = vadd.f32 %v4646, %v4657
        %v4675 = vadd.f32 %v4647, %v4662
        %v4676 = vadd.f32 %v4648, %v4667
        %v4677 = vadd.f32 %v4649, %v4672
        %v4678 = vunpack.c.l.bf16 %v3073
        %v4679 = vunpack.c.h.bf16 %v3073
        %v4680 = vunpack.c.l.bf16 %v3074
        %v4681 = vunpack.c.h.bf16 %v3074
        %v4682 = vadd.f32 %v4674, %v4678
        %v4683 = vadd.f32 %v4675, %v4679
        %v4684 = vadd.f32 %v4676, %v4680
        %v4685 = vadd.f32 %v4677, %v4681
        %v4686 = vmax.f32 %v4682, 0.0
        %v4687 = vmax.f32 %v4683, 0.0
        %v4688 = vmax.f32 %v4684, 0.0
        %v4689 = vmax.f32 %v4685, 0.0
        %v4690 = vpack.c.bf16 %v4687, %v4686
        %v4691 = vpack.c.bf16 %v4689, %v4688
        %v4692 = vld [vmem:[#allocation20] sm:$0xf]
        %v4693 = vld [vmem:[#allocation20 + $0x4] sm:$0xf]
        %v4694 = vld [vmem:[#allocation20 + $0x8] sm:$0xf]
        %v4695 = vld [vmem:[#allocation20 + $0xc] sm:$0xf]
        %v4696 = vld [vmem:[#allocation20 + $0x10] sm:$0xf]
        %v4697 = vld [vmem:[#allocation20 + $0x14] sm:$0xf]
        %v4698 = vld [vmem:[#allocation20 + $0x18] sm:$0xf]
        %v4699 = vld [vmem:[#allocation20 + $0x1c] sm:$0xf]
        %v4700 = vld [vmem:[#allocation20 + $0x20] sm:$0xf]
        %v4701 = vld [vmem:[#allocation20 + $0x24] sm:$0xf]
        %v4702 = vld [vmem:[#allocation20 + $0x28] sm:$0xf]
        %v4703 = vld [vmem:[#allocation20 + $0x2c] sm:$0xf]
        %v4704 = vld [vmem:[#allocation20 + $0x30] sm:$0xf]
        %v4705 = vld [vmem:[#allocation20 + $0x34] sm:$0xf]
        %v4706 = vld [vmem:[#allocation20 + $0x38] sm:$0xf]
        %v4707 = vld [vmem:[#allocation20 + $0x3c] sm:$0xf]
        %v4708 = vld [vmem:[#allocation20 + $0x40] sm:$0xf]
        %v4709 = vld [vmem:[#allocation20 + $0x44] sm:$0xf]
        %v4710 = vld [vmem:[#allocation21] sm:$0xf]
        %v4711 = vld [vmem:[#allocation21 + $0x4] sm:$0xf]
        %v4712 = vld [vmem:[#allocation21 + $0x8] sm:$0xf]
        %v4713 = vld [vmem:[#allocation21 + $0xc] sm:$0xf]
        %v4714 = vld [vmem:[#allocation21 + $0x10] sm:$0xf]
        %v4715 = vld [vmem:[#allocation21 + $0x14] sm:$0xf]
        %v4716 = vld [vmem:[#allocation21 + $0x18] sm:$0xf]
        %v4717 = vld [vmem:[#allocation21 + $0x1c] sm:$0xf]
        %v4718 = vld [vmem:[#allocation21 + $0x20] sm:$0xf]
        %v4719 = vld [vmem:[#allocation21 + $0x24] sm:$0xf]
        %v4720 = vld [vmem:[#allocation21 + $0x28] sm:$0xf]
        %v4721 = vld [vmem:[#allocation21 + $0x2c] sm:$0xf]
        %v4722 = vld [vmem:[#allocation21 + $0x30] sm:$0xf]
        %v4723 = vld [vmem:[#allocation21 + $0x34] sm:$0xf]
        %v4724 = vld [vmem:[#allocation21 + $0x38] sm:$0xf]
        %v4725 = vld [vmem:[#allocation21 + $0x3c] sm:$0xf]
        %v4726 = vld [vmem:[#allocation21 + $0x40] sm:$0xf]
        %v4727 = vld [vmem:[#allocation21 + $0x44] sm:$0xf]
        %v4746 = vunpack.c.l.b16 %v4710
        %v4747 = vunpack.c.l.b16 %v4711
        %v4748 = vunpack.c.l.b16 %v4712
        %v4749 = vunpack.c.l.b16 %v4713
        %v4750 = vunpack.c.l.b16 %v4714
        %v4751 = vunpack.c.l.b16 %v4715
        %v4752 = vunpack.c.l.b16 %v4716
        %v4753 = vunpack.c.l.b16 %v4717
        %v4754 = vunpack.c.l.b16 %v4718
        %v4755 = vunpack.c.l.b16 %v4719
        %v4756 = vunpack.c.l.b16 %v4720
        %v4757 = vunpack.c.l.b16 %v4721
        %v4758 = vunpack.c.l.b16 %v4722
        %v4759 = vunpack.c.l.b16 %v4723
        %v4760 = vunpack.c.l.b16 %v4724
        %v4761 = vunpack.c.l.b16 %v4725
        %v4762 = vunpack.c.l.b16 %v4726
        %v4763 = vunpack.c.l.b16 %v4727
        %v4764 = vpack.c.b16 %v4747, %v4746
        %v4765 = vpack.c.b16 %v4749, %v4748
        %v4766 = vpack.c.b16 %v4751, %v4750
        %v4767 = vpack.c.b16 %v4753, %v4752
        %v4768 = vpack.c.b16 %v4755, %v4754
        %v4769 = vpack.c.b16 %v4757, %v4756
        %v4770 = vpack.c.b16 %v4759, %v4758
        %v4771 = vpack.c.b16 %v4761, %v4760
        %v4772 = vpack.c.b16 %v4763, %v4762
        %v4774 = vsel %vm3177, %v4764, 0
        %v4777 = vsel %vm3177, %v4765, 0
        %v4780 = vsel %vm3177, %v4766, 0
        %v4783 = vsel %vm3177, %v4767, 0
        %v4786 = vsel %vm3177, %v4768, 0
        %v4789 = vsel %vm3177, %v4769, 0
        %v4792 = vsel %vm3177, %v4770, 0
        %v4795 = vsel %vm3177, %v4771, 0
        %v4798 = vsel %vm3177, %v4772, 0
        %4800 = vmatprep.subr.bf16.mxu0 0
        %4801 = vmatpush1.bf16.msra.mxu0 0
        %4802 = vmatprep.subr.bf16.mxu0 0
        %4803 = vmatpush1.bf16.msra.mxu0 0
        %4804 = vmatprep.subr.bf16.mxu0 0
        %4805 = vmatpush1.bf16.msra.mxu0 0
        %4806 = vmatprep.subr.bf16.mxu0 0
        %4807 = vmatpush1.bf16.msra.mxu0 0
        %4808 = vmatprep.subr.bf16.mxu0 0
        %4809 = vmatpush1.bf16.msra.mxu0 0
        %4810 = vmatprep.subr.bf16.mxu0 0
        %4811 = vmatpush1.bf16.msra.mxu0 0
        %4812 = vmatprep.subr.bf16.mxu0 0
        %4813 = vmatpush1.bf16.msra.mxu0 %v3074
        %4814 = vmatprep.subr.bf16.mxu0 0
        %4815 = vmatpush1.bf16.msra.mxu0 %v3073
        %4816 = vmatprep.subr.bf16.mxu0 0
        %4817 = vmatpush2.bf16.msra.mxu0 0
        %4818 = vmatprep.subr.bf16.mxu0 0
        %4819 = vmatpush2.bf16.msra.mxu0 0
        %4820 = vmatprep.subr.bf16.mxu0 0
        %4821 = vmatpush2.bf16.msra.mxu0 0
        %4822 = vmatprep.subr.bf16.mxu0 0
        %4823 = vmatpush2.bf16.msra.mxu0 0
        %4824 = vmatprep.subr.bf16.mxu0 0
        %4825 = vmatpush2.bf16.msra.mxu0 0
        %4826 = vmatprep.subr.bf16.mxu0 0
        %4827 = vmatpush2.bf16.msra.mxu0 0
        %4828 = vmatprep.subr.bf16.mxu0 0
        %4829 = vmatpush2.bf16.msra.mxu0 0
        %4830 = vmatprep.subr.bf16.mxu0 0
        %4831 = vmatpush2.bf16.msra.mxu0 0
        %4832 = vmatprep.mubr.bf16.mxu0 0
        %4833 = vmatmul.mubr.bf16.gmra.mxu0 %v4774
        %v4834 = vpop.f32.mrf.mxu0
        %v4835 = vadd.f32 0.0, %v4834
        %v4836 = vpop.f32.mrf.mxu0
        %v4837 = vpop.f32.mrf.mxu0
        %v4838 = vadd.f32 0.0, %v4837
        %v4839 = vpop.f32.mrf.mxu0
        %4840 = vmatprep.mubr.bf16.mxu0 0
        %4841 = vmatmul.mubr.bf16.gmra.mxu0 %v4777
        %v4842 = vpop.f32.mrf.mxu0
        %v4843 = vadd.f32 0.0, %v4842
        %v4844 = vpop.f32.mrf.mxu0
        %v4845 = vpop.f32.mrf.mxu0
        %v4846 = vadd.f32 0.0, %v4845
        %v4847 = vpop.f32.mrf.mxu0
        %4848 = vmatprep.mubr.bf16.mxu0 0
        %4849 = vmatmul.mubr.bf16.gmra.mxu0 %v4780
        %v4850 = vpop.f32.mrf.mxu0
        %v4851 = vadd.f32 0.0, %v4850
        %v4852 = vpop.f32.mrf.mxu0
        %v4853 = vpop.f32.mrf.mxu0
        %v4854 = vadd.f32 0.0, %v4853
        %v4855 = vpop.f32.mrf.mxu0
        %4856 = vmatprep.mubr.bf16.mxu0 0
        %4857 = vmatmul.mubr.bf16.gmra.mxu0 %v4783
        %v4858 = vpop.f32.mrf.mxu0
        %v4859 = vadd.f32 0.0, %v4858
        %v4860 = vpop.f32.mrf.mxu0
        %v4861 = vpop.f32.mrf.mxu0
        %v4862 = vadd.f32 0.0, %v4861
        %v4863 = vpop.f32.mrf.mxu0
        %4864 = vmatprep.mubr.bf16.mxu0 0
        %4865 = vmatmul.mubr.bf16.gmra.mxu0 %v4786
        %v4866 = vpop.f32.mrf.mxu0
        %v4867 = vadd.f32 0.0, %v4866
        %v4868 = vpop.f32.mrf.mxu0
        %v4869 = vpop.f32.mrf.mxu0
        %v4870 = vadd.f32 0.0, %v4869
        %v4871 = vpop.f32.mrf.mxu0
        %4872 = vmatprep.mubr.bf16.mxu0 0
        %4873 = vmatmul.mubr.bf16.gmra.mxu0 %v4789
        %v4874 = vpop.f32.mrf.mxu0
        %v4875 = vadd.f32 0.0, %v4874
        %v4876 = vpop.f32.mrf.mxu0
        %v4877 = vpop.f32.mrf.mxu0
        %v4878 = vadd.f32 0.0, %v4877
        %v4879 = vpop.f32.mrf.mxu0
        %4880 = vmatprep.mubr.bf16.mxu0 0
        %4881 = vmatmul.mubr.bf16.gmra.mxu0 %v4792
        %v4882 = vpop.f32.mrf.mxu0
        %v4883 = vadd.f32 0.0, %v4882
        %v4884 = vpop.f32.mrf.mxu0
        %v4885 = vpop.f32.mrf.mxu0
        %v4886 = vadd.f32 0.0, %v4885
        %v4887 = vpop.f32.mrf.mxu0
        %4888 = vmatprep.mubr.bf16.mxu0 0
        %4889 = vmatmul.mubr.bf16.gmra.mxu0 %v4795
        %v4890 = vpop.f32.mrf.mxu0
        %v4891 = vadd.f32 0.0, %v4890
        %v4892 = vpop.f32.mrf.mxu0
        %v4893 = vpop.f32.mrf.mxu0
        %v4894 = vadd.f32 0.0, %v4893
        %v4895 = vpop.f32.mrf.mxu0
        %4896 = vmatprep.mubr.bf16.mxu0 0
        %4897 = vmatmul.mubr.bf16.gmra.mxu0 %v4798
        %v4898 = vpop.f32.mrf.mxu0
        %v4899 = vadd.f32 0.0, %v4898
        %v4900 = vpop.f32.mrf.mxu0
        %v4901 = vpop.f32.mrf.mxu0
        %v4902 = vadd.f32 0.0, %v4901
        %v4903 = vpop.f32.mrf.mxu0
        %4904 = vdwg.mxu0
        %v4923 = vunpack.c.l.b16 %v4692
        %v4924 = vunpack.c.l.b16 %v4693
        %v4925 = vunpack.c.l.b16 %v4694
        %v4926 = vunpack.c.l.b16 %v4695
        %v4927 = vunpack.c.l.b16 %v4696
        %v4928 = vunpack.c.l.b16 %v4697
        %v4929 = vunpack.c.l.b16 %v4698
        %v4930 = vunpack.c.l.b16 %v4699
        %v4931 = vunpack.c.l.b16 %v4700
        %v4932 = vunpack.c.l.b16 %v4701
        %v4933 = vunpack.c.l.b16 %v4702
        %v4934 = vunpack.c.l.b16 %v4703
        %v4935 = vunpack.c.l.b16 %v4704
        %v4936 = vunpack.c.l.b16 %v4705
        %v4937 = vunpack.c.l.b16 %v4706
        %v4938 = vunpack.c.l.b16 %v4707
        %v4939 = vunpack.c.l.b16 %v4708
        %v4940 = vunpack.c.l.b16 %v4709
        %v4941 = vpack.c.b16 %v4924, %v4923
        %v4942 = vpack.c.b16 %v4926, %v4925
        %v4943 = vpack.c.b16 %v4928, %v4927
        %v4944 = vpack.c.b16 %v4930, %v4929
        %v4945 = vpack.c.b16 %v4932, %v4931
        %v4946 = vpack.c.b16 %v4934, %v4933
        %v4947 = vpack.c.b16 %v4936, %v4935
        %v4948 = vpack.c.b16 %v4938, %v4937
        %v4949 = vpack.c.b16 %v4940, %v4939
        %v4951 = vsel %vm3177, %v4941, 0
        %v4954 = vsel %vm3177, %v4942, 0
        %v4957 = vsel %vm3177, %v4943, 0
        %v4960 = vsel %vm3177, %v4944, 0
        %v4963 = vsel %vm3177, %v4945, 0
        %v4966 = vsel %vm3177, %v4946, 0
        %v4969 = vsel %vm3177, %v4947, 0
        %v4972 = vsel %vm3177, %v4948, 0
        %v4975 = vsel %vm3177, %v4949, 0
        %4977 = vmatprep.subr.bf16.mxu0 0
        %4978 = vmatpush1.bf16.msra.mxu0 0
        %4979 = vmatprep.subr.bf16.mxu0 0
        %4980 = vmatpush1.bf16.msra.mxu0 0
        %4981 = vmatprep.subr.bf16.mxu0 0
        %4982 = vmatpush1.bf16.msra.mxu0 0
        %4983 = vmatprep.subr.bf16.mxu0 0
        %4984 = vmatpush1.bf16.msra.mxu0 0
        %4985 = vmatprep.subr.bf16.mxu0 0
        %4986 = vmatpush1.bf16.msra.mxu0 0
        %4987 = vmatprep.subr.bf16.mxu0 0
        %4988 = vmatpush1.bf16.msra.mxu0 0
        %4989 = vmatprep.subr.bf16.mxu0 0
        %4990 = vmatpush1.bf16.msra.mxu0 %v4691
        %4991 = vmatprep.subr.bf16.mxu0 0
        %4992 = vmatpush1.bf16.msra.mxu0 %v4690
        %4993 = vmatprep.subr.bf16.mxu0 0
        %4994 = vmatpush2.bf16.msra.mxu0 0
        %4995 = vmatprep.subr.bf16.mxu0 0
        %4996 = vmatpush2.bf16.msra.mxu0 0
        %4997 = vmatprep.subr.bf16.mxu0 0
        %4998 = vmatpush2.bf16.msra.mxu0 0
        %4999 = vmatprep.subr.bf16.mxu0 0
        %5000 = vmatpush2.bf16.msra.mxu0 0
        %5001 = vmatprep.subr.bf16.mxu0 0
        %5002 = vmatpush2.bf16.msra.mxu0 0
        %5003 = vmatprep.subr.bf16.mxu0 0
        %5004 = vmatpush2.bf16.msra.mxu0 0
        %5005 = vmatprep.subr.bf16.mxu0 0
        %5006 = vmatpush2.bf16.msra.mxu0 0
        %5007 = vmatprep.subr.bf16.mxu0 0
        %5008 = vmatpush2.bf16.msra.mxu0 0
        %5009 = vmatprep.mubr.bf16.mxu0 0
        %5010 = vmatmul.mubr.bf16.gmra.mxu0 %v4951
        %v5011 = vpop.f32.mrf.mxu0
        %v5012 = vadd.f32 %v4835, %v5011
        %v5013 = vpop.f32.mrf.mxu0
        %v5014 = vpop.f32.mrf.mxu0
        %v5015 = vadd.f32 %v4838, %v5014
        %v5016 = vpop.f32.mrf.mxu0
        %5017 = vmatprep.mubr.bf16.mxu0 0
        %5018 = vmatmul.mubr.bf16.gmra.mxu0 %v4954
        %v5019 = vpop.f32.mrf.mxu0
        %v5020 = vadd.f32 %v4843, %v5019
        %v5021 = vpop.f32.mrf.mxu0
        %v5022 = vpop.f32.mrf.mxu0
        %v5023 = vadd.f32 %v4846, %v5022
        %v5024 = vpop.f32.mrf.mxu0
        %5025 = vmatprep.mubr.bf16.mxu0 0
        %5026 = vmatmul.mubr.bf16.gmra.mxu0 %v4957
        %v5027 = vpop.f32.mrf.mxu0
        %v5028 = vadd.f32 %v4851, %v5027
        %v5029 = vpop.f32.mrf.mxu0
        %v5030 = vpop.f32.mrf.mxu0
        %v5031 = vadd.f32 %v4854, %v5030
        %v5032 = vpop.f32.mrf.mxu0
        %5033 = vmatprep.mubr.bf16.mxu0 0
        %5034 = vmatmul.mubr.bf16.gmra.mxu0 %v4960
        %v5035 = vpop.f32.mrf.mxu0
        %v5036 = vadd.f32 %v4859, %v5035
        %v5037 = vpop.f32.mrf.mxu0
        %v5038 = vpop.f32.mrf.mxu0
        %v5039 = vadd.f32 %v4862, %v5038
        %v5040 = vpop.f32.mrf.mxu0
        %5041 = vmatprep.mubr.bf16.mxu0 0
        %5042 = vmatmul.mubr.bf16.gmra.mxu0 %v4963
        %v5043 = vpop.f32.mrf.mxu0
        %v5044 = vadd.f32 %v4867, %v5043
        %v5045 = vpop.f32.mrf.mxu0
        %v5046 = vpop.f32.mrf.mxu0
        %v5047 = vadd.f32 %v4870, %v5046
        %v5048 = vpop.f32.mrf.mxu0
        %5049 = vmatprep.mubr.bf16.mxu0 0
        %5050 = vmatmul.mubr.bf16.gmra.mxu0 %v4966
        %v5051 = vpop.f32.mrf.mxu0
        %v5052 = vadd.f32 %v4875, %v5051
        %v5053 = vpop.f32.mrf.mxu0
        %v5054 = vpop.f32.mrf.mxu0
        %v5055 = vadd.f32 %v4878, %v5054
        %v5056 = vpop.f32.mrf.mxu0
        %5057 = vmatprep.mubr.bf16.mxu0 0
        %5058 = vmatmul.mubr.bf16.gmra.mxu0 %v4969
        %v5059 = vpop.f32.mrf.mxu0
        %v5060 = vadd.f32 %v4883, %v5059
        %v5061 = vpop.f32.mrf.mxu0
        %v5062 = vpop.f32.mrf.mxu0
        %v5063 = vadd.f32 %v4886, %v5062
        %v5064 = vpop.f32.mrf.mxu0
        %5065 = vmatprep.mubr.bf16.mxu0 0
        %5066 = vmatmul.mubr.bf16.gmra.mxu0 %v4972
        %v5067 = vpop.f32.mrf.mxu0
        %v5068 = vadd.f32 %v4891, %v5067
        %v5069 = vpop.f32.mrf.mxu0
        %v5070 = vpop.f32.mrf.mxu0
        %v5071 = vadd.f32 %v4894, %v5070
        %v5072 = vpop.f32.mrf.mxu0
        %5073 = vmatprep.mubr.bf16.mxu0 0
        %5074 = vmatmul.mubr.bf16.gmra.mxu0 %v4975
        %v5075 = vpop.f32.mrf.mxu0
        %v5076 = vadd.f32 %v4899, %v5075
        %v5077 = vpop.f32.mrf.mxu0
        %v5078 = vpop.f32.mrf.mxu0
        %v5079 = vadd.f32 %v4902, %v5078
        %v5080 = vpop.f32.mrf.mxu0
        %5081 = vdwg.mxu0
        %v5082 = vpack.c.bf16 %v5015, %v5012
        %v5083 = vld [vmem:[#allocation17] sm:$0xf]
        %v5084 = vld [vmem:[#allocation17 + $0x4] sm:$0xf]
        %v5085 = vpack.c.bf16 %v5023, %v5020
        %s5086 = scalar_lea.vmem [#allocation17], 8
        %v5087 = vld [vmem:[%s5086] sm:$0xf]
        %v5088 = vld [vmem:[%s5086 + $0x4] sm:$0xf]
        %v5091 = vunpack.c.l.b16 %v5087
        %v5092 = vunpack.c.l.b16 %v5088
        %v5093 = vpack.c.b16 %v5092, %v5091
        %v5096 = vsel %vm2384, %v5085, 0
        %5098 = vmatprep.subr.bf16.mxu0 0
        %5099 = vmatpush1.bf16.msra.mxu0 0
        %5100 = vmatprep.subr.bf16.mxu0 0
        %5101 = vmatpush1.bf16.msra.mxu0 0
        %5102 = vmatprep.subr.bf16.mxu0 0
        %5103 = vmatpush1.bf16.msra.mxu0 0
        %5104 = vmatprep.subr.bf16.mxu0 0
        %5105 = vmatpush1.bf16.msra.mxu0 0
        %5106 = vmatprep.subr.bf16.mxu0 0
        %5107 = vmatpush1.bf16.msra.mxu0 0
        %5108 = vmatprep.subr.bf16.mxu0 0
        %5109 = vmatpush1.bf16.msra.mxu0 0
        %5110 = vmatprep.subr.bf16.mxu0 0
        %5111 = vmatpush1.bf16.msra.mxu0 0
        %5112 = vmatprep.subr.bf16.mxu0 0
        %5113 = vmatpush1.bf16.msra.mxu0 %v5093
        %5114 = vmatprep.subr.bf16.mxu0 0
        %5115 = vmatpush2.bf16.msra.mxu0 0
        %5116 = vmatprep.subr.bf16.mxu0 0
        %5117 = vmatpush2.bf16.msra.mxu0 0
        %5118 = vmatprep.subr.bf16.mxu0 0
        %5119 = vmatpush2.bf16.msra.mxu0 0
        %5120 = vmatprep.subr.bf16.mxu0 0
        %5121 = vmatpush2.bf16.msra.mxu0 0
        %5122 = vmatprep.subr.bf16.mxu0 0
        %5123 = vmatpush2.bf16.msra.mxu0 0
        %5124 = vmatprep.subr.bf16.mxu0 0
        %5125 = vmatpush2.bf16.msra.mxu0 0
        %5126 = vmatprep.subr.bf16.mxu0 0
        %5127 = vmatpush2.bf16.msra.mxu0 0
        %5128 = vmatprep.subr.bf16.mxu0 0
        %5129 = vmatpush2.bf16.msra.mxu0 0
        %5130 = vmatprep.mubr.bf16.mxu0 0
        %5131 = vmatmul.mubr.bf16.gmra.mxu0 %v5096
        %v5132 = vpop.f32.mrf.mxu0
        %v5133 = vadd.f32 0.0, %v5132
        %v5134 = vpop.f32.mrf.mxu0
        %v5135 = vpop.f32.mrf.mxu0
        %v5136 = vadd.f32 0.0, %v5135
        %v5137 = vpop.f32.mrf.mxu0
        %5138 = vdwg.mxu0
        %v5141 = vunpack.c.l.b16 %v5083
        %v5142 = vunpack.c.l.b16 %v5084
        %v5143 = vpack.c.b16 %v5142, %v5141
        %v5146 = vsel %vm2384, %v5082, 0
        %5148 = vmatprep.subr.bf16.mxu0 0
        %5149 = vmatpush1.bf16.msra.mxu0 0
        %5150 = vmatprep.subr.bf16.mxu0 0
        %5151 = vmatpush1.bf16.msra.mxu0 0
        %5152 = vmatprep.subr.bf16.mxu0 0
        %5153 = vmatpush1.bf16.msra.mxu0 0
        %5154 = vmatprep.subr.bf16.mxu0 0
        %5155 = vmatpush1.bf16.msra.mxu0 0
        %5156 = vmatprep.subr.bf16.mxu0 0
        %5157 = vmatpush1.bf16.msra.mxu0 0
        %5158 = vmatprep.subr.bf16.mxu0 0
        %5159 = vmatpush1.bf16.msra.mxu0 0
        %5160 = vmatprep.subr.bf16.mxu0 0
        %5161 = vmatpush1.bf16.msra.mxu0 0
        %5162 = vmatprep.subr.bf16.mxu0 0
        %5163 = vmatpush1.bf16.msra.mxu0 %v5143
        %5164 = vmatprep.subr.bf16.mxu0 0
        %5165 = vmatpush2.bf16.msra.mxu0 0
        %5166 = vmatprep.subr.bf16.mxu0 0
        %5167 = vmatpush2.bf16.msra.mxu0 0
        %5168 = vmatprep.subr.bf16.mxu0 0
        %5169 = vmatpush2.bf16.msra.mxu0 0
        %5170 = vmatprep.subr.bf16.mxu0 0
        %5171 = vmatpush2.bf16.msra.mxu0 0
        %5172 = vmatprep.subr.bf16.mxu0 0
        %5173 = vmatpush2.bf16.msra.mxu0 0
        %5174 = vmatprep.subr.bf16.mxu0 0
        %5175 = vmatpush2.bf16.msra.mxu0 0
        %5176 = vmatprep.subr.bf16.mxu0 0
        %5177 = vmatpush2.bf16.msra.mxu0 0
        %5178 = vmatprep.subr.bf16.mxu0 0
        %5179 = vmatpush2.bf16.msra.mxu0 0
        %5180 = vmatprep.mubr.bf16.mxu0 0
        %5181 = vmatmul.mubr.bf16.gmra.mxu0 %v5146
        %v5182 = vpop.f32.mrf.mxu0
        %v5183 = vadd.f32 %v5133, %v5182
        %v5184 = vpop.f32.mrf.mxu0
        %v5185 = vpop.f32.mrf.mxu0
        %v5186 = vadd.f32 %v5136, %v5185
        %v5187 = vpop.f32.mrf.mxu0
        %5188 = vdwg.mxu0
        %v5189 = vpack.c.bf16 %v5031, %v5028
        %s5190 = scalar_lea.vmem [#allocation17], 16
        %v5191 = vld [vmem:[%s5190] sm:$0xf]
        %v5192 = vld [vmem:[%s5190 + $0x4] sm:$0xf]
        %v5195 = vunpack.c.l.b16 %v5191
        %v5196 = vunpack.c.l.b16 %v5192
        %v5197 = vpack.c.b16 %v5196, %v5195
        %v5200 = vsel %vm2384, %v5189, 0
        %5202 = vmatprep.subr.bf16.mxu0 0
        %5203 = vmatpush1.bf16.msra.mxu0 0
        %5204 = vmatprep.subr.bf16.mxu0 0
        %5205 = vmatpush1.bf16.msra.mxu0 0
        %5206 = vmatprep.subr.bf16.mxu0 0
        %5207 = vmatpush1.bf16.msra.mxu0 0
        %5208 = vmatprep.subr.bf16.mxu0 0
        %5209 = vmatpush1.bf16.msra.mxu0 0
        %5210 = vmatprep.subr.bf16.mxu0 0
        %5211 = vmatpush1.bf16.msra.mxu0 0
        %5212 = vmatprep.subr.bf16.mxu0 0
        %5213 = vmatpush1.bf16.msra.mxu0 0
        %5214 = vmatprep.subr.bf16.mxu0 0
        %5215 = vmatpush1.bf16.msra.mxu0 0
        %5216 = vmatprep.subr.bf16.mxu0 0
        %5217 = vmatpush1.bf16.msra.mxu0 %v5197
        %5218 = vmatprep.subr.bf16.mxu0 0
        %5219 = vmatpush2.bf16.msra.mxu0 0
        %5220 = vmatprep.subr.bf16.mxu0 0
        %5221 = vmatpush2.bf16.msra.mxu0 0
        %5222 = vmatprep.subr.bf16.mxu0 0
        %5223 = vmatpush2.bf16.msra.mxu0 0
        %5224 = vmatprep.subr.bf16.mxu0 0
        %5225 = vmatpush2.bf16.msra.mxu0 0
        %5226 = vmatprep.subr.bf16.mxu0 0
        %5227 = vmatpush2.bf16.msra.mxu0 0
        %5228 = vmatprep.subr.bf16.mxu0 0
        %5229 = vmatpush2.bf16.msra.mxu0 0
        %5230 = vmatprep.subr.bf16.mxu0 0
        %5231 = vmatpush2.bf16.msra.mxu0 0
        %5232 = vmatprep.subr.bf16.mxu0 0
        %5233 = vmatpush2.bf16.msra.mxu0 0
        %5234 = vmatprep.mubr.bf16.mxu0 0
        %5235 = vmatmul.mubr.bf16.gmra.mxu0 %v5200
        %v5236 = vpop.f32.mrf.mxu0
        %v5237 = vadd.f32 0.0, %v5236
        %v5238 = vpop.f32.mrf.mxu0
        %v5239 = vpop.f32.mrf.mxu0
        %v5240 = vadd.f32 0.0, %v5239
        %v5241 = vpop.f32.mrf.mxu0
        %5242 = vdwg.mxu0
        %v5243 = vadd.f32 %v5183, %v5237
        %v5244 = vadd.f32 %v5186, %v5240
        %v5245 = vpack.c.bf16 %v5039, %v5036
        %s5246 = scalar_lea.vmem [#allocation17], 24
        %v5247 = vld [vmem:[%s5246] sm:$0xf]
        %v5248 = vld [vmem:[%s5246 + $0x4] sm:$0xf]
        %v5251 = vunpack.c.l.b16 %v5247
        %v5252 = vunpack.c.l.b16 %v5248
        %v5253 = vpack.c.b16 %v5252, %v5251
        %v5256 = vsel %vm2384, %v5245, 0
        %5258 = vmatprep.subr.bf16.mxu0 0
        %5259 = vmatpush1.bf16.msra.mxu0 0
        %5260 = vmatprep.subr.bf16.mxu0 0
        %5261 = vmatpush1.bf16.msra.mxu0 0
        %5262 = vmatprep.subr.bf16.mxu0 0
        %5263 = vmatpush1.bf16.msra.mxu0 0
        %5264 = vmatprep.subr.bf16.mxu0 0
        %5265 = vmatpush1.bf16.msra.mxu0 0
        %5266 = vmatprep.subr.bf16.mxu0 0
        %5267 = vmatpush1.bf16.msra.mxu0 0
        %5268 = vmatprep.subr.bf16.mxu0 0
        %5269 = vmatpush1.bf16.msra.mxu0 0
        %5270 = vmatprep.subr.bf16.mxu0 0
        %5271 = vmatpush1.bf16.msra.mxu0 0
        %5272 = vmatprep.subr.bf16.mxu0 0
        %5273 = vmatpush1.bf16.msra.mxu0 %v5253
        %5274 = vmatprep.subr.bf16.mxu0 0
        %5275 = vmatpush2.bf16.msra.mxu0 0
        %5276 = vmatprep.subr.bf16.mxu0 0
        %5277 = vmatpush2.bf16.msra.mxu0 0
        %5278 = vmatprep.subr.bf16.mxu0 0
        %5279 = vmatpush2.bf16.msra.mxu0 0
        %5280 = vmatprep.subr.bf16.mxu0 0
        %5281 = vmatpush2.bf16.msra.mxu0 0
        %5282 = vmatprep.subr.bf16.mxu0 0
        %5283 = vmatpush2.bf16.msra.mxu0 0
        %5284 = vmatprep.subr.bf16.mxu0 0
        %5285 = vmatpush2.bf16.msra.mxu0 0
        %5286 = vmatprep.subr.bf16.mxu0 0
        %5287 = vmatpush2.bf16.msra.mxu0 0
        %5288 = vmatprep.subr.bf16.mxu0 0
        %5289 = vmatpush2.bf16.msra.mxu0 0
        %5290 = vmatprep.mubr.bf16.mxu0 0
        %5291 = vmatmul.mubr.bf16.gmra.mxu0 %v5256
        %v5292 = vpop.f32.mrf.mxu0
        %v5293 = vadd.f32 0.0, %v5292
        %v5294 = vpop.f32.mrf.mxu0
        %v5295 = vpop.f32.mrf.mxu0
        %v5296 = vadd.f32 0.0, %v5295
        %v5297 = vpop.f32.mrf.mxu0
        %5298 = vdwg.mxu0
        %v5299 = vadd.f32 %v5243, %v5293
        %v5300 = vadd.f32 %v5244, %v5296
        %v5301 = vpack.c.bf16 %v5047, %v5044
        %s5302 = scalar_lea.vmem [#allocation17], 32
        %v5303 = vld [vmem:[%s5302] sm:$0xf]
        %v5304 = vld [vmem:[%s5302 + $0x4] sm:$0xf]
        %v5307 = vunpack.c.l.b16 %v5303
        %v5308 = vunpack.c.l.b16 %v5304
        %v5309 = vpack.c.b16 %v5308, %v5307
        %v5312 = vsel %vm2384, %v5301, 0
        %5314 = vmatprep.subr.bf16.mxu0 0
        %5315 = vmatpush1.bf16.msra.mxu0 0
        %5316 = vmatprep.subr.bf16.mxu0 0
        %5317 = vmatpush1.bf16.msra.mxu0 0
        %5318 = vmatprep.subr.bf16.mxu0 0
        %5319 = vmatpush1.bf16.msra.mxu0 0
        %5320 = vmatprep.subr.bf16.mxu0 0
        %5321 = vmatpush1.bf16.msra.mxu0 0
        %5322 = vmatprep.subr.bf16.mxu0 0
        %5323 = vmatpush1.bf16.msra.mxu0 0
        %5324 = vmatprep.subr.bf16.mxu0 0
        %5325 = vmatpush1.bf16.msra.mxu0 0
        %5326 = vmatprep.subr.bf16.mxu0 0
        %5327 = vmatpush1.bf16.msra.mxu0 0
        %5328 = vmatprep.subr.bf16.mxu0 0
        %5329 = vmatpush1.bf16.msra.mxu0 %v5309
        %5330 = vmatprep.subr.bf16.mxu0 0
        %5331 = vmatpush2.bf16.msra.mxu0 0
        %5332 = vmatprep.subr.bf16.mxu0 0
        %5333 = vmatpush2.bf16.msra.mxu0 0
        %5334 = vmatprep.subr.bf16.mxu0 0
        %5335 = vmatpush2.bf16.msra.mxu0 0
        %5336 = vmatprep.subr.bf16.mxu0 0
        %5337 = vmatpush2.bf16.msra.mxu0 0
        %5338 = vmatprep.subr.bf16.mxu0 0
        %5339 = vmatpush2.bf16.msra.mxu0 0
        %5340 = vmatprep.subr.bf16.mxu0 0
        %5341 = vmatpush2.bf16.msra.mxu0 0
        %5342 = vmatprep.subr.bf16.mxu0 0
        %5343 = vmatpush2.bf16.msra.mxu0 0
        %5344 = vmatprep.subr.bf16.mxu0 0
        %5345 = vmatpush2.bf16.msra.mxu0 0
        %5346 = vmatprep.mubr.bf16.mxu0 0
        %5347 = vmatmul.mubr.bf16.gmra.mxu0 %v5312
        %v5348 = vpop.f32.mrf.mxu0
        %v5349 = vadd.f32 0.0, %v5348
        %v5350 = vpop.f32.mrf.mxu0
        %v5351 = vpop.f32.mrf.mxu0
        %v5352 = vadd.f32 0.0, %v5351
        %v5353 = vpop.f32.mrf.mxu0
        %5354 = vdwg.mxu0
        %v5355 = vadd.f32 %v5299, %v5349
        %v5356 = vadd.f32 %v5300, %v5352
        %v5357 = vpack.c.bf16 %v5055, %v5052
        %s5358 = scalar_lea.vmem [#allocation17], 40
        %v5359 = vld [vmem:[%s5358] sm:$0xf]
        %v5360 = vld [vmem:[%s5358 + $0x4] sm:$0xf]
        %v5363 = vunpack.c.l.b16 %v5359
        %v5364 = vunpack.c.l.b16 %v5360
        %v5365 = vpack.c.b16 %v5364, %v5363
        %v5368 = vsel %vm2384, %v5357, 0
        %5370 = vmatprep.subr.bf16.mxu0 0
        %5371 = vmatpush1.bf16.msra.mxu0 0
        %5372 = vmatprep.subr.bf16.mxu0 0
        %5373 = vmatpush1.bf16.msra.mxu0 0
        %5374 = vmatprep.subr.bf16.mxu0 0
        %5375 = vmatpush1.bf16.msra.mxu0 0
        %5376 = vmatprep.subr.bf16.mxu0 0
        %5377 = vmatpush1.bf16.msra.mxu0 0
        %5378 = vmatprep.subr.bf16.mxu0 0
        %5379 = vmatpush1.bf16.msra.mxu0 0
        %5380 = vmatprep.subr.bf16.mxu0 0
        %5381 = vmatpush1.bf16.msra.mxu0 0
        %5382 = vmatprep.subr.bf16.mxu0 0
        %5383 = vmatpush1.bf16.msra.mxu0 0
        %5384 = vmatprep.subr.bf16.mxu0 0
        %5385 = vmatpush1.bf16.msra.mxu0 %v5365
        %5386 = vmatprep.subr.bf16.mxu0 0
        %5387 = vmatpush2.bf16.msra.mxu0 0
        %5388 = vmatprep.subr.bf16.mxu0 0
        %5389 = vmatpush2.bf16.msra.mxu0 0
        %5390 = vmatprep.subr.bf16.mxu0 0
        %5391 = vmatpush2.bf16.msra.mxu0 0
        %5392 = vmatprep.subr.bf16.mxu0 0
        %5393 = vmatpush2.bf16.msra.mxu0 0
        %5394 = vmatprep.subr.bf16.mxu0 0
        %5395 = vmatpush2.bf16.msra.mxu0 0
        %5396 = vmatprep.subr.bf16.mxu0 0
        %5397 = vmatpush2.bf16.msra.mxu0 0
        %5398 = vmatprep.subr.bf16.mxu0 0
        %5399 = vmatpush2.bf16.msra.mxu0 0
        %5400 = vmatprep.subr.bf16.mxu0 0
        %5401 = vmatpush2.bf16.msra.mxu0 0
        %5402 = vmatprep.mubr.bf16.mxu0 0
        %5403 = vmatmul.mubr.bf16.gmra.mxu0 %v5368
        %v5404 = vpop.f32.mrf.mxu0
        %v5405 = vadd.f32 0.0, %v5404
        %v5406 = vpop.f32.mrf.mxu0
        %v5407 = vpop.f32.mrf.mxu0
        %v5408 = vadd.f32 0.0, %v5407
        %v5409 = vpop.f32.mrf.mxu0
        %5410 = vdwg.mxu0
        %v5411 = vadd.f32 %v5355, %v5405
        %v5412 = vadd.f32 %v5356, %v5408
        %v5413 = vpack.c.bf16 %v5063, %v5060
        %s5414 = scalar_lea.vmem [#allocation17], 48
        %v5415 = vld [vmem:[%s5414] sm:$0xf]
        %v5416 = vld [vmem:[%s5414 + $0x4] sm:$0xf]
        %v5419 = vunpack.c.l.b16 %v5415
        %v5420 = vunpack.c.l.b16 %v5416
        %v5421 = vpack.c.b16 %v5420, %v5419
        %v5424 = vsel %vm2384, %v5413, 0
        %5426 = vmatprep.subr.bf16.mxu0 0
        %5427 = vmatpush1.bf16.msra.mxu0 0
        %5428 = vmatprep.subr.bf16.mxu0 0
        %5429 = vmatpush1.bf16.msra.mxu0 0
        %5430 = vmatprep.subr.bf16.mxu0 0
        %5431 = vmatpush1.bf16.msra.mxu0 0
        %5432 = vmatprep.subr.bf16.mxu0 0
        %5433 = vmatpush1.bf16.msra.mxu0 0
        %5434 = vmatprep.subr.bf16.mxu0 0
        %5435 = vmatpush1.bf16.msra.mxu0 0
        %5436 = vmatprep.subr.bf16.mxu0 0
        %5437 = vmatpush1.bf16.msra.mxu0 0
        %5438 = vmatprep.subr.bf16.mxu0 0
        %5439 = vmatpush1.bf16.msra.mxu0 0
        %5440 = vmatprep.subr.bf16.mxu0 0
        %5441 = vmatpush1.bf16.msra.mxu0 %v5421
        %5442 = vmatprep.subr.bf16.mxu0 0
        %5443 = vmatpush2.bf16.msra.mxu0 0
        %5444 = vmatprep.subr.bf16.mxu0 0
        %5445 = vmatpush2.bf16.msra.mxu0 0
        %5446 = vmatprep.subr.bf16.mxu0 0
        %5447 = vmatpush2.bf16.msra.mxu0 0
        %5448 = vmatprep.subr.bf16.mxu0 0
        %5449 = vmatpush2.bf16.msra.mxu0 0
        %5450 = vmatprep.subr.bf16.mxu0 0
        %5451 = vmatpush2.bf16.msra.mxu0 0
        %5452 = vmatprep.subr.bf16.mxu0 0
        %5453 = vmatpush2.bf16.msra.mxu0 0
        %5454 = vmatprep.subr.bf16.mxu0 0
        %5455 = vmatpush2.bf16.msra.mxu0 0
        %5456 = vmatprep.subr.bf16.mxu0 0
        %5457 = vmatpush2.bf16.msra.mxu0 0
        %5458 = vmatprep.mubr.bf16.mxu0 0
        %5459 = vmatmul.mubr.bf16.gmra.mxu0 %v5424
        %v5460 = vpop.f32.mrf.mxu0
        %v5461 = vadd.f32 0.0, %v5460
        %v5462 = vpop.f32.mrf.mxu0
        %v5463 = vpop.f32.mrf.mxu0
        %v5464 = vadd.f32 0.0, %v5463
        %v5465 = vpop.f32.mrf.mxu0
        %5466 = vdwg.mxu0
        %v5467 = vadd.f32 %v5411, %v5461
        %v5468 = vadd.f32 %v5412, %v5464
        %v5469 = vpack.c.bf16 %v5071, %v5068
        %s5470 = scalar_lea.vmem [#allocation17], 56
        %v5471 = vld [vmem:[%s5470] sm:$0xf]
        %v5472 = vld [vmem:[%s5470 + $0x4] sm:$0xf]
        %v5475 = vunpack.c.l.b16 %v5471
        %v5476 = vunpack.c.l.b16 %v5472
        %v5477 = vpack.c.b16 %v5476, %v5475
        %v5480 = vsel %vm2384, %v5469, 0
        %5482 = vmatprep.subr.bf16.mxu0 0
        %5483 = vmatpush1.bf16.msra.mxu0 0
        %5484 = vmatprep.subr.bf16.mxu0 0
        %5485 = vmatpush1.bf16.msra.mxu0 0
        %5486 = vmatprep.subr.bf16.mxu0 0
        %5487 = vmatpush1.bf16.msra.mxu0 0
        %5488 = vmatprep.subr.bf16.mxu0 0
        %5489 = vmatpush1.bf16.msra.mxu0 0
        %5490 = vmatprep.subr.bf16.mxu0 0
        %5491 = vmatpush1.bf16.msra.mxu0 0
        %5492 = vmatprep.subr.bf16.mxu0 0
        %5493 = vmatpush1.bf16.msra.mxu0 0
        %5494 = vmatprep.subr.bf16.mxu0 0
        %5495 = vmatpush1.bf16.msra.mxu0 0
        %5496 = vmatprep.subr.bf16.mxu0 0
        %5497 = vmatpush1.bf16.msra.mxu0 %v5477
        %5498 = vmatprep.subr.bf16.mxu0 0
        %5499 = vmatpush2.bf16.msra.mxu0 0
        %5500 = vmatprep.subr.bf16.mxu0 0
        %5501 = vmatpush2.bf16.msra.mxu0 0
        %5502 = vmatprep.subr.bf16.mxu0 0
        %5503 = vmatpush2.bf16.msra.mxu0 0
        %5504 = vmatprep.subr.bf16.mxu0 0
        %5505 = vmatpush2.bf16.msra.mxu0 0
        %5506 = vmatprep.subr.bf16.mxu0 0
        %5507 = vmatpush2.bf16.msra.mxu0 0
        %5508 = vmatprep.subr.bf16.mxu0 0
        %5509 = vmatpush2.bf16.msra.mxu0 0
        %5510 = vmatprep.subr.bf16.mxu0 0
        %5511 = vmatpush2.bf16.msra.mxu0 0
        %5512 = vmatprep.subr.bf16.mxu0 0
        %5513 = vmatpush2.bf16.msra.mxu0 0
        %5514 = vmatprep.mubr.bf16.mxu0 0
        %5515 = vmatmul.mubr.bf16.gmra.mxu0 %v5480
        %v5516 = vpop.f32.mrf.mxu0
        %v5517 = vadd.f32 0.0, %v5516
        %v5518 = vpop.f32.mrf.mxu0
        %v5519 = vpop.f32.mrf.mxu0
        %v5520 = vadd.f32 0.0, %v5519
        %v5521 = vpop.f32.mrf.mxu0
        %5522 = vdwg.mxu0
        %v5523 = vadd.f32 %v5467, %v5517
        %v5524 = vadd.f32 %v5468, %v5520
        %v5525 = vpack.c.bf16 %v5079, %v5076
        %s5526 = scalar_lea.vmem [#allocation17], 64
        %v5527 = vld [vmem:[%s5526] sm:$0xf]
        %v5528 = vld [vmem:[%s5526 + $0x4] sm:$0xf]
        %v5531 = vunpack.c.l.b16 %v5527
        %v5532 = vunpack.c.l.b16 %v5528
        %v5533 = vpack.c.b16 %v5532, %v5531
        %v5536 = vsel %vm2384, %v5525, 0
        %5538 = vmatprep.subr.bf16.mxu0 0
        %5539 = vmatpush1.bf16.msra.mxu0 0
        %5540 = vmatprep.subr.bf16.mxu0 0
        %5541 = vmatpush1.bf16.msra.mxu0 0
        %5542 = vmatprep.subr.bf16.mxu0 0
        %5543 = vmatpush1.bf16.msra.mxu0 0
        %5544 = vmatprep.subr.bf16.mxu0 0
        %5545 = vmatpush1.bf16.msra.mxu0 0
        %5546 = vmatprep.subr.bf16.mxu0 0
        %5547 = vmatpush1.bf16.msra.mxu0 0
        %5548 = vmatprep.subr.bf16.mxu0 0
        %5549 = vmatpush1.bf16.msra.mxu0 0
        %5550 = vmatprep.subr.bf16.mxu0 0
        %5551 = vmatpush1.bf16.msra.mxu0 0
        %5552 = vmatprep.subr.bf16.mxu0 0
        %5553 = vmatpush1.bf16.msra.mxu0 %v5533
        %5554 = vmatprep.subr.bf16.mxu0 0
        %5555 = vmatpush2.bf16.msra.mxu0 0
        %5556 = vmatprep.subr.bf16.mxu0 0
        %5557 = vmatpush2.bf16.msra.mxu0 0
        %5558 = vmatprep.subr.bf16.mxu0 0
        %5559 = vmatpush2.bf16.msra.mxu0 0
        %5560 = vmatprep.subr.bf16.mxu0 0
        %5561 = vmatpush2.bf16.msra.mxu0 0
        %5562 = vmatprep.subr.bf16.mxu0 0
        %5563 = vmatpush2.bf16.msra.mxu0 0
        %5564 = vmatprep.subr.bf16.mxu0 0
        %5565 = vmatpush2.bf16.msra.mxu0 0
        %5566 = vmatprep.subr.bf16.mxu0 0
        %5567 = vmatpush2.bf16.msra.mxu0 0
        %5568 = vmatprep.subr.bf16.mxu0 0
        %5569 = vmatpush2.bf16.msra.mxu0 0
        %5570 = vmatprep.mubr.bf16.mxu0 0
        %5571 = vmatmul.mubr.bf16.gmra.mxu0 %v5536
        %v5572 = vpop.f32.mrf.mxu0
        %v5573 = vadd.f32 0.0, %v5572
        %v5574 = vpop.f32.mrf.mxu0
        %v5575 = vpop.f32.mrf.mxu0
        %v5576 = vadd.f32 0.0, %v5575
        %v5577 = vpop.f32.mrf.mxu0
        %5578 = vdwg.mxu0
        %v5579 = vadd.f32 %v5523, %v5573
        %v5580 = vadd.f32 %v5524, %v5576
        %v5581 = vld [vmem:[#allocation18] sm:$0xff]
        %v5582 = vld [vmem:[#allocation18 + $0x8] sm:$0xff]
        %5584 = vset.pattern.permute.xlu0 0
        %5585 = vperm.xlu0 %5584, %v5581
        %v5586 = vpop.permute.xlu0 %5585
        %5589 = vset.pattern.permute.xlu0 0
        %5590 = vperm.xlu0 %5589, %v5582
        %v5591 = vpop.permute.xlu0 %5590
        %v5593 = vadd.f32 %v5579, %v5586
        %v5594 = vadd.f32 %v5580, %v5591
        %v5595 = vmax.f32 %v5593, 0.0
        %v5596 = vmax.f32 %v5594, 0.0
        %v5597 = vpack.c.bf16 %v5596, %v5595
        %v5598 = vld [vmem:[#allocation30] sm:$0x1]
        %v5599 = vld [vmem:[#allocation2] sm:$0x1]
        %5601 = vset.pattern.permute.xlu0 0
        %5602 = vperm.xlu0 %5601, %v5599
        %v5603 = vpop.permute.xlu0 %5602
        %v5605 = vlaneseq
        %v5606 = vshrl.u32 %v5605, 7
        %v5607 = vsub.s32 0, %v5606
        %v5608 = vrot.slane %v5603, %v5607
        %v5610 = vsel %vm2384, %v5598, 0
        %5612 = vmatprep.subr.bf16.mxu0 0
        %5613 = vmatpush1.bf16.msra.mxu0 0
        %5614 = vmatprep.subr.bf16.mxu0 0
        %5615 = vmatpush1.bf16.msra.mxu0 0
        %5616 = vmatprep.subr.bf16.mxu0 0
        %5617 = vmatpush1.bf16.msra.mxu0 0
        %5618 = vmatprep.subr.bf16.mxu0 0
        %5619 = vmatpush1.bf16.msra.mxu0 0
        %5620 = vmatprep.subr.bf16.mxu0 0
        %5621 = vmatpush1.bf16.msra.mxu0 0
        %5622 = vmatprep.subr.bf16.mxu0 0
        %5623 = vmatpush1.bf16.msra.mxu0 0
        %5624 = vmatprep.subr.bf16.mxu0 0
        %5625 = vmatpush1.bf16.msra.mxu0 0
        %5626 = vmatprep.subr.bf16.mxu0 0
        %5627 = vmatpush1.bf16.msra.mxu0 %v5597
        %5628 = vmatprep.subr.bf16.mxu0 0
        %5629 = vmatpush2.bf16.msra.mxu0 0
        %5630 = vmatprep.subr.bf16.mxu0 0
        %5631 = vmatpush2.bf16.msra.mxu0 0
        %5632 = vmatprep.subr.bf16.mxu0 0
        %5633 = vmatpush2.bf16.msra.mxu0 0
        %5634 = vmatprep.subr.bf16.mxu0 0
        %5635 = vmatpush2.bf16.msra.mxu0 0
        %5636 = vmatprep.subr.bf16.mxu0 0
        %5637 = vmatpush2.bf16.msra.mxu0 0
        %5638 = vmatprep.subr.bf16.mxu0 0
        %5639 = vmatpush2.bf16.msra.mxu0 0
        %5640 = vmatprep.subr.bf16.mxu0 0
        %5641 = vmatpush2.bf16.msra.mxu0 0
        %5642 = vmatprep.subr.bf16.mxu0 0
        %5643 = vmatpush2.bf16.msra.mxu0 0
        %5644 = vmatprep.mubr.bf16.mxu0 0
        %5645 = vmatmul.mubr.bf16.gmra.mxu0 %v5610
        %v5646 = vpop.f32.mrf.mxu0
        %v5647 = vadd.f32 %v5608, %v5646
        %v5648 = vpop.f32.mrf.mxu0
        %v5649 = vpop.f32.mrf.mxu0
        %v5650 = vpop.f32.mrf.mxu0
        %5651 = vdwg.mxu0
        %vm5652 = vcmask 516096
        %5653 = vst.msk [vmem:[%s1068] sm:$0x1] %vm5652, %v5647
        %v5654 = vld [vmem:[#allocation27] sm:$0xf]
        %v5655 = vld [vmem:[#allocation27 + $0x4] sm:$0xf]
        %v5656 = vld [vmem:[#allocation27 + $0x8] sm:$0xf]
        %v5657 = vld [vmem:[#allocation27 + $0xc] sm:$0xf]
        %v5658 = vld [vmem:[#allocation27 + $0x10] sm:$0xf]
        %v5659 = vld [vmem:[#allocation27 + $0x14] sm:$0xf]
        %v5660 = vld [vmem:[#allocation27 + $0x18] sm:$0xf]
        %v5661 = vld [vmem:[#allocation27 + $0x1c] sm:$0xf]
        %v5662 = vld [vmem:[#allocation27 + $0x20] sm:$0xf]
        %v5663 = vld [vmem:[#allocation29] sm:$0xf]
        %v5664 = vld [vmem:[#allocation29 + $0x4] sm:$0xf]
        %v5665 = vld [vmem:[#allocation29 + $0x8] sm:$0xf]
        %v5666 = vld [vmem:[#allocation29 + $0xc] sm:$0xf]
        %v5667 = vld [vmem:[#allocation29 + $0x10] sm:$0xf]
        %v5668 = vld [vmem:[#allocation29 + $0x14] sm:$0xf]
        %v5669 = vld [vmem:[#allocation29 + $0x18] sm:$0xf]
        %v5670 = vld [vmem:[#allocation29 + $0x1c] sm:$0xf]
        %v5671 = vld [vmem:[#allocation29 + $0x20] sm:$0xf]
        %v5681 = vunpack.c.l.b16 %v5663
        %v5682 = vunpack.c.l.b16 %v5664
        %v5683 = vunpack.c.l.b16 %v5665
        %v5684 = vunpack.c.l.b16 %v5666
        %v5685 = vunpack.c.l.b16 %v5667
        %v5686 = vunpack.c.l.b16 %v5668
        %v5687 = vunpack.c.l.b16 %v5669
        %v5688 = vunpack.c.l.b16 %v5670
        %v5689 = vunpack.c.l.b16 %v5671
        %v5690 = vpack.c.b16 %v5682, %v5681
        %v5691 = vpack.c.b16 %v5684, %v5683
        %v5692 = vpack.c.b16 %v5686, %v5685
        %v5693 = vpack.c.b16 %v5688, %v5687
        %v5694 = vpack.c.b16 %v5689, %v5689
        %v5696 = vsel %vm2384, %v5690, 0
        %v5699 = vsel %vm2384, %v5691, 0
        %v5702 = vsel %vm2384, %v5692, 0
        %v5705 = vsel %vm2384, %v5693, 0
        %v5708 = vsel %vm2384, %v5694, 0
        %5710 = vmatprep.subr.bf16.mxu0 0
        %5711 = vmatpush1.bf16.msra.mxu0 0
        %5712 = vmatprep.subr.bf16.mxu0 0
        %5713 = vmatpush1.bf16.msra.mxu0 0
        %5714 = vmatprep.subr.bf16.mxu0 0
        %5715 = vmatpush1.bf16.msra.mxu0 0
        %5716 = vmatprep.subr.bf16.mxu0 0
        %5717 = vmatpush1.bf16.msra.mxu0 0
        %5718 = vmatprep.subr.bf16.mxu0 0
        %5719 = vmatpush1.bf16.msra.mxu0 0
        %5720 = vmatprep.subr.bf16.mxu0 0
        %5721 = vmatpush1.bf16.msra.mxu0 0
        %5722 = vmatprep.subr.bf16.mxu0 0
        %5723 = vmatpush1.bf16.msra.mxu0 0
        %5724 = vmatprep.subr.bf16.mxu0 0
        %5725 = vmatpush1.bf16.msra.mxu0 %v2263
        %5726 = vmatprep.subr.bf16.mxu0 0
        %5727 = vmatpush2.bf16.msra.mxu0 0
        %5728 = vmatprep.subr.bf16.mxu0 0
        %5729 = vmatpush2.bf16.msra.mxu0 0
        %5730 = vmatprep.subr.bf16.mxu0 0
        %5731 = vmatpush2.bf16.msra.mxu0 0
        %5732 = vmatprep.subr.bf16.mxu0 0
        %5733 = vmatpush2.bf16.msra.mxu0 0
        %5734 = vmatprep.subr.bf16.mxu0 0
        %5735 = vmatpush2.bf16.msra.mxu0 0
        %5736 = vmatprep.subr.bf16.mxu0 0
        %5737 = vmatpush2.bf16.msra.mxu0 0
        %5738 = vmatprep.subr.bf16.mxu0 0
        %5739 = vmatpush2.bf16.msra.mxu0 0
        %5740 = vmatprep.subr.bf16.mxu0 0
        %5741 = vmatpush2.bf16.msra.mxu0 0
        %5742 = vmatprep.mubr.bf16.mxu0 0
        %5743 = vmatmul.mubr.bf16.gmra.mxu0 %v5696
        %v5744 = vpop.f32.mrf.mxu0
        %v5745 = vadd.f32 0.0, %v5744
        %v5746 = vpop.f32.mrf.mxu0
        %v5747 = vpop.f32.mrf.mxu0
        %v5748 = vadd.f32 0.0, %v5747
        %v5749 = vpop.f32.mrf.mxu0
        %5750 = vmatprep.mubr.bf16.mxu0 0
        %5751 = vmatmul.mubr.bf16.gmra.mxu0 %v5699
        %v5752 = vpop.f32.mrf.mxu0
        %v5753 = vadd.f32 0.0, %v5752
        %v5754 = vpop.f32.mrf.mxu0
        %v5755 = vpop.f32.mrf.mxu0
        %v5756 = vadd.f32 0.0, %v5755
        %v5757 = vpop.f32.mrf.mxu0
        %5758 = vmatprep.mubr.bf16.mxu0 0
        %5759 = vmatmul.mubr.bf16.gmra.mxu0 %v5702
        %v5760 = vpop.f32.mrf.mxu0
        %v5761 = vadd.f32 0.0, %v5760
        %v5762 = vpop.f32.mrf.mxu0
        %v5763 = vpop.f32.mrf.mxu0
        %v5764 = vadd.f32 0.0, %v5763
        %v5765 = vpop.f32.mrf.mxu0
        %5766 = vmatprep.mubr.bf16.mxu0 0
        %5767 = vmatmul.mubr.bf16.gmra.mxu0 %v5705
        %v5768 = vpop.f32.mrf.mxu0
        %v5769 = vadd.f32 0.0, %v5768
        %v5770 = vpop.f32.mrf.mxu0
        %v5771 = vpop.f32.mrf.mxu0
        %v5772 = vadd.f32 0.0, %v5771
        %v5773 = vpop.f32.mrf.mxu0
        %5774 = vmatprep.mubr.bf16.mxu0 0
        %5775 = vmatmul.mubr.bf16.gmra.mxu0 %v5708
        %v5776 = vpop.f32.mrf.mxu0
        %v5777 = vadd.f32 0.0, %v5776
        %v5778 = vpop.f32.mrf.mxu0
        %v5779 = vpop.f32.mrf.mxu0
        %v5780 = vpop.f32.mrf.mxu0
        %5781 = vdwg.mxu0
        %v5791 = vunpack.c.l.b16 %v5654
        %v5792 = vunpack.c.l.b16 %v5655
        %v5793 = vunpack.c.l.b16 %v5656
        %v5794 = vunpack.c.l.b16 %v5657
        %v5795 = vunpack.c.l.b16 %v5658
        %v5796 = vunpack.c.l.b16 %v5659
        %v5797 = vunpack.c.l.b16 %v5660
        %v5798 = vunpack.c.l.b16 %v5661
        %v5799 = vunpack.c.l.b16 %v5662
        %v5800 = vpack.c.b16 %v5792, %v5791
        %v5801 = vpack.c.b16 %v5794, %v5793
        %v5802 = vpack.c.b16 %v5796, %v5795
        %v5803 = vpack.c.b16 %v5798, %v5797
        %v5804 = vpack.c.b16 %v5799, %v5799
        %v5806 = vsel %vm2384, %v5800, 0
        %v5809 = vsel %vm2384, %v5801, 0
        %v5812 = vsel %vm2384, %v5802, 0
        %v5815 = vsel %vm2384, %v5803, 0
        %v5818 = vsel %vm2384, %v5804, 0
        %5820 = vmatprep.subr.bf16.mxu0 0
        %5821 = vmatpush1.bf16.msra.mxu0 0
        %5822 = vmatprep.subr.bf16.mxu0 0
        %5823 = vmatpush1.bf16.msra.mxu0 0
        %5824 = vmatprep.subr.bf16.mxu0 0
        %5825 = vmatpush1.bf16.msra.mxu0 0
        %5826 = vmatprep.subr.bf16.mxu0 0
        %5827 = vmatpush1.bf16.msra.mxu0 0
        %5828 = vmatprep.subr.bf16.mxu0 0
        %5829 = vmatpush1.bf16.msra.mxu0 0
        %5830 = vmatprep.subr.bf16.mxu0 0
        %5831 = vmatpush1.bf16.msra.mxu0 0
        %5832 = vmatprep.subr.bf16.mxu0 0
        %5833 = vmatpush1.bf16.msra.mxu0 0
        %5834 = vmatprep.subr.bf16.mxu0 0
        %5835 = vmatpush1.bf16.msra.mxu0 %v5597
        %5836 = vmatprep.subr.bf16.mxu0 0
        %5837 = vmatpush2.bf16.msra.mxu0 0
        %5838 = vmatprep.subr.bf16.mxu0 0
        %5839 = vmatpush2.bf16.msra.mxu0 0
        %5840 = vmatprep.subr.bf16.mxu0 0
        %5841 = vmatpush2.bf16.msra.mxu0 0
        %5842 = vmatprep.subr.bf16.mxu0 0
        %5843 = vmatpush2.bf16.msra.mxu0 0
        %5844 = vmatprep.subr.bf16.mxu0 0
        %5845 = vmatpush2.bf16.msra.mxu0 0
        %5846 = vmatprep.subr.bf16.mxu0 0
        %5847 = vmatpush2.bf16.msra.mxu0 0
        %5848 = vmatprep.subr.bf16.mxu0 0
        %5849 = vmatpush2.bf16.msra.mxu0 0
        %5850 = vmatprep.subr.bf16.mxu0 0
        %5851 = vmatpush2.bf16.msra.mxu0 0
        %5852 = vmatprep.mubr.bf16.mxu0 0
        %5853 = vmatmul.mubr.bf16.gmra.mxu0 %v5806
        %v5854 = vpop.f32.mrf.mxu0
        %v5855 = vadd.f32 %v5745, %v5854
        %v5856 = vpop.f32.mrf.mxu0
        %v5857 = vpop.f32.mrf.mxu0
        %v5858 = vadd.f32 %v5748, %v5857
        %v5859 = vpop.f32.mrf.mxu0
        %5860 = vmatprep.mubr.bf16.mxu0 0
        %5861 = vmatmul.mubr.bf16.gmra.mxu0 %v5809
        %v5862 = vpop.f32.mrf.mxu0
        %v5863 = vadd.f32 %v5753, %v5862
        %v5864 = vpop.f32.mrf.mxu0
        %v5865 = vpop.f32.mrf.mxu0
        %v5866 = vadd.f32 %v5756, %v5865
        %v5867 = vpop.f32.mrf.mxu0
        %5868 = vmatprep.mubr.bf16.mxu0 0
        %5869 = vmatmul.mubr.bf16.gmra.mxu0 %v5812
        %v5870 = vpop.f32.mrf.mxu0
        %v5871 = vadd.f32 %v5761, %v5870
        %v5872 = vpop.f32.mrf.mxu0
        %v5873 = vpop.f32.mrf.mxu0
        %v5874 = vadd.f32 %v5764, %v5873
        %v5875 = vpop.f32.mrf.mxu0
        %5876 = vmatprep.mubr.bf16.mxu0 0
        %5877 = vmatmul.mubr.bf16.gmra.mxu0 %v5815
        %v5878 = vpop.f32.mrf.mxu0
        %v5879 = vadd.f32 %v5769, %v5878
        %v5880 = vpop.f32.mrf.mxu0
        %v5881 = vpop.f32.mrf.mxu0
        %v5882 = vadd.f32 %v5772, %v5881
        %v5883 = vpop.f32.mrf.mxu0
        %5884 = vmatprep.mubr.bf16.mxu0 0
        %5885 = vmatmul.mubr.bf16.gmra.mxu0 %v5818
        %v5886 = vpop.f32.mrf.mxu0
        %v5887 = vadd.f32 %v5777, %v5886
        %v5888 = vpop.f32.mrf.mxu0
        %v5889 = vpop.f32.mrf.mxu0
        %v5890 = vpop.f32.mrf.mxu0
        %5891 = vdwg.mxu0
        %v5892 = vld [vmem:[#allocation26] sm:$0xff]
        %v5893 = vld [vmem:[#allocation26 + $0x8] sm:$0xff]
        %v5894 = vld [vmem:[#allocation26 + $0x10] sm:$0xff]
        %v5895 = vld [vmem:[#allocation26 + $0x18] sm:$0xff]
        %v5896 = vld [vmem:[#allocation26 + $0x20] sm:$0xff]
        %v5897 = vld [vmem:[#allocation26 + $0x28] sm:$0xff]
        %v5898 = vld [vmem:[#allocation26 + $0x30] sm:$0xff]
        %v5899 = vld [vmem:[#allocation26 + $0x38] sm:$0xff]
        %v5900 = vld [vmem:[#allocation26 + $0x40] sm:$0xff]
        %5902 = vset.pattern.permute.xlu0 0
        %5903 = vperm.xlu0 %5902, %v5892
        %v5904 = vpop.permute.xlu0 %5903
        %5907 = vset.pattern.permute.xlu0 0
        %5908 = vperm.xlu0 %5907, %v5893
        %v5909 = vpop.permute.xlu0 %5908
        %5912 = vset.pattern.permute.xlu0 0
        %5913 = vperm.xlu0 %5912, %v5894
        %v5914 = vpop.permute.xlu0 %5913
        %5917 = vset.pattern.permute.xlu0 0
        %5918 = vperm.xlu0 %5917, %v5895
        %v5919 = vpop.permute.xlu0 %5918
        %5922 = vset.pattern.permute.xlu0 0
        %5923 = vperm.xlu0 %5922, %v5896
        %v5924 = vpop.permute.xlu0 %5923
        %5927 = vset.pattern.permute.xlu0 0
        %5928 = vperm.xlu0 %5927, %v5897
        %v5929 = vpop.permute.xlu0 %5928
        %5932 = vset.pattern.permute.xlu0 0
        %5933 = vperm.xlu0 %5932, %v5898
        %v5934 = vpop.permute.xlu0 %5933
        %5937 = vset.pattern.permute.xlu0 0
        %5938 = vperm.xlu0 %5937, %v5899
        %v5939 = vpop.permute.xlu0 %5938
        %5942 = vset.pattern.permute.xlu0 0
        %5943 = vperm.xlu0 %5942, %v5900
        %v5944 = vpop.permute.xlu0 %5943
        %v5946 = vlaneseq
        %v5947 = vshrl.u32 %v5946, 7
        %v5948 = vsub.s32 0, %v5947
        %v5949 = vrot.slane %v5647, %v5948
        %v5950 = vmul.f32 %v5904, %v5949
        %v5951 = vmul.f32 %v5909, %v5949
        %v5952 = vmul.f32 %v5914, %v5949
        %v5953 = vmul.f32 %v5919, %v5949
        %v5954 = vmul.f32 %v5924, %v5949
        %v5955 = vmul.f32 %v5929, %v5949
        %v5956 = vmul.f32 %v5934, %v5949
        %v5957 = vmul.f32 %v5939, %v5949
        %v5958 = vmul.f32 %v5944, %v5949
        %v5959 = vadd.f32 %v5855, %v5950
        %v5960 = vadd.f32 %v5858, %v5951
        %v5961 = vadd.f32 %v5863, %v5952
        %v5962 = vadd.f32 %v5866, %v5953
        %v5963 = vadd.f32 %v5871, %v5954
        %v5964 = vadd.f32 %v5874, %v5955
        %v5965 = vadd.f32 %v5879, %v5956
        %v5966 = vadd.f32 %v5882, %v5957
        %v5967 = vadd.f32 %v5887, %v5958
        %v5968 = vpack.c.bf16 %v5959, %v5959
        %v5969 = vld [vmem:[#allocation23] sm:$0xff]
        %v5970 = vld [vmem:[#allocation23 + $0x8] sm:$0xff]
        %v5971 = vld [vmem:[#allocation23 + $0x10] sm:$0xff]
        %v5972 = vld [vmem:[#allocation23 + $0x18] sm:$0xff]
        %v5973 = vld [vmem:[#allocation23 + $0x20] sm:$0xff]
        %v5974 = vld [vmem:[#allocation23 + $0x28] sm:$0xff]
        %v5975 = vld [vmem:[#allocation23 + $0x30] sm:$0xff]
        %v5976 = vld [vmem:[#allocation23 + $0x38] sm:$0xff]
        %v5977 = vpack.c.bf16 %v5960, %v5960
        %s5978 = scalar_lea.vmem [#allocation23], 64
        %v5979 = vld [vmem:[%s5978] sm:$0xff]
        %v5980 = vld [vmem:[%s5978 + $0x8] sm:$0xff]
        %v5981 = vld [vmem:[%s5978 + $0x10] sm:$0xff]
        %v5982 = vld [vmem:[%s5978 + $0x18] sm:$0xff]
        %v5983 = vld [vmem:[%s5978 + $0x20] sm:$0xff]
        %v5984 = vld [vmem:[%s5978 + $0x28] sm:$0xff]
        %v5985 = vld [vmem:[%s5978 + $0x30] sm:$0xff]
        %v5986 = vld [vmem:[%s5978 + $0x38] sm:$0xff]
        %v5995 = vunpack.c.l.b16 %v5979
        %v5996 = vunpack.c.h.b16 %v5979
        %v5997 = vunpack.c.l.b16 %v5980
        %v5998 = vunpack.c.h.b16 %v5980
        %v5999 = vunpack.c.l.b16 %v5981
        %v6000 = vunpack.c.h.b16 %v5981
        %v6001 = vunpack.c.l.b16 %v5982
        %v6002 = vunpack.c.h.b16 %v5982
        %v6003 = vunpack.c.l.b16 %v5983
        %v6004 = vunpack.c.h.b16 %v5983
        %v6005 = vunpack.c.l.b16 %v5984
        %v6006 = vunpack.c.h.b16 %v5984
        %v6007 = vunpack.c.l.b16 %v5985
        %v6008 = vunpack.c.h.b16 %v5985
        %v6009 = vunpack.c.l.b16 %v5986
        %v6010 = vunpack.c.h.b16 %v5986
        %v6011 = vpack.c.b16 %v5997, %v5995
        %v6012 = vpack.c.b16 %v5998, %v5996
        %v6013 = vpack.c.b16 %v6001, %v5999
        %v6014 = vpack.c.b16 %v6002, %v6000
        %v6015 = vpack.c.b16 %v6005, %v6003
        %v6016 = vpack.c.b16 %v6006, %v6004
        %v6017 = vpack.c.b16 %v6009, %v6007
        %v6018 = vpack.c.b16 %v6010, %v6008
        %v6028 = vsel %vm2312, %v5977, 0
        %6030 = vmatprep.subr.bf16.mxu0 0
        %6031 = vmatpush1.bf16.msra.mxu0 0
        %6032 = vmatprep.subr.bf16.mxu0 0
        %6033 = vmatpush1.bf16.msra.mxu0 0
        %6034 = vmatprep.subr.bf16.mxu0 0
        %6035 = vmatpush1.bf16.msra.mxu0 0
        %6036 = vmatprep.subr.bf16.mxu0 0
        %6037 = vmatpush1.bf16.msra.mxu0 0
        %6038 = vmatprep.subr.bf16.mxu0 %v6018
        %6039 = vmatpush1.bf16.msra.mxu0 %v6017
        %6040 = vmatprep.subr.bf16.mxu0 %v6016
        %6041 = vmatpush1.bf16.msra.mxu0 %v6015
        %6042 = vmatprep.subr.bf16.mxu0 %v6014
        %6043 = vmatpush1.bf16.msra.mxu0 %v6013
        %6044 = vmatprep.subr.bf16.mxu0 %v6012
        %6045 = vmatpush1.bf16.msra.mxu0 %v6011
        %6046 = vmatprep.subr.bf16.mxu0 0
        %6047 = vmatpush2.bf16.msra.mxu0 0
        %6048 = vmatprep.subr.bf16.mxu0 0
        %6049 = vmatpush2.bf16.msra.mxu0 0
        %6050 = vmatprep.subr.bf16.mxu0 0
        %6051 = vmatpush2.bf16.msra.mxu0 0
        %6052 = vmatprep.subr.bf16.mxu0 0
        %6053 = vmatpush2.bf16.msra.mxu0 0
        %6054 = vmatprep.subr.bf16.mxu0 0
        %6055 = vmatpush2.bf16.msra.mxu0 0
        %6056 = vmatprep.subr.bf16.mxu0 0
        %6057 = vmatpush2.bf16.msra.mxu0 0
        %6058 = vmatprep.subr.bf16.mxu0 0
        %6059 = vmatpush2.bf16.msra.mxu0 0
        %6060 = vmatprep.subr.bf16.mxu0 0
        %6061 = vmatpush2.bf16.msra.mxu0 0
        %6062 = vmatprep.mubr.bf16.mxu0 0
        %6063 = vmatmul.mubr.bf16.gmra.mxu0 %v6028
        %v6064 = vpop.f32.mrf.mxu0
        %v6065 = vadd.f32 0.0, %v6064
        %v6066 = vpop.f32.mrf.mxu0
        %v6067 = vadd.f32 0.0, %v6066
        %v6068 = vpop.f32.mrf.mxu0
        %v6069 = vpop.f32.mrf.mxu0
        %6070 = vdwg.mxu0
        %v6079 = vunpack.c.l.b16 %v5969
        %v6080 = vunpack.c.h.b16 %v5969
        %v6081 = vunpack.c.l.b16 %v5970
        %v6082 = vunpack.c.h.b16 %v5970
        %v6083 = vunpack.c.l.b16 %v5971
        %v6084 = vunpack.c.h.b16 %v5971
        %v6085 = vunpack.c.l.b16 %v5972
        %v6086 = vunpack.c.h.b16 %v5972
        %v6087 = vunpack.c.l.b16 %v5973
        %v6088 = vunpack.c.h.b16 %v5973
        %v6089 = vunpack.c.l.b16 %v5974
        %v6090 = vunpack.c.h.b16 %v5974
        %v6091 = vunpack.c.l.b16 %v5975
        %v6092 = vunpack.c.h.b16 %v5975
        %v6093 = vunpack.c.l.b16 %v5976
        %v6094 = vunpack.c.h.b16 %v5976
        %v6095 = vpack.c.b16 %v6081, %v6079
        %v6096 = vpack.c.b16 %v6082, %v6080
        %v6097 = vpack.c.b16 %v6085, %v6083
        %v6098 = vpack.c.b16 %v6086, %v6084
        %v6099 = vpack.c.b16 %v6089, %v6087
        %v6100 = vpack.c.b16 %v6090, %v6088
        %v6101 = vpack.c.b16 %v6093, %v6091
        %v6102 = vpack.c.b16 %v6094, %v6092
        %v6112 = vsel %vm2312, %v5968, 0
        %6114 = vmatprep.subr.bf16.mxu0 0
        %6115 = vmatpush1.bf16.msra.mxu0 0
        %6116 = vmatprep.subr.bf16.mxu0 0
        %6117 = vmatpush1.bf16.msra.mxu0 0
        %6118 = vmatprep.subr.bf16.mxu0 0
        %6119 = vmatpush1.bf16.msra.mxu0 0
        %6120 = vmatprep.subr.bf16.mxu0 0
        %6121 = vmatpush1.bf16.msra.mxu0 0
        %6122 = vmatprep.subr.bf16.mxu0 %v6102
        %6123 = vmatpush1.bf16.msra.mxu0 %v6101
        %6124 = vmatprep.subr.bf16.mxu0 %v6100
        %6125 = vmatpush1.bf16.msra.mxu0 %v6099
        %6126 = vmatprep.subr.bf16.mxu0 %v6098
        %6127 = vmatpush1.bf16.msra.mxu0 %v6097
        %6128 = vmatprep.subr.bf16.mxu0 %v6096
        %6129 = vmatpush1.bf16.msra.mxu0 %v6095
        %6130 = vmatprep.subr.bf16.mxu0 0
        %6131 = vmatpush2.bf16.msra.mxu0 0
        %6132 = vmatprep.subr.bf16.mxu0 0
        %6133 = vmatpush2.bf16.msra.mxu0 0
        %6134 = vmatprep.subr.bf16.mxu0 0
        %6135 = vmatpush2.bf16.msra.mxu0 0
        %6136 = vmatprep.subr.bf16.mxu0 0
        %6137 = vmatpush2.bf16.msra.mxu0 0
        %6138 = vmatprep.subr.bf16.mxu0 0
        %6139 = vmatpush2.bf16.msra.mxu0 0
        %6140 = vmatprep.subr.bf16.mxu0 0
        %6141 = vmatpush2.bf16.msra.mxu0 0
        %6142 = vmatprep.subr.bf16.mxu0 0
        %6143 = vmatpush2.bf16.msra.mxu0 0
        %6144 = vmatprep.subr.bf16.mxu0 0
        %6145 = vmatpush2.bf16.msra.mxu0 0
        %6146 = vmatprep.mubr.bf16.mxu0 0
        %6147 = vmatmul.mubr.bf16.gmra.mxu0 %v6112
        %v6148 = vpop.f32.mrf.mxu0
        %v6149 = vadd.f32 %v6065, %v6148
        %v6150 = vpop.f32.mrf.mxu0
        %v6151 = vadd.f32 %v6067, %v6150
        %v6152 = vpop.f32.mrf.mxu0
        %v6153 = vpop.f32.mrf.mxu0
        %6154 = vdwg.mxu0
        %v6155 = vpack.c.bf16 %v5961, %v5961
        %s6156 = scalar_lea.vmem [#allocation23], 128
        %v6157 = vld [vmem:[%s6156] sm:$0xff]
        %v6158 = vld [vmem:[%s6156 + $0x8] sm:$0xff]
        %v6159 = vld [vmem:[%s6156 + $0x10] sm:$0xff]
        %v6160 = vld [vmem:[%s6156 + $0x18] sm:$0xff]
        %v6161 = vld [vmem:[%s6156 + $0x20] sm:$0xff]
        %v6162 = vld [vmem:[%s6156 + $0x28] sm:$0xff]
        %v6163 = vld [vmem:[%s6156 + $0x30] sm:$0xff]
        %v6164 = vld [vmem:[%s6156 + $0x38] sm:$0xff]
        %v6173 = vunpack.c.l.b16 %v6157
        %v6174 = vunpack.c.h.b16 %v6157
        %v6175 = vunpack.c.l.b16 %v6158
        %v6176 = vunpack.c.h.b16 %v6158
        %v6177 = vunpack.c.l.b16 %v6159
        %v6178 = vunpack.c.h.b16 %v6159
        %v6179 = vunpack.c.l.b16 %v6160
        %v6180 = vunpack.c.h.b16 %v6160
        %v6181 = vunpack.c.l.b16 %v6161
        %v6182 = vunpack.c.h.b16 %v6161
        %v6183 = vunpack.c.l.b16 %v6162
        %v6184 = vunpack.c.h.b16 %v6162
        %v6185 = vunpack.c.l.b16 %v6163
        %v6186 = vunpack.c.h.b16 %v6163
        %v6187 = vunpack.c.l.b16 %v6164
        %v6188 = vunpack.c.h.b16 %v6164
        %v6189 = vpack.c.b16 %v6175, %v6173
        %v6190 = vpack.c.b16 %v6176, %v6174
        %v6191 = vpack.c.b16 %v6179, %v6177
        %v6192 = vpack.c.b16 %v6180, %v6178
        %v6193 = vpack.c.b16 %v6183, %v6181
        %v6194 = vpack.c.b16 %v6184, %v6182
        %v6195 = vpack.c.b16 %v6187, %v6185
        %v6196 = vpack.c.b16 %v6188, %v6186
        %v6206 = vsel %vm2312, %v6155, 0
        %6208 = vmatprep.subr.bf16.mxu0 0
        %6209 = vmatpush1.bf16.msra.mxu0 0
        %6210 = vmatprep.subr.bf16.mxu0 0
        %6211 = vmatpush1.bf16.msra.mxu0 0
        %6212 = vmatprep.subr.bf16.mxu0 0
        %6213 = vmatpush1.bf16.msra.mxu0 0
        %6214 = vmatprep.subr.bf16.mxu0 0
        %6215 = vmatpush1.bf16.msra.mxu0 0
        %6216 = vmatprep.subr.bf16.mxu0 %v6196
        %6217 = vmatpush1.bf16.msra.mxu0 %v6195
        %6218 = vmatprep.subr.bf16.mxu0 %v6194
        %6219 = vmatpush1.bf16.msra.mxu0 %v6193
        %6220 = vmatprep.subr.bf16.mxu0 %v6192
        %6221 = vmatpush1.bf16.msra.mxu0 %v6191
        %6222 = vmatprep.subr.bf16.mxu0 %v6190
        %6223 = vmatpush1.bf16.msra.mxu0 %v6189
        %6224 = vmatprep.subr.bf16.mxu0 0
        %6225 = vmatpush2.bf16.msra.mxu0 0
        %6226 = vmatprep.subr.bf16.mxu0 0
        %6227 = vmatpush2.bf16.msra.mxu0 0
        %6228 = vmatprep.subr.bf16.mxu0 0
        %6229 = vmatpush2.bf16.msra.mxu0 0
        %6230 = vmatprep.subr.bf16.mxu0 0
        %6231 = vmatpush2.bf16.msra.mxu0 0
        %6232 = vmatprep.subr.bf16.mxu0 0
        %6233 = vmatpush2.bf16.msra.mxu0 0
        %6234 = vmatprep.subr.bf16.mxu0 0
        %6235 = vmatpush2.bf16.msra.mxu0 0
        %6236 = vmatprep.subr.bf16.mxu0 0
        %6237 = vmatpush2.bf16.msra.mxu0 0
        %6238 = vmatprep.subr.bf16.mxu0 0
        %6239 = vmatpush2.bf16.msra.mxu0 0
        %6240 = vmatprep.mubr.bf16.mxu0 0
        %6241 = vmatmul.mubr.bf16.gmra.mxu0 %v6206
        %v6242 = vpop.f32.mrf.mxu0
        %v6243 = vadd.f32 0.0, %v6242
        %v6244 = vpop.f32.mrf.mxu0
        %v6245 = vadd.f32 0.0, %v6244
        %v6246 = vpop.f32.mrf.mxu0
        %v6247 = vpop.f32.mrf.mxu0
        %6248 = vdwg.mxu0
        %v6249 = vadd.f32 %v6149, %v6243
        %v6250 = vadd.f32 %v6151, %v6245
        %v6251 = vpack.c.bf16 %v5962, %v5962
        %s6252 = scalar_lea.vmem [#allocation23], 192
        %v6253 = vld [vmem:[%s6252] sm:$0xff]
        %v6254 = vld [vmem:[%s6252 + $0x8] sm:$0xff]
        %v6255 = vld [vmem:[%s6252 + $0x10] sm:$0xff]
        %v6256 = vld [vmem:[%s6252 + $0x18] sm:$0xff]
        %v6257 = vld [vmem:[%s6252 + $0x20] sm:$0xff]
        %v6258 = vld [vmem:[%s6252 + $0x28] sm:$0xff]
        %v6259 = vld [vmem:[%s6252 + $0x30] sm:$0xff]
        %v6260 = vld [vmem:[%s6252 + $0x38] sm:$0xff]
        %v6269 = vunpack.c.l.b16 %v6253
        %v6270 = vunpack.c.h.b16 %v6253
        %v6271 = vunpack.c.l.b16 %v6254
        %v6272 = vunpack.c.h.b16 %v6254
        %v6273 = vunpack.c.l.b16 %v6255
        %v6274 = vunpack.c.h.b16 %v6255
        %v6275 = vunpack.c.l.b16 %v6256
        %v6276 = vunpack.c.h.b16 %v6256
        %v6277 = vunpack.c.l.b16 %v6257
        %v6278 = vunpack.c.h.b16 %v6257
        %v6279 = vunpack.c.l.b16 %v6258
        %v6280 = vunpack.c.h.b16 %v6258
        %v6281 = vunpack.c.l.b16 %v6259
        %v6282 = vunpack.c.h.b16 %v6259
        %v6283 = vunpack.c.l.b16 %v6260
        %v6284 = vunpack.c.h.b16 %v6260
        %v6285 = vpack.c.b16 %v6271, %v6269
        %v6286 = vpack.c.b16 %v6272, %v6270
        %v6287 = vpack.c.b16 %v6275, %v6273
        %v6288 = vpack.c.b16 %v6276, %v6274
        %v6289 = vpack.c.b16 %v6279, %v6277
        %v6290 = vpack.c.b16 %v6280, %v6278
        %v6291 = vpack.c.b16 %v6283, %v6281
        %v6292 = vpack.c.b16 %v6284, %v6282
        %v6302 = vsel %vm2312, %v6251, 0
        %6304 = vmatprep.subr.bf16.mxu0 0
        %6305 = vmatpush1.bf16.msra.mxu0 0
        %6306 = vmatprep.subr.bf16.mxu0 0
        %6307 = vmatpush1.bf16.msra.mxu0 0
        %6308 = vmatprep.subr.bf16.mxu0 0
        %6309 = vmatpush1.bf16.msra.mxu0 0
        %6310 = vmatprep.subr.bf16.mxu0 0
        %6311 = vmatpush1.bf16.msra.mxu0 0
        %6312 = vmatprep.subr.bf16.mxu0 %v6292
        %6313 = vmatpush1.bf16.msra.mxu0 %v6291
        %6314 = vmatprep.subr.bf16.mxu0 %v6290
        %6315 = vmatpush1.bf16.msra.mxu0 %v6289
        %6316 = vmatprep.subr.bf16.mxu0 %v6288
        %6317 = vmatpush1.bf16.msra.mxu0 %v6287
        %6318 = vmatprep.subr.bf16.mxu0 %v6286
        %6319 = vmatpush1.bf16.msra.mxu0 %v6285
        %6320 = vmatprep.subr.bf16.mxu0 0
        %6321 = vmatpush2.bf16.msra.mxu0 0
        %6322 = vmatprep.subr.bf16.mxu0 0
        %6323 = vmatpush2.bf16.msra.mxu0 0
        %6324 = vmatprep.subr.bf16.mxu0 0
        %6325 = vmatpush2.bf16.msra.mxu0 0
        %6326 = vmatprep.subr.bf16.mxu0 0
        %6327 = vmatpush2.bf16.msra.mxu0 0
        %6328 = vmatprep.subr.bf16.mxu0 0
        %6329 = vmatpush2.bf16.msra.mxu0 0
        %6330 = vmatprep.subr.bf16.mxu0 0
        %6331 = vmatpush2.bf16.msra.mxu0 0
        %6332 = vmatprep.subr.bf16.mxu0 0
        %6333 = vmatpush2.bf16.msra.mxu0 0
        %6334 = vmatprep.subr.bf16.mxu0 0
        %6335 = vmatpush2.bf16.msra.mxu0 0
        %6336 = vmatprep.mubr.bf16.mxu0 0
        %6337 = vmatmul.mubr.bf16.gmra.mxu0 %v6302
        %v6338 = vpop.f32.mrf.mxu0
        %v6339 = vadd.f32 0.0, %v6338
        %v6340 = vpop.f32.mrf.mxu0
        %v6341 = vadd.f32 0.0, %v6340
        %v6342 = vpop.f32.mrf.mxu0
        %v6343 = vpop.f32.mrf.mxu0
        %6344 = vdwg.mxu0
        %v6345 = vadd.f32 %v6249, %v6339
        %v6346 = vadd.f32 %v6250, %v6341
        %v6347 = vpack.c.bf16 %v5963, %v5963
        %s6348 = scalar_lea.vmem [#allocation23], 256
        %v6349 = vld [vmem:[%s6348] sm:$0xff]
        %v6350 = vld [vmem:[%s6348 + $0x8] sm:$0xff]
        %v6351 = vld [vmem:[%s6348 + $0x10] sm:$0xff]
        %v6352 = vld [vmem:[%s6348 + $0x18] sm:$0xff]
        %v6353 = vld [vmem:[%s6348 + $0x20] sm:$0xff]
        %v6354 = vld [vmem:[%s6348 + $0x28] sm:$0xff]
        %v6355 = vld [vmem:[%s6348 + $0x30] sm:$0xff]
        %v6356 = vld [vmem:[%s6348 + $0x38] sm:$0xff]
        %v6365 = vunpack.c.l.b16 %v6349
        %v6366 = vunpack.c.h.b16 %v6349
        %v6367 = vunpack.c.l.b16 %v6350
        %v6368 = vunpack.c.h.b16 %v6350
        %v6369 = vunpack.c.l.b16 %v6351
        %v6370 = vunpack.c.h.b16 %v6351
        %v6371 = vunpack.c.l.b16 %v6352
        %v6372 = vunpack.c.h.b16 %v6352
        %v6373 = vunpack.c.l.b16 %v6353
        %v6374 = vunpack.c.h.b16 %v6353
        %v6375 = vunpack.c.l.b16 %v6354
        %v6376 = vunpack.c.h.b16 %v6354
        %v6377 = vunpack.c.l.b16 %v6355
        %v6378 = vunpack.c.h.b16 %v6355
        %v6379 = vunpack.c.l.b16 %v6356
        %v6380 = vunpack.c.h.b16 %v6356
        %v6381 = vpack.c.b16 %v6367, %v6365
        %v6382 = vpack.c.b16 %v6368, %v6366
        %v6383 = vpack.c.b16 %v6371, %v6369
        %v6384 = vpack.c.b16 %v6372, %v6370
        %v6385 = vpack.c.b16 %v6375, %v6373
        %v6386 = vpack.c.b16 %v6376, %v6374
        %v6387 = vpack.c.b16 %v6379, %v6377
        %v6388 = vpack.c.b16 %v6380, %v6378
        %v6398 = vsel %vm2312, %v6347, 0
        %6400 = vmatprep.subr.bf16.mxu0 0
        %6401 = vmatpush1.bf16.msra.mxu0 0
        %6402 = vmatprep.subr.bf16.mxu0 0
        %6403 = vmatpush1.bf16.msra.mxu0 0
        %6404 = vmatprep.subr.bf16.mxu0 0
        %6405 = vmatpush1.bf16.msra.mxu0 0
        %6406 = vmatprep.subr.bf16.mxu0 0
        %6407 = vmatpush1.bf16.msra.mxu0 0
        %6408 = vmatprep.subr.bf16.mxu0 %v6388
        %6409 = vmatpush1.bf16.msra.mxu0 %v6387
        %6410 = vmatprep.subr.bf16.mxu0 %v6386
        %6411 = vmatpush1.bf16.msra.mxu0 %v6385
        %6412 = vmatprep.subr.bf16.mxu0 %v6384
        %6413 = vmatpush1.bf16.msra.mxu0 %v6383
        %6414 = vmatprep.subr.bf16.mxu0 %v6382
        %6415 = vmatpush1.bf16.msra.mxu0 %v6381
        %6416 = vmatprep.subr.bf16.mxu0 0
        %6417 = vmatpush2.bf16.msra.mxu0 0
        %6418 = vmatprep.subr.bf16.mxu0 0
        %6419 = vmatpush2.bf16.msra.mxu0 0
        %6420 = vmatprep.subr.bf16.mxu0 0
        %6421 = vmatpush2.bf16.msra.mxu0 0
        %6422 = vmatprep.subr.bf16.mxu0 0
        %6423 = vmatpush2.bf16.msra.mxu0 0
        %6424 = vmatprep.subr.bf16.mxu0 0
        %6425 = vmatpush2.bf16.msra.mxu0 0
        %6426 = vmatprep.subr.bf16.mxu0 0
        %6427 = vmatpush2.bf16.msra.mxu0 0
        %6428 = vmatprep.subr.bf16.mxu0 0
        %6429 = vmatpush2.bf16.msra.mxu0 0
        %6430 = vmatprep.subr.bf16.mxu0 0
        %6431 = vmatpush2.bf16.msra.mxu0 0
        %6432 = vmatprep.mubr.bf16.mxu0 0
        %6433 = vmatmul.mubr.bf16.gmra.mxu0 %v6398
        %v6434 = vpop.f32.mrf.mxu0
        %v6435 = vadd.f32 0.0, %v6434
        %v6436 = vpop.f32.mrf.mxu0
        %v6437 = vadd.f32 0.0, %v6436
        %v6438 = vpop.f32.mrf.mxu0
        %v6439 = vpop.f32.mrf.mxu0
        %6440 = vdwg.mxu0
        %v6441 = vadd.f32 %v6345, %v6435
        %v6442 = vadd.f32 %v6346, %v6437
        %v6443 = vpack.c.bf16 %v5964, %v5964
        %s6444 = scalar_lea.vmem [#allocation23], 320
        %v6445 = vld [vmem:[%s6444] sm:$0xff]
        %v6446 = vld [vmem:[%s6444 + $0x8] sm:$0xff]
        %v6447 = vld [vmem:[%s6444 + $0x10] sm:$0xff]
        %v6448 = vld [vmem:[%s6444 + $0x18] sm:$0xff]
        %v6449 = vld [vmem:[%s6444 + $0x20] sm:$0xff]
        %v6450 = vld [vmem:[%s6444 + $0x28] sm:$0xff]
        %v6451 = vld [vmem:[%s6444 + $0x30] sm:$0xff]
        %v6452 = vld [vmem:[%s6444 + $0x38] sm:$0xff]
        %v6461 = vunpack.c.l.b16 %v6445
        %v6462 = vunpack.c.h.b16 %v6445
        %v6463 = vunpack.c.l.b16 %v6446
        %v6464 = vunpack.c.h.b16 %v6446
        %v6465 = vunpack.c.l.b16 %v6447
        %v6466 = vunpack.c.h.b16 %v6447
        %v6467 = vunpack.c.l.b16 %v6448
        %v6468 = vunpack.c.h.b16 %v6448
        %v6469 = vunpack.c.l.b16 %v6449
        %v6470 = vunpack.c.h.b16 %v6449
        %v6471 = vunpack.c.l.b16 %v6450
        %v6472 = vunpack.c.h.b16 %v6450
        %v6473 = vunpack.c.l.b16 %v6451
        %v6474 = vunpack.c.h.b16 %v6451
        %v6475 = vunpack.c.l.b16 %v6452
        %v6476 = vunpack.c.h.b16 %v6452
        %v6477 = vpack.c.b16 %v6463, %v6461
        %v6478 = vpack.c.b16 %v6464, %v6462
        %v6479 = vpack.c.b16 %v6467, %v6465
        %v6480 = vpack.c.b16 %v6468, %v6466
        %v6481 = vpack.c.b16 %v6471, %v6469
        %v6482 = vpack.c.b16 %v6472, %v6470
        %v6483 = vpack.c.b16 %v6475, %v6473
        %v6484 = vpack.c.b16 %v6476, %v6474
        %v6494 = vsel %vm2312, %v6443, 0
        %6496 = vmatprep.subr.bf16.mxu0 0
        %6497 = vmatpush1.bf16.msra.mxu0 0
        %6498 = vmatprep.subr.bf16.mxu0 0
        %6499 = vmatpush1.bf16.msra.mxu0 0
        %6500 = vmatprep.subr.bf16.mxu0 0
        %6501 = vmatpush1.bf16.msra.mxu0 0
        %6502 = vmatprep.subr.bf16.mxu0 0
        %6503 = vmatpush1.bf16.msra.mxu0 0
        %6504 = vmatprep.subr.bf16.mxu0 %v6484
        %6505 = vmatpush1.bf16.msra.mxu0 %v6483
        %6506 = vmatprep.subr.bf16.mxu0 %v6482
        %6507 = vmatpush1.bf16.msra.mxu0 %v6481
        %6508 = vmatprep.subr.bf16.mxu0 %v6480
        %6509 = vmatpush1.bf16.msra.mxu0 %v6479
        %6510 = vmatprep.subr.bf16.mxu0 %v6478
        %6511 = vmatpush1.bf16.msra.mxu0 %v6477
        %6512 = vmatprep.subr.bf16.mxu0 0
        %6513 = vmatpush2.bf16.msra.mxu0 0
        %6514 = vmatprep.subr.bf16.mxu0 0
        %6515 = vmatpush2.bf16.msra.mxu0 0
        %6516 = vmatprep.subr.bf16.mxu0 0
        %6517 = vmatpush2.bf16.msra.mxu0 0
        %6518 = vmatprep.subr.bf16.mxu0 0
        %6519 = vmatpush2.bf16.msra.mxu0 0
        %6520 = vmatprep.subr.bf16.mxu0 0
        %6521 = vmatpush2.bf16.msra.mxu0 0
        %6522 = vmatprep.subr.bf16.mxu0 0
        %6523 = vmatpush2.bf16.msra.mxu0 0
        %6524 = vmatprep.subr.bf16.mxu0 0
        %6525 = vmatpush2.bf16.msra.mxu0 0
        %6526 = vmatprep.subr.bf16.mxu0 0
        %6527 = vmatpush2.bf16.msra.mxu0 0
        %6528 = vmatprep.mubr.bf16.mxu0 0
        %6529 = vmatmul.mubr.bf16.gmra.mxu0 %v6494
        %v6530 = vpop.f32.mrf.mxu0
        %v6531 = vadd.f32 0.0, %v6530
        %v6532 = vpop.f32.mrf.mxu0
        %v6533 = vadd.f32 0.0, %v6532
        %v6534 = vpop.f32.mrf.mxu0
        %v6535 = vpop.f32.mrf.mxu0
        %6536 = vdwg.mxu0
        %v6537 = vadd.f32 %v6441, %v6531
        %v6538 = vadd.f32 %v6442, %v6533
        %v6539 = vpack.c.bf16 %v5965, %v5965
        %s6540 = scalar_lea.vmem [#allocation23], 384
        %v6541 = vld [vmem:[%s6540] sm:$0xff]
        %v6542 = vld [vmem:[%s6540 + $0x8] sm:$0xff]
        %v6543 = vld [vmem:[%s6540 + $0x10] sm:$0xff]
        %v6544 = vld [vmem:[%s6540 + $0x18] sm:$0xff]
        %v6545 = vld [vmem:[%s6540 + $0x20] sm:$0xff]
        %v6546 = vld [vmem:[%s6540 + $0x28] sm:$0xff]
        %v6547 = vld [vmem:[%s6540 + $0x30] sm:$0xff]
        %v6548 = vld [vmem:[%s6540 + $0x38] sm:$0xff]
        %v6557 = vunpack.c.l.b16 %v6541
        %v6558 = vunpack.c.h.b16 %v6541
        %v6559 = vunpack.c.l.b16 %v6542
        %v6560 = vunpack.c.h.b16 %v6542
        %v6561 = vunpack.c.l.b16 %v6543
        %v6562 = vunpack.c.h.b16 %v6543
        %v6563 = vunpack.c.l.b16 %v6544
        %v6564 = vunpack.c.h.b16 %v6544
        %v6565 = vunpack.c.l.b16 %v6545
        %v6566 = vunpack.c.h.b16 %v6545
        %v6567 = vunpack.c.l.b16 %v6546
        %v6568 = vunpack.c.h.b16 %v6546
        %v6569 = vunpack.c.l.b16 %v6547
        %v6570 = vunpack.c.h.b16 %v6547
        %v6571 = vunpack.c.l.b16 %v6548
        %v6572 = vunpack.c.h.b16 %v6548
        %v6573 = vpack.c.b16 %v6559, %v6557
        %v6574 = vpack.c.b16 %v6560, %v6558
        %v6575 = vpack.c.b16 %v6563, %v6561
        %v6576 = vpack.c.b16 %v6564, %v6562
        %v6577 = vpack.c.b16 %v6567, %v6565
        %v6578 = vpack.c.b16 %v6568, %v6566
        %v6579 = vpack.c.b16 %v6571, %v6569
        %v6580 = vpack.c.b16 %v6572, %v6570
        %v6590 = vsel %vm2312, %v6539, 0
        %6592 = vmatprep.subr.bf16.mxu0 0
        %6593 = vmatpush1.bf16.msra.mxu0 0
        %6594 = vmatprep.subr.bf16.mxu0 0
        %6595 = vmatpush1.bf16.msra.mxu0 0
        %6596 = vmatprep.subr.bf16.mxu0 0
        %6597 = vmatpush1.bf16.msra.mxu0 0
        %6598 = vmatprep.subr.bf16.mxu0 0
        %6599 = vmatpush1.bf16.msra.mxu0 0
        %6600 = vmatprep.subr.bf16.mxu0 %v6580
        %6601 = vmatpush1.bf16.msra.mxu0 %v6579
        %6602 = vmatprep.subr.bf16.mxu0 %v6578
        %6603 = vmatpush1.bf16.msra.mxu0 %v6577
        %6604 = vmatprep.subr.bf16.mxu0 %v6576
        %6605 = vmatpush1.bf16.msra.mxu0 %v6575
        %6606 = vmatprep.subr.bf16.mxu0 %v6574
        %6607 = vmatpush1.bf16.msra.mxu0 %v6573
        %6608 = vmatprep.subr.bf16.mxu0 0
        %6609 = vmatpush2.bf16.msra.mxu0 0
        %6610 = vmatprep.subr.bf16.mxu0 0
        %6611 = vmatpush2.bf16.msra.mxu0 0
        %6612 = vmatprep.subr.bf16.mxu0 0
        %6613 = vmatpush2.bf16.msra.mxu0 0
        %6614 = vmatprep.subr.bf16.mxu0 0
        %6615 = vmatpush2.bf16.msra.mxu0 0
        %6616 = vmatprep.subr.bf16.mxu0 0
        %6617 = vmatpush2.bf16.msra.mxu0 0
        %6618 = vmatprep.subr.bf16.mxu0 0
        %6619 = vmatpush2.bf16.msra.mxu0 0
        %6620 = vmatprep.subr.bf16.mxu0 0
        %6621 = vmatpush2.bf16.msra.mxu0 0
        %6622 = vmatprep.subr.bf16.mxu0 0
        %6623 = vmatpush2.bf16.msra.mxu0 0
        %6624 = vmatprep.mubr.bf16.mxu0 0
        %6625 = vmatmul.mubr.bf16.gmra.mxu0 %v6590
        %v6626 = vpop.f32.mrf.mxu0
        %v6627 = vadd.f32 0.0, %v6626
        %v6628 = vpop.f32.mrf.mxu0
        %v6629 = vadd.f32 0.0, %v6628
        %v6630 = vpop.f32.mrf.mxu0
        %v6631 = vpop.f32.mrf.mxu0
        %6632 = vdwg.mxu0
        %v6633 = vadd.f32 %v6537, %v6627
        %v6634 = vadd.f32 %v6538, %v6629
        %v6635 = vpack.c.bf16 %v5966, %v5966
        %s6636 = scalar_lea.vmem [#allocation23], 448
        %v6637 = vld [vmem:[%s6636] sm:$0xff]
        %v6638 = vld [vmem:[%s6636 + $0x8] sm:$0xff]
        %v6639 = vld [vmem:[%s6636 + $0x10] sm:$0xff]
        %v6640 = vld [vmem:[%s6636 + $0x18] sm:$0xff]
        %v6641 = vld [vmem:[%s6636 + $0x20] sm:$0xff]
        %v6642 = vld [vmem:[%s6636 + $0x28] sm:$0xff]
        %v6643 = vld [vmem:[%s6636 + $0x30] sm:$0xff]
        %v6644 = vld [vmem:[%s6636 + $0x38] sm:$0xff]
        %v6653 = vunpack.c.l.b16 %v6637
        %v6654 = vunpack.c.h.b16 %v6637
        %v6655 = vunpack.c.l.b16 %v6638
        %v6656 = vunpack.c.h.b16 %v6638
        %v6657 = vunpack.c.l.b16 %v6639
        %v6658 = vunpack.c.h.b16 %v6639
        %v6659 = vunpack.c.l.b16 %v6640
        %v6660 = vunpack.c.h.b16 %v6640
        %v6661 = vunpack.c.l.b16 %v6641
        %v6662 = vunpack.c.h.b16 %v6641
        %v6663 = vunpack.c.l.b16 %v6642
        %v6664 = vunpack.c.h.b16 %v6642
        %v6665 = vunpack.c.l.b16 %v6643
        %v6666 = vunpack.c.h.b16 %v6643
        %v6667 = vunpack.c.l.b16 %v6644
        %v6668 = vunpack.c.h.b16 %v6644
        %v6669 = vpack.c.b16 %v6655, %v6653
        %v6670 = vpack.c.b16 %v6656, %v6654
        %v6671 = vpack.c.b16 %v6659, %v6657
        %v6672 = vpack.c.b16 %v6660, %v6658
        %v6673 = vpack.c.b16 %v6663, %v6661
        %v6674 = vpack.c.b16 %v6664, %v6662
        %v6675 = vpack.c.b16 %v6667, %v6665
        %v6676 = vpack.c.b16 %v6668, %v6666
        %v6686 = vsel %vm2312, %v6635, 0
        %6688 = vmatprep.subr.bf16.mxu0 0
        %6689 = vmatpush1.bf16.msra.mxu0 0
        %6690 = vmatprep.subr.bf16.mxu0 0
        %6691 = vmatpush1.bf16.msra.mxu0 0
        %6692 = vmatprep.subr.bf16.mxu0 0
        %6693 = vmatpush1.bf16.msra.mxu0 0
        %6694 = vmatprep.subr.bf16.mxu0 0
        %6695 = vmatpush1.bf16.msra.mxu0 0
        %6696 = vmatprep.subr.bf16.mxu0 %v6676
        %6697 = vmatpush1.bf16.msra.mxu0 %v6675
        %6698 = vmatprep.subr.bf16.mxu0 %v6674
        %6699 = vmatpush1.bf16.msra.mxu0 %v6673
        %6700 = vmatprep.subr.bf16.mxu0 %v6672
        %6701 = vmatpush1.bf16.msra.mxu0 %v6671
        %6702 = vmatprep.subr.bf16.mxu0 %v6670
        %6703 = vmatpush1.bf16.msra.mxu0 %v6669
        %6704 = vmatprep.subr.bf16.mxu0 0
        %6705 = vmatpush2.bf16.msra.mxu0 0
        %6706 = vmatprep.subr.bf16.mxu0 0
        %6707 = vmatpush2.bf16.msra.mxu0 0
        %6708 = vmatprep.subr.bf16.mxu0 0
        %6709 = vmatpush2.bf16.msra.mxu0 0
        %6710 = vmatprep.subr.bf16.mxu0 0
        %6711 = vmatpush2.bf16.msra.mxu0 0
        %6712 = vmatprep.subr.bf16.mxu0 0
        %6713 = vmatpush2.bf16.msra.mxu0 0
        %6714 = vmatprep.subr.bf16.mxu0 0
        %6715 = vmatpush2.bf16.msra.mxu0 0
        %6716 = vmatprep.subr.bf16.mxu0 0
        %6717 = vmatpush2.bf16.msra.mxu0 0
        %6718 = vmatprep.subr.bf16.mxu0 0
        %6719 = vmatpush2.bf16.msra.mxu0 0
        %6720 = vmatprep.mubr.bf16.mxu0 0
        %6721 = vmatmul.mubr.bf16.gmra.mxu0 %v6686
        %v6722 = vpop.f32.mrf.mxu0
        %v6723 = vadd.f32 0.0, %v6722
        %v6724 = vpop.f32.mrf.mxu0
        %v6725 = vadd.f32 0.0, %v6724
        %v6726 = vpop.f32.mrf.mxu0
        %v6727 = vpop.f32.mrf.mxu0
        %6728 = vdwg.mxu0
        %v6729 = vadd.f32 %v6633, %v6723
        %v6730 = vadd.f32 %v6634, %v6725
        %v6731 = vpack.c.bf16 %v5967, %v5967
        %s6732 = scalar_lea.vmem [#allocation23], 512
        %v6733 = vld [vmem:[%s6732] sm:$0xff]
        %v6734 = vld [vmem:[%s6732 + $0x8] sm:$0xff]
        %v6735 = vld [vmem:[%s6732 + $0x10] sm:$0xff]
        %v6736 = vld [vmem:[%s6732 + $0x18] sm:$0xff]
        %v6737 = vld [vmem:[%s6732 + $0x20] sm:$0xff]
        %v6738 = vld [vmem:[%s6732 + $0x28] sm:$0xff]
        %v6739 = vld [vmem:[%s6732 + $0x30] sm:$0xff]
        %v6740 = vld [vmem:[%s6732 + $0x38] sm:$0xff]
        %v6749 = vunpack.c.l.b16 %v6733
        %v6750 = vunpack.c.h.b16 %v6733
        %v6751 = vunpack.c.l.b16 %v6734
        %v6752 = vunpack.c.h.b16 %v6734
        %v6753 = vunpack.c.l.b16 %v6735
        %v6754 = vunpack.c.h.b16 %v6735
        %v6755 = vunpack.c.l.b16 %v6736
        %v6756 = vunpack.c.h.b16 %v6736
        %v6757 = vunpack.c.l.b16 %v6737
        %v6758 = vunpack.c.h.b16 %v6737
        %v6759 = vunpack.c.l.b16 %v6738
        %v6760 = vunpack.c.h.b16 %v6738
        %v6761 = vunpack.c.l.b16 %v6739
        %v6762 = vunpack.c.h.b16 %v6739
        %v6763 = vunpack.c.l.b16 %v6740
        %v6764 = vunpack.c.h.b16 %v6740
        %v6765 = vpack.c.b16 %v6751, %v6749
        %v6766 = vpack.c.b16 %v6752, %v6750
        %v6767 = vpack.c.b16 %v6755, %v6753
        %v6768 = vpack.c.b16 %v6756, %v6754
        %v6769 = vpack.c.b16 %v6759, %v6757
        %v6770 = vpack.c.b16 %v6760, %v6758
        %v6771 = vpack.c.b16 %v6763, %v6761
        %v6772 = vpack.c.b16 %v6764, %v6762
        %v6782 = vsel %vm2312, %v6731, 0
        %6784 = vmatprep.subr.bf16.mxu0 0
        %6785 = vmatpush1.bf16.msra.mxu0 0
        %6786 = vmatprep.subr.bf16.mxu0 0
        %6787 = vmatpush1.bf16.msra.mxu0 0
        %6788 = vmatprep.subr.bf16.mxu0 0
        %6789 = vmatpush1.bf16.msra.mxu0 0
        %6790 = vmatprep.subr.bf16.mxu0 0
        %6791 = vmatpush1.bf16.msra.mxu0 0
        %6792 = vmatprep.subr.bf16.mxu0 %v6772
        %6793 = vmatpush1.bf16.msra.mxu0 %v6771
        %6794 = vmatprep.subr.bf16.mxu0 %v6770
        %6795 = vmatpush1.bf16.msra.mxu0 %v6769
        %6796 = vmatprep.subr.bf16.mxu0 %v6768
        %6797 = vmatpush1.bf16.msra.mxu0 %v6767
        %6798 = vmatprep.subr.bf16.mxu0 %v6766
        %6799 = vmatpush1.bf16.msra.mxu0 %v6765
        %6800 = vmatprep.subr.bf16.mxu0 0
        %6801 = vmatpush2.bf16.msra.mxu0 0
        %6802 = vmatprep.subr.bf16.mxu0 0
        %6803 = vmatpush2.bf16.msra.mxu0 0
        %6804 = vmatprep.subr.bf16.mxu0 0
        %6805 = vmatpush2.bf16.msra.mxu0 0
        %6806 = vmatprep.subr.bf16.mxu0 0
        %6807 = vmatpush2.bf16.msra.mxu0 0
        %6808 = vmatprep.subr.bf16.mxu0 0
        %6809 = vmatpush2.bf16.msra.mxu0 0
        %6810 = vmatprep.subr.bf16.mxu0 0
        %6811 = vmatpush2.bf16.msra.mxu0 0
        %6812 = vmatprep.subr.bf16.mxu0 0
        %6813 = vmatpush2.bf16.msra.mxu0 0
        %6814 = vmatprep.subr.bf16.mxu0 0
        %6815 = vmatpush2.bf16.msra.mxu0 0
        %6816 = vmatprep.mubr.bf16.mxu0 0
        %6817 = vmatmul.mubr.bf16.gmra.mxu0 %v6782
        %v6818 = vpop.f32.mrf.mxu0
        %v6819 = vadd.f32 0.0, %v6818
        %v6820 = vpop.f32.mrf.mxu0
        %v6821 = vadd.f32 0.0, %v6820
        %v6822 = vpop.f32.mrf.mxu0
        %v6823 = vpop.f32.mrf.mxu0
        %6824 = vdwg.mxu0
        %v6825 = vadd.f32 %v6729, %v6819
        %v6826 = vadd.f32 %v6730, %v6821
        %v6827 = vld [vmem:[#allocation24] sm:$0xff]
        %6829 = vset.pattern.permute.xlu0 0
        %6830 = vperm.xlu0 %6829, %v6827
        %v6831 = vpop.permute.xlu0 %6830
        %v6833 = vadd.f32 %v6825, %v6831
        %v6834 = vadd.f32 %v6826, %v6831
        %v6835 = vmax.f32 %v6833, 0.0
        %v6836 = vmax.f32 %v6834, 0.0
        %v6837 = vpack.c.bf16 %v6835, %v6835
        %v6838 = vpack.c.bf16 %v6836, %v6836
        %v6839 = vld [vmem:[#allocation32] sm:$0x1]
        %v6840 = vld [vmem:[#allocation3] sm:$0x1]
        %6842 = vset.pattern.permute.xlu0 0
        %6843 = vperm.xlu0 %6842, %v6840
        %v6844 = vpop.permute.xlu0 %6843
        %v6846 = vlaneseq
        %v6847 = vshrl.u32 %v6846, 7
        %v6848 = vsub.s32 0, %v6847
        %v6849 = vrot.slane %v6844, %v6848
        %vm6850 = vcmask 64512
        %v6852 = vsel %vm6850, %v6839, 0
        %vm6854 = vcmask 1043456
        %v6856 = vsel %vm6854, %v6837, 0
        %v6859 = vsel %vm6854, %v6838, 0
        %6861 = vmatprep.subr.bf16.mxu0 0
        %6862 = vmatpush1.bf16.msra.mxu0 0
        %6863 = vmatprep.subr.bf16.mxu0 0
        %6864 = vmatpush1.bf16.msra.mxu0 0
        %6865 = vmatprep.subr.bf16.mxu0 0
        %6866 = vmatpush1.bf16.msra.mxu0 0
        %6867 = vmatprep.subr.bf16.mxu0 0
        %6868 = vmatpush1.bf16.msra.mxu0 0
        %6869 = vmatprep.subr.bf16.mxu0 0
        %6870 = vmatpush1.bf16.msra.mxu0 0
        %6871 = vmatprep.subr.bf16.mxu0 0
        %6872 = vmatpush1.bf16.msra.mxu0 0
        %6873 = vmatprep.subr.bf16.mxu0 0
        %6874 = vmatpush1.bf16.msra.mxu0 0
        %6875 = vmatprep.subr.bf16.mxu0 %v6859
        %6876 = vmatpush1.bf16.msra.mxu0 %v6856
        %6877 = vmatprep.subr.bf16.mxu0 0
        %6878 = vmatpush2.bf16.msra.mxu0 0
        %6879 = vmatprep.subr.bf16.mxu0 0
        %6880 = vmatpush2.bf16.msra.mxu0 0
        %6881 = vmatprep.subr.bf16.mxu0 0
        %6882 = vmatpush2.bf16.msra.mxu0 0
        %6883 = vmatprep.subr.bf16.mxu0 0
        %6884 = vmatpush2.bf16.msra.mxu0 0
        %6885 = vmatprep.subr.bf16.mxu0 0
        %6886 = vmatpush2.bf16.msra.mxu0 0
        %6887 = vmatprep.subr.bf16.mxu0 0
        %6888 = vmatpush2.bf16.msra.mxu0 0
        %6889 = vmatprep.subr.bf16.mxu0 0
        %6890 = vmatpush2.bf16.msra.mxu0 0
        %6891 = vmatprep.subr.bf16.mxu0 0
        %6892 = vmatpush2.bf16.msra.mxu0 0
        %6893 = vmatprep.mubr.bf16.mxu0 0
        %6894 = vmatmul.mubr.bf16.gmra.mxu0 %v6852
        %v6895 = vpop.f32.mrf.mxu0
        %v6896 = vadd.f32 %v6849, %v6895
        %v6897 = vpop.f32.mrf.mxu0
        %v6898 = vadd.f32 %v6849, %v6897
        %v6899 = vpop.f32.mrf.mxu0
        %v6900 = vpop.f32.mrf.mxu0
        %6901 = vdwg.mxu0
        %v6904 = vcombine.low %v6896, %v6898
        %v6906 = vunpack.c.l.s4 1966171168
        %v6907 = vunpack.c.0.s8 %v6906
        %v6908 = vlaneseq
        %v6909 = vshrl.u32 %v6908, 7
        %v6910 = vsub.s32 %v6907, %v6909
        %v6911 = vrot.slane %v6904, %v6910
        %v6913 = vunpack.c.l.s4 1966171168
        %v6914 = vunpack.c.0.s8 %v6913
        %v6915 = vlaneseq
        %v6916 = vshrl.u32 %v6915, 7
        %v6917 = vsub.s32 %v6914, %v6916
        %v6918 = vrot.slane %v6911, %v6917
        %v6920 = vlaneseq
        %vm6921 = vcmp.ge.s32.totalorder %v6920, 0
        %vm6922 = vcmp.lt.s32.totalorder %v6920, 256
        %vm6923 = vmand %vm6921, %vm6922
        %6924 = vst.msk [vmem:[%s1072] sm:$0x3] %vm6923, %v6918
        %p6925 = scmp.lt.s32.totalorder %s52, 1
        %s6926 = scalar_select %p6925, %s52, 1
        %s6927 = scalar_lea.vmem %s25, %s6926
        %p6928 = scmp.lt.s32.totalorder %s52, 1
        %s6929 = scalar_select %p6928, %s52, 1
        %s6930 = smul.addr %s6929, 2
        %s6931 = scalar_lea.vmem %s26, %s6930
        // Predicated region
        $region197: #{forward.1} parent=119 // pred_check
          %p6932 = pneg %p600
        $region198: #{forward.1} parent=119 // pred_check_branch
          %6934 = sbr.rel (%p6932) target = $region200
        $region199: #{forward.1} parent=119 // pred_region
          _
        $region200: #{forward.1} parent=119 // pred_fallthru
          _
        // Predicated region
        $region201: #{forward.1} parent=119 // pred_check
          %p6935 = pneg %p626
        $region202: #{forward.1} parent=119 // pred_check_branch
          %6937 = sbr.rel (%p6935) target = $region204
        $region203: #{forward.1} parent=119 // pred_region
          _
        $region204: #{forward.1} parent=119 // pred_fallthru
          _
      $region120: #{forward.1} parent=5 // pred_fallthru
        _
      %p6938 = scmp.le.s32.totalorder 2, %s47
      // Predicated region
      $region205: #{forward.1} parent=5 // pred_check
        %p6939 = pneg %p6938
      $region206: #{forward.1} parent=5 // pred_check_branch
        %6941 = sbr.rel (%p6939) target = $region208
      $region207: #{forward.1} parent=5 // pred_region
        %s6942 = ssub.s32 %s47, 2
        // Predicated region
        $region209: #{forward.1} parent=207 // pred_check
          %p6943 = pneg %p606
        $region210: #{forward.1} parent=207 // pred_check_branch
          %6945 = sbr.rel (%p6943) target = $region212
        $region211: #{forward.1} parent=207 // pred_region
          %p6946 = scmp.lt.s32.totalorder %s53, 1
          %s6947 = scalar_select %p6946, %s53, 1
          %s6948 = scalar_lea.vmem %s25, %s6947
        $region212: #{forward.1} parent=207 // pred_fallthru
          _
        // Predicated region
        $region213: #{forward.1} parent=207 // pred_check
          %p6949 = pneg %p632
        $region214: #{forward.1} parent=207 // pred_check_branch
          %6951 = sbr.rel (%p6949) target = $region216
        $region215: #{forward.1} parent=207 // pred_region
          %p6952 = scmp.lt.s32.totalorder %s53, 1
          %s6953 = scalar_select %p6952, %s53, 1
          %s6954 = smul.addr %s6953, 2
          %s6955 = scalar_lea.vmem %s26, %s6954
        $region216: #{forward.1} parent=207 // pred_fallthru
          _
      $region208: #{forward.1} parent=5 // pred_fallthru
        _
    $region6: #{forward.1} parent=1 // loop_footer
      %s51 = sadd.s32 1, %s47
    $region7: #{forward.1} parent=1 // loop_footer_branch
      %46 = sbr.rel target = $region3
    $region8: #{forward.1} parent=1 // loop_exit
      _
    %6956 = vsyncpa [#allocation5], 1
    %s6957 = scalar_lea.sflag [#allocation5], 1
    %6958 = vsyncpa %s6957, 1
    %6959 = vsyncpa [#allocation7], 1
    %6960 = vsyncpa [#allocation10], 1
    %6961 = vsyncpa [#allocation13], 1
    %6962 = vsyncpa [#allocation16], 1
    %6963 = vsyncpa [#allocation19], 1
    %6964 = vsyncpa [#allocation22], 1
    %6965 = vsyncpa [#allocation25], 1
    %6966 = vsyncpa [#allocation28], 1
    %6967 = vsyncpa [#allocation31], 1

</llo_original>
